<compile_context>
chip_gen: v7x
topology: tpu7x:2x2x1
jax: 0.10.0
libtpu: 0.0.40
codegen_flags: <defaults>
</compile_context>

<pallas_src>
import functools

import jax
import jax.numpy as jnp
from jax.experimental import pallas as pl
from jax.experimental.pallas import tpu as pltpu

# ---------------- small synthetic configuration (shapes consistent with the module) -------------
B = 2                      # batch
IN_CH = 3                  # image channels
IMG = 16                   # image size (224/384 in real model)
PATCH = 8                  # patch size (16 in real model)
DV = 32                    # vision_width (768 in real model)
VIT_HEADS = 4
VIT_DEPTH = 2              # 12 in real model
HID = 32                   # decoder hidden size (768 in real model)
NUM_HEADS = 4
NUM_LAYERS = 2             # 12 in real model
INTER = 64                 # intermediate size (3072 in real model)
VOCAB = 64                 # 30524 in real model
MAX_POS = 40
SEQ = 8                    # tokenized caption length (<= 40)
ENC_WIDTH = DV             # med_config.encoder_width = vision_width
PAD_ID = 0
BOS_ID = 1
PROMPT_LEN = 3             # len(tokenizer(prompt).input_ids) - 1
LABEL_SMOOTH = 0.1         # BLIP med.py BertLMHeadModel uses CrossEntropyLoss(label_smoothing=0.1)
IGNORE_INDEX = -100

ROW_TILE_CAP = 256         # MXU-friendly row tile (multiple of 8)
LANE_TILE_CAP = 512        # lane tile cap for N / K when tiled (multiple of 128)

_TANH_C = 0.7978845608028654  # sqrt(2/pi)


def _gelu(x):
    # TODO(synk): PyTorch nn.GELU / HF "gelu" use the exact erf form; tanh approximation is used
    # here for a Mosaic-safe transcendental path (EUP).
    return 0.5 * x * (1.0 + jnp.tanh(_TANH_C * (x + 0.044715 * x * x * x)))


def _bf16(x):
    return x if x.dtype == jnp.bfloat16 else x.astype(jnp.bfloat16)


def _round_up(x, m):
    return ((x + m - 1) // m) * m


def _row_tiling(m, cap=ROW_TILE_CAP):
    """Sublane-dim tiling: pad rows to a multiple of 8 and tile with <= cap rows."""
    mp = _round_up(m, 8)
    if mp <= cap:
        return mp, mp
    return cap, _round_up(m, cap)


def _lane_tiling(n, cap, align=False):
    """Lane-dim tiling: keep the full dim when it fits `cap` (full-dim blocks are legal),
    otherwise pad to a multiple of 128 and tile with the largest 128-multiple <= cap."""
    if n <= cap and not align:
        return n, n
    npad = _round_up(n, 128)
    if npad <= cap:
        return npad, npad
    for t in range(cap, 127, -128):
        if npad % t == 0:
            return t, npad
    return 128, npad


def _q_tiling(t, cap=ROW_TILE_CAP):
    """Query-tile for attention: full dim if small, else pad to a multiple of cap."""
    if t <= cap:
        return t, t
    return cap, _round_up(t, cap)


def _pad2d(x, rows, cols):
    r, c = x.shape
    if r == rows and c == cols:
        return x
    return jnp.pad(x, ((0, rows - r), (0, cols - c)))


def _vmem_limit_bytes():
    # Generation-aware scoped-VMEM budget: ~3/4 of physical VMEM (v5e/v6e 128 MiB -> 96 MiB,
    # v7x 64 MiB -> 48 MiB), well above the 16/32 MiB defaults so large lane-dense tiles and
    # double-buffering fit without silently shrinking the pipeline.
    try:
        phys = pltpu.get_tpu_info().vmem_capacity_bytes
    except Exception:
        phys = 64 * 1024 * 1024
    return min((phys * 3) // 4, 100 * 1024 * 1024)


VMEM_LIMIT = _vmem_limit_bytes()


# ---------------------------------- Pallas kernels ----------------------------------------------
# Kernel A: tiled matmul, grid (M, N, K) tiles, f32 accumulator, optional bias+GELU+residual.
def _matmul_kernel(x_ref, w_ref, b_ref, *rest, activation, has_residual):
    if has_residual:
        res_ref, o_ref, acc_ref = rest
    else:
        o_ref, acc_ref = rest
        res_ref = None

    @pl.when(pl.program_id(2) == 0)
    def _():
        acc_ref[...] = jnp.zeros_like(acc_ref)

    acc_ref[...] += jnp.dot(_bf16(x_ref[...]), _bf16(w_ref[...]),
                            preferred_element_type=jnp.float32)

    @pl.when(pl.program_id(2) == pl.num_programs(2) - 1)
    def _():
        y = acc_ref[...] + b_ref[...]
        if activation == "gelu":
            y = _gelu(y)
        if has_residual:
            y = y + res_ref[...]
        o_ref[...] = y.astype(o_ref.dtype)


def linear(x, w, b, activation=None, residual=None, out_dtype=jnp.float32):
    m, k = x.shape
    n = w.shape[1]
    tm, mp = _row_tiling(m)
    tn, npad = _lane_tiling(n, LANE_TILE_CAP)
    tk, kp = _lane_tiling(k, LANE_TILE_CAP)
    xp = _pad2d(x, mp, kp)
    wp = _pad2d(w, kp, npad)
    bp = _pad2d(b.reshape(1, n).astype(jnp.float32), 1, npad)
    in_specs = [
        pl.BlockSpec((tm, tk), lambda i, j, kk: (i, kk)),
        pl.BlockSpec((tk, tn), lambda i, j, kk: (kk, j)),
        pl.BlockSpec((1, tn), lambda i, j, kk: (0, j)),
    ]
    inputs = [xp, wp, bp]
    if residual is not None:
        in_specs.append(pl.BlockSpec((tm, tn), lambda i, j, kk: (i, j)))
        inputs.append(_pad2d(residual, mp, npad))
    out = pl.pallas_call(
        functools.partial(_matmul_kernel, activation=activation,
                          has_residual=residual is not None),
        grid=(mp // tm, npad // tn, kp // tk),
        in_specs=in_specs,
        out_specs=pl.BlockSpec((tm, tn), lambda i, j, kk: (i, j)),
        out_shape=jax.ShapeDtypeStruct((mp, npad), out_dtype),
        scratch_shapes=[pltpu.VMEM((tm, tn), jnp.float32)],
        compiler_params=pltpu.CompilerParams(
            dimension_semantics=("parallel", "parallel", "arbitrary"),
            vmem_limit_bytes=VMEM_LIMIT),
    )(*inputs)
    return out[:m, :n]


# Kernel B: pre-LayerNorm fused into the following matmul (ViT LN1->QKV, LN2->FC1).  The LN'd
# row tile is computed once (at the first N tile) into a bf16 VMEM scratch and reused across
# all N tiles; the LN feature dim K is never padded (statistics must be exact).
def _ln_matmul_kernel(x_ref, g_ref, bln_ref, w_ref, b_ref, o_ref, xn_ref, *, eps, activation):
    @pl.when(pl.program_id(1) == 0)
    def _():
        x = x_ref[...]
        mu = jnp.mean(x, axis=-1, keepdims=True)
        var = jnp.mean(jnp.square(x - mu), axis=-1, keepdims=True)
        xn = (x - mu) * jax.lax.rsqrt(var + eps) * g_ref[...] + bln_ref[...]
        xn_ref[...] = xn.astype(jnp.bfloat16)

    y = jnp.dot(xn_ref[...], _bf16(w_ref[...]),
                preferred_element_type=jnp.float32) + b_ref[...]
    if activation == "gelu":
        y = _gelu(y)
    o_ref[...] = y.astype(o_ref.dtype)


def ln_linear(x, g, bln, w, b, eps, activation=None, out_dtype=jnp.float32):
    m, k = x.shape
    n = w.shape[1]
    tm, mp = _row_tiling(m)
    tn, npad = _lane_tiling(n, LANE_TILE_CAP)
    xp = _pad2d(x, mp, k)
    wp = _pad2d(w, k, npad)
    bp = _pad2d(b.reshape(1, n).astype(jnp.float32), 1, npad)
    out = pl.pallas_call(
        functools.partial(_ln_matmul_kernel, eps=eps, activation=activation),
        grid=(mp // tm, npad // tn),
        in_specs=[
            pl.BlockSpec((tm, k), lambda i, j: (i, 0)),
            pl.BlockSpec((1, k), lambda i, j: (0, 0)),
            pl.BlockSpec((1, k), lambda i, j: (0, 0)),
            pl.BlockSpec((k, tn), lambda i, j: (0, j)),
            pl.BlockSpec((1, tn), lambda i, j: (0, j)),
        ],
        out_specs=pl.BlockSpec((tm, tn), lambda i, j: (i, j)),
        out_shape=jax.ShapeDtypeStruct((mp, npad), out_dtype),
        # N axis is "arbitrary" so the per-row-tile xn scratch is valid across its steps.
        scratch_shapes=[pltpu.VMEM((tm, k), jnp.bfloat16)],
        compiler_params=pltpu.CompilerParams(
            dimension_semantics=("parallel", "arbitrary"),
            vmem_limit_bytes=VMEM_LIMIT),
    )(xp, g.reshape(1, k), bln.reshape(1, k), wp, bp)
    return out[:m, :n]


# Kernel C: matmul (+GELU) (+residual) followed by post-LayerNorm (HF Bert post-LN sublayers,
# LM-head transform).  N is the full hidden dim (needed for the LN); grid over rows, parallel.
def _matmul_post_ln_kernel(x_ref, w_ref, b_ref, *rest, eps, activation, has_residual):
    if has_residual:
        res_ref, g_ref, bln_ref, o_ref = rest
    else:
        g_ref, bln_ref, o_ref = rest
    y = jnp.dot(_bf16(x_ref[...]), _bf16(w_ref[...]),
                preferred_element_type=jnp.float32) + b_ref[...]
    if activation == "gelu":
        y = _gelu(y)
    if has_residual:
        y = y + res_ref[...]
    mu = jnp.mean(y, axis=-1, keepdims=True)
    var = jnp.mean(jnp.square(y - mu), axis=-1, keepdims=True)
    o_ref[...] = ((y - mu) * jax.lax.rsqrt(var + eps) * g_ref[...]
                  + bln_ref[...]).astype(o_ref.dtype)


def linear_post_ln(x, w, b, g, bln, eps, residual=None, activation=None,
                   out_dtype=jnp.float32):
    m, k = x.shape
    n = w.shape[1]                       # LN feature dim: kept whole (never padded/tiled)
    tm, mp = _row_tiling(m)
    xp = _pad2d(x, mp, k)
    in_specs = [
        pl.BlockSpec((tm, k), lambda i: (i, 0)),
        pl.BlockSpec((k, n), lambda i: (0, 0)),
        pl.BlockSpec((1, n), lambda i: (0, 0)),
    ]
    inputs = [xp, w, b.reshape(1, n).astype(jnp.float32)]
    if residual is not None:
        in_specs.append(pl.BlockSpec((tm, n), lambda i: (i, 0)))
        inputs.append(_pad2d(residual, mp, n))
    in_specs += [pl.BlockSpec((1, n), lambda i: (0, 0)),
                 pl.BlockSpec((1, n), lambda i: (0, 0))]
    inputs += [g.reshape(1, n), bln.reshape(1, n)]
    out = pl.pallas_call(
        functools.partial(_matmul_post_ln_kernel, eps=eps, activation=activation,
                          has_residual=residual is not None),
        grid=(mp // tm,),
        in_specs=in_specs,
        out_specs=pl.BlockSpec((tm, n), lambda i: (i, 0)),
        out_shape=jax.ShapeDtypeStruct((mp, n), out_dtype),
        compiler_params=pltpu.CompilerParams(
            dimension_semantics=("parallel",), vmem_limit_bytes=VMEM_LIMIT),
    )(*inputs)
    return out[:m]


# Standalone LayerNorm (embedding LN, ViT final norm) -- tiled over rows, parallel grid.
def _layernorm_kernel(x_ref, g_ref, b_ref, o_ref, *, eps):
    x = x_ref[...]
    mu = jnp.mean(x, axis=-1, keepdims=True)
    var = jnp.mean(jnp.square(x - mu), axis=-1, keepdims=True)
    o_ref[...] = (x - mu) * jax.lax.rsqrt(var + eps) * g_ref[...] + b_ref[...]


def layernorm(x, g, b, eps):
    m, d = x.shape
    tm, mp = _row_tiling(m)
    xp = _pad2d(x, mp, d)
    out = pl.pallas_call(
        functools.partial(_layernorm_kernel, eps=eps),
        grid=(mp // tm,),
        in_specs=[pl.BlockSpec((tm, d), lambda i: (i, 0)),
                  pl.BlockSpec((1, d), lambda i: (0, 0)),
                  pl.BlockSpec((1, d), lambda i: (0, 0))],
        out_specs=pl.BlockSpec((tm, d), lambda i: (i, 0)),
        out_shape=jax.ShapeDtypeStruct((mp, d), jnp.float32),
        compiler_params=pltpu.CompilerParams(
            dimension_semantics=("parallel",), vmem_limit_bytes=VMEM_LIMIT),
    )(xp, g.reshape(1, d), b.reshape(1, d))
    return out[:m]


# Fused multi-head attention.  Grid = (batch, query_tile) -- two parallel axes so both
# TensorCores get work even at small batch (v7x megacore).  Q/K/V arrive packed and bf16
# ([B,T,3D] self-attn / [B,T,D]+[B,Tk,2D] cross-attn); the Q view is tiled over query rows,
# the K/V view is the full (padded) key range.  The softmax scale is folded into Q once,
# causal / key-padding / pad-row masks are built in-kernel, and all heads are concatenated
# into ONE full-width lane-dense store per grid step.
def _mha_kernel(*refs, num_heads, scale, causal, has_mask, fused_qkv, kv_real):
    idx = 0
    q_ref = refs[idx]; idx += 1
    kv_ref = refs[idx]; idx += 1
    mask_ref = None
    if has_mask:
        mask_ref = refs[idx]; idx += 1
    o_ref = refs[idx]

    d = q_ref.shape[2] // 3 if fused_qkv else q_ref.shape[2]
    kv_base = d if fused_qkv else 0
    dh = d // num_heads
    tq = q_ref.shape[1]
    tk = kv_ref.shape[1]

    # softmax scale folded into Q once (bf16), not into the f32 [tq,tk] score matrix per head
    q_all = q_ref[0, :, 0:d] * scale
    k_all = kv_ref[0, :, kv_base:kv_base + d]
    v_all = kv_ref[0, :, kv_base + d:kv_base + 2 * d]

    add = None
    col = jax.lax.broadcasted_iota(jnp.int32, (tq, tk), 1)
    if causal:
        row = jax.lax.broadcasted_iota(jnp.int32, (tq, tk), 0) + pl.program_id(1) * tq
        add = jnp.where(col <= row, 0.0, -10000.0)
    if has_mask:
        pad = (1.0 - mask_ref[0]) * -10000.0          # [1, tk] broadcasts over query rows
        add = pad if add is None else add + pad
    if tk > kv_real:                                   # keys created by query-row padding
        kvm = jnp.where(col < kv_real, 0.0, -10000.0)
        add = kvm if add is None else add + kvm

    outs = []
    for h in range(num_heads):
        lo = h * dh
        qh = q_all[:, lo:lo + dh]
        kh = k_all[:, lo:lo + dh]
        vh = v_all[:, lo:lo + dh]
        s = jax.lax.dot_general(_bf16(qh), _bf16(kh), (((1,), (1,)), ((), ())),
                                preferred_element_type=jnp.float32)
        if add is not None:
            s = s + add
        s = s - jnp.max(s, axis=-1, keepdims=True)
        p = jnp.exp(s)
        p = p * pl.reciprocal(jnp.sum(p, axis=-1, keepdims=True), approx=True)
        outs.append(jnp.dot(p.astype(jnp.bfloat16), _bf16(vh),
                            preferred_element_type=jnp.float32))
    # one full-width lane-dense store per step (no per-head masked partial stores)
    o_ref[0, :, :] = jnp.concatenate(outs, axis=-1).astype(o_ref.dtype)


def fused_mha(num_heads, scale, qkv=None, q=None, kv=None, mask=None, causal=False,
              out_dtype=jnp.bfloat16):
    fused_qkv = qkv is not None
    if fused_qkv:
        bsz, t, d3 = qkv.shape
        d = d3 // 3
        tq, tpad = _q_tiling(t)
        src = jnp.pad(qkv, ((0, 0), (0, tpad - t), (0, 0))) if tpad != t else qkv
        q_in, kv_in = src, src
        kv_len, kv_rows = t, tpad
        q_width, kv_width = 3 * d, 3 * d
    else:
        bsz, t, d = q.shape
        tkr = kv.shape[1]
        tq, tpad = _q_tiling(t)
        q_in = jnp.pad(q, ((0, 0), (0, tpad - t), (0, 0))) if tpad != t else q
        kv_in = kv
        kv_len, kv_rows = tkr, tkr
        q_width, kv_width = d, 2 * d
    has_mask = mask is not None
    in_specs = [pl.BlockSpec((1, tq, q_width), lambda b, qt: (b, qt, 0)),
                pl.BlockSpec((1, kv_rows, kv_width), lambda b, qt: (b, 0, 0))]
    inputs = [q_in, kv_in]
    if has_mask:
        mk = mask.reshape(bsz, 1, -1).astype(jnp.float32)
        if mk.shape[-1] < kv_rows:
            mk = jnp.pad(mk, ((0, 0), (0, 0), (0, kv_rows - mk.shape[-1])))
        in_specs.append(pl.BlockSpec((1, 1, kv_rows), lambda b, qt: (b, 0, 0)))
        inputs.append(mk)
    out = pl.pallas_call(
        functools.partial(_mha_kernel, num_heads=num_heads, scale=scale,
                          causal=causal, has_mask=has_mask, fused_qkv=fused_qkv,
                          kv_real=kv_len),
        grid=(bsz, tpad // tq),
        in_specs=in_specs,
        out_specs=pl.BlockSpec((1, tq, d), lambda b, qt: (b, qt, 0)),
        out_shape=jax.ShapeDtypeStruct((bsz, tpad, d), out_dtype),
        compiler_params=pltpu.CompilerParams(
            dimension_semantics=("parallel", "parallel"),
            vmem_limit_bytes=VMEM_LIMIT),
    )(*inputs)
    return out[:, :t, :]


# Fused LM-head matmul + label-smoothed masked cross-entropy.  Vocab is padded to a lane-aligned
# multiple and streamed in tiles (grid axis 1, "arbitrary") with online max / logsumexp /
# target-logit / logit-sum scratch accumulators, so the full [M, V] logits tensor is never
# materialized.  Padded vocab columns are excluded from the max/logsumexp and smoothing sum.
def _lm_ce_kernel(h_ref, w_ref, b_ref, lab_ref, loss_ref, valid_ref,
                  m_run, l_run, s_run, t_run, *, vocab, smoothing, ignore_index):
    j = pl.program_id(1)

    @pl.when(j == 0)
    def _():
        m_run[...] = jnp.full_like(m_run, -1e30)
        l_run[...] = jnp.zeros_like(l_run)
        s_run[...] = jnp.zeros_like(s_run)
        t_run[...] = jnp.zeros_like(t_run)

    logits = jnp.dot(_bf16(h_ref[...]), _bf16(w_ref[...]),
                     preferred_element_type=jnp.float32) + b_ref[...]     # [tm, tv]
    labels = lab_ref[...]                                                 # [tm, 1] int32
    tv = logits.shape[1]
    col = jax.lax.broadcasted_iota(jnp.int32, logits.shape, 1) + j * tv
    in_vocab = col < vocab
    masked = jnp.where(in_vocab, logits, -1e30)
    t_run[...] += jnp.sum(jnp.where(col == labels, logits, 0.0), axis=-1, keepdims=True)
    s_run[...] += jnp.sum(jnp.where(in_vocab, logits, 0.0), axis=-1, keepdims=True)
    m_new = jnp.maximum(m_run[...], jnp.max(masked, axis=-1, keepdims=True))
    l_run[...] = l_run[...] * jnp.exp(m_run[...] - m_new) + \
        jnp.sum(jnp.exp(masked - m_new), axis=-1, keepdims=True)
    m_run[...] = m_new

    @pl.when(j == pl.num_programs(1) - 1)
    def _():
        lse = m_run[...] + jnp.log(l_run[...])
        nll = lse - t_run[...]
        smooth = lse - s_run[...] * (1.0 / vocab)
        per = (1.0 - smoothing) * nll + smoothing * smooth
        valid = (labels != ignore_index).astype(jnp.float32)
        loss_ref[...] = per * valid
        valid_ref[...] = valid


def lm_head_ce_loss(h, w, b, labels, smoothing):
    m, k = h.shape
    vocab = w.shape[1]
    # tm covers the whole (padded) M so the [K, V] weight matrix is streamed from HBM once.
    tm, mp = _row_tiling(m, cap=1024)
    tv, vp = _lane_tiling(vocab, 2048, align=True)
    hp = _pad2d(h, mp, k)
    wp = _pad2d(w, k, vp)
    bp = _pad2d(b.reshape(1, vocab).astype(jnp.float32), 1, vp)
    lab = jnp.full((mp, 1), IGNORE_INDEX, jnp.int32).at[:m, 0].set(labels.astype(jnp.int32))
    w_spec = pl.BlockSpec((k, tv), lambda i, j: (0, j))
    if vp // tv > 2:
        # deeper weight prefetch: the LM head is weight-DMA-bound (esp. v5e / v6e)
        w_spec = pl.BlockSpec((k, tv), lambda i, j: (0, j), pipeline_mode=pl.Buffered(3))
    loss, valid = pl.pallas_call(
        functools.partial(_lm_ce_kernel, vocab=vocab, smoothing=smoothing,
                          ignore_index=IGNORE_INDEX),
        grid=(mp // tm, vp // tv),
        in_specs=[
            pl.BlockSpec((tm, k), lambda i, j: (i, 0)),
            w_spec,
            pl.BlockSpec((1, tv), lambda i, j: (0, j)),
            pl.BlockSpec((tm, 1), lambda i, j: (i, 0)),
        ],
        out_specs=(pl.BlockSpec((tm, 1), lambda i, j: (i, 0)),
                   pl.BlockSpec((tm, 1), lambda i, j: (i, 0))),
        out_shape=(jax.ShapeDtypeStruct((mp, 1), jnp.float32),
                   jax.ShapeDtypeStruct((mp, 1), jnp.float32)),
        scratch_shapes=[pltpu.VMEM((tm, 1), jnp.float32)] * 4,
        compiler_params=pltpu.CompilerParams(
            dimension_semantics=("parallel", "arbitrary"),
            vmem_limit_bytes=VMEM_LIMIT),
    )(hp, wp, bp, lab)
    # padded rows have label == IGNORE_INDEX -> valid == 0 and zero loss contribution
    return jnp.sum(loss) / jnp.maximum(jnp.sum(valid), 1.0)


# ---------------------------------- parameter init ----------------------------------------------
class _Keys:
    def __init__(self, key):
        self._key = key

    def __call__(self):
        self._key, sub = jax.random.split(self._key)
        return sub


def _wm(k, shape):   # matmul weights stored bf16 (MXU-native operand, half the weight DMA)
    return (jax.random.normal(k(), shape, jnp.float32) * 0.02).astype(jnp.bfloat16)


def _wf(k, shape):   # f32 tables used in JAX glue (embeddings, cls token, pos embed)
    return jax.random.normal(k(), shape, jnp.float32) * 0.02


def init_vit_params(k):
    p = dict(
        patch_w=_wm(k, (IN_CH * PATCH * PATCH, DV)),
        patch_b=jnp.zeros((DV,), jnp.float32),
        cls_token=_wf(k, (1, 1, DV)),
        pos_embed=_wf(k, (1, (IMG // PATCH) ** 2 + 1, DV)),
        norm_g=jnp.ones((DV,), jnp.float32),
        norm_b=jnp.zeros((DV,), jnp.float32),
        blocks=[],
    )
    for _ in range(VIT_DEPTH):
        p["blocks"].append(dict(
            ln1_g=jnp.ones((DV,), jnp.float32), ln1_b=jnp.zeros((DV,), jnp.float32),
            qkv_w=_wm(k, (DV, 3 * DV)), qkv_b=jnp.zeros((3 * DV,), jnp.float32),
            proj_w=_wm(k, (DV, DV)), proj_b=jnp.zeros((DV,), jnp.float32),
            ln2_g=jnp.ones((DV,), jnp.float32), ln2_b=jnp.zeros((DV,), jnp.float32),
            fc1_w=_wm(k, (DV, 4 * DV)), fc1_b=jnp.zeros((4 * DV,), jnp.float32),
            fc2_w=_wm(k, (4 * DV, DV)), fc2_b=jnp.zeros((DV,), jnp.float32),
        ))
    return p


def init_bert_params(k):
    def self_attn_params():
        return dict(
            qkv_w=_wm(k, (HID, 3 * HID)), qkv_b=jnp.zeros((3 * HID,), jnp.float32),
            o_w=_wm(k, (HID, HID)), o_b=jnp.zeros((HID,), jnp.float32),
            ln_g=jnp.ones((HID,), jnp.float32), ln_b=jnp.zeros((HID,), jnp.float32),
        )

    def cross_attn_params():
        return dict(
            q_w=_wm(k, (HID, HID)), q_b=jnp.zeros((HID,), jnp.float32),
            kv_w=_wm(k, (ENC_WIDTH, 2 * HID)), kv_b=jnp.zeros((2 * HID,), jnp.float32),
            o_w=_wm(k, (HID, HID)), o_b=jnp.zeros((HID,), jnp.float32),
            ln_g=jnp.ones((HID,), jnp.float32), ln_b=jnp.zeros((HID,), jnp.float32),
        )

    p = dict(
        word_emb=_wf(k, (VOCAB, HID)),
        pos_emb=_wf(k, (MAX_POS, HID)),
        emb_ln_g=jnp.ones((HID,), jnp.float32), emb_ln_b=jnp.zeros((HID,), jnp.float32),
        layers=[],
        tr_w=_wm(k, (HID, HID)), tr_b=jnp.zeros((HID,), jnp.float32),
        tr_ln_g=jnp.ones((HID,), jnp.float32), tr_ln_b=jnp.zeros((HID,), jnp.float32),
        dec_w=_wm(k, (HID, VOCAB)), dec_b=jnp.zeros((VOCAB,), jnp.float32),
    )
    for _ in range(NUM_LAYERS):
        p["layers"].append(dict(
            self_attn=self_attn_params(),
            cross_attn=cross_attn_params(),
            inter_w=_wm(k, (HID, INTER)), inter_b=jnp.zeros((INTER,), jnp.float32),
            out_w=_wm(k, (INTER, HID)), out_b=jnp.zeros((HID,), jnp.float32),
            out_ln_g=jnp.ones((HID,), jnp.float32), out_ln_b=jnp.zeros((HID,), jnp.float32),
        ))
    return p


# ---------------------------------- model forward ------------------------------------------------
def vit_forward(p, image):
    # ViT (pre-LN) visual encoder. image: NCHW float32.
    b, c, hgt, wid = image.shape
    gh, gw = hgt // PATCH, wid // PATCH
    patches = image.reshape(b, c, gh, PATCH, gw, PATCH)
    patches = patches.transpose(0, 2, 4, 1, 3, 5).reshape(b * gh * gw, c * PATCH * PATCH)
    x = linear(patches, p["patch_w"], p["patch_b"]).reshape(b, gh * gw, DV)
    cls = jnp.broadcast_to(p["cls_token"], (b, 1, DV))
    x = jnp.concatenate([cls, x], axis=1) + p["pos_embed"]
    t = x.shape[1]
    head_dim = DV // VIT_HEADS
    for blk in p["blocks"]:
        x2d = x.reshape(b * t, DV)
        # LN1 fused into the QKV projection; bf16 QKV feeds the attention kernel directly.
        qkv = ln_linear(x2d, blk["ln1_g"], blk["ln1_b"], blk["qkv_w"], blk["qkv_b"],
                        eps=1e-6, out_dtype=jnp.bfloat16)
        ctx = fused_mha(VIT_HEADS, head_dim ** -0.5, qkv=qkv.reshape(b, t, 3 * DV))
        # output projection with the residual add fused in (no JAX-side "x + o")
        x2d = linear(ctx.reshape(b * t, DV), blk["proj_w"], blk["proj_b"], residual=x2d)
        # LN2 fused into FC1 (+GELU, bf16 out); FC2 with fused residual back to f32 stream
        h = ln_linear(x2d, blk["ln2_g"], blk["ln2_b"], blk["fc1_w"], blk["fc1_b"],
                      eps=1e-6, activation="gelu", out_dtype=jnp.bfloat16)
        x2d = linear(h, blk["fc2_w"], blk["fc2_b"], residual=x2d)
        x = x2d.reshape(b, t, DV)
    x = layernorm(x.reshape(b * t, DV), p["norm_g"], p["norm_b"], eps=1e-6).reshape(b, t, DV)
    return x


def bert_self_attention(x, pad_mask, p):
    # post-LN self-attention sublayer (causal mask built in-kernel, padding mask [B, Tk]).
    b, t, d = x.shape
    x2d = x.reshape(b * t, d)
    qkv = linear(x2d, p["qkv_w"], p["qkv_b"], out_dtype=jnp.bfloat16)
    ctx = fused_mha(NUM_HEADS, (d // NUM_HEADS) ** -0.5,
                    qkv=qkv.reshape(b, t, 3 * d), mask=pad_mask, causal=True)
    out = linear_post_ln(ctx.reshape(b * t, d), p["o_w"], p["o_b"],
                         p["ln_g"], p["ln_b"], eps=1e-12, residual=x2d)
    return out.reshape(b, t, d)


def bert_cross_attention(x, enc, p):
    # encoder_attention_mask (image_atts) is all ones in BLIP_Decoder.forward -> no mask input.
    b, t, d = x.shape
    tk, dk = enc.shape[1], enc.shape[2]
    x2d = x.reshape(b * t, d)
    q = linear(x2d, p["q_w"], p["q_b"], out_dtype=jnp.bfloat16)
    kv = linear(enc.reshape(b * tk, dk), p["kv_w"], p["kv_b"], out_dtype=jnp.bfloat16)
    ctx = fused_mha(NUM_HEADS, (d // NUM_HEADS) ** -0.5,
                    q=q.reshape(b, t, d), kv=kv.reshape(b, tk, 2 * d))
    out = linear_post_ln(ctx.reshape(b * t, d), p["o_w"], p["o_b"],
                         p["ln_g"], p["ln_b"], eps=1e-12, residual=x2d)
    return out.reshape(b, t, d)


def bert_decoder_forward(p, input_ids, attention_mask, enc_hidden):
    b, t = input_ids.shape
    x = jnp.take(p["word_emb"], input_ids, axis=0) + p["pos_emb"][:t][None]
    x = layernorm(x.reshape(b * t, HID), p["emb_ln_g"], p["emb_ln_b"],
                  eps=1e-12).reshape(b, t, HID)
    pad_mask = attention_mask.astype(jnp.float32)          # [B, T]; causal handled in-kernel
    for layer in p["layers"]:
        x = bert_self_attention(x, pad_mask, layer["self_attn"])
        x = bert_cross_attention(x, enc_hidden, layer["cross_attn"])
        x2d = x.reshape(b * t, HID)
        h = linear(x2d, layer["inter_w"], layer["inter_b"], activation="gelu",
                   out_dtype=jnp.bfloat16)
        x = linear_post_ln(h, layer["out_w"], layer["out_b"],
                           layer["out_ln_g"], layer["out_ln_b"],
                           eps=1e-12, residual=x2d).reshape(b, t, HID)
    return x


def blip_decoder_forward(params, image, input_ids, attention_mask):
    # == BLIP_Decoder.forward(image, caption) -> loss_lm ==
    image_embeds = vit_forward(params["vit"], image)                       # [B, Nv+1, DV]
    # image_atts = torch.ones(...) -> encoder attention mask is a no-op, omitted from the kernel.

    # text.input_ids[:, 0] = bos_token_id
    input_ids = input_ids.at[:, 0].set(BOS_ID)
    decoder_targets = jnp.where(input_ids == PAD_ID, IGNORE_INDEX, input_ids)
    decoder_targets = decoder_targets.at[:, :PROMPT_LEN].set(IGNORE_INDEX)

    hidden = bert_decoder_forward(params["bert"], input_ids, attention_mask, image_embeds)

    bp = params["bert"]
    b, t, _ = hidden.shape
    # shift: position i predicts token i+1 -> only positions [0, T-2] feed the LM head.
    h_shift = hidden[:, :-1, :].reshape(b * (t - 1), HID)
    labels = decoder_targets[:, 1:].reshape(b * (t - 1))
    # BertLMPredictionHead transform (dense -> GELU -> LayerNorm) fused in one kernel; bf16 out
    # because it only feeds the LM-head matmul.
    h_tr = linear_post_ln(h_shift, bp["tr_w"], bp["tr_b"], bp["tr_ln_g"], bp["tr_ln_b"],
                          eps=1e-12, activation="gelu", out_dtype=jnp.bfloat16)
    # decoder matmul fused with masked label-smoothed CE; logits never materialized
    return lm_head_ce_loss(h_tr, bp["dec_w"], bp["dec_b"], labels, LABEL_SMOOTH)


# ---------------------------------------- main ---------------------------------------------------
if __name__ == "__main__":
    key = jax.random.PRNGKey(0)
    k_img, k_ids, k_params = jax.random.split(key, 3)

    image = jax.random.normal(k_img, (B, IN_CH, IMG, IMG), jnp.float32)    # NCHW
    # TODO(synk): BertTokenizer is host-side string processing; synthetic token ids stand in.
    input_ids = jax.random.randint(k_ids, (B, SEQ), 2, VOCAB, dtype=jnp.int32)
    lengths = jnp.array([SEQ, SEQ - 2], jnp.int32)                         # pad the 2nd caption
    pos = jnp.arange(SEQ)[None, :]
    attention_mask = (pos < lengths[:, None]).astype(jnp.int32)
    input_ids = jnp.where(attention_mask == 1, input_ids, PAD_ID)

    keys = _Keys(k_params)
    params = dict(vit=init_vit_params(keys), bert=init_bert_params(keys))

    loss = jax.jit(blip_decoder_forward)(params, image, input_ids, attention_mask)
    jax.block_until_ready(loss)
    assert loss.shape == () and bool(jnp.isfinite(loss))
    print("KERNEL_OK")
</pallas_src>

<mosaic_0001>
module attributes {stable_mosaic.version = 11 : i64} {
  func.func @_ln_matmul_kernel(%arg0: i32, %arg1: i32, %arg2: memref<16x32xf32, #tpu.memory_space<vmem>>, %arg3: memref<1x32xf32, #tpu.memory_space<vmem>>, %arg4: memref<1x32xf32, #tpu.memory_space<vmem>>, %arg5: memref<32x96xbf16, #tpu.memory_space<vmem>>, %arg6: memref<1x96xf32, #tpu.memory_space<vmem>>, %arg7: memref<16x96xbf16, #tpu.memory_space<vmem>>, %arg8: memref<16x32xbf16, #tpu.memory_space<vmem>>) attributes {dimension_semantics = [#tpu.dimension_semantics<parallel>, #tpu.dimension_semantics<arbitrary>], iteration_bounds = array<i64: 1, 1>, scalar_prefetch = 0 : i64, scratch_operands = 1 : i64, tpu.core_type = #tpu.core_type<tc>, window_params = [{transform_indices = @transform_0, window_bounds = array<i64: 16, 32>}, {pipeline_mode = #tpu.pipeline_mode<synchronous>, transform_indices = @transform_1, window_bounds = array<i64: 1, 32>}, {pipeline_mode = #tpu.pipeline_mode<synchronous>, transform_indices = @transform_2, window_bounds = array<i64: 1, 32>}, {transform_indices = @transform_3, window_bounds = array<i64: 32, 96>}, {transform_indices = @transform_4, window_bounds = array<i64: 1, 96>}, {transform_indices = @transform_5, window_bounds = array<i64: 16, 96>}]} {
    %c0_i32 = arith.constant 0 : i32
    %0 = arith.cmpi eq, %arg1, %c0_i32 : i32
    %1 = arith.extui %0 : i1 to i32
    %c0_i32_0 = arith.constant 0 : i32
    %2 = arith.cmpi ne, %1, %c0_i32_0 : i32
    scf.if %2 {
      %c0_8 = arith.constant 0 : index
      %c0_9 = arith.constant 0 : index
      %11 = vector.load %arg2[%c0_8, %c0_9] : memref<16x32xf32, #tpu.memory_space<vmem>>, vector<16x32xf32>
      %cst_10 = arith.constant dense<0.000000e+00> : vector<16xf32>
      %12 = vector.multi_reduction <add>, %11, %cst_10 [1] : vector<16x32xf32> to vector<16xf32>
      %13 = vector.shape_cast %12 : vector<16xf32> to vector<16x1xf32>
      %cst_11 = arith.constant 3.200000e+01 : f32
      %14 = vector.broadcast %cst_11 : f32 to vector<16x1xf32>
      %15 = arith.divf %13, %14 : vector<16x1xf32>
      %16 = vector.broadcast %15 : vector<16x1xf32> to vector<16x32xf32>
      %17 = arith.subf %11, %16 : vector<16x32xf32>
      %18 = arith.mulf %17, %17 : vector<16x32xf32>
      %cst_12 = arith.constant dense<0.000000e+00> : vector<16xf32>
      %19 = vector.multi_reduction <add>, %18, %cst_12 [1] : vector<16x32xf32> to vector<16xf32>
      %20 = vector.shape_cast %19 : vector<16xf32> to vector<16x1xf32>
      %cst_13 = arith.constant 3.200000e+01 : f32
      %21 = vector.broadcast %cst_13 : f32 to vector<16x1xf32>
      %22 = arith.divf %20, %21 : vector<16x1xf32>
      %23 = vector.broadcast %15 : vector<16x1xf32> to vector<16x32xf32>
      %24 = arith.subf %11, %23 : vector<16x32xf32>
      %cst_14 = arith.constant 9.99999997E-7 : f32
      %25 = vector.broadcast %cst_14 : f32 to vector<16x1xf32>
      %26 = arith.addf %22, %25 : vector<16x1xf32>
      %27 = math.rsqrt %26 : vector<16x1xf32>
      %28 = vector.broadcast %27 : vector<16x1xf32> to vector<16x32xf32>
      %29 = arith.mulf %24, %28 : vector<16x32xf32>
      %c0_15 = arith.constant 0 : index
      %c0_16 = arith.constant 0 : index
      %30 = vector.load %arg3[%c0_15, %c0_16] : memref<1x32xf32, #tpu.memory_space<vmem>>, vector<1x32xf32>
      %31 = vector.broadcast %30 : vector<1x32xf32> to vector<16x32xf32>
      %32 = arith.mulf %29, %31 : vector<16x32xf32>
      %c0_17 = arith.constant 0 : index
      %c0_18 = arith.constant 0 : index
      %33 = vector.load %arg4[%c0_17, %c0_18] : memref<1x32xf32, #tpu.memory_space<vmem>>, vector<1x32xf32>
      %34 = vector.broadcast %33 : vector<1x32xf32> to vector<16x32xf32>
      %35 = arith.addf %32, %34 : vector<16x32xf32>
      %36 = arith.truncf %35 : vector<16x32xf32> to vector<16x32xbf16>
      %c0_19 = arith.constant 0 : index
      %c0_20 = arith.constant 0 : index
      %37 = vector.load %arg8[%c0_19, %c0_20] : memref<16x32xbf16, #tpu.memory_space<vmem>>, vector<16x32xbf16>
      tpu.vector_store %arg8[%c0_19, %c0_20], %36 {strides = array<i32>} : memref<16x32xbf16, #tpu.memory_space<vmem>>, vector<16x32xbf16>,
    } else {
    }
    %c0 = arith.constant 0 : index
    %c0_1 = arith.constant 0 : index
    %3 = vector.load %arg8[%c0, %c0_1] : memref<16x32xbf16, #tpu.memory_space<vmem>>, vector<16x32xbf16>
    %c0_2 = arith.constant 0 : index
    %c0_3 = arith.constant 0 : index
    %4 = vector.load %arg5[%c0_2, %c0_3] : memref<32x96xbf16, #tpu.memory_space<vmem>>, vector<32x96xbf16>
    %cst = arith.constant dense<0.000000e+00> : vector<16x96xf32>
    %5 = tpu.matmul %3, %4, %cst {dimension_numbers = #tpu.dot_dimension_numbers<[1], [0], [0], [1], [0, 0, 1, 1], [], []>} : vector<16x32xbf16>, vector<32x96xbf16>, vector<16x96xf32> -> vector<16x96xf32>
    %c0_4 = arith.constant 0 : index
    %c0_5 = arith.constant 0 : index
    %6 = vector.load %arg6[%c0_4, %c0_5] : memref<1x96xf32, #tpu.memory_space<vmem>>, vector<1x96xf32>
    %7 = vector.broadcast %6 : vector<1x96xf32> to vector<16x96xf32>
    %8 = arith.addf %5, %7 : vector<16x96xf32>
    %9 = arith.truncf %8 : vector<16x96xf32> to vector<16x96xbf16>
    %c0_6 = arith.constant 0 : index
    %c0_7 = arith.constant 0 : index
    %10 = vector.load %arg7[%c0_6, %c0_7] : memref<16x96xbf16, #tpu.memory_space<vmem>>, vector<16x96xbf16>
    tpu.vector_store %arg7[%c0_6, %c0_7], %9 {strides = array<i32>} : memref<16x96xbf16, #tpu.memory_space<vmem>>, vector<16x96xbf16>,
    return
  }
  func.func @transform_0(%arg0: i32, %arg1: i32) -> (i32, i32) {
    %c0_i32 = arith.constant 0 : i32
    %c0_i32_0 = arith.constant 0 : i32
    return %arg0, %c0_i32 : i32, i32
  }
  func.func @transform_1(%arg0: i32, %arg1: i32) -> (i32, i32) {
    %c0_i32 = arith.constant 0 : i32
    %c0_i32_0 = arith.constant 0 : i32
    %c0_i32_1 = arith.constant 0 : i32
    return %c0_i32, %c0_i32_0 : i32, i32
  }
  func.func @transform_2(%arg0: i32, %arg1: i32) -> (i32, i32) {
    %c0_i32 = arith.constant 0 : i32
    %c0_i32_0 = arith.constant 0 : i32
    %c0_i32_1 = arith.constant 0 : i32
    return %c0_i32, %c0_i32_0 : i32, i32
  }
  func.func @transform_3(%arg0: i32, %arg1: i32) -> (i32, i32) {
    %c0_i32 = arith.constant 0 : i32
    %c0_i32_0 = arith.constant 0 : i32
    return %c0_i32, %arg1 : i32, i32
  }
  func.func @transform_4(%arg0: i32, %arg1: i32) -> (i32, i32) {
    %c0_i32 = arith.constant 0 : i32
    %c0_i32_0 = arith.constant 0 : i32
    return %c0_i32, %arg1 : i32, i32
  }
  func.func @transform_5(%arg0: i32, %arg1: i32) -> (i32, i32) {
    %c0_i32 = arith.constant 0 : i32
    return %arg0, %arg1 : i32, i32
  }
}

module attributes {stable_mosaic.version = 11 : i64} {
  func.func @_matmul_kernel(%arg0: i32, %arg1: i32, %arg2: i32, %arg3: memref<8x192xf32, #tpu.memory_space<vmem>>, %arg4: memref<192x32xbf16, #tpu.memory_space<vmem>>, %arg5: memref<1x32xf32, #tpu.memory_space<vmem>>, %arg6: memref<8x32xf32, #tpu.memory_space<vmem>>, %arg7: memref<8x32xf32, #tpu.memory_space<vmem>>) attributes {dimension_semantics = [#tpu.dimension_semantics<parallel>, #tpu.dimension_semantics<parallel>, #tpu.dimension_semantics<arbitrary>], iteration_bounds = array<i64: 1, 1, 1>, scalar_prefetch = 0 : i64, scratch_operands = 1 : i64, tpu.core_type = #tpu.core_type<tc>, window_params = [{transform_indices = @transform_0, window_bounds = array<i64: 8, 192>}, {transform_indices = @transform_1, window_bounds = array<i64: 192, 32>}, {transform_indices = @transform_2, window_bounds = array<i64: 1, 32>}, {transform_indices = @transform_3, window_bounds = array<i64: 8, 32>}]} {
    %c0_i32 = arith.constant 0 : i32
    %0 = arith.cmpi eq, %arg2, %c0_i32 : i32
    %1 = arith.extui %0 : i1 to i32
    %c0_i32_0 = arith.constant 0 : i32
    %2 = arith.cmpi ne, %1, %c0_i32_0 : i32
    scf.if %2 {
      %cst_10 = arith.constant 0.000000e+00 : f32
      %13 = vector.broadcast %cst_10 : f32 to vector<8x32xf32>
      %c0_11 = arith.constant 0 : index
      %c0_12 = arith.constant 0 : index
      %14 = vector.load %arg7[%c0_11, %c0_12] : memref<8x32xf32, #tpu.memory_space<vmem>>, vector<8x32xf32>
      tpu.vector_store %arg7[%c0_11, %c0_12], %13 {strides = array<i32>} : memref<8x32xf32, #tpu.memory_space<vmem>>, vector<8x32xf32>,
    } else {
    }
    %c0 = arith.constant 0 : index
    %c0_1 = arith.constant 0 : index
    %3 = vector.load %arg7[%c0, %c0_1] : memref<8x32xf32, #tpu.memory_space<vmem>>, vector<8x32xf32>
    %c0_2 = arith.constant 0 : index
    %c0_3 = arith.constant 0 : index
    %4 = vector.load %arg3[%c0_2, %c0_3] : memref<8x192xf32, #tpu.memory_space<vmem>>, vector<8x192xf32>
    %5 = arith.truncf %4 : vector<8x192xf32> to vector<8x192xbf16>
    %c0_4 = arith.constant 0 : index
    %c0_5 = arith.constant 0 : index
    %6 = vector.load %arg4[%c0_4, %c0_5] : memref<192x32xbf16, #tpu.memory_space<vmem>>, vector<192x32xbf16>
    %cst = arith.constant dense<0.000000e+00> : vector<8x32xf32>
    %7 = tpu.matmul %5, %6, %cst {dimension_numbers = #tpu.dot_dimension_numbers<[1], [0], [0], [1], [0, 0, 1, 1], [], []>} : vector<8x192xbf16>, vector<192x32xbf16>, vector<8x32xf32> -> vector<8x32xf32>
    %8 = arith.addf %3, %7 : vector<8x32xf32>
    %c0_6 = arith.constant 0 : index
    %c0_7 = arith.constant 0 : index
    %9 = vector.load %arg7[%c0_6, %c0_7] : memref<8x32xf32, #tpu.memory_space<vmem>>, vector<8x32xf32>
    tpu.vector_store %arg7[%c0_6, %c0_7], %8 {strides = array<i32>} : memref<8x32xf32, #tpu.memory_space<vmem>>, vector<8x32xf32>,
    %c0_i32_8 = arith.constant 0 : i32
    %10 = arith.cmpi eq, %arg2, %c0_i32_8 : i32
    %11 = arith.extui %10 : i1 to i32
    %c0_i32_9 = arith.constant 0 : i32
    %12 = arith.cmpi ne, %11, %c0_i32_9 : i32
    scf.if %12 {
      %c0_10 = arith.constant 0 : index
      %c0_11 = arith.constant 0 : index
      %13 = vector.load %arg7[%c0_10, %c0_11] : memref<8x32xf32, #tpu.memory_space<vmem>>, vector<8x32xf32>
      %c0_12 = arith.constant 0 : index
      %c0_13 = arith.constant 0 : index
      %14 = vector.load %arg5[%c0_12, %c0_13] : memref<1x32xf32, #tpu.memory_space<vmem>>, vector<1x32xf32>
      %15 = vector.broadcast %14 : vector<1x32xf32> to vector<8x32xf32>
      %16 = arith.addf %13, %15 : vector<8x32xf32>
      %c0_14 = arith.constant 0 : index
      %c0_15 = arith.constant 0 : index
      %17 = vector.load %arg6[%c0_14, %c0_15] : memref<8x32xf32, #tpu.memory_space<vmem>>, vector<8x32xf32>
      tpu.vector_store %arg6[%c0_14, %c0_15], %16 {strides = array<i32>} : memref<8x32xf32, #tpu.memory_space<vmem>>, vector<8x32xf32>,
    } else {
    }
    return
  }
  func.func @transform_0(%arg0: i32, %arg1: i32, %arg2: i32) -> (i32, i32) {
    %c0_i32 = arith.constant 0 : i32
    return %arg0, %arg2 : i32, i32
  }
  func.func @transform_1(%arg0: i32, %arg1: i32, %arg2: i32) -> (i32, i32) {
    %c0_i32 = arith.constant 0 : i32
    return %arg2, %arg1 : i32, i32
  }
  func.func @transform_2(%arg0: i32, %arg1: i32, %arg2: i32) -> (i32, i32) {
    %c0_i32 = arith.constant 0 : i32
    %c0_i32_0 = arith.constant 0 : i32
    return %c0_i32, %arg1 : i32, i32
  }
  func.func @transform_3(%arg0: i32, %arg1: i32, %arg2: i32) -> (i32, i32) {
    %c0_i32 = arith.constant 0 : i32
    return %arg0, %arg1 : i32, i32
  }
}

module attributes {stable_mosaic.version = 11 : i64} {
  func.func @_mha_kernel(%arg0: i32, %arg1: i32, %arg2: memref<1x5x96xbf16, #tpu.memory_space<vmem>>, %arg3: memref<1x5x96xbf16, #tpu.memory_space<vmem>>, %arg4: memref<1x5x32xbf16, #tpu.memory_space<vmem>>) attributes {dimension_semantics = [#tpu.dimension_semantics<parallel>, #tpu.dimension_semantics<parallel>], iteration_bounds = array<i64: 2, 1>, scalar_prefetch = 0 : i64, scratch_operands = 0 : i64, tpu.core_type = #tpu.core_type<tc>, window_params = [{transform_indices = @transform_0, window_bounds = array<i64: 1, 5, 96>}, {transform_indices = @transform_1, window_bounds = array<i64: 1, 5, 96>}, {transform_indices = @transform_2, window_bounds = array<i64: 1, 5, 32>}]} {
    %c0 = arith.constant 0 : index
    %c0_0 = arith.constant 0 : index
    %c0_1 = arith.constant 0 : index
    %0 = vector.load %arg2[%c0, %c0_0, %c0_1] : memref<1x5x96xbf16, #tpu.memory_space<vmem>>, vector<1x5x32xbf16>
    %1 = vector.shape_cast %0 : vector<1x5x32xbf16> to vector<5x32xbf16>
    %cst = arith.constant 3.535160e-01 : bf16
    %2 = vector.broadcast %cst : bf16 to vector<5x32xbf16>
    %3 = arith.mulf %1, %2 : vector<5x32xbf16>
    %c0_2 = arith.constant 0 : index
    %c0_3 = arith.constant 0 : index
    %c32 = arith.constant 32 : index
    %4 = vector.load %arg3[%c0_2, %c0_3, %c32] : memref<1x5x96xbf16, #tpu.memory_space<vmem>>, vector<1x5x32xbf16>
    %5 = vector.shape_cast %4 : vector<1x5x32xbf16> to vector<5x32xbf16>
    %c0_4 = arith.constant 0 : index
    %c0_5 = arith.constant 0 : index
    %c64 = arith.constant 64 : index
    %6 = vector.load %arg3[%c0_4, %c0_5, %c64] : memref<1x5x96xbf16, #tpu.memory_space<vmem>>, vector<1x5x32xbf16>
    %7 = vector.shape_cast %6 : vector<1x5x32xbf16> to vector<5x32xbf16>
    %8 = vector.extract_strided_slice %3 {offsets = [0, 0], sizes = [5, 8], strides = [1, 1]} : vector<5x32xbf16> to vector<5x8xbf16>
    %9 = vector.extract_strided_slice %5 {offsets = [0, 0], sizes = [5, 8], strides = [1, 1]} : vector<5x32xbf16> to vector<5x8xbf16>
    %10 = vector.extract_strided_slice %7 {offsets = [0, 0], sizes = [5, 8], strides = [1, 1]} : vector<5x32xbf16> to vector<5x8xbf16>
    %cst_6 = arith.constant dense<0.000000e+00> : vector<5x5xf32>
    %11 = tpu.matmul %8, %9, %cst_6 {dimension_numbers = #tpu.dot_dimension_numbers<[1], [1], [0], [0], [0, 0, 1, 0], [], []>} : vector<5x8xbf16>, vector<5x8xbf16>, vector<5x5xf32> -> vector<5x5xf32>
    %cst_7 = arith.constant dense<0xFF800000> : vector<5xf32>
    %12 = vector.multi_reduction <maximumf>, %11, %cst_7 [1] : vector<5x5xf32> to vector<5xf32>
    %13 = vector.shape_cast %12 : vector<5xf32> to vector<5x1xf32>
    %14 = vector.broadcast %13 : vector<5x1xf32> to vector<5x5xf32>
    %15 = arith.subf %11, %14 : vector<5x5xf32>
    %16 = math.exp %15 : vector<5x5xf32>
    %cst_8 = arith.constant dense<0.000000e+00> : vector<5xf32>
    %17 = vector.multi_reduction <add>, %16, %cst_8 [1] : vector<5x5xf32> to vector<5xf32>
    %18 = vector.shape_cast %17 : vector<5xf32> to vector<5x1xf32>
    %19 = tpu.reciprocal %18 {approx = true} : vector<5x1xf32> -> vector<5x1xf32>
    %20 = vector.broadcast %19 : vector<5x1xf32> to vector<5x5xf32>
    %21 = arith.mulf %16, %20 : vector<5x5xf32>
    %22 = arith.truncf %21 : vector<5x5xf32> to vector<5x5xbf16>
    %cst_9 = arith.constant dense<0.000000e+00> : vector<5x8xf32>
    %23 = tpu.matmul %22, %10, %cst_9 {dimension_numbers = #tpu.dot_dimension_numbers<[1], [0], [0], [1], [0, 0, 1, 1], [], []>} : vector<5x5xbf16>, vector<5x8xbf16>, vector<5x8xf32> -> vector<5x8xf32>
    %24 = vector.extract_strided_slice %3 {offsets = [0, 8], sizes = [5, 8], strides = [1, 1]} : vector<5x32xbf16> to vector<5x8xbf16>
    %25 = vector.extract_strided_slice %5 {offsets = [0, 8], sizes = [5, 8], strides = [1, 1]} : vector<5x32xbf16> to vector<5x8xbf16>
    %26 = vector.extract_strided_slice %7 {offsets = [0, 8], sizes = [5, 8], strides = [1, 1]} : vector<5x32xbf16> to vector<5x8xbf16>
    %cst_10 = arith.constant dense<0.000000e+00> : vector<5x5xf32>
    %27 = tpu.matmul %24, %25, %cst_10 {dimension_numbers = #tpu.dot_dimension_numbers<[1], [1], [0], [0], [0, 0, 1, 0], [], []>} : vector<5x8xbf16>, vector<5x8xbf16>, vector<5x5xf32> -> vector<5x5xf32>
    %cst_11 = arith.constant dense<0xFF800000> : vector<5xf32>
    %28 = vector.multi_reduction <maximumf>, %27, %cst_11 [1] : vector<5x5xf32> to vector<5xf32>
    %29 = vector.shape_cast %28 : vector<5xf32> to vector<5x1xf32>
    %30 = vector.broadcast %29 : vector<5x1xf32> to vector<5x5xf32>
    %31 = arith.subf %27, %30 : vector<5x5xf32>
    %32 = math.exp %31 : vector<5x5xf32>
    %cst_12 = arith.constant dense<0.000000e+00> : vector<5xf32>
    %33 = vector.multi_reduction <add>, %32, %cst_12 [1] : vector<5x5xf32> to vector<5xf32>
    %34 = vector.shape_cast %33 : vector<5xf32> to vector<5x1xf32>
    %35 = tpu.reciprocal %34 {approx = true} : vector<5x1xf32> -> vector<5x1xf32>
    %36 = vector.broadcast %35 : vector<5x1xf32> to vector<5x5xf32>
    %37 = arith.mulf %32, %36 : vector<5x5xf32>
    %38 = arith.truncf %37 : vector<5x5xf32> to vector<5x5xbf16>
    %cst_13 = arith.constant dense<0.000000e+00> : vector<5x8xf32>
    %39 = tpu.matmul %38, %26, %cst_13 {dimension_numbers = #tpu.dot_dimension_numbers<[1], [0], [0], [1], [0, 0, 1, 1], [], []>} : vector<5x5xbf16>, vector<5x8xbf16>, vector<5x8xf32> -> vector<5x8xf32>
    %40 = vector.extract_strided_slice %3 {offsets = [0, 16], sizes = [5, 8], strides = [1, 1]} : vector<5x32xbf16> to vector<5x8xbf16>
    %41 = vector.extract_strided_slice %5 {offsets = [0, 16], sizes = [5, 8], strides = [1, 1]} : vector<5x32xbf16> to vector<5x8xbf16>
    %42 = vector.extract_strided_slice %7 {offsets = [0, 16], sizes = [5, 8], strides = [1, 1]} : vector<5x32xbf16> to vector<5x8xbf16>
    %cst_14 = arith.constant dense<0.000000e+00> : vector<5x5xf32>
    %43 = tpu.matmul %40, %41, %cst_14 {dimension_numbers = #tpu.dot_dimension_numbers<[1], [1], [0], [0], [0, 0, 1, 0], [], []>} : vector<5x8xbf16>, vector<5x8xbf16>, vector<5x5xf32> -> vector<5x5xf32>
    %cst_15 = arith.constant dense<0xFF800000> : vector<5xf32>
    %44 = vector.multi_reduction <maximumf>, %43, %cst_15 [1] : vector<5x5xf32> to vector<5xf32>
    %45 = vector.shape_cast %44 : vector<5xf32> to vector<5x1xf32>
    %46 = vector.broadcast %45 : vector<5x1xf32> to vector<5x5xf32>
    %47 = arith.subf %43, %46 : vector<5x5xf32>
    %48 = math.exp %47 : vector<5x5xf32>
    %cst_16 = arith.constant dense<0.000000e+00> : vector<5xf32>
    %49 = vector.multi_reduction <add>, %48, %cst_16 [1] : vector<5x5xf32> to vector<5xf32>
    %50 = vector.shape_cast %49 : vector<5xf32> to vector<5x1xf32>
    %51 = tpu.reciprocal %50 {approx = true} : vector<5x1xf32> -> vector<5x1xf32>
    %52 = vector.broadcast %51 : vector<5x1xf32> to vector<5x5xf32>
    %53 = arith.mulf %48, %52 : vector<5x5xf32>
    %54 = arith.truncf %53 : vector<5x5xf32> to vector<5x5xbf16>
    %cst_17 = arith.constant dense<0.000000e+00> : vector<5x8xf32>
    %55 = tpu.matmul %54, %42, %cst_17 {dimension_numbers = #tpu.dot_dimension_numbers<[1], [0], [0], [1], [0, 0, 1, 1], [], []>} : vector<5x5xbf16>, vector<5x8xbf16>, vector<5x8xf32> -> vector<5x8xf32>
    %56 = vector.extract_strided_slice %3 {offsets = [0, 24], sizes = [5, 8], strides = [1, 1]} : vector<5x32xbf16> to vector<5x8xbf16>
    %57 = vector.extract_strided_slice %5 {offsets = [0, 24], sizes = [5, 8], strides = [1, 1]} : vector<5x32xbf16> to vector<5x8xbf16>
    %58 = vector.extract_strided_slice %7 {offsets = [0, 24], sizes = [5, 8], strides = [1, 1]} : vector<5x32xbf16> to vector<5x8xbf16>
    %cst_18 = arith.constant dense<0.000000e+00> : vector<5x5xf32>
    %59 = tpu.matmul %56, %57, %cst_18 {dimension_numbers = #tpu.dot_dimension_numbers<[1], [1], [0], [0], [0, 0, 1, 0], [], []>} : vector<5x8xbf16>, vector<5x8xbf16>, vector<5x5xf32> -> vector<5x5xf32>
    %cst_19 = arith.constant dense<0xFF800000> : vector<5xf32>
    %60 = vector.multi_reduction <maximumf>, %59, %cst_19 [1] : vector<5x5xf32> to vector<5xf32>
    %61 = vector.shape_cast %60 : vector<5xf32> to vector<5x1xf32>
    %62 = vector.broadcast %61 : vector<5x1xf32> to vector<5x5xf32>
    %63 = arith.subf %59, %62 : vector<5x5xf32>
    %64 = math.exp %63 : vector<5x5xf32>
    %cst_20 = arith.constant dense<0.000000e+00> : vector<5xf32>
    %65 = vector.multi_reduction <add>, %64, %cst_20 [1] : vector<5x5xf32> to vector<5xf32>
    %66 = vector.shape_cast %65 : vector<5xf32> to vector<5x1xf32>
    %67 = tpu.reciprocal %66 {approx = true} : vector<5x1xf32> -> vector<5x1xf32>
    %68 = vector.broadcast %67 : vector<5x1xf32> to vector<5x5xf32>
    %69 = arith.mulf %64, %68 : vector<5x5xf32>
    %70 = arith.truncf %69 : vector<5x5xf32> to vector<5x5xbf16>
    %cst_21 = arith.constant dense<0.000000e+00> : vector<5x8xf32>
    %71 = tpu.matmul %70, %58, %cst_21 {dimension_numbers = #tpu.dot_dimension_numbers<[1], [0], [0], [1], [0, 0, 1, 1], [], []>} : vector<5x5xbf16>, vector<5x8xbf16>, vector<5x8xf32> -> vector<5x8xf32>
    %72 = tpu.concatenate %23, %39, %55, %71 in 1 : vector<5x8xf32>, vector<5x8xf32>, vector<5x8xf32>, vector<5x8xf32> -> vector<5x32xf32>
    %73 = arith.truncf %72 : vector<5x32xf32> to vector<5x32xbf16>
    %c0_22 = arith.constant 0 : index
    %c0_23 = arith.constant 0 : index
    %c0_24 = arith.constant 0 : index
    %74 = vector.load %arg4[%c0_22, %c0_23, %c0_24] : memref<1x5x32xbf16, #tpu.memory_space<vmem>>, vector<1x5x32xbf16>
    %75 = vector.shape_cast %74 : vector<1x5x32xbf16> to vector<5x32xbf16>
    %76 = vector.shape_cast %73 : vector<5x32xbf16> to vector<1x5x32xbf16>
    tpu.vector_store %arg4[%c0_22, %c0_23, %c0_24], %76 {strides = array<i32>} : memref<1x5x32xbf16, #tpu.memory_space<vmem>>, vector<1x5x32xbf16>,
    return
  }
  func.func @transform_0(%arg0: i32, %arg1: i32) -> (i32, i32, i32) {
    %c0_i32 = arith.constant 0 : i32
    %c0_i32_0 = arith.constant 0 : i32
    return %arg0, %arg1, %c0_i32 : i32, i32, i32
  }
  func.func @transform_1(%arg0: i32, %arg1: i32) -> (i32, i32, i32) {
    %c0_i32 = arith.constant 0 : i32
    %c0_i32_0 = arith.constant 0 : i32
    %c0_i32_1 = arith.constant 0 : i32
    return %arg0, %c0_i32, %c0_i32_0 : i32, i32, i32
  }
  func.func @transform_2(%arg0: i32, %arg1: i32) -> (i32, i32, i32) {
    %c0_i32 = arith.constant 0 : i32
    %c0_i32_0 = arith.constant 0 : i32
    return %arg0, %arg1, %c0_i32 : i32, i32, i32
  }
}

module attributes {stable_mosaic.version = 11 : i64} {
  func.func @_matmul_kernel(%arg0: i32, %arg1: i32, %arg2: i32, %arg3: memref<16x32xbf16, #tpu.memory_space<vmem>>, %arg4: memref<32x32xbf16, #tpu.memory_space<vmem>>, %arg5: memref<1x32xf32, #tpu.memory_space<vmem>>, %arg6: memref<16x32xf32, #tpu.memory_space<vmem>>, %arg7: memref<16x32xf32, #tpu.memory_space<vmem>>, %arg8: memref<16x32xf32, #tpu.memory_space<vmem>>) attributes {dimension_semantics = [#tpu.dimension_semantics<parallel>, #tpu.dimension_semantics<parallel>, #tpu.dimension_semantics<arbitrary>], iteration_bounds = array<i64: 1, 1, 1>, scalar_prefetch = 0 : i64, scratch_operands = 1 : i64, tpu.core_type = #tpu.core_type<tc>, window_params = [{transform_indices = @transform_0, window_bounds = array<i64: 16, 32>}, {transform_indices = @transform_1, window_bounds = array<i64: 32, 32>}, {transform_indices = @transform_2, window_bounds = array<i64: 1, 32>}, {transform_indices = @transform_3, window_bounds = array<i64: 16, 32>}, {transform_indices = @transform_4, window_bounds = array<i64: 16, 32>}]} {
    %c0_i32 = arith.constant 0 : i32
    %0 = arith.cmpi eq, %arg2, %c0_i32 : i32
    %1 = arith.extui %0 : i1 to i32
    %c0_i32_0 = arith.constant 0 : i32
    %2 = arith.cmpi ne, %1, %c0_i32_0 : i32
    scf.if %2 {
      %cst_10 = arith.constant 0.000000e+00 : f32
      %12 = vector.broadcast %cst_10 : f32 to vector<16x32xf32>
      %c0_11 = arith.constant 0 : index
      %c0_12 = arith.constant 0 : index
      %13 = vector.load %arg8[%c0_11, %c0_12] : memref<16x32xf32, #tpu.memory_space<vmem>>, vector<16x32xf32>
      tpu.vector_store %arg8[%c0_11, %c0_12], %12 {strides = array<i32>} : memref<16x32xf32, #tpu.memory_space<vmem>>, vector<16x32xf32>,
    } else {
    }
    %c0 = arith.constant 0 : index
    %c0_1 = arith.constant 0 : index
    %3 = vector.load %arg8[%c0, %c0_1] : memref<16x32xf32, #tpu.memory_space<vmem>>, vector<16x32xf32>
    %c0_2 = arith.constant 0 : index
    %c0_3 = arith.constant 0 : index
    %4 = vector.load %arg3[%c0_2, %c0_3] : memref<16x32xbf16, #tpu.memory_space<vmem>>, vector<16x32xbf16>
    %c0_4 = arith.constant 0 : index
    %c0_5 = arith.constant 0 : index
    %5 = vector.load %arg4[%c0_4, %c0_5] : memref<32x32xbf16, #tpu.memory_space<vmem>>, vector<32x32xbf16>
    %cst = arith.constant dense<0.000000e+00> : vector<16x32xf32>
    %6 = tpu.matmul %4, %5, %cst {dimension_numbers = #tpu.dot_dimension_numbers<[1], [0], [0], [1], [0, 0, 1, 1], [], []>} : vector<16x32xbf16>, vector<32x32xbf16>, vector<16x32xf32> -> vector<16x32xf32>
    %7 = arith.addf %3, %6 : vector<16x32xf32>
    %c0_6 = arith.constant 0 : index
    %c0_7 = arith.constant 0 : index
    %8 = vector.load %arg8[%c0_6, %c0_7] : memref<16x32xf32, #tpu.memory_space<vmem>>, vector<16x32xf32>
    tpu.vector_store %arg8[%c0_6, %c0_7], %7 {strides = array<i32>} : memref<16x32xf32, #tpu.memory_space<vmem>>, vector<16x32xf32>,
    %c0_i32_8 = arith.constant 0 : i32
    %9 = arith.cmpi eq, %arg2, %c0_i32_8 : i32
    %10 = arith.extui %9 : i1 to i32
    %c0_i32_9 = arith.constant 0 : i32
    %11 = arith.cmpi ne, %10, %c0_i32_9 : i32
    scf.if %11 {
      %c0_10 = arith.constant 0 : index
      %c0_11 = arith.constant 0 : index
      %12 = vector.load %arg8[%c0_10, %c0_11] : memref<16x32xf32, #tpu.memory_space<vmem>>, vector<16x32xf32>
      %c0_12 = arith.constant 0 : index
      %c0_13 = arith.constant 0 : index
      %13 = vector.load %arg5[%c0_12, %c0_13] : memref<1x32xf32, #tpu.memory_space<vmem>>, vector<1x32xf32>
      %14 = vector.broadcast %13 : vector<1x32xf32> to vector<16x32xf32>
      %15 = arith.addf %12, %14 : vector<16x32xf32>
      %c0_14 = arith.constant 0 : index
      %c0_15 = arith.constant 0 : index
      %16 = vector.load %arg6[%c0_14, %c0_15] : memref<16x32xf32, #tpu.memory_space<vmem>>, vector<16x32xf32>
      %17 = arith.addf %15, %16 : vector<16x32xf32>
      %c0_16 = arith.constant 0 : index
      %c0_17 = arith.constant 0 : index
      %18 = vector.load %arg7[%c0_16, %c0_17] : memref<16x32xf32, #tpu.memory_space<vmem>>, vector<16x32xf32>
      tpu.vector_store %arg7[%c0_16, %c0_17], %17 {strides = array<i32>} : memref<16x32xf32, #tpu.memory_space<vmem>>, vector<16x32xf32>,
    } else {
    }
    return
  }
  func.func @transform_0(%arg0: i32, %arg1: i32, %arg2: i32) -> (i32, i32) {
    %c0_i32 = arith.constant 0 : i32
    return %arg0, %arg2 : i32, i32
  }
  func.func @transform_1(%arg0: i32, %arg1: i32, %arg2: i32) -> (i32, i32) {
    %c0_i32 = arith.constant 0 : i32
    return %arg2, %arg1 : i32, i32
  }
  func.func @transform_2(%arg0: i32, %arg1: i32, %arg2: i32) -> (i32, i32) {
    %c0_i32 = arith.constant 0 : i32
    %c0_i32_0 = arith.constant 0 : i32
    return %c0_i32, %arg1 : i32, i32
  }
  func.func @transform_3(%arg0: i32, %arg1: i32, %arg2: i32) -> (i32, i32) {
    %c0_i32 = arith.constant 0 : i32
    return %arg0, %arg1 : i32, i32
  }
  func.func @transform_4(%arg0: i32, %arg1: i32, %arg2: i32) -> (i32, i32) {
    %c0_i32 = arith.constant 0 : i32
    return %arg0, %arg1 : i32, i32
  }
}

module attributes {stable_mosaic.version = 11 : i64} {
  func.func @_matmul_kernel(%arg0: i32, %arg1: i32, %arg2: i32, %arg3: memref<16x128xbf16, #tpu.memory_space<vmem>>, %arg4: memref<128x32xbf16, #tpu.memory_space<vmem>>, %arg5: memref<1x32xf32, #tpu.memory_space<vmem>>, %arg6: memref<16x32xf32, #tpu.memory_space<vmem>>, %arg7: memref<16x32xf32, #tpu.memory_space<vmem>>, %arg8: memref<16x32xf32, #tpu.memory_space<vmem>>) attributes {dimension_semantics = [#tpu.dimension_semantics<parallel>, #tpu.dimension_semantics<parallel>, #tpu.dimension_semantics<arbitrary>], iteration_bounds = array<i64: 1, 1, 1>, scalar_prefetch = 0 : i64, scratch_operands = 1 : i64, tpu.core_type = #tpu.core_type<tc>, window_params = [{transform_indices = @transform_0, window_bounds = array<i64: 16, 128>}, {transform_indices = @transform_1, window_bounds = array<i64: 128, 32>}, {transform_indices = @transform_2, window_bounds = array<i64: 1, 32>}, {transform_indices = @transform_3, window_bounds = array<i64: 16, 32>}, {transform_indices = @transform_4, window_bounds = array<i64: 16, 32>}]} {
    %c0_i32 = arith.constant 0 : i32
    %0 = arith.cmpi eq, %arg2, %c0_i32 : i32
    %1 = arith.extui %0 : i1 to i32
    %c0_i32_0 = arith.constant 0 : i32
    %2 = arith.cmpi ne, %1, %c0_i32_0 : i32
    scf.if %2 {
      %cst_10 = arith.constant 0.000000e+00 : f32
      %12 = vector.broadcast %cst_10 : f32 to vector<16x32xf32>
      %c0_11 = arith.constant 0 : index
      %c0_12 = arith.constant 0 : index
      %13 = vector.load %arg8[%c0_11, %c0_12] : memref<16x32xf32, #tpu.memory_space<vmem>>, vector<16x32xf32>
      tpu.vector_store %arg8[%c0_11, %c0_12], %12 {strides = array<i32>} : memref<16x32xf32, #tpu.memory_space<vmem>>, vector<16x32xf32>,
    } else {
    }
    %c0 = arith.constant 0 : index
    %c0_1 = arith.constant 0 : index
    %3 = vector.load %arg8[%c0, %c0_1] : memref<16x32xf32, #tpu.memory_space<vmem>>, vector<16x32xf32>
    %c0_2 = arith.constant 0 : index
    %c0_3 = arith.constant 0 : index
    %4 = vector.load %arg3[%c0_2, %c0_3] : memref<16x128xbf16, #tpu.memory_space<vmem>>, vector<16x128xbf16>
    %c0_4 = arith.constant 0 : index
    %c0_5 = arith.constant 0 : index
    %5 = vector.load %arg4[%c0_4, %c0_5] : memref<128x32xbf16, #tpu.memory_space<vmem>>, vector<128x32xbf16>
    %cst = arith.constant dense<0.000000e+00> : vector<16x32xf32>
    %6 = tpu.matmul %4, %5, %cst {dimension_numbers = #tpu.dot_dimension_numbers<[1], [0], [0], [1], [0, 0, 1, 1], [], []>} : vector<16x128xbf16>, vector<128x32xbf16>, vector<16x32xf32> -> vector<16x32xf32>
    %7 = arith.addf %3, %6 : vector<16x32xf32>
    %c0_6 = arith.constant 0 : index
    %c0_7 = arith.constant 0 : index
    %8 = vector.load %arg8[%c0_6, %c0_7] : memref<16x32xf32, #tpu.memory_space<vmem>>, vector<16x32xf32>
    tpu.vector_store %arg8[%c0_6, %c0_7], %7 {strides = array<i32>} : memref<16x32xf32, #tpu.memory_space<vmem>>, vector<16x32xf32>,
    %c0_i32_8 = arith.constant 0 : i32
    %9 = arith.cmpi eq, %arg2, %c0_i32_8 : i32
    %10 = arith.extui %9 : i1 to i32
    %c0_i32_9 = arith.constant 0 : i32
    %11 = arith.cmpi ne, %10, %c0_i32_9 : i32
    scf.if %11 {
      %c0_10 = arith.constant 0 : index
      %c0_11 = arith.constant 0 : index
      %12 = vector.load %arg8[%c0_10, %c0_11] : memref<16x32xf32, #tpu.memory_space<vmem>>, vector<16x32xf32>
      %c0_12 = arith.constant 0 : index
      %c0_13 = arith.constant 0 : index
      %13 = vector.load %arg5[%c0_12, %c0_13] : memref<1x32xf32, #tpu.memory_space<vmem>>, vector<1x32xf32>
      %14 = vector.broadcast %13 : vector<1x32xf32> to vector<16x32xf32>
      %15 = arith.addf %12, %14 : vector<16x32xf32>
      %c0_14 = arith.constant 0 : index
      %c0_15 = arith.constant 0 : index
      %16 = vector.load %arg6[%c0_14, %c0_15] : memref<16x32xf32, #tpu.memory_space<vmem>>, vector<16x32xf32>
      %17 = arith.addf %15, %16 : vector<16x32xf32>
      %c0_16 = arith.constant 0 : index
      %c0_17 = arith.constant 0 : index
      %18 = vector.load %arg7[%c0_16, %c0_17] : memref<16x32xf32, #tpu.memory_space<vmem>>, vector<16x32xf32>
      tpu.vector_store %arg7[%c0_16, %c0_17], %17 {strides = array<i32>} : memref<16x32xf32, #tpu.memory_space<vmem>>, vector<16x32xf32>,
    } else {
    }
    return
  }
  func.func @transform_0(%arg0: i32, %arg1: i32, %arg2: i32) -> (i32, i32) {
    %c0_i32 = arith.constant 0 : i32
    return %arg0, %arg2 : i32, i32
  }
  func.func @transform_1(%arg0: i32, %arg1: i32, %arg2: i32) -> (i32, i32) {
    %c0_i32 = arith.constant 0 : i32
    return %arg2, %arg1 : i32, i32
  }
  func.func @transform_2(%arg0: i32, %arg1: i32, %arg2: i32) -> (i32, i32) {
    %c0_i32 = arith.constant 0 : i32
    %c0_i32_0 = arith.constant 0 : i32
    return %c0_i32, %arg1 : i32, i32
  }
  func.func @transform_3(%arg0: i32, %arg1: i32, %arg2: i32) -> (i32, i32) {
    %c0_i32 = arith.constant 0 : i32
    return %arg0, %arg1 : i32, i32
  }
  func.func @transform_4(%arg0: i32, %arg1: i32, %arg2: i32) -> (i32, i32) {
    %c0_i32 = arith.constant 0 : i32
    return %arg0, %arg1 : i32, i32
  }
}

module attributes {stable_mosaic.version = 11 : i64} {
  func.func @_layernorm_kernel(%arg0: i32, %arg1: memref<16x32xf32, #tpu.memory_space<vmem>>, %arg2: memref<1x32xf32, #tpu.memory_space<vmem>>, %arg3: memref<1x32xf32, #tpu.memory_space<vmem>>, %arg4: memref<16x32xf32, #tpu.memory_space<vmem>>) attributes {dimension_semantics = [#tpu.dimension_semantics<parallel>], iteration_bounds = array<i64: 1>, scalar_prefetch = 0 : i64, scratch_operands = 0 : i64, tpu.core_type = #tpu.core_type<tc>, window_params = [{transform_indices = @transform_0, window_bounds = array<i64: 16, 32>}, {pipeline_mode = #tpu.pipeline_mode<synchronous>, transform_indices = @transform_1, window_bounds = array<i64: 1, 32>}, {pipeline_mode = #tpu.pipeline_mode<synchronous>, transform_indices = @transform_2, window_bounds = array<i64: 1, 32>}, {transform_indices = @transform_3, window_bounds = array<i64: 16, 32>}]} {
    %c0 = arith.constant 0 : index
    %c0_0 = arith.constant 0 : index
    %0 = vector.load %arg1[%c0, %c0_0] : memref<16x32xf32, #tpu.memory_space<vmem>>, vector<16x32xf32>
    %cst = arith.constant dense<0.000000e+00> : vector<16xf32>
    %1 = vector.multi_reduction <add>, %0, %cst [1] : vector<16x32xf32> to vector<16xf32>
    %2 = vector.shape_cast %1 : vector<16xf32> to vector<16x1xf32>
    %cst_1 = arith.constant 3.200000e+01 : f32
    %3 = vector.broadcast %cst_1 : f32 to vector<16x1xf32>
    %4 = arith.divf %2, %3 : vector<16x1xf32>
    %5 = vector.broadcast %4 : vector<16x1xf32> to vector<16x32xf32>
    %6 = arith.subf %0, %5 : vector<16x32xf32>
    %7 = arith.mulf %6, %6 : vector<16x32xf32>
    %cst_2 = arith.constant dense<0.000000e+00> : vector<16xf32>
    %8 = vector.multi_reduction <add>, %7, %cst_2 [1] : vector<16x32xf32> to vector<16xf32>
    %9 = vector.shape_cast %8 : vector<16xf32> to vector<16x1xf32>
    %cst_3 = arith.constant 3.200000e+01 : f32
    %10 = vector.broadcast %cst_3 : f32 to vector<16x1xf32>
    %11 = arith.divf %9, %10 : vector<16x1xf32>
    %12 = vector.broadcast %4 : vector<16x1xf32> to vector<16x32xf32>
    %13 = arith.subf %0, %12 : vector<16x32xf32>
    %cst_4 = arith.constant 9.99999997E-7 : f32
    %14 = vector.broadcast %cst_4 : f32 to vector<16x1xf32>
    %15 = arith.addf %11, %14 : vector<16x1xf32>
    %16 = math.rsqrt %15 : vector<16x1xf32>
    %17 = vector.broadcast %16 : vector<16x1xf32> to vector<16x32xf32>
    %18 = arith.mulf %13, %17 : vector<16x32xf32>
    %c0_5 = arith.constant 0 : index
    %c0_6 = arith.constant 0 : index
    %19 = vector.load %arg2[%c0_5, %c0_6] : memref<1x32xf32, #tpu.memory_space<vmem>>, vector<1x32xf32>
    %20 = vector.broadcast %19 : vector<1x32xf32> to vector<16x32xf32>
    %21 = arith.mulf %18, %20 : vector<16x32xf32>
    %c0_7 = arith.constant 0 : index
    %c0_8 = arith.constant 0 : index
    %22 = vector.load %arg3[%c0_7, %c0_8] : memref<1x32xf32, #tpu.memory_space<vmem>>, vector<1x32xf32>
    %23 = vector.broadcast %22 : vector<1x32xf32> to vector<16x32xf32>
    %24 = arith.addf %21, %23 : vector<16x32xf32>
    %c0_9 = arith.constant 0 : index
    %c0_10 = arith.constant 0 : index
    %25 = vector.load %arg4[%c0_9, %c0_10] : memref<16x32xf32, #tpu.memory_space<vmem>>, vector<16x32xf32>
    tpu.vector_store %arg4[%c0_9, %c0_10], %24 {strides = array<i32>} : memref<16x32xf32, #tpu.memory_space<vmem>>, vector<16x32xf32>,
    return
  }
  func.func @transform_0(%arg0: i32) -> (i32, i32) {
    %c0_i32 = arith.constant 0 : i32
    %c0_i32_0 = arith.constant 0 : i32
    return %arg0, %c0_i32 : i32, i32
  }
  func.func @transform_1(%arg0: i32) -> (i32, i32) {
    %c0_i32 = arith.constant 0 : i32
    %c0_i32_0 = arith.constant 0 : i32
    %c0_i32_1 = arith.constant 0 : i32
    return %c0_i32, %c0_i32_0 : i32, i32
  }
  func.func @transform_2(%arg0: i32) -> (i32, i32) {
    %c0_i32 = arith.constant 0 : i32
    %c0_i32_0 = arith.constant 0 : i32
    %c0_i32_1 = arith.constant 0 : i32
    return %c0_i32, %c0_i32_0 : i32, i32
  }
  func.func @transform_3(%arg0: i32) -> (i32, i32) {
    %c0_i32 = arith.constant 0 : i32
    %c0_i32_0 = arith.constant 0 : i32
    return %arg0, %c0_i32 : i32, i32
  }
}

module attributes {stable_mosaic.version = 11 : i64} {
  func.func @_ln_matmul_kernel(%arg0: i32, %arg1: i32, %arg2: memref<16x32xf32, #tpu.memory_space<vmem>>, %arg3: memref<1x32xf32, #tpu.memory_space<vmem>>, %arg4: memref<1x32xf32, #tpu.memory_space<vmem>>, %arg5: memref<32x128xbf16, #tpu.memory_space<vmem>>, %arg6: memref<1x128xf32, #tpu.memory_space<vmem>>, %arg7: memref<16x128xbf16, #tpu.memory_space<vmem>>, %arg8: memref<16x32xbf16, #tpu.memory_space<vmem>>) attributes {dimension_semantics = [#tpu.dimension_semantics<parallel>, #tpu.dimension_semantics<arbitrary>], iteration_bounds = array<i64: 1, 1>, scalar_prefetch = 0 : i64, scratch_operands = 1 : i64, tpu.core_type = #tpu.core_type<tc>, window_params = [{transform_indices = @transform_0, window_bounds = array<i64: 16, 32>}, {pipeline_mode = #tpu.pipeline_mode<synchronous>, transform_indices = @transform_1, window_bounds = array<i64: 1, 32>}, {pipeline_mode = #tpu.pipeline_mode<synchronous>, transform_indices = @transform_2, window_bounds = array<i64: 1, 32>}, {transform_indices = @transform_3, window_bounds = array<i64: 32, 128>}, {transform_indices = @transform_4, window_bounds = array<i64: 1, 128>}, {transform_indices = @transform_5, window_bounds = array<i64: 16, 128>}]} {
    %c0_i32 = arith.constant 0 : i32
    %0 = arith.cmpi eq, %arg1, %c0_i32 : i32
    %1 = arith.extui %0 : i1 to i32
    %c0_i32_0 = arith.constant 0 : i32
    %2 = arith.cmpi ne, %1, %c0_i32_0 : i32
    scf.if %2 {
      %c0_12 = arith.constant 0 : index
      %c0_13 = arith.constant 0 : index
      %24 = vector.load %arg2[%c0_12, %c0_13] : memref<16x32xf32, #tpu.memory_space<vmem>>, vector<16x32xf32>
      %cst_14 = arith.constant dense<0.000000e+00> : vector<16xf32>
      %25 = vector.multi_reduction <add>, %24, %cst_14 [1] : vector<16x32xf32> to vector<16xf32>
      %26 = vector.shape_cast %25 : vector<16xf32> to vector<16x1xf32>
      %cst_15 = arith.constant 3.200000e+01 : f32
      %27 = vector.broadcast %cst_15 : f32 to vector<16x1xf32>
      %28 = arith.divf %26, %27 : vector<16x1xf32>
      %29 = vector.broadcast %28 : vector<16x1xf32> to vector<16x32xf32>
      %30 = arith.subf %24, %29 : vector<16x32xf32>
      %31 = arith.mulf %30, %30 : vector<16x32xf32>
      %cst_16 = arith.constant dense<0.000000e+00> : vector<16xf32>
      %32 = vector.multi_reduction <add>, %31, %cst_16 [1] : vector<16x32xf32> to vector<16xf32>
      %33 = vector.shape_cast %32 : vector<16xf32> to vector<16x1xf32>
      %cst_17 = arith.constant 3.200000e+01 : f32
      %34 = vector.broadcast %cst_17 : f32 to vector<16x1xf32>
      %35 = arith.divf %33, %34 : vector<16x1xf32>
      %36 = vector.broadcast %28 : vector<16x1xf32> to vector<16x32xf32>
      %37 = arith.subf %24, %36 : vector<16x32xf32>
      %cst_18 = arith.constant 9.99999997E-7 : f32
      %38 = vector.broadcast %cst_18 : f32 to vector<16x1xf32>
      %39 = arith.addf %35, %38 : vector<16x1xf32>
      %40 = math.rsqrt %39 : vector<16x1xf32>
      %41 = vector.broadcast %40 : vector<16x1xf32> to vector<16x32xf32>
      %42 = arith.mulf %37, %41 : vector<16x32xf32>
      %c0_19 = arith.constant 0 : index
      %c0_20 = arith.constant 0 : index
      %43 = vector.load %arg3[%c0_19, %c0_20] : memref<1x32xf32, #tpu.memory_space<vmem>>, vector<1x32xf32>
      %44 = vector.broadcast %43 : vector<1x32xf32> to vector<16x32xf32>
      %45 = arith.mulf %42, %44 : vector<16x32xf32>
      %c0_21 = arith.constant 0 : index
      %c0_22 = arith.constant 0 : index
      %46 = vector.load %arg4[%c0_21, %c0_22] : memref<1x32xf32, #tpu.memory_space<vmem>>, vector<1x32xf32>
      %47 = vector.broadcast %46 : vector<1x32xf32> to vector<16x32xf32>
      %48 = arith.addf %45, %47 : vector<16x32xf32>
      %49 = arith.truncf %48 : vector<16x32xf32> to vector<16x32xbf16>
      %c0_23 = arith.constant 0 : index
      %c0_24 = arith.constant 0 : index
      %50 = vector.load %arg8[%c0_23, %c0_24] : memref<16x32xbf16, #tpu.memory_space<vmem>>, vector<16x32xbf16>
      tpu.vector_store %arg8[%c0_23, %c0_24], %49 {strides = array<i32>} : memref<16x32xbf16, #tpu.memory_space<vmem>>, vector<16x32xbf16>,
    } else {
    }
    %c0 = arith.constant 0 : index
    %c0_1 = arith.constant 0 : index
    %3 = vector.load %arg8[%c0, %c0_1] : memref<16x32xbf16, #tpu.memory_space<vmem>>, vector<16x32xbf16>
    %c0_2 = arith.constant 0 : index
    %c0_3 = arith.constant 0 : index
    %4 = vector.load %arg5[%c0_2, %c0_3] : memref<32x128xbf16, #tpu.memory_space<vmem>>, vector<32x128xbf16>
    %cst = arith.constant dense<0.000000e+00> : vector<16x128xf32>
    %5 = tpu.matmul %3, %4, %cst {dimension_numbers = #tpu.dot_dimension_numbers<[1], [0], [0], [1], [0, 0, 1, 1], [], []>} : vector<16x32xbf16>, vector<32x128xbf16>, vector<16x128xf32> -> vector<16x128xf32>
    %c0_4 = arith.constant 0 : index
    %c0_5 = arith.constant 0 : index
    %6 = vector.load %arg6[%c0_4, %c0_5] : memref<1x128xf32, #tpu.memory_space<vmem>>, vector<1x128xf32>
    %7 = vector.broadcast %6 : vector<1x128xf32> to vector<16x128xf32>
    %8 = arith.addf %5, %7 : vector<16x128xf32>
    %cst_6 = arith.constant 5.000000e-01 : f32
    %9 = vector.broadcast %cst_6 : f32 to vector<16x128xf32>
    %10 = arith.mulf %9, %8 : vector<16x128xf32>
    %cst_7 = arith.constant 4.471500e-02 : f32
    %11 = vector.broadcast %cst_7 : f32 to vector<16x128xf32>
    %12 = arith.mulf %11, %8 : vector<16x128xf32>
    %13 = arith.mulf %12, %8 : vector<16x128xf32>
    %14 = arith.mulf %13, %8 : vector<16x128xf32>
    %15 = arith.addf %8, %14 : vector<16x128xf32>
    %cst_8 = arith.constant 0.797884583 : f32
    %16 = vector.broadcast %cst_8 : f32 to vector<16x128xf32>
    %17 = arith.mulf %16, %15 : vector<16x128xf32>
    %18 = math.tanh %17 : vector<16x128xf32>
    %cst_9 = arith.constant 1.000000e+00 : f32
    %19 = vector.broadcast %cst_9 : f32 to vector<16x128xf32>
    %20 = arith.addf %19, %18 : vector<16x128xf32>
    %21 = arith.mulf %10, %20 : vector<16x128xf32>
    %22 = arith.truncf %21 : vector<16x128xf32> to vector<16x128xbf16>
    %c0_10 = arith.constant 0 : index
    %c0_11 = arith.constant 0 : index
    %23 = vector.load %arg7[%c0_10, %c0_11] : memref<16x128xbf16, #tpu.memory_space<vmem>>, vector<16x128xbf16>
    tpu.vector_store %arg7[%c0_10, %c0_11], %22 {strides = array<i32>} : memref<16x128xbf16, #tpu.memory_space<vmem>>, vector<16x128xbf16>,
    return
  }
  func.func @transform_0(%arg0: i32, %arg1: i32) -> (i32, i32) {
    %c0_i32 = arith.constant 0 : i32
    %c0_i32_0 = arith.constant 0 : i32
    return %arg0, %c0_i32 : i32, i32
  }
  func.func @transform_1(%arg0: i32, %arg1: i32) -> (i32, i32) {
    %c0_i32 = arith.constant 0 : i32
    %c0_i32_0 = arith.constant 0 : i32
    %c0_i32_1 = arith.constant 0 : i32
    return %c0_i32, %c0_i32_0 : i32, i32
  }
  func.func @transform_2(%arg0: i32, %arg1: i32) -> (i32, i32) {
    %c0_i32 = arith.constant 0 : i32
    %c0_i32_0 = arith.constant 0 : i32
    %c0_i32_1 = arith.constant 0 : i32
    return %c0_i32, %c0_i32_0 : i32, i32
  }
  func.func @transform_3(%arg0: i32, %arg1: i32) -> (i32, i32) {
    %c0_i32 = arith.constant 0 : i32
    %c0_i32_0 = arith.constant 0 : i32
    return %c0_i32, %arg1 : i32, i32
  }
  func.func @transform_4(%arg0: i32, %arg1: i32) -> (i32, i32) {
    %c0_i32 = arith.constant 0 : i32
    %c0_i32_0 = arith.constant 0 : i32
    return %c0_i32, %arg1 : i32, i32
  }
  func.func @transform_5(%arg0: i32, %arg1: i32) -> (i32, i32) {
    %c0_i32 = arith.constant 0 : i32
    return %arg0, %arg1 : i32, i32
  }
}

module attributes {stable_mosaic.version = 11 : i64} {
  func.func @_matmul_kernel(%arg0: i32, %arg1: i32, %arg2: i32, %arg3: memref<16x32xf32, #tpu.memory_space<vmem>>, %arg4: memref<32x64xbf16, #tpu.memory_space<vmem>>, %arg5: memref<1x64xf32, #tpu.memory_space<vmem>>, %arg6: memref<16x64xbf16, #tpu.memory_space<vmem>>, %arg7: memref<16x64xf32, #tpu.memory_space<vmem>>) attributes {dimension_semantics = [#tpu.dimension_semantics<parallel>, #tpu.dimension_semantics<parallel>, #tpu.dimension_semantics<arbitrary>], iteration_bounds = array<i64: 1, 1, 1>, scalar_prefetch = 0 : i64, scratch_operands = 1 : i64, tpu.core_type = #tpu.core_type<tc>, window_params = [{transform_indices = @transform_0, window_bounds = array<i64: 16, 32>}, {transform_indices = @transform_1, window_bounds = array<i64: 32, 64>}, {transform_indices = @transform_2, window_bounds = array<i64: 1, 64>}, {transform_indices = @transform_3, window_bounds = array<i64: 16, 64>}]} {
    %c0_i32 = arith.constant 0 : i32
    %0 = arith.cmpi eq, %arg2, %c0_i32 : i32
    %1 = arith.extui %0 : i1 to i32
    %c0_i32_0 = arith.constant 0 : i32
    %2 = arith.cmpi ne, %1, %c0_i32_0 : i32
    scf.if %2 {
      %cst_10 = arith.constant 0.000000e+00 : f32
      %13 = vector.broadcast %cst_10 : f32 to vector<16x64xf32>
      %c0_11 = arith.constant 0 : index
      %c0_12 = arith.constant 0 : index
      %14 = vector.load %arg7[%c0_11, %c0_12] : memref<16x64xf32, #tpu.memory_space<vmem>>, vector<16x64xf32>
      tpu.vector_store %arg7[%c0_11, %c0_12], %13 {strides = array<i32>} : memref<16x64xf32, #tpu.memory_space<vmem>>, vector<16x64xf32>,
    } else {
    }
    %c0 = arith.constant 0 : index
    %c0_1 = arith.constant 0 : index
    %3 = vector.load %arg7[%c0, %c0_1] : memref<16x64xf32, #tpu.memory_space<vmem>>, vector<16x64xf32>
    %c0_2 = arith.constant 0 : index
    %c0_3 = arith.constant 0 : index
    %4 = vector.load %arg3[%c0_2, %c0_3] : memref<16x32xf32, #tpu.memory_space<vmem>>, vector<16x32xf32>
    %5 = arith.truncf %4 : vector<16x32xf32> to vector<16x32xbf16>
    %c0_4 = arith.constant 0 : index
    %c0_5 = arith.constant 0 : index
    %6 = vector.load %arg4[%c0_4, %c0_5] : memref<32x64xbf16, #tpu.memory_space<vmem>>, vector<32x64xbf16>
    %cst = arith.constant dense<0.000000e+00> : vector<16x64xf32>
    %7 = tpu.matmul %5, %6, %cst {dimension_numbers = #tpu.dot_dimension_numbers<[1], [0], [0], [1], [0, 0, 1, 1], [], []>} : vector<16x32xbf16>, vector<32x64xbf16>, vector<16x64xf32> -> vector<16x64xf32>
    %8 = arith.addf %3, %7 : vector<16x64xf32>
    %c0_6 = arith.constant 0 : index
    %c0_7 = arith.constant 0 : index
    %9 = vector.load %arg7[%c0_6, %c0_7] : memref<16x64xf32, #tpu.memory_space<vmem>>, vector<16x64xf32>
    tpu.vector_store %arg7[%c0_6, %c0_7], %8 {strides = array<i32>} : memref<16x64xf32, #tpu.memory_space<vmem>>, vector<16x64xf32>,
    %c0_i32_8 = arith.constant 0 : i32
    %10 = arith.cmpi eq, %arg2, %c0_i32_8 : i32
    %11 = arith.extui %10 : i1 to i32
    %c0_i32_9 = arith.constant 0 : i32
    %12 = arith.cmpi ne, %11, %c0_i32_9 : i32
    scf.if %12 {
      %c0_10 = arith.constant 0 : index
      %c0_11 = arith.constant 0 : index
      %13 = vector.load %arg7[%c0_10, %c0_11] : memref<16x64xf32, #tpu.memory_space<vmem>>, vector<16x64xf32>
      %c0_12 = arith.constant 0 : index
      %c0_13 = arith.constant 0 : index
      %14 = vector.load %arg5[%c0_12, %c0_13] : memref<1x64xf32, #tpu.memory_space<vmem>>, vector<1x64xf32>
      %15 = vector.broadcast %14 : vector<1x64xf32> to vector<16x64xf32>
      %16 = arith.addf %13, %15 : vector<16x64xf32>
      %17 = arith.truncf %16 : vector<16x64xf32> to vector<16x64xbf16>
      %c0_14 = arith.constant 0 : index
      %c0_15 = arith.constant 0 : index
      %18 = vector.load %arg6[%c0_14, %c0_15] : memref<16x64xbf16, #tpu.memory_space<vmem>>, vector<16x64xbf16>
      tpu.vector_store %arg6[%c0_14, %c0_15], %17 {strides = array<i32>} : memref<16x64xbf16, #tpu.memory_space<vmem>>, vector<16x64xbf16>,
    } else {
    }
    return
  }
  func.func @transform_0(%arg0: i32, %arg1: i32, %arg2: i32) -> (i32, i32) {
    %c0_i32 = arith.constant 0 : i32
    return %arg0, %arg2 : i32, i32
  }
  func.func @transform_1(%arg0: i32, %arg1: i32, %arg2: i32) -> (i32, i32) {
    %c0_i32 = arith.constant 0 : i32
    return %arg2, %arg1 : i32, i32
  }
  func.func @transform_2(%arg0: i32, %arg1: i32, %arg2: i32) -> (i32, i32) {
    %c0_i32 = arith.constant 0 : i32
    %c0_i32_0 = arith.constant 0 : i32
    return %c0_i32, %arg1 : i32, i32
  }
  func.func @transform_3(%arg0: i32, %arg1: i32, %arg2: i32) -> (i32, i32) {
    %c0_i32 = arith.constant 0 : i32
    return %arg0, %arg1 : i32, i32
  }
}

module attributes {stable_mosaic.version = 11 : i64} {
  func.func @_matmul_kernel(%arg0: i32, %arg1: i32, %arg2: i32, %arg3: memref<16x32xf32, #tpu.memory_space<vmem>>, %arg4: memref<32x96xbf16, #tpu.memory_space<vmem>>, %arg5: memref<1x96xf32, #tpu.memory_space<vmem>>, %arg6: memref<16x96xbf16, #tpu.memory_space<vmem>>, %arg7: memref<16x96xf32, #tpu.memory_space<vmem>>) attributes {dimension_semantics = [#tpu.dimension_semantics<parallel>, #tpu.dimension_semantics<parallel>, #tpu.dimension_semantics<arbitrary>], iteration_bounds = array<i64: 1, 1, 1>, scalar_prefetch = 0 : i64, scratch_operands = 1 : i64, tpu.core_type = #tpu.core_type<tc>, window_params = [{transform_indices = @transform_0, window_bounds = array<i64: 16, 32>}, {transform_indices = @transform_1, window_bounds = array<i64: 32, 96>}, {transform_indices = @transform_2, window_bounds = array<i64: 1, 96>}, {transform_indices = @transform_3, window_bounds = array<i64: 16, 96>}]} {
    %c0_i32 = arith.constant 0 : i32
    %0 = arith.cmpi eq, %arg2, %c0_i32 : i32
    %1 = arith.extui %0 : i1 to i32
    %c0_i32_0 = arith.constant 0 : i32
    %2 = arith.cmpi ne, %1, %c0_i32_0 : i32
    scf.if %2 {
      %cst_10 = arith.constant 0.000000e+00 : f32
      %13 = vector.broadcast %cst_10 : f32 to vector<16x96xf32>
      %c0_11 = arith.constant 0 : index
      %c0_12 = arith.constant 0 : index
      %14 = vector.load %arg7[%c0_11, %c0_12] : memref<16x96xf32, #tpu.memory_space<vmem>>, vector<16x96xf32>
      tpu.vector_store %arg7[%c0_11, %c0_12], %13 {strides = array<i32>} : memref<16x96xf32, #tpu.memory_space<vmem>>, vector<16x96xf32>,
    } else {
    }
    %c0 = arith.constant 0 : index
    %c0_1 = arith.constant 0 : index
    %3 = vector.load %arg7[%c0, %c0_1] : memref<16x96xf32, #tpu.memory_space<vmem>>, vector<16x96xf32>
    %c0_2 = arith.constant 0 : index
    %c0_3 = arith.constant 0 : index
    %4 = vector.load %arg3[%c0_2, %c0_3] : memref<16x32xf32, #tpu.memory_space<vmem>>, vector<16x32xf32>
    %5 = arith.truncf %4 : vector<16x32xf32> to vector<16x32xbf16>
    %c0_4 = arith.constant 0 : index
    %c0_5 = arith.constant 0 : index
    %6 = vector.load %arg4[%c0_4, %c0_5] : memref<32x96xbf16, #tpu.memory_space<vmem>>, vector<32x96xbf16>
    %cst = arith.constant dense<0.000000e+00> : vector<16x96xf32>
    %7 = tpu.matmul %5, %6, %cst {dimension_numbers = #tpu.dot_dimension_numbers<[1], [0], [0], [1], [0, 0, 1, 1], [], []>} : vector<16x32xbf16>, vector<32x96xbf16>, vector<16x96xf32> -> vector<16x96xf32>
    %8 = arith.addf %3, %7 : vector<16x96xf32>
    %c0_6 = arith.constant 0 : index
    %c0_7 = arith.constant 0 : index
    %9 = vector.load %arg7[%c0_6, %c0_7] : memref<16x96xf32, #tpu.memory_space<vmem>>, vector<16x96xf32>
    tpu.vector_store %arg7[%c0_6, %c0_7], %8 {strides = array<i32>} : memref<16x96xf32, #tpu.memory_space<vmem>>, vector<16x96xf32>,
    %c0_i32_8 = arith.constant 0 : i32
    %10 = arith.cmpi eq, %arg2, %c0_i32_8 : i32
    %11 = arith.extui %10 : i1 to i32
    %c0_i32_9 = arith.constant 0 : i32
    %12 = arith.cmpi ne, %11, %c0_i32_9 : i32
    scf.if %12 {
      %c0_10 = arith.constant 0 : index
      %c0_11 = arith.constant 0 : index
      %13 = vector.load %arg7[%c0_10, %c0_11] : memref<16x96xf32, #tpu.memory_space<vmem>>, vector<16x96xf32>
      %c0_12 = arith.constant 0 : index
      %c0_13 = arith.constant 0 : index
      %14 = vector.load %arg5[%c0_12, %c0_13] : memref<1x96xf32, #tpu.memory_space<vmem>>, vector<1x96xf32>
      %15 = vector.broadcast %14 : vector<1x96xf32> to vector<16x96xf32>
      %16 = arith.addf %13, %15 : vector<16x96xf32>
      %17 = arith.truncf %16 : vector<16x96xf32> to vector<16x96xbf16>
      %c0_14 = arith.constant 0 : index
      %c0_15 = arith.constant 0 : index
      %18 = vector.load %arg6[%c0_14, %c0_15] : memref<16x96xbf16, #tpu.memory_space<vmem>>, vector<16x96xbf16>
      tpu.vector_store %arg6[%c0_14, %c0_15], %17 {strides = array<i32>} : memref<16x96xbf16, #tpu.memory_space<vmem>>, vector<16x96xbf16>,
    } else {
    }
    return
  }
  func.func @transform_0(%arg0: i32, %arg1: i32, %arg2: i32) -> (i32, i32) {
    %c0_i32 = arith.constant 0 : i32
    return %arg0, %arg2 : i32, i32
  }
  func.func @transform_1(%arg0: i32, %arg1: i32, %arg2: i32) -> (i32, i32) {
    %c0_i32 = arith.constant 0 : i32
    return %arg2, %arg1 : i32, i32
  }
  func.func @transform_2(%arg0: i32, %arg1: i32, %arg2: i32) -> (i32, i32) {
    %c0_i32 = arith.constant 0 : i32
    %c0_i32_0 = arith.constant 0 : i32
    return %c0_i32, %arg1 : i32, i32
  }
  func.func @transform_3(%arg0: i32, %arg1: i32, %arg2: i32) -> (i32, i32) {
    %c0_i32 = arith.constant 0 : i32
    return %arg0, %arg1 : i32, i32
  }
}

module attributes {stable_mosaic.version = 11 : i64} {
  func.func @_layernorm_kernel(%arg0: i32, %arg1: memref<16x32xf32, #tpu.memory_space<vmem>>, %arg2: memref<1x32xf32, #tpu.memory_space<vmem>>, %arg3: memref<1x32xf32, #tpu.memory_space<vmem>>, %arg4: memref<16x32xf32, #tpu.memory_space<vmem>>) attributes {dimension_semantics = [#tpu.dimension_semantics<parallel>], iteration_bounds = array<i64: 1>, scalar_prefetch = 0 : i64, scratch_operands = 0 : i64, tpu.core_type = #tpu.core_type<tc>, window_params = [{transform_indices = @transform_0, window_bounds = array<i64: 16, 32>}, {pipeline_mode = #tpu.pipeline_mode<synchronous>, transform_indices = @transform_1, window_bounds = array<i64: 1, 32>}, {pipeline_mode = #tpu.pipeline_mode<synchronous>, transform_indices = @transform_2, window_bounds = array<i64: 1, 32>}, {transform_indices = @transform_3, window_bounds = array<i64: 16, 32>}]} {
    %c0 = arith.constant 0 : index
    %c0_0 = arith.constant 0 : index
    %0 = vector.load %arg1[%c0, %c0_0] : memref<16x32xf32, #tpu.memory_space<vmem>>, vector<16x32xf32>
    %cst = arith.constant dense<0.000000e+00> : vector<16xf32>
    %1 = vector.multi_reduction <add>, %0, %cst [1] : vector<16x32xf32> to vector<16xf32>
    %2 = vector.shape_cast %1 : vector<16xf32> to vector<16x1xf32>
    %cst_1 = arith.constant 3.200000e+01 : f32
    %3 = vector.broadcast %cst_1 : f32 to vector<16x1xf32>
    %4 = arith.divf %2, %3 : vector<16x1xf32>
    %5 = vector.broadcast %4 : vector<16x1xf32> to vector<16x32xf32>
    %6 = arith.subf %0, %5 : vector<16x32xf32>
    %7 = arith.mulf %6, %6 : vector<16x32xf32>
    %cst_2 = arith.constant dense<0.000000e+00> : vector<16xf32>
    %8 = vector.multi_reduction <add>, %7, %cst_2 [1] : vector<16x32xf32> to vector<16xf32>
    %9 = vector.shape_cast %8 : vector<16xf32> to vector<16x1xf32>
    %cst_3 = arith.constant 3.200000e+01 : f32
    %10 = vector.broadcast %cst_3 : f32 to vector<16x1xf32>
    %11 = arith.divf %9, %10 : vector<16x1xf32>
    %12 = vector.broadcast %4 : vector<16x1xf32> to vector<16x32xf32>
    %13 = arith.subf %0, %12 : vector<16x32xf32>
    %cst_4 = arith.constant 9.99999996E-13 : f32
    %14 = vector.broadcast %cst_4 : f32 to vector<16x1xf32>
    %15 = arith.addf %11, %14 : vector<16x1xf32>
    %16 = math.rsqrt %15 : vector<16x1xf32>
    %17 = vector.broadcast %16 : vector<16x1xf32> to vector<16x32xf32>
    %18 = arith.mulf %13, %17 : vector<16x32xf32>
    %c0_5 = arith.constant 0 : index
    %c0_6 = arith.constant 0 : index
    %19 = vector.load %arg2[%c0_5, %c0_6] : memref<1x32xf32, #tpu.memory_space<vmem>>, vector<1x32xf32>
    %20 = vector.broadcast %19 : vector<1x32xf32> to vector<16x32xf32>
    %21 = arith.mulf %18, %20 : vector<16x32xf32>
    %c0_7 = arith.constant 0 : index
    %c0_8 = arith.constant 0 : index
    %22 = vector.load %arg3[%c0_7, %c0_8] : memref<1x32xf32, #tpu.memory_space<vmem>>, vector<1x32xf32>
    %23 = vector.broadcast %22 : vector<1x32xf32> to vector<16x32xf32>
    %24 = arith.addf %21, %23 : vector<16x32xf32>
    %c0_9 = arith.constant 0 : index
    %c0_10 = arith.constant 0 : index
    %25 = vector.load %arg4[%c0_9, %c0_10] : memref<16x32xf32, #tpu.memory_space<vmem>>, vector<16x32xf32>
    tpu.vector_store %arg4[%c0_9, %c0_10], %24 {strides = array<i32>} : memref<16x32xf32, #tpu.memory_space<vmem>>, vector<16x32xf32>,
    return
  }
  func.func @transform_0(%arg0: i32) -> (i32, i32) {
    %c0_i32 = arith.constant 0 : i32
    %c0_i32_0 = arith.constant 0 : i32
    return %arg0, %c0_i32 : i32, i32
  }
  func.func @transform_1(%arg0: i32) -> (i32, i32) {
    %c0_i32 = arith.constant 0 : i32
    %c0_i32_0 = arith.constant 0 : i32
    %c0_i32_1 = arith.constant 0 : i32
    return %c0_i32, %c0_i32_0 : i32, i32
  }
  func.func @transform_2(%arg0: i32) -> (i32, i32) {
    %c0_i32 = arith.constant 0 : i32
    %c0_i32_0 = arith.constant 0 : i32
    %c0_i32_1 = arith.constant 0 : i32
    return %c0_i32, %c0_i32_0 : i32, i32
  }
  func.func @transform_3(%arg0: i32) -> (i32, i32) {
    %c0_i32 = arith.constant 0 : i32
    %c0_i32_0 = arith.constant 0 : i32
    return %arg0, %c0_i32 : i32, i32
  }
}

module attributes {stable_mosaic.version = 11 : i64} {
  func.func @_mha_kernel(%arg0: i32, %arg1: i32, %arg2: memref<1x8x96xbf16, #tpu.memory_space<vmem>>, %arg3: memref<1x8x96xbf16, #tpu.memory_space<vmem>>, %arg4: memref<1x1x8xf32, #tpu.memory_space<vmem>>, %arg5: memref<1x8x32xbf16, #tpu.memory_space<vmem>>) attributes {dimension_semantics = [#tpu.dimension_semantics<parallel>, #tpu.dimension_semantics<parallel>], iteration_bounds = array<i64: 2, 1>, scalar_prefetch = 0 : i64, scratch_operands = 0 : i64, tpu.core_type = #tpu.core_type<tc>, window_params = [{transform_indices = @transform_0, window_bounds = array<i64: 1, 8, 96>}, {transform_indices = @transform_1, window_bounds = array<i64: 1, 8, 96>}, {transform_indices = @transform_2, window_bounds = array<i64: 1, 1, 8>}, {transform_indices = @transform_3, window_bounds = array<i64: 1, 8, 32>}]} {
    %c0 = arith.constant 0 : index
    %c0_0 = arith.constant 0 : index
    %c0_1 = arith.constant 0 : index
    %0 = vector.load %arg2[%c0, %c0_0, %c0_1] : memref<1x8x96xbf16, #tpu.memory_space<vmem>>, vector<1x8x32xbf16>
    %1 = vector.shape_cast %0 : vector<1x8x32xbf16> to vector<8x32xbf16>
    %cst = arith.constant 3.535160e-01 : bf16
    %2 = vector.broadcast %cst : bf16 to vector<8x32xbf16>
    %3 = arith.mulf %1, %2 : vector<8x32xbf16>
    %c0_2 = arith.constant 0 : index
    %c0_3 = arith.constant 0 : index
    %c32 = arith.constant 32 : index
    %4 = vector.load %arg3[%c0_2, %c0_3, %c32] : memref<1x8x96xbf16, #tpu.memory_space<vmem>>, vector<1x8x32xbf16>
    %5 = vector.shape_cast %4 : vector<1x8x32xbf16> to vector<8x32xbf16>
    %c0_4 = arith.constant 0 : index
    %c0_5 = arith.constant 0 : index
    %c64 = arith.constant 64 : index
    %6 = vector.load %arg3[%c0_4, %c0_5, %c64] : memref<1x8x96xbf16, #tpu.memory_space<vmem>>, vector<1x8x32xbf16>
    %7 = vector.shape_cast %6 : vector<1x8x32xbf16> to vector<8x32xbf16>
    %8 = tpu.iota {dimensions = array<i32: 1>} : vector<8x8xi32>
    %9 = tpu.iota {dimensions = array<i32: 0>} : vector<8x8xi32>
    %c8_i32 = arith.constant 8 : i32
    %10 = arith.muli %arg1, %c8_i32 : i32
    %11 = vector.broadcast %10 : i32 to vector<8x8xi32>
    %12 = arith.addi %9, %11 : vector<8x8xi32>
    %13 = arith.cmpi sle, %8, %12 : vector<8x8xi32>
    %cst_6 = arith.constant 0.000000e+00 : f32
    %cst_7 = arith.constant -1.000000e+04 : f32
    %14 = vector.broadcast %cst_6 : f32 to vector<8x8xf32>
    %15 = vector.broadcast %cst_7 : f32 to vector<8x8xf32>
    %16 = arith.select %13, %14, %15 : vector<8x8xi1>, vector<8x8xf32>
    %c0_8 = arith.constant 0 : index
    %c0_9 = arith.constant 0 : index
    %c0_10 = arith.constant 0 : index
    %17 = vector.load %arg4[%c0_8, %c0_9, %c0_10] : memref<1x1x8xf32, #tpu.memory_space<vmem>>, vector<1x1x8xf32>
    %18 = vector.shape_cast %17 : vector<1x1x8xf32> to vector<1x8xf32>
    %cst_11 = arith.constant 1.000000e+00 : f32
    %19 = vector.broadcast %cst_11 : f32 to vector<1x8xf32>
    %20 = arith.subf %19, %18 : vector<1x8xf32>
    %cst_12 = arith.constant -1.000000e+04 : f32
    %21 = vector.broadcast %cst_12 : f32 to vector<1x8xf32>
    %22 = arith.mulf %20, %21 : vector<1x8xf32>
    %23 = vector.broadcast %22 : vector<1x8xf32> to vector<8x8xf32>
    %24 = arith.addf %16, %23 : vector<8x8xf32>
    %25 = vector.extract_strided_slice %3 {offsets = [0, 0], sizes = [8, 8], strides = [1, 1]} : vector<8x32xbf16> to vector<8x8xbf16>
    %26 = vector.extract_strided_slice %5 {offsets = [0, 0], sizes = [8, 8], strides = [1, 1]} : vector<8x32xbf16> to vector<8x8xbf16>
    %27 = vector.extract_strided_slice %7 {offsets = [0, 0], sizes = [8, 8], strides = [1, 1]} : vector<8x32xbf16> to vector<8x8xbf16>
    %cst_13 = arith.constant dense<0.000000e+00> : vector<8x8xf32>
    %28 = tpu.matmul %25, %26, %cst_13 {dimension_numbers = #tpu.dot_dimension_numbers<[1], [1], [0], [0], [0, 0, 1, 0], [], []>} : vector<8x8xbf16>, vector<8x8xbf16>, vector<8x8xf32> -> vector<8x8xf32>
    %29 = arith.addf %28, %24 : vector<8x8xf32>
    %cst_14 = arith.constant dense<0xFF800000> : vector<8xf32>
    %30 = vector.multi_reduction <maximumf>, %29, %cst_14 [1] : vector<8x8xf32> to vector<8xf32>
    %31 = vector.shape_cast %30 : vector<8xf32> to vector<8x1xf32>
    %32 = vector.broadcast %31 : vector<8x1xf32> to vector<8x8xf32>
    %33 = arith.subf %29, %32 : vector<8x8xf32>
    %34 = math.exp %33 : vector<8x8xf32>
    %cst_15 = arith.constant dense<0.000000e+00> : vector<8xf32>
    %35 = vector.multi_reduction <add>, %34, %cst_15 [1] : vector<8x8xf32> to vector<8xf32>
    %36 = vector.shape_cast %35 : vector<8xf32> to vector<8x1xf32>
    %37 = tpu.reciprocal %36 {approx = true} : vector<8x1xf32> -> vector<8x1xf32>
    %38 = vector.broadcast %37 : vector<8x1xf32> to vector<8x8xf32>
    %39 = arith.mulf %34, %38 : vector<8x8xf32>
    %40 = arith.truncf %39 : vector<8x8xf32> to vector<8x8xbf16>
    %cst_16 = arith.constant dense<0.000000e+00> : vector<8x8xf32>
    %41 = tpu.matmul %40, %27, %cst_16 {dimension_numbers = #tpu.dot_dimension_numbers<[1], [0], [0], [1], [0, 0, 1, 1], [], []>} : vector<8x8xbf16>, vector<8x8xbf16>, vector<8x8xf32> -> vector<8x8xf32>
    %42 = vector.extract_strided_slice %3 {offsets = [0, 8], sizes = [8, 8], strides = [1, 1]} : vector<8x32xbf16> to vector<8x8xbf16>
    %43 = vector.extract_strided_slice %5 {offsets = [0, 8], sizes = [8, 8], strides = [1, 1]} : vector<8x32xbf16> to vector<8x8xbf16>
    %44 = vector.extract_strided_slice %7 {offsets = [0, 8], sizes = [8, 8], strides = [1, 1]} : vector<8x32xbf16> to vector<8x8xbf16>
    %cst_17 = arith.constant dense<0.000000e+00> : vector<8x8xf32>
    %45 = tpu.matmul %42, %43, %cst_17 {dimension_numbers = #tpu.dot_dimension_numbers<[1], [1], [0], [0], [0, 0, 1, 0], [], []>} : vector<8x8xbf16>, vector<8x8xbf16>, vector<8x8xf32> -> vector<8x8xf32>
    %46 = arith.addf %45, %24 : vector<8x8xf32>
    %cst_18 = arith.constant dense<0xFF800000> : vector<8xf32>
    %47 = vector.multi_reduction <maximumf>, %46, %cst_18 [1] : vector<8x8xf32> to vector<8xf32>
    %48 = vector.shape_cast %47 : vector<8xf32> to vector<8x1xf32>
    %49 = vector.broadcast %48 : vector<8x1xf32> to vector<8x8xf32>
    %50 = arith.subf %46, %49 : vector<8x8xf32>
    %51 = math.exp %50 : vector<8x8xf32>
    %cst_19 = arith.constant dense<0.000000e+00> : vector<8xf32>
    %52 = vector.multi_reduction <add>, %51, %cst_19 [1] : vector<8x8xf32> to vector<8xf32>
    %53 = vector.shape_cast %52 : vector<8xf32> to vector<8x1xf32>
    %54 = tpu.reciprocal %53 {approx = true} : vector<8x1xf32> -> vector<8x1xf32>
    %55 = vector.broadcast %54 : vector<8x1xf32> to vector<8x8xf32>
    %56 = arith.mulf %51, %55 : vector<8x8xf32>
    %57 = arith.truncf %56 : vector<8x8xf32> to vector<8x8xbf16>
    %cst_20 = arith.constant dense<0.000000e+00> : vector<8x8xf32>
    %58 = tpu.matmul %57, %44, %cst_20 {dimension_numbers = #tpu.dot_dimension_numbers<[1], [0], [0], [1], [0, 0, 1, 1], [], []>} : vector<8x8xbf16>, vector<8x8xbf16>, vector<8x8xf32> -> vector<8x8xf32>
    %59 = vector.extract_strided_slice %3 {offsets = [0, 16], sizes = [8, 8], strides = [1, 1]} : vector<8x32xbf16> to vector<8x8xbf16>
    %60 = vector.extract_strided_slice %5 {offsets = [0, 16], sizes = [8, 8], strides = [1, 1]} : vector<8x32xbf16> to vector<8x8xbf16>
    %61 = vector.extract_strided_slice %7 {offsets = [0, 16], sizes = [8, 8], strides = [1, 1]} : vector<8x32xbf16> to vector<8x8xbf16>
    %cst_21 = arith.constant dense<0.000000e+00> : vector<8x8xf32>
    %62 = tpu.matmul %59, %60, %cst_21 {dimension_numbers = #tpu.dot_dimension_numbers<[1], [1], [0], [0], [0, 0, 1, 0], [], []>} : vector<8x8xbf16>, vector<8x8xbf16>, vector<8x8xf32> -> vector<8x8xf32>
    %63 = arith.addf %62, %24 : vector<8x8xf32>
    %cst_22 = arith.constant dense<0xFF800000> : vector<8xf32>
    %64 = vector.multi_reduction <maximumf>, %63, %cst_22 [1] : vector<8x8xf32> to vector<8xf32>
    %65 = vector.shape_cast %64 : vector<8xf32> to vector<8x1xf32>
    %66 = vector.broadcast %65 : vector<8x1xf32> to vector<8x8xf32>
    %67 = arith.subf %63, %66 : vector<8x8xf32>
    %68 = math.exp %67 : vector<8x8xf32>
    %cst_23 = arith.constant dense<0.000000e+00> : vector<8xf32>
    %69 = vector.multi_reduction <add>, %68, %cst_23 [1] : vector<8x8xf32> to vector<8xf32>
    %70 = vector.shape_cast %69 : vector<8xf32> to vector<8x1xf32>
    %71 = tpu.reciprocal %70 {approx = true} : vector<8x1xf32> -> vector<8x1xf32>
    %72 = vector.broadcast %71 : vector<8x1xf32> to vector<8x8xf32>
    %73 = arith.mulf %68, %72 : vector<8x8xf32>
    %74 = arith.truncf %73 : vector<8x8xf32> to vector<8x8xbf16>
    %cst_24 = arith.constant dense<0.000000e+00> : vector<8x8xf32>
    %75 = tpu.matmul %74, %61, %cst_24 {dimension_numbers = #tpu.dot_dimension_numbers<[1], [0], [0], [1], [0, 0, 1, 1], [], []>} : vector<8x8xbf16>, vector<8x8xbf16>, vector<8x8xf32> -> vector<8x8xf32>
    %76 = vector.extract_strided_slice %3 {offsets = [0, 24], sizes = [8, 8], strides = [1, 1]} : vector<8x32xbf16> to vector<8x8xbf16>
    %77 = vector.extract_strided_slice %5 {offsets = [0, 24], sizes = [8, 8], strides = [1, 1]} : vector<8x32xbf16> to vector<8x8xbf16>
    %78 = vector.extract_strided_slice %7 {offsets = [0, 24], sizes = [8, 8], strides = [1, 1]} : vector<8x32xbf16> to vector<8x8xbf16>
    %cst_25 = arith.constant dense<0.000000e+00> : vector<8x8xf32>
    %79 = tpu.matmul %76, %77, %cst_25 {dimension_numbers = #tpu.dot_dimension_numbers<[1], [1], [0], [0], [0, 0, 1, 0], [], []>} : vector<8x8xbf16>, vector<8x8xbf16>, vector<8x8xf32> -> vector<8x8xf32>
    %80 = arith.addf %79, %24 : vector<8x8xf32>
    %cst_26 = arith.constant dense<0xFF800000> : vector<8xf32>
    %81 = vector.multi_reduction <maximumf>, %80, %cst_26 [1] : vector<8x8xf32> to vector<8xf32>
    %82 = vector.shape_cast %81 : vector<8xf32> to vector<8x1xf32>
    %83 = vector.broadcast %82 : vector<8x1xf32> to vector<8x8xf32>
    %84 = arith.subf %80, %83 : vector<8x8xf32>
    %85 = math.exp %84 : vector<8x8xf32>
    %cst_27 = arith.constant dense<0.000000e+00> : vector<8xf32>
    %86 = vector.multi_reduction <add>, %85, %cst_27 [1] : vector<8x8xf32> to vector<8xf32>
    %87 = vector.shape_cast %86 : vector<8xf32> to vector<8x1xf32>
    %88 = tpu.reciprocal %87 {approx = true} : vector<8x1xf32> -> vector<8x1xf32>
    %89 = vector.broadcast %88 : vector<8x1xf32> to vector<8x8xf32>
    %90 = arith.mulf %85, %89 : vector<8x8xf32>
    %91 = arith.truncf %90 : vector<8x8xf32> to vector<8x8xbf16>
    %cst_28 = arith.constant dense<0.000000e+00> : vector<8x8xf32>
    %92 = tpu.matmul %91, %78, %cst_28 {dimension_numbers = #tpu.dot_dimension_numbers<[1], [0], [0], [1], [0, 0, 1, 1], [], []>} : vector<8x8xbf16>, vector<8x8xbf16>, vector<8x8xf32> -> vector<8x8xf32>
    %93 = tpu.concatenate %41, %58, %75, %92 in 1 : vector<8x8xf32>, vector<8x8xf32>, vector<8x8xf32>, vector<8x8xf32> -> vector<8x32xf32>
    %94 = arith.truncf %93 : vector<8x32xf32> to vector<8x32xbf16>
    %c0_29 = arith.constant 0 : index
    %c0_30 = arith.constant 0 : index
    %c0_31 = arith.constant 0 : index
    %95 = vector.load %arg5[%c0_29, %c0_30, %c0_31] : memref<1x8x32xbf16, #tpu.memory_space<vmem>>, vector<1x8x32xbf16>
    %96 = vector.shape_cast %95 : vector<1x8x32xbf16> to vector<8x32xbf16>
    %97 = vector.shape_cast %94 : vector<8x32xbf16> to vector<1x8x32xbf16>
    tpu.vector_store %arg5[%c0_29, %c0_30, %c0_31], %97 {strides = array<i32>} : memref<1x8x32xbf16, #tpu.memory_space<vmem>>, vector<1x8x32xbf16>,
    return
  }
  func.func @transform_0(%arg0: i32, %arg1: i32) -> (i32, i32, i32) {
    %c0_i32 = arith.constant 0 : i32
    %c0_i32_0 = arith.constant 0 : i32
    return %arg0, %arg1, %c0_i32 : i32, i32, i32
  }
  func.func @transform_1(%arg0: i32, %arg1: i32) -> (i32, i32, i32) {
    %c0_i32 = arith.constant 0 : i32
    %c0_i32_0 = arith.constant 0 : i32
    %c0_i32_1 = arith.constant 0 : i32
    return %arg0, %c0_i32, %c0_i32_0 : i32, i32, i32
  }
  func.func @transform_2(%arg0: i32, %arg1: i32) -> (i32, i32, i32) {
    %c0_i32 = arith.constant 0 : i32
    %c0_i32_0 = arith.constant 0 : i32
    %c0_i32_1 = arith.constant 0 : i32
    return %arg0, %c0_i32, %c0_i32_0 : i32, i32, i32
  }
  func.func @transform_3(%arg0: i32, %arg1: i32) -> (i32, i32, i32) {
    %c0_i32 = arith.constant 0 : i32
    %c0_i32_0 = arith.constant 0 : i32
    return %arg0, %arg1, %c0_i32 : i32, i32, i32
  }
}

module attributes {stable_mosaic.version = 11 : i64} {
  func.func @_matmul_post_ln_kernel(%arg0: i32, %arg1: memref<16x32xbf16, #tpu.memory_space<vmem>>, %arg2: memref<32x32xbf16, #tpu.memory_space<vmem>>, %arg3: memref<1x32xf32, #tpu.memory_space<vmem>>, %arg4: memref<16x32xf32, #tpu.memory_space<vmem>>, %arg5: memref<1x32xf32, #tpu.memory_space<vmem>>, %arg6: memref<1x32xf32, #tpu.memory_space<vmem>>, %arg7: memref<16x32xf32, #tpu.memory_space<vmem>>) attributes {dimension_semantics = [#tpu.dimension_semantics<parallel>], iteration_bounds = array<i64: 1>, scalar_prefetch = 0 : i64, scratch_operands = 0 : i64, tpu.core_type = #tpu.core_type<tc>, window_params = [{transform_indices = @transform_0, window_bounds = array<i64: 16, 32>}, {pipeline_mode = #tpu.pipeline_mode<synchronous>, transform_indices = @transform_1, window_bounds = array<i64: 32, 32>}, {pipeline_mode = #tpu.pipeline_mode<synchronous>, transform_indices = @transform_2, window_bounds = array<i64: 1, 32>}, {transform_indices = @transform_3, window_bounds = array<i64: 16, 32>}, {pipeline_mode = #tpu.pipeline_mode<synchronous>, transform_indices = @transform_4, window_bounds = array<i64: 1, 32>}, {pipeline_mode = #tpu.pipeline_mode<synchronous>, transform_indices = @transform_5, window_bounds = array<i64: 1, 32>}, {transform_indices = @transform_6, window_bounds = array<i64: 16, 32>}]} {
    %c0 = arith.constant 0 : index
    %c0_0 = arith.constant 0 : index
    %0 = vector.load %arg1[%c0, %c0_0] : memref<16x32xbf16, #tpu.memory_space<vmem>>, vector<16x32xbf16>
    %c0_1 = arith.constant 0 : index
    %c0_2 = arith.constant 0 : index
    %1 = vector.load %arg2[%c0_1, %c0_2] : memref<32x32xbf16, #tpu.memory_space<vmem>>, vector<32x32xbf16>
    %cst = arith.constant dense<0.000000e+00> : vector<16x32xf32>
    %2 = tpu.matmul %0, %1, %cst {dimension_numbers = #tpu.dot_dimension_numbers<[1], [0], [0], [1], [0, 0, 1, 1], [], []>} : vector<16x32xbf16>, vector<32x32xbf16>, vector<16x32xf32> -> vector<16x32xf32>
    %c0_3 = arith.constant 0 : index
    %c0_4 = arith.constant 0 : index
    %3 = vector.load %arg3[%c0_3, %c0_4] : memref<1x32xf32, #tpu.memory_space<vmem>>, vector<1x32xf32>
    %4 = vector.broadcast %3 : vector<1x32xf32> to vector<16x32xf32>
    %5 = arith.addf %2, %4 : vector<16x32xf32>
    %c0_5 = arith.constant 0 : index
    %c0_6 = arith.constant 0 : index
    %6 = vector.load %arg4[%c0_5, %c0_6] : memref<16x32xf32, #tpu.memory_space<vmem>>, vector<16x32xf32>
    %7 = arith.addf %5, %6 : vector<16x32xf32>
    %cst_7 = arith.constant dense<0.000000e+00> : vector<16xf32>
    %8 = vector.multi_reduction <add>, %7, %cst_7 [1] : vector<16x32xf32> to vector<16xf32>
    %9 = vector.shape_cast %8 : vector<16xf32> to vector<16x1xf32>
    %cst_8 = arith.constant 3.200000e+01 : f32
    %10 = vector.broadcast %cst_8 : f32 to vector<16x1xf32>
    %11 = arith.divf %9, %10 : vector<16x1xf32>
    %12 = vector.broadcast %11 : vector<16x1xf32> to vector<16x32xf32>
    %13 = arith.subf %7, %12 : vector<16x32xf32>
    %14 = arith.mulf %13, %13 : vector<16x32xf32>
    %cst_9 = arith.constant dense<0.000000e+00> : vector<16xf32>
    %15 = vector.multi_reduction <add>, %14, %cst_9 [1] : vector<16x32xf32> to vector<16xf32>
    %16 = vector.shape_cast %15 : vector<16xf32> to vector<16x1xf32>
    %cst_10 = arith.constant 3.200000e+01 : f32
    %17 = vector.broadcast %cst_10 : f32 to vector<16x1xf32>
    %18 = arith.divf %16, %17 : vector<16x1xf32>
    %19 = vector.broadcast %11 : vector<16x1xf32> to vector<16x32xf32>
    %20 = arith.subf %7, %19 : vector<16x32xf32>
    %cst_11 = arith.constant 9.99999996E-13 : f32
    %21 = vector.broadcast %cst_11 : f32 to vector<16x1xf32>
    %22 = arith.addf %18, %21 : vector<16x1xf32>
    %23 = math.rsqrt %22 : vector<16x1xf32>
    %24 = vector.broadcast %23 : vector<16x1xf32> to vector<16x32xf32>
    %25 = arith.mulf %20, %24 : vector<16x32xf32>
    %c0_12 = arith.constant 0 : index
    %c0_13 = arith.constant 0 : index
    %26 = vector.load %arg5[%c0_12, %c0_13] : memref<1x32xf32, #tpu.memory_space<vmem>>, vector<1x32xf32>
    %27 = vector.broadcast %26 : vector<1x32xf32> to vector<16x32xf32>
    %28 = arith.mulf %25, %27 : vector<16x32xf32>
    %c0_14 = arith.constant 0 : index
    %c0_15 = arith.constant 0 : index
    %29 = vector.load %arg6[%c0_14, %c0_15] : memref<1x32xf32, #tpu.memory_space<vmem>>, vector<1x32xf32>
    %30 = vector.broadcast %29 : vector<1x32xf32> to vector<16x32xf32>
    %31 = arith.addf %28, %30 : vector<16x32xf32>
    %c0_16 = arith.constant 0 : index
    %c0_17 = arith.constant 0 : index
    %32 = vector.load %arg7[%c0_16, %c0_17] : memref<16x32xf32, #tpu.memory_space<vmem>>, vector<16x32xf32>
    tpu.vector_store %arg7[%c0_16, %c0_17], %31 {strides = array<i32>} : memref<16x32xf32, #tpu.memory_space<vmem>>, vector<16x32xf32>,
    return
  }
  func.func @transform_0(%arg0: i32) -> (i32, i32) {
    %c0_i32 = arith.constant 0 : i32
    %c0_i32_0 = arith.constant 0 : i32
    return %arg0, %c0_i32 : i32, i32
  }
  func.func @transform_1(%arg0: i32) -> (i32, i32) {
    %c0_i32 = arith.constant 0 : i32
    %c0_i32_0 = arith.constant 0 : i32
    %c0_i32_1 = arith.constant 0 : i32
    return %c0_i32, %c0_i32_0 : i32, i32
  }
  func.func @transform_2(%arg0: i32) -> (i32, i32) {
    %c0_i32 = arith.constant 0 : i32
    %c0_i32_0 = arith.constant 0 : i32
    %c0_i32_1 = arith.constant 0 : i32
    return %c0_i32, %c0_i32_0 : i32, i32
  }
  func.func @transform_3(%arg0: i32) -> (i32, i32) {
    %c0_i32 = arith.constant 0 : i32
    %c0_i32_0 = arith.constant 0 : i32
    return %arg0, %c0_i32 : i32, i32
  }
  func.func @transform_4(%arg0: i32) -> (i32, i32) {
    %c0_i32 = arith.constant 0 : i32
    %c0_i32_0 = arith.constant 0 : i32
    %c0_i32_1 = arith.constant 0 : i32
    return %c0_i32, %c0_i32_0 : i32, i32
  }
  func.func @transform_5(%arg0: i32) -> (i32, i32) {
    %c0_i32 = arith.constant 0 : i32
    %c0_i32_0 = arith.constant 0 : i32
    %c0_i32_1 = arith.constant 0 : i32
    return %c0_i32, %c0_i32_0 : i32, i32
  }
  func.func @transform_6(%arg0: i32) -> (i32, i32) {
    %c0_i32 = arith.constant 0 : i32
    %c0_i32_0 = arith.constant 0 : i32
    return %arg0, %c0_i32 : i32, i32
  }
}

module attributes {stable_mosaic.version = 11 : i64} {
  func.func @_mha_kernel(%arg0: i32, %arg1: i32, %arg2: memref<1x8x32xbf16, #tpu.memory_space<vmem>>, %arg3: memref<1x5x64xbf16, #tpu.memory_space<vmem>>, %arg4: memref<1x8x32xbf16, #tpu.memory_space<vmem>>) attributes {dimension_semantics = [#tpu.dimension_semantics<parallel>, #tpu.dimension_semantics<parallel>], iteration_bounds = array<i64: 2, 1>, scalar_prefetch = 0 : i64, scratch_operands = 0 : i64, tpu.core_type = #tpu.core_type<tc>, window_params = [{transform_indices = @transform_0, window_bounds = array<i64: 1, 8, 32>}, {transform_indices = @transform_1, window_bounds = array<i64: 1, 5, 64>}, {transform_indices = @transform_2, window_bounds = array<i64: 1, 8, 32>}]} {
    %c0 = arith.constant 0 : index
    %c0_0 = arith.constant 0 : index
    %c0_1 = arith.constant 0 : index
    %0 = vector.load %arg2[%c0, %c0_0, %c0_1] : memref<1x8x32xbf16, #tpu.memory_space<vmem>>, vector<1x8x32xbf16>
    %1 = vector.shape_cast %0 : vector<1x8x32xbf16> to vector<8x32xbf16>
    %cst = arith.constant 3.535160e-01 : bf16
    %2 = vector.broadcast %cst : bf16 to vector<8x32xbf16>
    %3 = arith.mulf %1, %2 : vector<8x32xbf16>
    %c0_2 = arith.constant 0 : index
    %c0_3 = arith.constant 0 : index
    %c0_4 = arith.constant 0 : index
    %4 = vector.load %arg3[%c0_2, %c0_3, %c0_4] : memref<1x5x64xbf16, #tpu.memory_space<vmem>>, vector<1x5x32xbf16>
    %5 = vector.shape_cast %4 : vector<1x5x32xbf16> to vector<5x32xbf16>
    %c0_5 = arith.constant 0 : index
    %c0_6 = arith.constant 0 : index
    %c32 = arith.constant 32 : index
    %6 = vector.load %arg3[%c0_5, %c0_6, %c32] : memref<1x5x64xbf16, #tpu.memory_space<vmem>>, vector<1x5x32xbf16>
    %7 = vector.shape_cast %6 : vector<1x5x32xbf16> to vector<5x32xbf16>
    %8 = vector.extract_strided_slice %3 {offsets = [0, 0], sizes = [8, 8], strides = [1, 1]} : vector<8x32xbf16> to vector<8x8xbf16>
    %9 = vector.extract_strided_slice %5 {offsets = [0, 0], sizes = [5, 8], strides = [1, 1]} : vector<5x32xbf16> to vector<5x8xbf16>
    %10 = vector.extract_strided_slice %7 {offsets = [0, 0], sizes = [5, 8], strides = [1, 1]} : vector<5x32xbf16> to vector<5x8xbf16>
    %cst_7 = arith.constant dense<0.000000e+00> : vector<8x5xf32>
    %11 = tpu.matmul %8, %9, %cst_7 {dimension_numbers = #tpu.dot_dimension_numbers<[1], [1], [0], [0], [0, 0, 1, 0], [], []>} : vector<8x8xbf16>, vector<5x8xbf16>, vector<8x5xf32> -> vector<8x5xf32>
    %cst_8 = arith.constant dense<0xFF800000> : vector<8xf32>
    %12 = vector.multi_reduction <maximumf>, %11, %cst_8 [1] : vector<8x5xf32> to vector<8xf32>
    %13 = vector.shape_cast %12 : vector<8xf32> to vector<8x1xf32>
    %14 = vector.broadcast %13 : vector<8x1xf32> to vector<8x5xf32>
    %15 = arith.subf %11, %14 : vector<8x5xf32>
    %16 = math.exp %15 : vector<8x5xf32>
    %cst_9 = arith.constant dense<0.000000e+00> : vector<8xf32>
    %17 = vector.multi_reduction <add>, %16, %cst_9 [1] : vector<8x5xf32> to vector<8xf32>
    %18 = vector.shape_cast %17 : vector<8xf32> to vector<8x1xf32>
    %19 = tpu.reciprocal %18 {approx = true} : vector<8x1xf32> -> vector<8x1xf32>
    %20 = vector.broadcast %19 : vector<8x1xf32> to vector<8x5xf32>
    %21 = arith.mulf %16, %20 : vector<8x5xf32>
    %22 = arith.truncf %21 : vector<8x5xf32> to vector<8x5xbf16>
    %cst_10 = arith.constant dense<0.000000e+00> : vector<8x8xf32>
    %23 = tpu.matmul %22, %10, %cst_10 {dimension_numbers = #tpu.dot_dimension_numbers<[1], [0], [0], [1], [0, 0, 1, 1], [], []>} : vector<8x5xbf16>, vector<5x8xbf16>, vector<8x8xf32> -> vector<8x8xf32>
    %24 = vector.extract_strided_slice %3 {offsets = [0, 8], sizes = [8, 8], strides = [1, 1]} : vector<8x32xbf16> to vector<8x8xbf16>
    %25 = vector.extract_strided_slice %5 {offsets = [0, 8], sizes = [5, 8], strides = [1, 1]} : vector<5x32xbf16> to vector<5x8xbf16>
    %26 = vector.extract_strided_slice %7 {offsets = [0, 8], sizes = [5, 8], strides = [1, 1]} : vector<5x32xbf16> to vector<5x8xbf16>
    %cst_11 = arith.constant dense<0.000000e+00> : vector<8x5xf32>
    %27 = tpu.matmul %24, %25, %cst_11 {dimension_numbers = #tpu.dot_dimension_numbers<[1], [1], [0], [0], [0, 0, 1, 0], [], []>} : vector<8x8xbf16>, vector<5x8xbf16>, vector<8x5xf32> -> vector<8x5xf32>
    %cst_12 = arith.constant dense<0xFF800000> : vector<8xf32>
    %28 = vector.multi_reduction <maximumf>, %27, %cst_12 [1] : vector<8x5xf32> to vector<8xf32>
    %29 = vector.shape_cast %28 : vector<8xf32> to vector<8x1xf32>
    %30 = vector.broadcast %29 : vector<8x1xf32> to vector<8x5xf32>
    %31 = arith.subf %27, %30 : vector<8x5xf32>
    %32 = math.exp %31 : vector<8x5xf32>
    %cst_13 = arith.constant dense<0.000000e+00> : vector<8xf32>
    %33 = vector.multi_reduction <add>, %32, %cst_13 [1] : vector<8x5xf32> to vector<8xf32>
    %34 = vector.shape_cast %33 : vector<8xf32> to vector<8x1xf32>
    %35 = tpu.reciprocal %34 {approx = true} : vector<8x1xf32> -> vector<8x1xf32>
    %36 = vector.broadcast %35 : vector<8x1xf32> to vector<8x5xf32>
    %37 = arith.mulf %32, %36 : vector<8x5xf32>
    %38 = arith.truncf %37 : vector<8x5xf32> to vector<8x5xbf16>
    %cst_14 = arith.constant dense<0.000000e+00> : vector<8x8xf32>
    %39 = tpu.matmul %38, %26, %cst_14 {dimension_numbers = #tpu.dot_dimension_numbers<[1], [0], [0], [1], [0, 0, 1, 1], [], []>} : vector<8x5xbf16>, vector<5x8xbf16>, vector<8x8xf32> -> vector<8x8xf32>
    %40 = vector.extract_strided_slice %3 {offsets = [0, 16], sizes = [8, 8], strides = [1, 1]} : vector<8x32xbf16> to vector<8x8xbf16>
    %41 = vector.extract_strided_slice %5 {offsets = [0, 16], sizes = [5, 8], strides = [1, 1]} : vector<5x32xbf16> to vector<5x8xbf16>
    %42 = vector.extract_strided_slice %7 {offsets = [0, 16], sizes = [5, 8], strides = [1, 1]} : vector<5x32xbf16> to vector<5x8xbf16>
    %cst_15 = arith.constant dense<0.000000e+00> : vector<8x5xf32>
    %43 = tpu.matmul %40, %41, %cst_15 {dimension_numbers = #tpu.dot_dimension_numbers<[1], [1], [0], [0], [0, 0, 1, 0], [], []>} : vector<8x8xbf16>, vector<5x8xbf16>, vector<8x5xf32> -> vector<8x5xf32>
    %cst_16 = arith.constant dense<0xFF800000> : vector<8xf32>
    %44 = vector.multi_reduction <maximumf>, %43, %cst_16 [1] : vector<8x5xf32> to vector<8xf32>
    %45 = vector.shape_cast %44 : vector<8xf32> to vector<8x1xf32>
    %46 = vector.broadcast %45 : vector<8x1xf32> to vector<8x5xf32>
    %47 = arith.subf %43, %46 : vector<8x5xf32>
    %48 = math.exp %47 : vector<8x5xf32>
    %cst_17 = arith.constant dense<0.000000e+00> : vector<8xf32>
    %49 = vector.multi_reduction <add>, %48, %cst_17 [1] : vector<8x5xf32> to vector<8xf32>
    %50 = vector.shape_cast %49 : vector<8xf32> to vector<8x1xf32>
    %51 = tpu.reciprocal %50 {approx = true} : vector<8x1xf32> -> vector<8x1xf32>
    %52 = vector.broadcast %51 : vector<8x1xf32> to vector<8x5xf32>
    %53 = arith.mulf %48, %52 : vector<8x5xf32>
    %54 = arith.truncf %53 : vector<8x5xf32> to vector<8x5xbf16>
    %cst_18 = arith.constant dense<0.000000e+00> : vector<8x8xf32>
    %55 = tpu.matmul %54, %42, %cst_18 {dimension_numbers = #tpu.dot_dimension_numbers<[1], [0], [0], [1], [0, 0, 1, 1], [], []>} : vector<8x5xbf16>, vector<5x8xbf16>, vector<8x8xf32> -> vector<8x8xf32>
    %56 = vector.extract_strided_slice %3 {offsets = [0, 24], sizes = [8, 8], strides = [1, 1]} : vector<8x32xbf16> to vector<8x8xbf16>
    %57 = vector.extract_strided_slice %5 {offsets = [0, 24], sizes = [5, 8], strides = [1, 1]} : vector<5x32xbf16> to vector<5x8xbf16>
    %58 = vector.extract_strided_slice %7 {offsets = [0, 24], sizes = [5, 8], strides = [1, 1]} : vector<5x32xbf16> to vector<5x8xbf16>
    %cst_19 = arith.constant dense<0.000000e+00> : vector<8x5xf32>
    %59 = tpu.matmul %56, %57, %cst_19 {dimension_numbers = #tpu.dot_dimension_numbers<[1], [1], [0], [0], [0, 0, 1, 0], [], []>} : vector<8x8xbf16>, vector<5x8xbf16>, vector<8x5xf32> -> vector<8x5xf32>
    %cst_20 = arith.constant dense<0xFF800000> : vector<8xf32>
    %60 = vector.multi_reduction <maximumf>, %59, %cst_20 [1] : vector<8x5xf32> to vector<8xf32>
    %61 = vector.shape_cast %60 : vector<8xf32> to vector<8x1xf32>
    %62 = vector.broadcast %61 : vector<8x1xf32> to vector<8x5xf32>
    %63 = arith.subf %59, %62 : vector<8x5xf32>
    %64 = math.exp %63 : vector<8x5xf32>
    %cst_21 = arith.constant dense<0.000000e+00> : vector<8xf32>
    %65 = vector.multi_reduction <add>, %64, %cst_21 [1] : vector<8x5xf32> to vector<8xf32>
    %66 = vector.shape_cast %65 : vector<8xf32> to vector<8x1xf32>
    %67 = tpu.reciprocal %66 {approx = true} : vector<8x1xf32> -> vector<8x1xf32>
    %68 = vector.broadcast %67 : vector<8x1xf32> to vector<8x5xf32>
    %69 = arith.mulf %64, %68 : vector<8x5xf32>
    %70 = arith.truncf %69 : vector<8x5xf32> to vector<8x5xbf16>
    %cst_22 = arith.constant dense<0.000000e+00> : vector<8x8xf32>
    %71 = tpu.matmul %70, %58, %cst_22 {dimension_numbers = #tpu.dot_dimension_numbers<[1], [0], [0], [1], [0, 0, 1, 1], [], []>} : vector<8x5xbf16>, vector<5x8xbf16>, vector<8x8xf32> -> vector<8x8xf32>
    %72 = tpu.concatenate %23, %39, %55, %71 in 1 : vector<8x8xf32>, vector<8x8xf32>, vector<8x8xf32>, vector<8x8xf32> -> vector<8x32xf32>
    %73 = arith.truncf %72 : vector<8x32xf32> to vector<8x32xbf16>
    %c0_23 = arith.constant 0 : index
    %c0_24 = arith.constant 0 : index
    %c0_25 = arith.constant 0 : index
    %74 = vector.load %arg4[%c0_23, %c0_24, %c0_25] : memref<1x8x32xbf16, #tpu.memory_space<vmem>>, vector<1x8x32xbf16>
    %75 = vector.shape_cast %74 : vector<1x8x32xbf16> to vector<8x32xbf16>
    %76 = vector.shape_cast %73 : vector<8x32xbf16> to vector<1x8x32xbf16>
    tpu.vector_store %arg4[%c0_23, %c0_24, %c0_25], %76 {strides = array<i32>} : memref<1x8x32xbf16, #tpu.memory_space<vmem>>, vector<1x8x32xbf16>,
    return
  }
  func.func @transform_0(%arg0: i32, %arg1: i32) -> (i32, i32, i32) {
    %c0_i32 = arith.constant 0 : i32
    %c0_i32_0 = arith.constant 0 : i32
    return %arg0, %arg1, %c0_i32 : i32, i32, i32
  }
  func.func @transform_1(%arg0: i32, %arg1: i32) -> (i32, i32, i32) {
    %c0_i32 = arith.constant 0 : i32
    %c0_i32_0 = arith.constant 0 : i32
    %c0_i32_1 = arith.constant 0 : i32
    return %arg0, %c0_i32, %c0_i32_0 : i32, i32, i32
  }
  func.func @transform_2(%arg0: i32, %arg1: i32) -> (i32, i32, i32) {
    %c0_i32 = arith.constant 0 : i32
    %c0_i32_0 = arith.constant 0 : i32
    return %arg0, %arg1, %c0_i32 : i32, i32, i32
  }
}

module attributes {stable_mosaic.version = 11 : i64} {
  func.func @_matmul_kernel(%arg0: i32, %arg1: i32, %arg2: i32, %arg3: memref<16x32xf32, #tpu.memory_space<vmem>>, %arg4: memref<32x32xbf16, #tpu.memory_space<vmem>>, %arg5: memref<1x32xf32, #tpu.memory_space<vmem>>, %arg6: memref<16x32xbf16, #tpu.memory_space<vmem>>, %arg7: memref<16x32xf32, #tpu.memory_space<vmem>>) attributes {dimension_semantics = [#tpu.dimension_semantics<parallel>, #tpu.dimension_semantics<parallel>, #tpu.dimension_semantics<arbitrary>], iteration_bounds = array<i64: 1, 1, 1>, scalar_prefetch = 0 : i64, scratch_operands = 1 : i64, tpu.core_type = #tpu.core_type<tc>, window_params = [{transform_indices = @transform_0, window_bounds = array<i64: 16, 32>}, {transform_indices = @transform_1, window_bounds = array<i64: 32, 32>}, {transform_indices = @transform_2, window_bounds = array<i64: 1, 32>}, {transform_indices = @transform_3, window_bounds = array<i64: 16, 32>}]} {
    %c0_i32 = arith.constant 0 : i32
    %0 = arith.cmpi eq, %arg2, %c0_i32 : i32
    %1 = arith.extui %0 : i1 to i32
    %c0_i32_0 = arith.constant 0 : i32
    %2 = arith.cmpi ne, %1, %c0_i32_0 : i32
    scf.if %2 {
      %cst_10 = arith.constant 0.000000e+00 : f32
      %13 = vector.broadcast %cst_10 : f32 to vector<16x32xf32>
      %c0_11 = arith.constant 0 : index
      %c0_12 = arith.constant 0 : index
      %14 = vector.load %arg7[%c0_11, %c0_12] : memref<16x32xf32, #tpu.memory_space<vmem>>, vector<16x32xf32>
      tpu.vector_store %arg7[%c0_11, %c0_12], %13 {strides = array<i32>} : memref<16x32xf32, #tpu.memory_space<vmem>>, vector<16x32xf32>,
    } else {
    }
    %c0 = arith.constant 0 : index
    %c0_1 = arith.constant 0 : index
    %3 = vector.load %arg7[%c0, %c0_1] : memref<16x32xf32, #tpu.memory_space<vmem>>, vector<16x32xf32>
    %c0_2 = arith.constant 0 : index
    %c0_3 = arith.constant 0 : index
    %4 = vector.load %arg3[%c0_2, %c0_3] : memref<16x32xf32, #tpu.memory_space<vmem>>, vector<16x32xf32>
    %5 = arith.truncf %4 : vector<16x32xf32> to vector<16x32xbf16>
    %c0_4 = arith.constant 0 : index
    %c0_5 = arith.constant 0 : index
    %6 = vector.load %arg4[%c0_4, %c0_5] : memref<32x32xbf16, #tpu.memory_space<vmem>>, vector<32x32xbf16>
    %cst = arith.constant dense<0.000000e+00> : vector<16x32xf32>
    %7 = tpu.matmul %5, %6, %cst {dimension_numbers = #tpu.dot_dimension_numbers<[1], [0], [0], [1], [0, 0, 1, 1], [], []>} : vector<16x32xbf16>, vector<32x32xbf16>, vector<16x32xf32> -> vector<16x32xf32>
    %8 = arith.addf %3, %7 : vector<16x32xf32>
    %c0_6 = arith.constant 0 : index
    %c0_7 = arith.constant 0 : index
    %9 = vector.load %arg7[%c0_6, %c0_7] : memref<16x32xf32, #tpu.memory_space<vmem>>, vector<16x32xf32>
    tpu.vector_store %arg7[%c0_6, %c0_7], %8 {strides = array<i32>} : memref<16x32xf32, #tpu.memory_space<vmem>>, vector<16x32xf32>,
    %c0_i32_8 = arith.constant 0 : i32
    %10 = arith.cmpi eq, %arg2, %c0_i32_8 : i32
    %11 = arith.extui %10 : i1 to i32
    %c0_i32_9 = arith.constant 0 : i32
    %12 = arith.cmpi ne, %11, %c0_i32_9 : i32
    scf.if %12 {
      %c0_10 = arith.constant 0 : index
      %c0_11 = arith.constant 0 : index
      %13 = vector.load %arg7[%c0_10, %c0_11] : memref<16x32xf32, #tpu.memory_space<vmem>>, vector<16x32xf32>
      %c0_12 = arith.constant 0 : index
      %c0_13 = arith.constant 0 : index
      %14 = vector.load %arg5[%c0_12, %c0_13] : memref<1x32xf32, #tpu.memory_space<vmem>>, vector<1x32xf32>
      %15 = vector.broadcast %14 : vector<1x32xf32> to vector<16x32xf32>
      %16 = arith.addf %13, %15 : vector<16x32xf32>
      %17 = arith.truncf %16 : vector<16x32xf32> to vector<16x32xbf16>
      %c0_14 = arith.constant 0 : index
      %c0_15 = arith.constant 0 : index
      %18 = vector.load %arg6[%c0_14, %c0_15] : memref<16x32xbf16, #tpu.memory_space<vmem>>, vector<16x32xbf16>
      tpu.vector_store %arg6[%c0_14, %c0_15], %17 {strides = array<i32>} : memref<16x32xbf16, #tpu.memory_space<vmem>>, vector<16x32xbf16>,
    } else {
    }
    return
  }
  func.func @transform_0(%arg0: i32, %arg1: i32, %arg2: i32) -> (i32, i32) {
    %c0_i32 = arith.constant 0 : i32
    return %arg0, %arg2 : i32, i32
  }
  func.func @transform_1(%arg0: i32, %arg1: i32, %arg2: i32) -> (i32, i32) {
    %c0_i32 = arith.constant 0 : i32
    return %arg2, %arg1 : i32, i32
  }
  func.func @transform_2(%arg0: i32, %arg1: i32, %arg2: i32) -> (i32, i32) {
    %c0_i32 = arith.constant 0 : i32
    %c0_i32_0 = arith.constant 0 : i32
    return %c0_i32, %arg1 : i32, i32
  }
  func.func @transform_3(%arg0: i32, %arg1: i32, %arg2: i32) -> (i32, i32) {
    %c0_i32 = arith.constant 0 : i32
    return %arg0, %arg1 : i32, i32
  }
}

module attributes {stable_mosaic.version = 11 : i64} {
  func.func @_matmul_kernel(%arg0: i32, %arg1: i32, %arg2: i32, %arg3: memref<16x32xf32, #tpu.memory_space<vmem>>, %arg4: memref<32x64xbf16, #tpu.memory_space<vmem>>, %arg5: memref<1x64xf32, #tpu.memory_space<vmem>>, %arg6: memref<16x64xbf16, #tpu.memory_space<vmem>>, %arg7: memref<16x64xf32, #tpu.memory_space<vmem>>) attributes {dimension_semantics = [#tpu.dimension_semantics<parallel>, #tpu.dimension_semantics<parallel>, #tpu.dimension_semantics<arbitrary>], iteration_bounds = array<i64: 1, 1, 1>, scalar_prefetch = 0 : i64, scratch_operands = 1 : i64, tpu.core_type = #tpu.core_type<tc>, window_params = [{transform_indices = @transform_0, window_bounds = array<i64: 16, 32>}, {transform_indices = @transform_1, window_bounds = array<i64: 32, 64>}, {transform_indices = @transform_2, window_bounds = array<i64: 1, 64>}, {transform_indices = @transform_3, window_bounds = array<i64: 16, 64>}]} {
    %c0_i32 = arith.constant 0 : i32
    %0 = arith.cmpi eq, %arg2, %c0_i32 : i32
    %1 = arith.extui %0 : i1 to i32
    %c0_i32_0 = arith.constant 0 : i32
    %2 = arith.cmpi ne, %1, %c0_i32_0 : i32
    scf.if %2 {
      %cst_10 = arith.constant 0.000000e+00 : f32
      %13 = vector.broadcast %cst_10 : f32 to vector<16x64xf32>
      %c0_11 = arith.constant 0 : index
      %c0_12 = arith.constant 0 : index
      %14 = vector.load %arg7[%c0_11, %c0_12] : memref<16x64xf32, #tpu.memory_space<vmem>>, vector<16x64xf32>
      tpu.vector_store %arg7[%c0_11, %c0_12], %13 {strides = array<i32>} : memref<16x64xf32, #tpu.memory_space<vmem>>, vector<16x64xf32>,
    } else {
    }
    %c0 = arith.constant 0 : index
    %c0_1 = arith.constant 0 : index
    %3 = vector.load %arg7[%c0, %c0_1] : memref<16x64xf32, #tpu.memory_space<vmem>>, vector<16x64xf32>
    %c0_2 = arith.constant 0 : index
    %c0_3 = arith.constant 0 : index
    %4 = vector.load %arg3[%c0_2, %c0_3] : memref<16x32xf32, #tpu.memory_space<vmem>>, vector<16x32xf32>
    %5 = arith.truncf %4 : vector<16x32xf32> to vector<16x32xbf16>
    %c0_4 = arith.constant 0 : index
    %c0_5 = arith.constant 0 : index
    %6 = vector.load %arg4[%c0_4, %c0_5] : memref<32x64xbf16, #tpu.memory_space<vmem>>, vector<32x64xbf16>
    %cst = arith.constant dense<0.000000e+00> : vector<16x64xf32>
    %7 = tpu.matmul %5, %6, %cst {dimension_numbers = #tpu.dot_dimension_numbers<[1], [0], [0], [1], [0, 0, 1, 1], [], []>} : vector<16x32xbf16>, vector<32x64xbf16>, vector<16x64xf32> -> vector<16x64xf32>
    %8 = arith.addf %3, %7 : vector<16x64xf32>
    %c0_6 = arith.constant 0 : index
    %c0_7 = arith.constant 0 : index
    %9 = vector.load %arg7[%c0_6, %c0_7] : memref<16x64xf32, #tpu.memory_space<vmem>>, vector<16x64xf32>
    tpu.vector_store %arg7[%c0_6, %c0_7], %8 {strides = array<i32>} : memref<16x64xf32, #tpu.memory_space<vmem>>, vector<16x64xf32>,
    %c0_i32_8 = arith.constant 0 : i32
    %10 = arith.cmpi eq, %arg2, %c0_i32_8 : i32
    %11 = arith.extui %10 : i1 to i32
    %c0_i32_9 = arith.constant 0 : i32
    %12 = arith.cmpi ne, %11, %c0_i32_9 : i32
    scf.if %12 {
      %c0_10 = arith.constant 0 : index
      %c0_11 = arith.constant 0 : index
      %13 = vector.load %arg7[%c0_10, %c0_11] : memref<16x64xf32, #tpu.memory_space<vmem>>, vector<16x64xf32>
      %c0_12 = arith.constant 0 : index
      %c0_13 = arith.constant 0 : index
      %14 = vector.load %arg5[%c0_12, %c0_13] : memref<1x64xf32, #tpu.memory_space<vmem>>, vector<1x64xf32>
      %15 = vector.broadcast %14 : vector<1x64xf32> to vector<16x64xf32>
      %16 = arith.addf %13, %15 : vector<16x64xf32>
      %cst_14 = arith.constant 5.000000e-01 : f32
      %17 = vector.broadcast %cst_14 : f32 to vector<16x64xf32>
      %18 = arith.mulf %17, %16 : vector<16x64xf32>
      %cst_15 = arith.constant 4.471500e-02 : f32
      %19 = vector.broadcast %cst_15 : f32 to vector<16x64xf32>
      %20 = arith.mulf %19, %16 : vector<16x64xf32>
      %21 = arith.mulf %20, %16 : vector<16x64xf32>
      %22 = arith.mulf %21, %16 : vector<16x64xf32>
      %23 = arith.addf %16, %22 : vector<16x64xf32>
      %cst_16 = arith.constant 0.797884583 : f32
      %24 = vector.broadcast %cst_16 : f32 to vector<16x64xf32>
      %25 = arith.mulf %24, %23 : vector<16x64xf32>
      %26 = math.tanh %25 : vector<16x64xf32>
      %cst_17 = arith.constant 1.000000e+00 : f32
      %27 = vector.broadcast %cst_17 : f32 to vector<16x64xf32>
      %28 = arith.addf %27, %26 : vector<16x64xf32>
      %29 = arith.mulf %18, %28 : vector<16x64xf32>
      %30 = arith.truncf %29 : vector<16x64xf32> to vector<16x64xbf16>
      %c0_18 = arith.constant 0 : index
      %c0_19 = arith.constant 0 : index
      %31 = vector.load %arg6[%c0_18, %c0_19] : memref<16x64xbf16, #tpu.memory_space<vmem>>, vector<16x64xbf16>
      tpu.vector_store %arg6[%c0_18, %c0_19], %30 {strides = array<i32>} : memref<16x64xbf16, #tpu.memory_space<vmem>>, vector<16x64xbf16>,
    } else {
    }
    return
  }
  func.func @transform_0(%arg0: i32, %arg1: i32, %arg2: i32) -> (i32, i32) {
    %c0_i32 = arith.constant 0 : i32
    return %arg0, %arg2 : i32, i32
  }
  func.func @transform_1(%arg0: i32, %arg1: i32, %arg2: i32) -> (i32, i32) {
    %c0_i32 = arith.constant 0 : i32
    return %arg2, %arg1 : i32, i32
  }
  func.func @transform_2(%arg0: i32, %arg1: i32, %arg2: i32) -> (i32, i32) {
    %c0_i32 = arith.constant 0 : i32
    %c0_i32_0 = arith.constant 0 : i32
    return %c0_i32, %arg1 : i32, i32
  }
  func.func @transform_3(%arg0: i32, %arg1: i32, %arg2: i32) -> (i32, i32) {
    %c0_i32 = arith.constant 0 : i32
    return %arg0, %arg1 : i32, i32
  }
}

module attributes {stable_mosaic.version = 11 : i64} {
  func.func @_matmul_post_ln_kernel(%arg0: i32, %arg1: memref<16x64xbf16, #tpu.memory_space<vmem>>, %arg2: memref<64x32xbf16, #tpu.memory_space<vmem>>, %arg3: memref<1x32xf32, #tpu.memory_space<vmem>>, %arg4: memref<16x32xf32, #tpu.memory_space<vmem>>, %arg5: memref<1x32xf32, #tpu.memory_space<vmem>>, %arg6: memref<1x32xf32, #tpu.memory_space<vmem>>, %arg7: memref<16x32xf32, #tpu.memory_space<vmem>>) attributes {dimension_semantics = [#tpu.dimension_semantics<parallel>], iteration_bounds = array<i64: 1>, scalar_prefetch = 0 : i64, scratch_operands = 0 : i64, tpu.core_type = #tpu.core_type<tc>, window_params = [{transform_indices = @transform_0, window_bounds = array<i64: 16, 64>}, {pipeline_mode = #tpu.pipeline_mode<synchronous>, transform_indices = @transform_1, window_bounds = array<i64: 64, 32>}, {pipeline_mode = #tpu.pipeline_mode<synchronous>, transform_indices = @transform_2, window_bounds = array<i64: 1, 32>}, {transform_indices = @transform_3, window_bounds = array<i64: 16, 32>}, {pipeline_mode = #tpu.pipeline_mode<synchronous>, transform_indices = @transform_4, window_bounds = array<i64: 1, 32>}, {pipeline_mode = #tpu.pipeline_mode<synchronous>, transform_indices = @transform_5, window_bounds = array<i64: 1, 32>}, {transform_indices = @transform_6, window_bounds = array<i64: 16, 32>}]} {
    %c0 = arith.constant 0 : index
    %c0_0 = arith.constant 0 : index
    %0 = vector.load %arg1[%c0, %c0_0] : memref<16x64xbf16, #tpu.memory_space<vmem>>, vector<16x64xbf16>
    %c0_1 = arith.constant 0 : index
    %c0_2 = arith.constant 0 : index
    %1 = vector.load %arg2[%c0_1, %c0_2] : memref<64x32xbf16, #tpu.memory_space<vmem>>, vector<64x32xbf16>
    %cst = arith.constant dense<0.000000e+00> : vector<16x32xf32>
    %2 = tpu.matmul %0, %1, %cst {dimension_numbers = #tpu.dot_dimension_numbers<[1], [0], [0], [1], [0, 0, 1, 1], [], []>} : vector<16x64xbf16>, vector<64x32xbf16>, vector<16x32xf32> -> vector<16x32xf32>
    %c0_3 = arith.constant 0 : index
    %c0_4 = arith.constant 0 : index
    %3 = vector.load %arg3[%c0_3, %c0_4] : memref<1x32xf32, #tpu.memory_space<vmem>>, vector<1x32xf32>
    %4 = vector.broadcast %3 : vector<1x32xf32> to vector<16x32xf32>
    %5 = arith.addf %2, %4 : vector<16x32xf32>
    %c0_5 = arith.constant 0 : index
    %c0_6 = arith.constant 0 : index
    %6 = vector.load %arg4[%c0_5, %c0_6] : memref<16x32xf32, #tpu.memory_space<vmem>>, vector<16x32xf32>
    %7 = arith.addf %5, %6 : vector<16x32xf32>
    %cst_7 = arith.constant dense<0.000000e+00> : vector<16xf32>
    %8 = vector.multi_reduction <add>, %7, %cst_7 [1] : vector<16x32xf32> to vector<16xf32>
    %9 = vector.shape_cast %8 : vector<16xf32> to vector<16x1xf32>
    %cst_8 = arith.constant 3.200000e+01 : f32
    %10 = vector.broadcast %cst_8 : f32 to vector<16x1xf32>
    %11 = arith.divf %9, %10 : vector<16x1xf32>
    %12 = vector.broadcast %11 : vector<16x1xf32> to vector<16x32xf32>
    %13 = arith.subf %7, %12 : vector<16x32xf32>
    %14 = arith.mulf %13, %13 : vector<16x32xf32>
    %cst_9 = arith.constant dense<0.000000e+00> : vector<16xf32>
    %15 = vector.multi_reduction <add>, %14, %cst_9 [1] : vector<16x32xf32> to vector<16xf32>
    %16 = vector.shape_cast %15 : vector<16xf32> to vector<16x1xf32>
    %cst_10 = arith.constant 3.200000e+01 : f32
    %17 = vector.broadcast %cst_10 : f32 to vector<16x1xf32>
    %18 = arith.divf %16, %17 : vector<16x1xf32>
    %19 = vector.broadcast %11 : vector<16x1xf32> to vector<16x32xf32>
    %20 = arith.subf %7, %19 : vector<16x32xf32>
    %cst_11 = arith.constant 9.99999996E-13 : f32
    %21 = vector.broadcast %cst_11 : f32 to vector<16x1xf32>
    %22 = arith.addf %18, %21 : vector<16x1xf32>
    %23 = math.rsqrt %22 : vector<16x1xf32>
    %24 = vector.broadcast %23 : vector<16x1xf32> to vector<16x32xf32>
    %25 = arith.mulf %20, %24 : vector<16x32xf32>
    %c0_12 = arith.constant 0 : index
    %c0_13 = arith.constant 0 : index
    %26 = vector.load %arg5[%c0_12, %c0_13] : memref<1x32xf32, #tpu.memory_space<vmem>>, vector<1x32xf32>
    %27 = vector.broadcast %26 : vector<1x32xf32> to vector<16x32xf32>
    %28 = arith.mulf %25, %27 : vector<16x32xf32>
    %c0_14 = arith.constant 0 : index
    %c0_15 = arith.constant 0 : index
    %29 = vector.load %arg6[%c0_14, %c0_15] : memref<1x32xf32, #tpu.memory_space<vmem>>, vector<1x32xf32>
    %30 = vector.broadcast %29 : vector<1x32xf32> to vector<16x32xf32>
    %31 = arith.addf %28, %30 : vector<16x32xf32>
    %c0_16 = arith.constant 0 : index
    %c0_17 = arith.constant 0 : index
    %32 = vector.load %arg7[%c0_16, %c0_17] : memref<16x32xf32, #tpu.memory_space<vmem>>, vector<16x32xf32>
    tpu.vector_store %arg7[%c0_16, %c0_17], %31 {strides = array<i32>} : memref<16x32xf32, #tpu.memory_space<vmem>>, vector<16x32xf32>,
    return
  }
  func.func @transform_0(%arg0: i32) -> (i32, i32) {
    %c0_i32 = arith.constant 0 : i32
    %c0_i32_0 = arith.constant 0 : i32
    return %arg0, %c0_i32 : i32, i32
  }
  func.func @transform_1(%arg0: i32) -> (i32, i32) {
    %c0_i32 = arith.constant 0 : i32
    %c0_i32_0 = arith.constant 0 : i32
    %c0_i32_1 = arith.constant 0 : i32
    return %c0_i32, %c0_i32_0 : i32, i32
  }
  func.func @transform_2(%arg0: i32) -> (i32, i32) {
    %c0_i32 = arith.constant 0 : i32
    %c0_i32_0 = arith.constant 0 : i32
    %c0_i32_1 = arith.constant 0 : i32
    return %c0_i32, %c0_i32_0 : i32, i32
  }
  func.func @transform_3(%arg0: i32) -> (i32, i32) {
    %c0_i32 = arith.constant 0 : i32
    %c0_i32_0 = arith.constant 0 : i32
    return %arg0, %c0_i32 : i32, i32
  }
  func.func @transform_4(%arg0: i32) -> (i32, i32) {
    %c0_i32 = arith.constant 0 : i32
    %c0_i32_0 = arith.constant 0 : i32
    %c0_i32_1 = arith.constant 0 : i32
    return %c0_i32, %c0_i32_0 : i32, i32
  }
  func.func @transform_5(%arg0: i32) -> (i32, i32) {
    %c0_i32 = arith.constant 0 : i32
    %c0_i32_0 = arith.constant 0 : i32
    %c0_i32_1 = arith.constant 0 : i32
    return %c0_i32, %c0_i32_0 : i32, i32
  }
  func.func @transform_6(%arg0: i32) -> (i32, i32) {
    %c0_i32 = arith.constant 0 : i32
    %c0_i32_0 = arith.constant 0 : i32
    return %arg0, %c0_i32 : i32, i32
  }
}

module attributes {stable_mosaic.version = 11 : i64} {
  func.func @_matmul_post_ln_kernel(%arg0: i32, %arg1: memref<16x32xf32, #tpu.memory_space<vmem>>, %arg2: memref<32x32xbf16, #tpu.memory_space<vmem>>, %arg3: memref<1x32xf32, #tpu.memory_space<vmem>>, %arg4: memref<1x32xf32, #tpu.memory_space<vmem>>, %arg5: memref<1x32xf32, #tpu.memory_space<vmem>>, %arg6: memref<16x32xbf16, #tpu.memory_space<vmem>>) attributes {dimension_semantics = [#tpu.dimension_semantics<parallel>], iteration_bounds = array<i64: 1>, scalar_prefetch = 0 : i64, scratch_operands = 0 : i64, tpu.core_type = #tpu.core_type<tc>, window_params = [{transform_indices = @transform_0, window_bounds = array<i64: 16, 32>}, {pipeline_mode = #tpu.pipeline_mode<synchronous>, transform_indices = @transform_1, window_bounds = array<i64: 32, 32>}, {pipeline_mode = #tpu.pipeline_mode<synchronous>, transform_indices = @transform_2, window_bounds = array<i64: 1, 32>}, {pipeline_mode = #tpu.pipeline_mode<synchronous>, transform_indices = @transform_3, window_bounds = array<i64: 1, 32>}, {pipeline_mode = #tpu.pipeline_mode<synchronous>, transform_indices = @transform_4, window_bounds = array<i64: 1, 32>}, {transform_indices = @transform_5, window_bounds = array<i64: 16, 32>}]} {
    %c0 = arith.constant 0 : index
    %c0_0 = arith.constant 0 : index
    %0 = vector.load %arg1[%c0, %c0_0] : memref<16x32xf32, #tpu.memory_space<vmem>>, vector<16x32xf32>
    %1 = arith.truncf %0 : vector<16x32xf32> to vector<16x32xbf16>
    %c0_1 = arith.constant 0 : index
    %c0_2 = arith.constant 0 : index
    %2 = vector.load %arg2[%c0_1, %c0_2] : memref<32x32xbf16, #tpu.memory_space<vmem>>, vector<32x32xbf16>
    %cst = arith.constant dense<0.000000e+00> : vector<16x32xf32>
    %3 = tpu.matmul %1, %2, %cst {dimension_numbers = #tpu.dot_dimension_numbers<[1], [0], [0], [1], [0, 0, 1, 1], [], []>} : vector<16x32xbf16>, vector<32x32xbf16>, vector<16x32xf32> -> vector<16x32xf32>
    %c0_3 = arith.constant 0 : index
    %c0_4 = arith.constant 0 : index
    %4 = vector.load %arg3[%c0_3, %c0_4] : memref<1x32xf32, #tpu.memory_space<vmem>>, vector<1x32xf32>
    %5 = vector.broadcast %4 : vector<1x32xf32> to vector<16x32xf32>
    %6 = arith.addf %3, %5 : vector<16x32xf32>
    %cst_5 = arith.constant 5.000000e-01 : f32
    %7 = vector.broadcast %cst_5 : f32 to vector<16x32xf32>
    %8 = arith.mulf %7, %6 : vector<16x32xf32>
    %cst_6 = arith.constant 4.471500e-02 : f32
    %9 = vector.broadcast %cst_6 : f32 to vector<16x32xf32>
    %10 = arith.mulf %9, %6 : vector<16x32xf32>
    %11 = arith.mulf %10, %6 : vector<16x32xf32>
    %12 = arith.mulf %11, %6 : vector<16x32xf32>
    %13 = arith.addf %6, %12 : vector<16x32xf32>
    %cst_7 = arith.constant 0.797884583 : f32
    %14 = vector.broadcast %cst_7 : f32 to vector<16x32xf32>
    %15 = arith.mulf %14, %13 : vector<16x32xf32>
    %16 = math.tanh %15 : vector<16x32xf32>
    %cst_8 = arith.constant 1.000000e+00 : f32
    %17 = vector.broadcast %cst_8 : f32 to vector<16x32xf32>
    %18 = arith.addf %17, %16 : vector<16x32xf32>
    %19 = arith.mulf %8, %18 : vector<16x32xf32>
    %cst_9 = arith.constant dense<0.000000e+00> : vector<16xf32>
    %20 = vector.multi_reduction <add>, %19, %cst_9 [1] : vector<16x32xf32> to vector<16xf32>
    %21 = vector.shape_cast %20 : vector<16xf32> to vector<16x1xf32>
    %cst_10 = arith.constant 3.200000e+01 : f32
    %22 = vector.broadcast %cst_10 : f32 to vector<16x1xf32>
    %23 = arith.divf %21, %22 : vector<16x1xf32>
    %24 = vector.broadcast %23 : vector<16x1xf32> to vector<16x32xf32>
    %25 = arith.subf %19, %24 : vector<16x32xf32>
    %26 = arith.mulf %25, %25 : vector<16x32xf32>
    %cst_11 = arith.constant dense<0.000000e+00> : vector<16xf32>
    %27 = vector.multi_reduction <add>, %26, %cst_11 [1] : vector<16x32xf32> to vector<16xf32>
    %28 = vector.shape_cast %27 : vector<16xf32> to vector<16x1xf32>
    %cst_12 = arith.constant 3.200000e+01 : f32
    %29 = vector.broadcast %cst_12 : f32 to vector<16x1xf32>
    %30 = arith.divf %28, %29 : vector<16x1xf32>
    %31 = vector.broadcast %23 : vector<16x1xf32> to vector<16x32xf32>
    %32 = arith.subf %19, %31 : vector<16x32xf32>
    %cst_13 = arith.constant 9.99999996E-13 : f32
    %33 = vector.broadcast %cst_13 : f32 to vector<16x1xf32>
    %34 = arith.addf %30, %33 : vector<16x1xf32>
    %35 = math.rsqrt %34 : vector<16x1xf32>
    %36 = vector.broadcast %35 : vector<16x1xf32> to vector<16x32xf32>
    %37 = arith.mulf %32, %36 : vector<16x32xf32>
    %c0_14 = arith.constant 0 : index
    %c0_15 = arith.constant 0 : index
    %38 = vector.load %arg4[%c0_14, %c0_15] : memref<1x32xf32, #tpu.memory_space<vmem>>, vector<1x32xf32>
    %39 = vector.broadcast %38 : vector<1x32xf32> to vector<16x32xf32>
    %40 = arith.mulf %37, %39 : vector<16x32xf32>
    %c0_16 = arith.constant 0 : index
    %c0_17 = arith.constant 0 : index
    %41 = vector.load %arg5[%c0_16, %c0_17] : memref<1x32xf32, #tpu.memory_space<vmem>>, vector<1x32xf32>
    %42 = vector.broadcast %41 : vector<1x32xf32> to vector<16x32xf32>
    %43 = arith.addf %40, %42 : vector<16x32xf32>
    %44 = arith.truncf %43 : vector<16x32xf32> to vector<16x32xbf16>
    %c0_18 = arith.constant 0 : index
    %c0_19 = arith.constant 0 : index
    %45 = vector.load %arg6[%c0_18, %c0_19] : memref<16x32xbf16, #tpu.memory_space<vmem>>, vector<16x32xbf16>
    tpu.vector_store %arg6[%c0_18, %c0_19], %44 {strides = array<i32>} : memref<16x32xbf16, #tpu.memory_space<vmem>>, vector<16x32xbf16>,
    return
  }
  func.func @transform_0(%arg0: i32) -> (i32, i32) {
    %c0_i32 = arith.constant 0 : i32
    %c0_i32_0 = arith.constant 0 : i32
    return %arg0, %c0_i32 : i32, i32
  }
  func.func @transform_1(%arg0: i32) -> (i32, i32) {
    %c0_i32 = arith.constant 0 : i32
    %c0_i32_0 = arith.constant 0 : i32
    %c0_i32_1 = arith.constant 0 : i32
    return %c0_i32, %c0_i32_0 : i32, i32
  }
  func.func @transform_2(%arg0: i32) -> (i32, i32) {
    %c0_i32 = arith.constant 0 : i32
    %c0_i32_0 = arith.constant 0 : i32
    %c0_i32_1 = arith.constant 0 : i32
    return %c0_i32, %c0_i32_0 : i32, i32
  }
  func.func @transform_3(%arg0: i32) -> (i32, i32) {
    %c0_i32 = arith.constant 0 : i32
    %c0_i32_0 = arith.constant 0 : i32
    %c0_i32_1 = arith.constant 0 : i32
    return %c0_i32, %c0_i32_0 : i32, i32
  }
  func.func @transform_4(%arg0: i32) -> (i32, i32) {
    %c0_i32 = arith.constant 0 : i32
    %c0_i32_0 = arith.constant 0 : i32
    %c0_i32_1 = arith.constant 0 : i32
    return %c0_i32, %c0_i32_0 : i32, i32
  }
  func.func @transform_5(%arg0: i32) -> (i32, i32) {
    %c0_i32 = arith.constant 0 : i32
    %c0_i32_0 = arith.constant 0 : i32
    return %arg0, %c0_i32 : i32, i32
  }
}

module attributes {stable_mosaic.version = 11 : i64} {
  func.func @_lm_ce_kernel(%arg0: i32, %arg1: i32, %arg2: memref<16x32xbf16, #tpu.memory_space<vmem>>, %arg3: memref<32x128xbf16, #tpu.memory_space<vmem>>, %arg4: memref<1x128xf32, #tpu.memory_space<vmem>>, %arg5: memref<16x1xi32, #tpu.memory_space<vmem>>, %arg6: memref<16x1xf32, #tpu.memory_space<vmem>>, %arg7: memref<16x1xf32, #tpu.memory_space<vmem>>, %arg8: memref<16x1xf32, #tpu.memory_space<vmem>>, %arg9: memref<16x1xf32, #tpu.memory_space<vmem>>, %arg10: memref<16x1xf32, #tpu.memory_space<vmem>>, %arg11: memref<16x1xf32, #tpu.memory_space<vmem>>) attributes {dimension_semantics = [#tpu.dimension_semantics<parallel>, #tpu.dimension_semantics<arbitrary>], iteration_bounds = array<i64: 1, 1>, scalar_prefetch = 0 : i64, scratch_operands = 4 : i64, tpu.core_type = #tpu.core_type<tc>, window_params = [{transform_indices = @transform_0, window_bounds = array<i64: 16, 32>}, {transform_indices = @transform_1, window_bounds = array<i64: 32, 128>}, {transform_indices = @transform_2, window_bounds = array<i64: 1, 128>}, {transform_indices = @transform_3, window_bounds = array<i64: 16, 1>}, {transform_indices = @transform_4, window_bounds = array<i64: 16, 1>}, {transform_indices = @transform_5, window_bounds = array<i64: 16, 1>}]} {
    %c0_i32 = arith.constant 0 : i32
    %0 = arith.cmpi eq, %arg1, %c0_i32 : i32
    %1 = arith.extui %0 : i1 to i32
    %c0_i32_0 = arith.constant 0 : i32
    %2 = arith.cmpi ne, %1, %c0_i32_0 : i32
    scf.if %2 {
      %cst_35 = arith.constant -1.000000e+30 : f32
      %54 = vector.broadcast %cst_35 : f32 to vector<16x1xf32>
      %c0_36 = arith.constant 0 : index
      %c0_37 = arith.constant 0 : index
      %55 = vector.load %arg8[%c0_36, %c0_37] : memref<16x1xf32, #tpu.memory_space<vmem>>, vector<16x1xf32>
      tpu.vector_store %arg8[%c0_36, %c0_37], %54 {strides = array<i32>} : memref<16x1xf32, #tpu.memory_space<vmem>>, vector<16x1xf32>,
      %cst_38 = arith.constant 0.000000e+00 : f32
      %56 = vector.broadcast %cst_38 : f32 to vector<16x1xf32>
      %c0_39 = arith.constant 0 : index
      %c0_40 = arith.constant 0 : index
      %57 = vector.load %arg9[%c0_39, %c0_40] : memref<16x1xf32, #tpu.memory_space<vmem>>, vector<16x1xf32>
      tpu.vector_store %arg9[%c0_39, %c0_40], %56 {strides = array<i32>} : memref<16x1xf32, #tpu.memory_space<vmem>>, vector<16x1xf32>,
      %cst_41 = arith.constant 0.000000e+00 : f32
      %58 = vector.broadcast %cst_41 : f32 to vector<16x1xf32>
      %c0_42 = arith.constant 0 : index
      %c0_43 = arith.constant 0 : index
      %59 = vector.load %arg10[%c0_42, %c0_43] : memref<16x1xf32, #tpu.memory_space<vmem>>, vector<16x1xf32>
      tpu.vector_store %arg10[%c0_42, %c0_43], %58 {strides = array<i32>} : memref<16x1xf32, #tpu.memory_space<vmem>>, vector<16x1xf32>,
      %cst_44 = arith.constant 0.000000e+00 : f32
      %60 = vector.broadcast %cst_44 : f32 to vector<16x1xf32>
      %c0_45 = arith.constant 0 : index
      %c0_46 = arith.constant 0 : index
      %61 = vector.load %arg11[%c0_45, %c0_46] : memref<16x1xf32, #tpu.memory_space<vmem>>, vector<16x1xf32>
      tpu.vector_store %arg11[%c0_45, %c0_46], %60 {strides = array<i32>} : memref<16x1xf32, #tpu.memory_space<vmem>>, vector<16x1xf32>,
    } else {
    }
    %c0 = arith.constant 0 : index
    %c0_1 = arith.constant 0 : index
    %3 = vector.load %arg2[%c0, %c0_1] : memref<16x32xbf16, #tpu.memory_space<vmem>>, vector<16x32xbf16>
    %c0_2 = arith.constant 0 : index
    %c0_3 = arith.constant 0 : index
    %4 = vector.load %arg3[%c0_2, %c0_3] : memref<32x128xbf16, #tpu.memory_space<vmem>>, vector<32x128xbf16>
    %cst = arith.constant dense<0.000000e+00> : vector<16x128xf32>
    %5 = tpu.matmul %3, %4, %cst {dimension_numbers = #tpu.dot_dimension_numbers<[1], [0], [0], [1], [0, 0, 1, 1], [], []>} : vector<16x32xbf16>, vector<32x128xbf16>, vector<16x128xf32> -> vector<16x128xf32>
    %c0_4 = arith.constant 0 : index
    %c0_5 = arith.constant 0 : index
    %6 = vector.load %arg4[%c0_4, %c0_5] : memref<1x128xf32, #tpu.memory_space<vmem>>, vector<1x128xf32>
    %7 = vector.broadcast %6 : vector<1x128xf32> to vector<16x128xf32>
    %8 = arith.addf %5, %7 : vector<16x128xf32>
    %c0_6 = arith.constant 0 : index
    %c0_7 = arith.constant 0 : index
    %9 = vector.load %arg5[%c0_6, %c0_7] : memref<16x1xi32, #tpu.memory_space<vmem>>, vector<16x1xi32>
    %10 = tpu.iota {dimensions = array<i32: 1>} : vector<16x128xi32>
    %c128_i32 = arith.constant 128 : i32
    %11 = arith.muli %arg1, %c128_i32 : i32
    %12 = vector.broadcast %11 : i32 to vector<16x128xi32>
    %13 = arith.addi %10, %12 : vector<16x128xi32>
    %c64_i32 = arith.constant 64 : i32
    %14 = vector.broadcast %c64_i32 : i32 to vector<16x128xi32>
    %15 = arith.cmpi slt, %13, %14 : vector<16x128xi32>
    %cst_8 = arith.constant -1.000000e+30 : f32
    %16 = vector.broadcast %cst_8 : f32 to vector<16x128xf32>
    %17 = arith.select %15, %8, %16 : vector<16x128xi1>, vector<16x128xf32>
    %c0_9 = arith.constant 0 : index
    %c0_10 = arith.constant 0 : index
    %18 = vector.load %arg11[%c0_9, %c0_10] : memref<16x1xf32, #tpu.memory_space<vmem>>, vector<16x1xf32>
    %19 = vector.broadcast %9 : vector<16x1xi32> to vector<16x128xi32>
    %20 = arith.cmpi eq, %13, %19 : vector<16x128xi32>
    %cst_11 = arith.constant 0.000000e+00 : f32
    %21 = vector.broadcast %cst_11 : f32 to vector<16x128xf32>
    %22 = arith.select %20, %8, %21 : vector<16x128xi1>, vector<16x128xf32>
    %cst_12 = arith.constant dense<0.000000e+00> : vector<16xf32>
    %23 = vector.multi_reduction <add>, %22, %cst_12 [1] : vector<16x128xf32> to vector<16xf32>
    %24 = vector.shape_cast %23 : vector<16xf32> to vector<16x1xf32>
    %25 = arith.addf %18, %24 : vector<16x1xf32>
    %c0_13 = arith.constant 0 : index
    %c0_14 = arith.constant 0 : index
    %26 = vector.load %arg11[%c0_13, %c0_14] : memref<16x1xf32, #tpu.memory_space<vmem>>, vector<16x1xf32>
    tpu.vector_store %arg11[%c0_13, %c0_14], %25 {strides = array<i32>} : memref<16x1xf32, #tpu.memory_space<vmem>>, vector<16x1xf32>,
    %c0_15 = arith.constant 0 : index
    %c0_16 = arith.constant 0 : index
    %27 = vector.load %arg10[%c0_15, %c0_16] : memref<16x1xf32, #tpu.memory_space<vmem>>, vector<16x1xf32>
    %cst_17 = arith.constant 0.000000e+00 : f32
    %28 = vector.broadcast %cst_17 : f32 to vector<16x128xf32>
    %29 = arith.select %15, %8, %28 : vector<16x128xi1>, vector<16x128xf32>
    %cst_18 = arith.constant dense<0.000000e+00> : vector<16xf32>
    %30 = vector.multi_reduction <add>, %29, %cst_18 [1] : vector<16x128xf32> to vector<16xf32>
    %31 = vector.shape_cast %30 : vector<16xf32> to vector<16x1xf32>
    %32 = arith.addf %27, %31 : vector<16x1xf32>
    %c0_19 = arith.constant 0 : index
    %c0_20 = arith.constant 0 : index
    %33 = vector.load %arg10[%c0_19, %c0_20] : memref<16x1xf32, #tpu.memory_space<vmem>>, vector<16x1xf32>
    tpu.vector_store %arg10[%c0_19, %c0_20], %32 {strides = array<i32>} : memref<16x1xf32, #tpu.memory_space<vmem>>, vector<16x1xf32>,
    %c0_21 = arith.constant 0 : index
    %c0_22 = arith.constant 0 : index
    %34 = vector.load %arg8[%c0_21, %c0_22] : memref<16x1xf32, #tpu.memory_space<vmem>>, vector<16x1xf32>
    %cst_23 = arith.constant dense<0xFF800000> : vector<16xf32>
    %35 = vector.multi_reduction <maximumf>, %17, %cst_23 [1] : vector<16x128xf32> to vector<16xf32>
    %36 = vector.shape_cast %35 : vector<16xf32> to vector<16x1xf32>
    %37 = arith.maximumf %34, %36 : vector<16x1xf32>
    %c0_24 = arith.constant 0 : index
    %c0_25 = arith.constant 0 : index
    %38 = vector.load %arg9[%c0_24, %c0_25] : memref<16x1xf32, #tpu.memory_space<vmem>>, vector<16x1xf32>
    %c0_26 = arith.constant 0 : index
    %c0_27 = arith.constant 0 : index
    %39 = vector.load %arg8[%c0_26, %c0_27] : memref<16x1xf32, #tpu.memory_space<vmem>>, vector<16x1xf32>
    %40 = arith.subf %39, %37 : vector<16x1xf32>
    %41 = math.exp %40 : vector<16x1xf32>
    %42 = arith.mulf %38, %41 : vector<16x1xf32>
    %43 = vector.broadcast %37 : vector<16x1xf32> to vector<16x128xf32>
    %44 = arith.subf %17, %43 : vector<16x128xf32>
    %45 = math.exp %44 : vector<16x128xf32>
    %cst_28 = arith.constant dense<0.000000e+00> : vector<16xf32>
    %46 = vector.multi_reduction <add>, %45, %cst_28 [1] : vector<16x128xf32> to vector<16xf32>
    %47 = vector.shape_cast %46 : vector<16xf32> to vector<16x1xf32>
    %48 = arith.addf %42, %47 : vector<16x1xf32>
    %c0_29 = arith.constant 0 : index
    %c0_30 = arith.constant 0 : index
    %49 = vector.load %arg9[%c0_29, %c0_30] : memref<16x1xf32, #tpu.memory_space<vmem>>, vector<16x1xf32>
    tpu.vector_store %arg9[%c0_29, %c0_30], %48 {strides = array<i32>} : memref<16x1xf32, #tpu.memory_space<vmem>>, vector<16x1xf32>,
    %c0_31 = arith.constant 0 : index
    %c0_32 = arith.constant 0 : index
    %50 = vector.load %arg8[%c0_31, %c0_32] : memref<16x1xf32, #tpu.memory_space<vmem>>, vector<16x1xf32>
    tpu.vector_store %arg8[%c0_31, %c0_32], %37 {strides = array<i32>} : memref<16x1xf32, #tpu.memory_space<vmem>>, vector<16x1xf32>,
    %c0_i32_33 = arith.constant 0 : i32
    %51 = arith.cmpi eq, %arg1, %c0_i32_33 : i32
    %52 = arith.extui %51 : i1 to i32
    %c0_i32_34 = arith.constant 0 : i32
    %53 = arith.cmpi ne, %52, %c0_i32_34 : i32
    scf.if %53 {
      %c0_35 = arith.constant 0 : index
      %c0_36 = arith.constant 0 : index
      %54 = vector.load %arg8[%c0_35, %c0_36] : memref<16x1xf32, #tpu.memory_space<vmem>>, vector<16x1xf32>
      %c0_37 = arith.constant 0 : index
      %c0_38 = arith.constant 0 : index
      %55 = vector.load %arg9[%c0_37, %c0_38] : memref<16x1xf32, #tpu.memory_space<vmem>>, vector<16x1xf32>
      %56 = math.log %55 : vector<16x1xf32>
      %57 = arith.addf %54, %56 : vector<16x1xf32>
      %c0_39 = arith.constant 0 : index
      %c0_40 = arith.constant 0 : index
      %58 = vector.load %arg11[%c0_39, %c0_40] : memref<16x1xf32, #tpu.memory_space<vmem>>, vector<16x1xf32>
      %59 = arith.subf %57, %58 : vector<16x1xf32>
      %c0_41 = arith.constant 0 : index
      %c0_42 = arith.constant 0 : index
      %60 = vector.load %arg10[%c0_41, %c0_42] : memref<16x1xf32, #tpu.memory_space<vmem>>, vector<16x1xf32>
      %cst_43 = arith.constant 1.562500e-02 : f32
      %61 = vector.broadcast %cst_43 : f32 to vector<16x1xf32>
      %62 = arith.mulf %60, %61 : vector<16x1xf32>
      %63 = arith.subf %57, %62 : vector<16x1xf32>
      %cst_44 = arith.constant 0.899999976 : f32
      %64 = vector.broadcast %cst_44 : f32 to vector<16x1xf32>
      %65 = arith.mulf %64, %59 : vector<16x1xf32>
      %cst_45 = arith.constant 1.000000e-01 : f32
      %66 = vector.broadcast %cst_45 : f32 to vector<16x1xf32>
      %67 = arith.mulf %66, %63 : vector<16x1xf32>
      %68 = arith.addf %65, %67 : vector<16x1xf32>
      %c-100_i32 = arith.constant -100 : i32
      %69 = vector.broadcast %c-100_i32 : i32 to vector<16x1xi32>
      %70 = arith.cmpi ne, %9, %69 : vector<16x1xi32>
      %71 = arith.extui %70 : vector<16x1xi1> to vector<16x1xi32>
      %72 = arith.sitofp %71 : vector<16x1xi32> to vector<16x1xf32>
      %73 = arith.mulf %68, %72 : vector<16x1xf32>
      %c0_46 = arith.constant 0 : index
      %c0_47 = arith.constant 0 : index
      %74 = vector.load %arg6[%c0_46, %c0_47] : memref<16x1xf32, #tpu.memory_space<vmem>>, vector<16x1xf32>
      tpu.vector_store %arg6[%c0_46, %c0_47], %73 {strides = array<i32>} : memref<16x1xf32, #tpu.memory_space<vmem>>, vector<16x1xf32>,
      %c0_48 = arith.constant 0 : index
      %c0_49 = arith.constant 0 : index
      %75 = vector.load %arg7[%c0_48, %c0_49] : memref<16x1xf32, #tpu.memory_space<vmem>>, vector<16x1xf32>
      tpu.vector_store %arg7[%c0_48, %c0_49], %72 {strides = array<i32>} : memref<16x1xf32, #tpu.memory_space<vmem>>, vector<16x1xf32>,
    } else {
    }
    return
  }
  func.func @transform_0(%arg0: i32, %arg1: i32) -> (i32, i32) {
    %c0_i32 = arith.constant 0 : i32
    %c0_i32_0 = arith.constant 0 : i32
    return %arg0, %c0_i32 : i32, i32
  }
  func.func @transform_1(%arg0: i32, %arg1: i32) -> (i32, i32) {
    %c0_i32 = arith.constant 0 : i32
    %c0_i32_0 = arith.constant 0 : i32
    return %c0_i32, %arg1 : i32, i32
  }
  func.func @transform_2(%arg0: i32, %arg1: i32) -> (i32, i32) {
    %c0_i32 = arith.constant 0 : i32
    %c0_i32_0 = arith.constant 0 : i32
    return %c0_i32, %arg1 : i32, i32
  }
  func.func @transform_3(%arg0: i32, %arg1: i32) -> (i32, i32) {
    %c0_i32 = arith.constant 0 : i32
    %c0_i32_0 = arith.constant 0 : i32
    return %arg0, %c0_i32 : i32, i32
  }
  func.func @transform_4(%arg0: i32, %arg1: i32) -> (i32, i32) {
    %c0_i32 = arith.constant 0 : i32
    %c0_i32_0 = arith.constant 0 : i32
    return %arg0, %c0_i32 : i32, i32
  }
  func.func @transform_5(%arg0: i32, %arg1: i32) -> (i32, i32) {
    %c0_i32 = arith.constant 0 : i32
    %c0_i32_0 = arith.constant 0 : i32
    return %arg0, %c0_i32 : i32, i32
  }
}

</mosaic_0001>

<llo_original>
// kernel: blip_decoder_forward.33
$region0: #{blip_decoder_forward.33}
  #allocation0 [shape = 'u32[]', space=smem, size = 0x4, offset = 0x4, fixed_abs, tag = 'smem constant byte address 0x4 - core index']
  #allocation1 [shape = 'u32[144,128]{1,0:T(1,128)}', space=vmem, size = 0x12000, scoped, tag = 'internal scratch']
  #allocation2 [shape = 'f32[8,32]{1,0:T(8,128)}', space=vmem, size = 0x1000, scoped, tag = 'scratch operand']
  %s0 = inlined_call_operand.vmem [shape: f32[8,192], index: 0, kind: input, shape index: {}]
  %s1 = inlined_call_operand.vmem [shape: bf16[192,32], index: 1, kind: input, shape index: {}]
  %s2 = inlined_call_operand.vmem [shape: f32[1,32], index: 2, kind: input, shape index: {}]
  %s3 = inlined_call_operand.vmem [shape: f32[8,32], index: 3, kind: output, shape index: {}]
  %s4 = sld [smem:[#allocation0]]
  $region30: #{blip_decoder_forward.33} parent=0
    _
  %s6 = ssub.s32 1, %s4
  %s7 = scalar_select 0, %s6, %s4
  // Predicated region
  $region2: #{blip_decoder_forward.33} parent=0 // pred_check
    _
  $region3: #{blip_decoder_forward.33} parent=0 // pred_check_branch
    %9 = sbr.rel (0) target = $region5
  $region4: #{blip_decoder_forward.33} parent=0 // pred_region
    _
  $region5: #{blip_decoder_forward.33} parent=0 // pred_fallthru
    _
  // Predicated region
  $region6: #{blip_decoder_forward.33} parent=0 // pred_check
    _
  $region7: #{blip_decoder_forward.33} parent=0 // pred_check_branch
    %11 = sbr.rel (0) target = $region9
  $region8: #{blip_decoder_forward.33} parent=0 // pred_region
    _
  $region9: #{blip_decoder_forward.33} parent=0 // pred_fallthru
    _
  // Predicated region
  $region10: #{blip_decoder_forward.33} parent=0 // pred_check
    _
  $region11: #{blip_decoder_forward.33} parent=0 // pred_check_branch
    %13 = sbr.rel (0) target = $region13
  $region12: #{blip_decoder_forward.33} parent=0 // pred_region
    _
  $region13: #{blip_decoder_forward.33} parent=0 // pred_fallthru
    _
  %p15 = scmp.eq.s32.totalorder 0, 0
  // Predicated region
  $region14: #{blip_decoder_forward.33} parent=0 // pred_check
    %p16 = pneg %p15
  $region15: #{blip_decoder_forward.33} parent=0 // pred_check_branch
    %18 = sbr.rel (%p16) target = $region17
  $region16: #{blip_decoder_forward.33} parent=0 // pred_region
    %vm19 = vcmask 261120
    %20 = vst.msk [vmem:[#allocation2] sm:$0xff] %vm19, 0.0
  $region17: #{blip_decoder_forward.33} parent=0 // pred_fallthru
    _
  %v21 = vld [vmem:[#allocation2] sm:$0xff]
  %v22 = vld [vmem:[%s0] sm:$0xff]
  %v23 = vld [vmem:[%s0 + $0x8] sm:$0xff]
  %v24 = vpack.c.bf16 %v22, %v22
  %v25 = vpack.c.bf16 %v23, %v23
  %v26 = vld [vmem:[%s1] sm:$0xf]
  %v27 = vld [vmem:[%s1 + $0x4] sm:$0xf]
  %v28 = vld [vmem:[%s1 + $0x8] sm:$0xf]
  %v29 = vld [vmem:[%s1 + $0xc] sm:$0xf]
  %v30 = vld [vmem:[%s1 + $0x10] sm:$0xf]
  %v31 = vld [vmem:[%s1 + $0x14] sm:$0xf]
  %v32 = vld [vmem:[%s1 + $0x18] sm:$0xf]
  %v33 = vld [vmem:[%s1 + $0x1c] sm:$0xf]
  %v34 = vld [vmem:[%s1 + $0x20] sm:$0xf]
  %v35 = vld [vmem:[%s1 + $0x24] sm:$0xf]
  %v36 = vld [vmem:[%s1 + $0x28] sm:$0xf]
  %v37 = vld [vmem:[%s1 + $0x2c] sm:$0xf]
  %v38 = vld [vmem:[%s1 + $0x30] sm:$0xf]
  %v39 = vld [vmem:[%s1 + $0x34] sm:$0xf]
  %v40 = vld [vmem:[%s1 + $0x38] sm:$0xf]
  %v41 = vld [vmem:[%s1 + $0x3c] sm:$0xf]
  %v42 = vld [vmem:[%s1 + $0x40] sm:$0xf]
  %v43 = vld [vmem:[%s1 + $0x44] sm:$0xf]
  %v44 = vld [vmem:[%s1 + $0x48] sm:$0xf]
  %v45 = vld [vmem:[%s1 + $0x4c] sm:$0xf]
  %v46 = vld [vmem:[%s1 + $0x50] sm:$0xf]
  %v47 = vld [vmem:[%s1 + $0x54] sm:$0xf]
  %v48 = vld [vmem:[%s1 + $0x58] sm:$0xf]
  %v49 = vld [vmem:[%s1 + $0x5c] sm:$0xf]
  %v74 = vunpack.c.l.b16 %v26
  %v75 = vunpack.c.l.b16 %v27
  %v76 = vunpack.c.l.b16 %v28
  %v77 = vunpack.c.l.b16 %v29
  %v78 = vunpack.c.l.b16 %v30
  %v79 = vunpack.c.l.b16 %v31
  %v80 = vunpack.c.l.b16 %v32
  %v81 = vunpack.c.l.b16 %v33
  %v82 = vunpack.c.l.b16 %v34
  %v83 = vunpack.c.l.b16 %v35
  %v84 = vunpack.c.l.b16 %v36
  %v85 = vunpack.c.l.b16 %v37
  %v86 = vunpack.c.l.b16 %v38
  %v87 = vunpack.c.l.b16 %v39
  %v88 = vunpack.c.l.b16 %v40
  %v89 = vunpack.c.l.b16 %v41
  %v90 = vunpack.c.l.b16 %v42
  %v91 = vunpack.c.l.b16 %v43
  %v92 = vunpack.c.l.b16 %v44
  %v93 = vunpack.c.l.b16 %v45
  %v94 = vunpack.c.l.b16 %v46
  %v95 = vunpack.c.l.b16 %v47
  %v96 = vunpack.c.l.b16 %v48
  %v97 = vunpack.c.l.b16 %v49
  %v98 = vpack.c.b16 %v75, %v74
  %v99 = vpack.c.b16 %v77, %v76
  %v100 = vpack.c.b16 %v79, %v78
  %v101 = vpack.c.b16 %v81, %v80
  %v102 = vpack.c.b16 %v83, %v82
  %v103 = vpack.c.b16 %v85, %v84
  %v104 = vpack.c.b16 %v87, %v86
  %v105 = vpack.c.b16 %v89, %v88
  %v106 = vpack.c.b16 %v91, %v90
  %v107 = vpack.c.b16 %v93, %v92
  %v108 = vpack.c.b16 %v95, %v94
  %v109 = vpack.c.b16 %v97, %v96
  %vm122 = vcmask 523264
  %v124 = vsel %vm122, %v25, 0
  %126 = vmatprep.subr.bf16.mxu0 0
  %127 = vmatpush1.bf16.msra.mxu0 %v98
  %128 = vmatprep.subr.bf16.mxu0 0
  %129 = vmatpush1.bf16.msra.mxu0 %v99
  %130 = vmatprep.subr.bf16.mxu0 0
  %131 = vmatpush1.bf16.msra.mxu0 %v100
  %132 = vmatprep.subr.bf16.mxu0 0
  %133 = vmatpush1.bf16.msra.mxu0 %v101
  %134 = vmatprep.subr.bf16.mxu0 0
  %135 = vmatpush1.bf16.msra.mxu0 %v102
  %136 = vmatprep.subr.bf16.mxu0 0
  %137 = vmatpush1.bf16.msra.mxu0 %v103
  %138 = vmatprep.subr.bf16.mxu0 0
  %139 = vmatpush1.bf16.msra.mxu0 %v104
  %140 = vmatprep.subr.bf16.mxu0 0
  %141 = vmatpush1.bf16.msra.mxu0 %v105
  %142 = vmatprep.subr.bf16.mxu0 0
  %143 = vmatpush1.bf16.msra.mxu0 %v106
  %144 = vmatprep.subr.bf16.mxu0 0
  %145 = vmatpush1.bf16.msra.mxu0 %v107
  %146 = vmatprep.subr.bf16.mxu0 0
  %147 = vmatpush1.bf16.msra.mxu0 %v108
  %148 = vmatprep.subr.bf16.mxu0 0
  %149 = vmatpush1.bf16.msra.mxu0 %v109
  %150 = vmatprep.subr.bf16.mxu0 0
  %151 = vmatpush1.bf16.msra.mxu0 0
  %152 = vmatprep.subr.bf16.mxu0 0
  %153 = vmatpush1.bf16.msra.mxu0 0
  %154 = vmatprep.subr.bf16.mxu0 0
  %155 = vmatpush1.bf16.msra.mxu0 0
  %156 = vmatprep.subr.bf16.mxu0 0
  %157 = vmatpush1.bf16.msra.mxu0 0
  %158 = vmatprep.mubr.bf16.mxu0 %v124
  %159 = vmatmul.mubr.bf16.gmra.mrb[0].mxu0 %v24
  %v160 = vpop.f32.mrb[0].mxu0
  %v161 = vadd.f32 0.0, %v160
  %v162 = vpop.f32.mrb[0].mxu0
  %v163 = vpop.f32.mrb[0].mxu0
  %v164 = vpop.f32.mrb[0].mxu0
  %165 = vdwg.mxu0
  %v166 = vadd.f32 %v21, %v161
  %vm167 = vcmask 261120
  %168 = vst.msk [vmem:[#allocation2] sm:$0xff] %vm167, %v166
  // Predicated region
  $region18: #{blip_decoder_forward.33} parent=0 // pred_check
    %p169 = pneg %p15
  $region19: #{blip_decoder_forward.33} parent=0 // pred_check_branch
    %171 = sbr.rel (%p169) target = $region21
  $region20: #{blip_decoder_forward.33} parent=0 // pred_region
    %v172 = vld [vmem:[#allocation2] sm:$0xff]
    %v173 = vld [vmem:[%s2] sm:$0x1]
    %v175 = vlaneseq
    %v176 = vshrl.u32 %v175, 7
    %v177 = vsub.s32 0, %v176
    %v178 = vrot.slane %v173, %v177
    %v180 = vadd.f32 %v172, %v178
    %181 = vst.msk [vmem:[%s3] sm:$0xff] %vm167, %v180
  $region21: #{blip_decoder_forward.33} parent=0 // pred_fallthru
    _
  // Predicated region
  $region22: #{blip_decoder_forward.33} parent=0 // pred_check
    _
  $region23: #{blip_decoder_forward.33} parent=0 // pred_check_branch
    %183 = sbr.rel (0) target = $region25
  $region24: #{blip_decoder_forward.33} parent=0 // pred_region
    _
  $region25: #{blip_decoder_forward.33} parent=0 // pred_fallthru
    _
  // Predicated region
  $region26: #{blip_decoder_forward.33} parent=0 // pred_check
    _
  $region27: #{blip_decoder_forward.33} parent=0 // pred_check_branch
    %185 = sbr.rel (0) target = $region29
  $region28: #{blip_decoder_forward.33} parent=0 // pred_region
    _
  $region29: #{blip_decoder_forward.33} parent=0 // pred_fallthru
    _

// kernel: blip_decoder_forward.34
$region0: #{blip_decoder_forward.34}
  #allocation0 [shape = 'u32[]', space=smem, size = 0x4, offset = 0x4, fixed_abs, tag = 'smem constant byte address 0x4 - core index']
  #allocation1 [shape = 'u32[144,128]{1,0:T(1,128)}', space=vmem, size = 0x12000, scoped, tag = 'internal scratch']
  #allocation2 [shape = 'bf16[16,32]{1,0:T(16,128)(2,1)}', space=vmem, size = 0x1000, scoped, tag = 'scratch operand']
  %s0 = inlined_call_operand.vmem [shape: f32[16,32], index: 0, kind: input, shape index: {}]
  %s1 = inlined_call_operand.vmem [shape: f32[1,32], index: 1, kind: input, shape index: {}]
  %s2 = inlined_call_operand.vmem [shape: f32[1,32], index: 2, kind: input, shape index: {}]
  %s3 = inlined_call_operand.vmem [shape: bf16[32,96], index: 3, kind: input, shape index: {}]
  %s4 = inlined_call_operand.vmem [shape: f32[1,96], index: 4, kind: input, shape index: {}]
  %s5 = inlined_call_operand.vmem [shape: bf16[16,96], index: 5, kind: output, shape index: {}]
  %s6 = sld [smem:[#allocation0]]
  $region34: #{blip_decoder_forward.34} parent=0
    _
  %s8 = ssub.s32 1, %s6
  %s9 = scalar_select 0, %s8, %s6
  // Predicated region
  $region2: #{blip_decoder_forward.34} parent=0 // pred_check
    _
  $region3: #{blip_decoder_forward.34} parent=0 // pred_check_branch
    %11 = sbr.rel (0) target = $region5
  $region4: #{blip_decoder_forward.34} parent=0 // pred_region
    _
  $region5: #{blip_decoder_forward.34} parent=0 // pred_fallthru
    _
  // Predicated region
  $region6: #{blip_decoder_forward.34} parent=0 // pred_check
    _
  $region7: #{blip_decoder_forward.34} parent=0 // pred_check_branch
    %13 = sbr.rel (0) target = $region9
  $region8: #{blip_decoder_forward.34} parent=0 // pred_region
    _
  $region9: #{blip_decoder_forward.34} parent=0 // pred_fallthru
    _
  // Predicated region
  $region10: #{blip_decoder_forward.34} parent=0 // pred_check
    _
  $region11: #{blip_decoder_forward.34} parent=0 // pred_check_branch
    %15 = sbr.rel (0) target = $region13
  $region12: #{blip_decoder_forward.34} parent=0 // pred_region
    _
  $region13: #{blip_decoder_forward.34} parent=0 // pred_fallthru
    _
  // Predicated region
  $region14: #{blip_decoder_forward.34} parent=0 // pred_check
    _
  $region15: #{blip_decoder_forward.34} parent=0 // pred_check_branch
    %17 = sbr.rel (0) target = $region17
  $region16: #{blip_decoder_forward.34} parent=0 // pred_region
    _
  $region17: #{blip_decoder_forward.34} parent=0 // pred_fallthru
    _
  // Predicated region
  $region18: #{blip_decoder_forward.34} parent=0 // pred_check
    _
  $region19: #{blip_decoder_forward.34} parent=0 // pred_check_branch
    %19 = sbr.rel (0) target = $region21
  $region20: #{blip_decoder_forward.34} parent=0 // pred_region
    _
  $region21: #{blip_decoder_forward.34} parent=0 // pred_fallthru
    _
  %p21 = scmp.eq.s32.totalorder 0, 0
  // Predicated region
  $region22: #{blip_decoder_forward.34} parent=0 // pred_check
    %p22 = pneg %p21
  $region23: #{blip_decoder_forward.34} parent=0 // pred_check_branch
    %24 = sbr.rel (%p22) target = $region25
  $region24: #{blip_decoder_forward.34} parent=0 // pred_region
    %v25 = vld [vmem:[%s0] sm:$0xff]
    %v26 = vld [vmem:[%s0 + $0x8] sm:$0xff]
    %vm27 = vcmask 261120
    %v28 = vsel %vm27, %v25, 0.0
    %29 = vadd.xlane.f32.xlu0 %v28
    %v30 = vpop.xlane.xlu0 %29
    %v31 = vsel %vm27, %v26, 0.0
    %32 = vadd.xlane.f32.xlu0 %v31
    %v33 = vpop.xlane.xlu0 %32
    %v34 = vrcp.pop 32.0
    %v35 = vmul.f32 %v30, %v34
    %v36 = vmul.f32 %v33, %v34
    %v37 = vsub.f32 %v25, %v35
    %v38 = vsub.f32 %v26, %v36
    %v39 = vmul.f32 %v37, %v37
    %v40 = vmul.f32 %v38, %v38
    %v41 = vsel %vm27, %v39, 0.0
    %42 = vadd.xlane.f32.xlu0 %v41
    %v43 = vpop.xlane.xlu0 %42
    %v44 = vsel %vm27, %v40, 0.0
    %45 = vadd.xlane.f32.xlu0 %v44
    %v46 = vpop.xlane.xlu0 %45
    %v47 = vmul.f32 %v43, %v34
    %v48 = vmul.f32 %v46, %v34
    %v49 = vadd.f32 %v47, 1e-06
    %v50 = vadd.f32 %v48, 1e-06
    %v51 = vrsqrt.pop %v49
    %v52 = vrsqrt.pop %v50
    %v53 = vmul.f32 %v37, %v51
    %v54 = vmul.f32 %v38, %v52
    %v55 = vld [vmem:[%s1] sm:$0x1]
    %v57 = vlaneseq
    %v58 = vshrl.u32 %v57, 7
    %v59 = vsub.s32 0, %v58
    %v60 = vrot.slane %v55, %v59
    %v62 = vmul.f32 %v53, %v60
    %v63 = vmul.f32 %v54, %v60
    %v64 = vld [vmem:[%s2] sm:$0x1]
    %v66 = vlaneseq
    %v67 = vshrl.u32 %v66, 7
    %v68 = vsub.s32 0, %v67
    %v69 = vrot.slane %v64, %v68
    %v71 = vadd.f32 %v62, %v69
    %v72 = vadd.f32 %v63, %v69
    %v73 = vpack.c.bf16 %v72, %v71
    %74 = vst.msk [vmem:[#allocation2] sm:$0xff] %vm27, %v73
  $region25: #{blip_decoder_forward.34} parent=0 // pred_fallthru
    _
  %v75 = vld [vmem:[#allocation2] sm:$0xff]
  %v76 = vld [vmem:[%s3] sm:$0xf]
  %v77 = vld [vmem:[%s3 + $0x4] sm:$0xf]
  %v78 = vld [vmem:[%s3 + $0x8] sm:$0xf]
  %v79 = vld [vmem:[%s3 + $0xc] sm:$0xf]
  %v80 = vld [vmem:[%s4] sm:$0x1]
  %v82 = vlaneseq
  %v83 = vshrl.u32 %v82, 7
  %v84 = vsub.s32 0, %v83
  %v85 = vrot.slane %v80, %v84
  %v91 = vunpack.c.l.b16 %v76
  %v92 = vunpack.c.l.b16 %v77
  %v93 = vunpack.c.l.b16 %v78
  %v94 = vunpack.c.l.b16 %v79
  %v95 = vpack.c.b16 %v92, %v91
  %v96 = vpack.c.b16 %v94, %v93
  %vm99 = vcmask 261120
  %v101 = vsel %vm99, %v75, 0
  %103 = vmatprep.subr.bf16.mxu0 0
  %104 = vmatpush1.bf16.msra.mxu0 %v95
  %105 = vmatprep.subr.bf16.mxu0 0
  %106 = vmatpush1.bf16.msra.mxu0 %v96
  %107 = vmatprep.subr.bf16.mxu0 0
  %108 = vmatpush1.bf16.msra.mxu0 0
  %109 = vmatprep.subr.bf16.mxu0 0
  %110 = vmatpush1.bf16.msra.mxu0 0
  %111 = vmatprep.subr.bf16.mxu0 0
  %112 = vmatpush1.bf16.msra.mxu0 0
  %113 = vmatprep.subr.bf16.mxu0 0
  %114 = vmatpush1.bf16.msra.mxu0 0
  %115 = vmatprep.subr.bf16.mxu0 0
  %116 = vmatpush1.bf16.msra.mxu0 0
  %117 = vmatprep.subr.bf16.mxu0 0
  %118 = vmatpush1.bf16.msra.mxu0 0
  %119 = vmatprep.subr.bf16.mxu0 0
  %120 = vmatpush1.bf16.msra.mxu0 0
  %121 = vmatprep.subr.bf16.mxu0 0
  %122 = vmatpush1.bf16.msra.mxu0 0
  %123 = vmatprep.subr.bf16.mxu0 0
  %124 = vmatpush1.bf16.msra.mxu0 0
  %125 = vmatprep.subr.bf16.mxu0 0
  %126 = vmatpush1.bf16.msra.mxu0 0
  %127 = vmatprep.subr.bf16.mxu0 0
  %128 = vmatpush1.bf16.msra.mxu0 0
  %129 = vmatprep.subr.bf16.mxu0 0
  %130 = vmatpush1.bf16.msra.mxu0 0
  %131 = vmatprep.subr.bf16.mxu0 0
  %132 = vmatpush1.bf16.msra.mxu0 0
  %133 = vmatprep.subr.bf16.mxu0 0
  %134 = vmatpush1.bf16.msra.mxu0 0
  %135 = vmatprep.mubr.bf16.mxu0 0
  %136 = vmatmul.mubr.bf16.gmra.mrb[0].mxu0 %v101
  %v137 = vpop.f32.mrb[0].mxu0
  %v138 = vadd.f32 %v85, %v137
  %v139 = vpop.f32.mrb[0].mxu0
  %v140 = vpop.f32.mrb[0].mxu0
  %v141 = vadd.f32 %v85, %v140
  %v142 = vpop.f32.mrb[0].mxu0
  %143 = vdwg.mxu0
  %v144 = vpack.c.bf16 %v141, %v138
  %v146 = vunpack.c.l.b16 %v144
  %v147 = vunpack.c.h.b16 %v144
  %v148 = vpack.c.b16 %v146, %v146
  %v149 = vpack.c.b16 %v147, %v147
  %vm152 = vcmask 781312
  %153 = vst.msk [vmem:[%s5] sm:$0xf] %vm152, %v148
  %154 = vst.msk [vmem:[%s5 + $0x4] sm:$0xf] %vm152, %v149
  // Predicated region
  $region26: #{blip_decoder_forward.34} parent=0 // pred_check
    _
  $region27: #{blip_decoder_forward.34} parent=0 // pred_check_branch
    %156 = sbr.rel (0) target = $region29
  $region28: #{blip_decoder_forward.34} parent=0 // pred_region
    _
  $region29: #{blip_decoder_forward.34} parent=0 // pred_fallthru
    _
  // Predicated region
  $region30: #{blip_decoder_forward.34} parent=0 // pred_check
    _
  $region31: #{blip_decoder_forward.34} parent=0 // pred_check_branch
    %158 = sbr.rel (0) target = $region33
  $region32: #{blip_decoder_forward.34} parent=0 // pred_region
    _
  $region33: #{blip_decoder_forward.34} parent=0 // pred_fallthru
    _

// kernel: blip_decoder_forward.36
$region0: #{blip_decoder_forward.36}
  #allocation0 [shape = 'u32[]', space=smem, size = 0x4, offset = 0x4, fixed_abs, tag = 'smem constant byte address 0x4 - core index']
  #allocation1 [shape = 'u32[144,128]{1,0:T(1,128)}', space=vmem, size = 0x12000, scoped, tag = 'internal scratch']
  #allocation2 [shape = 'f32[16,32]{1,0:T(8,128)}', space=vmem, size = 0x2000, scoped, tag = 'scratch operand']
  %s0 = inlined_call_operand.vmem [shape: bf16[16,32], index: 0, kind: input, shape index: {}]
  %s1 = inlined_call_operand.vmem [shape: bf16[32,32], index: 1, kind: input, shape index: {}]
  %s2 = inlined_call_operand.vmem [shape: f32[1,32], index: 2, kind: input, shape index: {}]
  %s3 = inlined_call_operand.vmem [shape: f32[16,32], index: 3, kind: input, shape index: {}]
  %s4 = inlined_call_operand.vmem [shape: f32[16,32], index: 4, kind: output, shape index: {}]
  %s5 = sld [smem:[#allocation0]]
  $region34: #{blip_decoder_forward.36} parent=0
    _
  %s7 = ssub.s32 1, %s5
  %s8 = scalar_select 0, %s7, %s5
  // Predicated region
  $region2: #{blip_decoder_forward.36} parent=0 // pred_check
    _
  $region3: #{blip_decoder_forward.36} parent=0 // pred_check_branch
    %10 = sbr.rel (0) target = $region5
  $region4: #{blip_decoder_forward.36} parent=0 // pred_region
    _
  $region5: #{blip_decoder_forward.36} parent=0 // pred_fallthru
    _
  // Predicated region
  $region6: #{blip_decoder_forward.36} parent=0 // pred_check
    _
  $region7: #{blip_decoder_forward.36} parent=0 // pred_check_branch
    %12 = sbr.rel (0) target = $region9
  $region8: #{blip_decoder_forward.36} parent=0 // pred_region
    _
  $region9: #{blip_decoder_forward.36} parent=0 // pred_fallthru
    _
  // Predicated region
  $region10: #{blip_decoder_forward.36} parent=0 // pred_check
    _
  $region11: #{blip_decoder_forward.36} parent=0 // pred_check_branch
    %14 = sbr.rel (0) target = $region13
  $region12: #{blip_decoder_forward.36} parent=0 // pred_region
    _
  $region13: #{blip_decoder_forward.36} parent=0 // pred_fallthru
    _
  // Predicated region
  $region14: #{blip_decoder_forward.36} parent=0 // pred_check
    _
  $region15: #{blip_decoder_forward.36} parent=0 // pred_check_branch
    %16 = sbr.rel (0) target = $region17
  $region16: #{blip_decoder_forward.36} parent=0 // pred_region
    _
  $region17: #{blip_decoder_forward.36} parent=0 // pred_fallthru
    _
  %p18 = scmp.eq.s32.totalorder 0, 0
  // Predicated region
  $region18: #{blip_decoder_forward.36} parent=0 // pred_check
    %p19 = pneg %p18
  $region19: #{blip_decoder_forward.36} parent=0 // pred_check_branch
    %21 = sbr.rel (%p19) target = $region21
  $region20: #{blip_decoder_forward.36} parent=0 // pred_region
    %vm22 = vcmask 261120
    %23 = vst.msk [vmem:[#allocation2] sm:$0xff] %vm22, 0.0
    %24 = vst.msk [vmem:[#allocation2 + $0x8] sm:$0xff] %vm22, 0.0
  $region21: #{blip_decoder_forward.36} parent=0 // pred_fallthru
    _
  %v25 = vld [vmem:[#allocation2] sm:$0xff]
  %v26 = vld [vmem:[#allocation2 + $0x8] sm:$0xff]
  %v27 = vld [vmem:[%s0] sm:$0xf]
  %v28 = vld [vmem:[%s0 + $0x4] sm:$0xf]
  %v29 = vld [vmem:[%s1] sm:$0xf]
  %v30 = vld [vmem:[%s1 + $0x4] sm:$0xf]
  %v31 = vld [vmem:[%s1 + $0x8] sm:$0xf]
  %v32 = vld [vmem:[%s1 + $0xc] sm:$0xf]
  %v35 = vunpack.c.l.b16 %v27
  %v36 = vunpack.c.l.b16 %v28
  %v37 = vpack.c.b16 %v36, %v35
  %v42 = vunpack.c.l.b16 %v29
  %v43 = vunpack.c.l.b16 %v30
  %v44 = vunpack.c.l.b16 %v31
  %v45 = vunpack.c.l.b16 %v32
  %v46 = vpack.c.b16 %v43, %v42
  %v47 = vpack.c.b16 %v45, %v44
  %vm50 = vcmask 261120
  %v52 = vsel %vm50, %v37, 0
  %54 = vmatprep.subr.bf16.mxu0 0
  %55 = vmatpush1.bf16.msra.mxu0 %v46
  %56 = vmatprep.subr.bf16.mxu0 0
  %57 = vmatpush1.bf16.msra.mxu0 %v47
  %58 = vmatprep.subr.bf16.mxu0 0
  %59 = vmatpush1.bf16.msra.mxu0 0
  %60 = vmatprep.subr.bf16.mxu0 0
  %61 = vmatpush1.bf16.msra.mxu0 0
  %62 = vmatprep.subr.bf16.mxu0 0
  %63 = vmatpush1.bf16.msra.mxu0 0
  %64 = vmatprep.subr.bf16.mxu0 0
  %65 = vmatpush1.bf16.msra.mxu0 0
  %66 = vmatprep.subr.bf16.mxu0 0
  %67 = vmatpush1.bf16.msra.mxu0 0
  %68 = vmatprep.subr.bf16.mxu0 0
  %69 = vmatpush1.bf16.msra.mxu0 0
  %70 = vmatprep.subr.bf16.mxu0 0
  %71 = vmatpush1.bf16.msra.mxu0 0
  %72 = vmatprep.subr.bf16.mxu0 0
  %73 = vmatpush1.bf16.msra.mxu0 0
  %74 = vmatprep.subr.bf16.mxu0 0
  %75 = vmatpush1.bf16.msra.mxu0 0
  %76 = vmatprep.subr.bf16.mxu0 0
  %77 = vmatpush1.bf16.msra.mxu0 0
  %78 = vmatprep.subr.bf16.mxu0 0
  %79 = vmatpush1.bf16.msra.mxu0 0
  %80 = vmatprep.subr.bf16.mxu0 0
  %81 = vmatpush1.bf16.msra.mxu0 0
  %82 = vmatprep.subr.bf16.mxu0 0
  %83 = vmatpush1.bf16.msra.mxu0 0
  %84 = vmatprep.subr.bf16.mxu0 0
  %85 = vmatpush1.bf16.msra.mxu0 0
  %86 = vmatprep.mubr.bf16.mxu0 0
  %87 = vmatmul.mubr.bf16.gmra.mrb[0].mxu0 %v52
  %v88 = vpop.f32.mrb[0].mxu0
  %v89 = vadd.f32 0.0, %v88
  %v90 = vpop.f32.mrb[0].mxu0
  %v91 = vpop.f32.mrb[0].mxu0
  %v92 = vadd.f32 0.0, %v91
  %v93 = vpop.f32.mrb[0].mxu0
  %94 = vdwg.mxu0
  %v95 = vadd.f32 %v25, %v89
  %v96 = vadd.f32 %v26, %v92
  %97 = vst.msk [vmem:[#allocation2] sm:$0xff] %vm50, %v95
  %98 = vst.msk [vmem:[#allocation2 + $0x8] sm:$0xff] %vm50, %v96
  // Predicated region
  $region22: #{blip_decoder_forward.36} parent=0 // pred_check
    %p99 = pneg %p18
  $region23: #{blip_decoder_forward.36} parent=0 // pred_check_branch
    %101 = sbr.rel (%p99) target = $region25
  $region24: #{blip_decoder_forward.36} parent=0 // pred_region
    %v102 = vld [vmem:[#allocation2] sm:$0xff]
    %v103 = vld [vmem:[#allocation2 + $0x8] sm:$0xff]
    %v104 = vld [vmem:[%s2] sm:$0x1]
    %v106 = vlaneseq
    %v107 = vshrl.u32 %v106, 7
    %v108 = vsub.s32 0, %v107
    %v109 = vrot.slane %v104, %v108
    %v111 = vadd.f32 %v102, %v109
    %v112 = vadd.f32 %v103, %v109
    %v113 = vld [vmem:[%s3] sm:$0xff]
    %v114 = vld [vmem:[%s3 + $0x8] sm:$0xff]
    %v115 = vadd.f32 %v111, %v113
    %v116 = vadd.f32 %v112, %v114
    %117 = vst.msk [vmem:[%s4] sm:$0xff] %vm50, %v115
    %118 = vst.msk [vmem:[%s4 + $0x8] sm:$0xff] %vm50, %v116
  $region25: #{blip_decoder_forward.36} parent=0 // pred_fallthru
    _
  // Predicated region
  $region26: #{blip_decoder_forward.36} parent=0 // pred_check
    _
  $region27: #{blip_decoder_forward.36} parent=0 // pred_check_branch
    %120 = sbr.rel (0) target = $region29
  $region28: #{blip_decoder_forward.36} parent=0 // pred_region
    _
  $region29: #{blip_decoder_forward.36} parent=0 // pred_fallthru
    _
  // Predicated region
  $region30: #{blip_decoder_forward.36} parent=0 // pred_check
    _
  $region31: #{blip_decoder_forward.36} parent=0 // pred_check_branch
    %122 = sbr.rel (0) target = $region33
  $region32: #{blip_decoder_forward.36} parent=0 // pred_region
    _
  $region33: #{blip_decoder_forward.36} parent=0 // pred_fallthru
    _

// kernel: blip_decoder_forward.35
$region0: #{blip_decoder_forward.35}
  #allocation0 [shape = 'u32[]', space=smem, size = 0x4, offset = 0x4, fixed_abs, tag = 'smem constant byte address 0x4 - core index']
  #allocation1 [shape = 'u32[144,128]{1,0:T(1,128)}', space=vmem, size = 0x12000, scoped, tag = 'internal scratch']
  %s0 = inlined_call_operand.vmem [shape: bf16[2,5,96], index: 0, kind: input, shape index: {}, may-alias: {0,1}]
  %s1 = inlined_call_operand.vmem [shape: bf16[2,5,96], index: 1, kind: input, shape index: {}, may-alias: {0,1}]
  %s2 = inlined_call_operand.vmem [shape: bf16[2,5,32], index: 2, kind: output, shape index: {}]
  %s3 = sld [smem:[#allocation0]]
  $region41: #{blip_decoder_forward.35} parent=0
    _
  %s5 = ssub.s32 1, %s3
  %s6 = scalar_select 0, %s5, %s3
  loop: start=0, step=1, limit=4
  $region2: #{blip_decoder_forward.35} parent=0 // loop_pre_header
    _
  $region3: #{blip_decoder_forward.35} parent=0 // loop_header
    %s8 = sphi 0, %s12
    %p9 = scmp.ge.s32.totalorder %s8, 4
    %s15 = sphi 0, %s27
    %s16 = sphi 0, %s23
    %s17 = sphi 0, %s15
    %s18 = sphi 0, %s16
    %s19 = sphi 0, %s17
    %s20 = sphi 0, %s18
    %s32 = sphi 0, %s34
    %s35 = sphi 0, %s32
    %s36 = sphi 0, %s35
    %s52 = sphi 0, %s36
    %s58 = sphi 0, %s60
    %s61 = sphi 0, %s58
    %s62 = sphi 0, %s61
    %s78 = sphi 0, %s62
    %s86 = sphi 0, %s88
    %s89 = sphi 0, %s86
    %s90 = sphi 0, %s89
    %s106 = sphi 0, %s90
  $region4: #{blip_decoder_forward.35} parent=0 // loop_header_branch
    %11 = sbr.rel (%p9) target = $region8
  $region5: #{blip_decoder_forward.35} parent=0 // loop_body
    %s13 = ssub.s32 %s8, 1
    %s14 = ssub.s32 %s8, 2
    %s21 = sadd.s32 1, %s16
    %p22 = scmp.ge.s32.totalorder %s21, 1
    %s23 = scalar_select %p22, 0, %s21
    %s24 = sadd.s32 1, %s15
    %s25 = scalar_select %p22, %s24, %s15
    %p26 = scmp.ge.s32.totalorder %s25, 2
    %s27 = scalar_select %p26, 0, %s25
    %s28 = ssub.s32 %s15, %s27
    %s29 = ssub.s32 %s16, %s23
    %s30 = sor.u32 %s28, %s29
    %p31 = scmp.eq.s32.totalorder %s30, 0
    %s33 = sadd.s32 %s32, 1
    %s34 = scalar_select %p31, %s32, %s33
    %p37 = pneg %p31
    %p38 = scmp.eq.s32.totalorder %s8, 1
    %p39 = por %p37, %p38
    %p40 = scmp.ne.s32.totalorder %s32, %s35
    %p41 = scmp.eq.s32.totalorder %s8, 0
    %p42 = por %p40, %p41
    %p43 = scmp.ne.s32.totalorder %s32, %s35
    %p44 = scmp.eq.s32.totalorder %s13, 1
    %p45 = por %p43, %p44
    %p46 = scmp.ne.s32.totalorder %s35, %s36
    %p47 = scmp.eq.s32.totalorder %s13, 0
    %p48 = por %p46, %p47
    %p49 = scmp.ne.s32.totalorder %s35, %s36
    %p50 = scmp.eq.s32.totalorder %s14, 1
    %p51 = por %p49, %p50
    %p53 = scmp.ne.s32.totalorder %s36, %s52
    %p54 = scmp.eq.s32.totalorder %s14, 0
    %p55 = por %p53, %p54
    %s56 = ssub.s32 %s15, %s27
    %p57 = scmp.eq.s32.totalorder %s56, 0
    %s59 = sadd.s32 %s58, 1
    %s60 = scalar_select %p57, %s58, %s59
    %p63 = pneg %p57
    %p64 = scmp.eq.s32.totalorder %s8, 1
    %p65 = por %p63, %p64
    %p66 = scmp.ne.s32.totalorder %s58, %s61
    %p67 = scmp.eq.s32.totalorder %s8, 0
    %p68 = por %p66, %p67
    %p69 = scmp.ne.s32.totalorder %s58, %s61
    %p70 = scmp.eq.s32.totalorder %s13, 1
    %p71 = por %p69, %p70
    %p72 = scmp.ne.s32.totalorder %s61, %s62
    %p73 = scmp.eq.s32.totalorder %s13, 0
    %p74 = por %p72, %p73
    %p75 = scmp.ne.s32.totalorder %s61, %s62
    %p76 = scmp.eq.s32.totalorder %s14, 1
    %p77 = por %p75, %p76
    %p79 = scmp.ne.s32.totalorder %s62, %s78
    %p80 = scmp.eq.s32.totalorder %s14, 0
    %p81 = por %p79, %p80
    %s82 = ssub.s32 %s15, %s27
    %s83 = ssub.s32 %s16, %s23
    %s84 = sor.u32 %s82, %s83
    %p85 = scmp.eq.s32.totalorder %s84, 0
    %s87 = sadd.s32 %s86, 1
    %s88 = scalar_select %p85, %s86, %s87
    %p91 = pneg %p85
    %p92 = scmp.eq.s32.totalorder %s8, 1
    %p93 = por %p91, %p92
    %p94 = scmp.ne.s32.totalorder %s86, %s89
    %p95 = scmp.eq.s32.totalorder %s8, 0
    %p96 = por %p94, %p95
    %p97 = scmp.ne.s32.totalorder %s86, %s89
    %p98 = scmp.eq.s32.totalorder %s13, 1
    %p99 = por %p97, %p98
    %p100 = scmp.ne.s32.totalorder %s89, %s90
    %p101 = scmp.eq.s32.totalorder %s13, 0
    %p102 = por %p100, %p101
    %p103 = scmp.ne.s32.totalorder %s89, %s90
    %p104 = scmp.eq.s32.totalorder %s14, 1
    %p105 = por %p103, %p104
    %p107 = scmp.ne.s32.totalorder %s90, %s106
    %p108 = scmp.eq.s32.totalorder %s14, 0
    %p109 = por %p107, %p108
    %p110 = scmp.le.s32.totalorder 1, %s8
    %p111 = scmp.lt.s32.totalorder %s8, 3
    %p112 = pnand %p110, %p111
    %p113 = pneg %p112
    // Predicated region
    $region9: #{blip_decoder_forward.35} parent=5 // pred_check
      _
    $region10: #{blip_decoder_forward.35} parent=5 // pred_check_branch
      %115 = sbr.rel (%p112) target = $region12
    $region11: #{blip_decoder_forward.35} parent=5 // pred_region
      %s116 = ssub.s32 %s8, 1
    $region12: #{blip_decoder_forward.35} parent=5 // pred_fallthru
      _
    %p117 = scmp.lt.s32.totalorder %s8, 2
    // Predicated region
    $region13: #{blip_decoder_forward.35} parent=5 // pred_check
      %p118 = pneg %p117
    $region14: #{blip_decoder_forward.35} parent=5 // pred_check_branch
      %120 = sbr.rel (%p118) target = $region16
    $region15: #{blip_decoder_forward.35} parent=5 // pred_region
      // Predicated region
      $region17: #{blip_decoder_forward.35} parent=15 // pred_check
        %p121 = pneg %p42
      $region18: #{blip_decoder_forward.35} parent=15 // pred_check_branch
        %123 = sbr.rel (%p121) target = $region20
      $region19: #{blip_decoder_forward.35} parent=15 // pred_region
        %p124 = scmp.lt.s32.totalorder %s15, 1
        %s125 = scalar_select %p124, %s15, 1
        %p126 = scmp.lt.s32.totalorder %s16, 0
        %s127 = scalar_select %p126, %s16, 0
        %s128 = sadd.s32 %s127, %s125
        %s129 = smul.addr %s128, 4
        %s130 = scalar_lea.vmem %s0, %s129
      $region20: #{blip_decoder_forward.35} parent=15 // pred_fallthru
        _
      // Predicated region
      $region21: #{blip_decoder_forward.35} parent=15 // pred_check
        %p131 = pneg %p68
      $region22: #{blip_decoder_forward.35} parent=15 // pred_check_branch
        %133 = sbr.rel (%p131) target = $region24
      $region23: #{blip_decoder_forward.35} parent=15 // pred_region
        %p134 = scmp.lt.s32.totalorder %s15, 1
        %s135 = scalar_select %p134, %s15, 1
        %s136 = smul.addr %s135, 4
        %s137 = scalar_lea.vmem %s1, %s136
      $region24: #{blip_decoder_forward.35} parent=15 // pred_fallthru
        _
    $region16: #{blip_decoder_forward.35} parent=5 // pred_fallthru
      _
    %p138 = scmp.le.s32.totalorder 1, %s8
    %p139 = scmp.lt.s32.totalorder %s8, 3
    %p140 = pnand %p138, %p139
    %p141 = pneg %p140
    // Predicated region
    $region25: #{blip_decoder_forward.35} parent=5 // pred_check
      _
    $region26: #{blip_decoder_forward.35} parent=5 // pred_check_branch
      %143 = sbr.rel (%p140) target = $region28
    $region27: #{blip_decoder_forward.35} parent=5 // pred_region
      %s144 = ssub.s32 %s8, 1
      %p145 = scmp.lt.s32.totalorder %s17, 1
      %s146 = scalar_select %p145, %s17, 1
      %p147 = scmp.lt.s32.totalorder %s18, 0
      %s148 = scalar_select %p147, %s18, 0
      %s149 = sadd.s32 %s148, %s146
      %s150 = smul.addr %s149, 4
      %s151 = scalar_lea.vmem %s0, %s150
      %p152 = pneg %p48
      %p153 = pneg %p45
      %p154 = scmp.lt.s32.totalorder %s17, 1
      %s155 = scalar_select %p154, %s17, 1
      %s156 = smul.addr %s155, 4
      %s157 = scalar_lea.vmem %s1, %s156
      %p158 = pneg %p74
      %p159 = pneg %p71
      %p160 = pneg %p102
      %p161 = pneg %p99
      %p162 = scmp.lt.s32.totalorder %s17, 1
      %s163 = scalar_select %p162, %s17, 1
      %p164 = scmp.lt.s32.totalorder %s18, 0
      %s165 = scalar_select %p164, %s18, 0
      %s166 = sadd.s32 %s165, %s163
      %s167 = smul.addr %s166, 4
      %s168 = scalar_lea.vmem %s2, %s167
      %p169 = scmp.lt.s32.totalorder %s17, 1
      %s170 = scalar_select %p169, %s17, 1
      %p171 = scmp.lt.s32.totalorder %s18, 0
      %s172 = scalar_select %p171, %s18, 0
      %s173 = sadd.s32 %s172, %s170
      %s174 = smul.addr %s173, 4
      %s175 = scalar_lea.vmem %s0, %s174
      %p176 = scmp.lt.s32.totalorder %s17, 1
      %s177 = scalar_select %p176, %s17, 1
      %s178 = smul.addr %s177, 4
      %s179 = scalar_lea.vmem %s1, %s178
      %p180 = scmp.lt.s32.totalorder %s17, 1
      %s181 = scalar_select %p180, %s17, 1
      %p182 = scmp.lt.s32.totalorder %s18, 0
      %s183 = scalar_select %p182, %s18, 0
      %s184 = sadd.s32 %s183, %s181
      %s185 = smul.addr %s184, 4
      %s186 = scalar_lea.vmem %s2, %s185
      %v189 = vld [vmem:[%s175] sm:$0x7]
      %v190 = vmul.bf16 %v189, 1052065461
      %v191 = vld [vmem:[%s179] sm:$0x7]
      %v193 = vunpack.c.l.b16 %v191
      %v194 = vpack.c.b16 %v193, %v193
      %195 = vrot.lane.b32.xlu0 %v194, 96
      %v196 = vpop.permute.xlu0 %195
      %vm197 = vcmask 64512
      %v199 = vsel %vm197, %v190, 0
      %v202 = vsel %vm197, %v196, 0
      %204 = vmatprep.subr.bf16.mxu0 0
      %205 = vmatpush1.bf16.xpose.msra.mxu0 %v202
      %206 = vmatprep.subr.bf16.mxu0 0
      %207 = vmatpush1.bf16.xpose.msra.mxu0 0
      %208 = vmatprep.subr.bf16.mxu0 0
      %209 = vmatpush1.bf16.xpose.msra.mxu0 0
      %210 = vmatprep.subr.bf16.mxu0 0
      %211 = vmatpush1.bf16.xpose.msra.mxu0 0
      %212 = vmatprep.subr.bf16.mxu0 0
      %213 = vmatpush1.bf16.xpose.msra.mxu0 0
      %214 = vmatprep.subr.bf16.mxu0 0
      %215 = vmatpush1.bf16.xpose.msra.mxu0 0
      %216 = vmatprep.subr.bf16.mxu0 0
      %217 = vmatpush1.bf16.xpose.msra.mxu0 0
      %218 = vmatprep.subr.bf16.mxu0 0
      %219 = vmatpush1.bf16.xpose.msra.mxu0 0
      %220 = vmatprep.subr.bf16.mxu0 0
      %221 = vmatpush1.bf16.xpose.msra.mxu0 0
      %222 = vmatprep.subr.bf16.mxu0 0
      %223 = vmatpush1.bf16.xpose.msra.mxu0 0
      %224 = vmatprep.subr.bf16.mxu0 0
      %225 = vmatpush1.bf16.xpose.msra.mxu0 0
      %226 = vmatprep.subr.bf16.mxu0 0
      %227 = vmatpush1.bf16.xpose.msra.mxu0 0
      %228 = vmatprep.subr.bf16.mxu0 0
      %229 = vmatpush1.bf16.xpose.msra.mxu0 0
      %230 = vmatprep.subr.bf16.mxu0 0
      %231 = vmatpush1.bf16.xpose.msra.mxu0 0
      %232 = vmatprep.subr.bf16.mxu0 0
      %233 = vmatpush1.bf16.xpose.msra.mxu0 0
      %234 = vmatprep.subr.bf16.mxu0 0
      %235 = vmatpush1.bf16.xpose.msra.mxu0 0
      %236 = vmatprep.mubr.bf16.mxu0 0
      %237 = vmatmul.mubr.bf16.gmra.mrb[0].mxu0 %v199
      %v238 = vpop.f32.mrb[0].mxu0
      %v239 = vadd.f32 0.0, %v238
      %v240 = vpop.f32.mrb[0].mxu0
      %v241 = vpop.f32.mrb[0].mxu0
      %v242 = vpop.f32.mrb[0].mxu0
      %243 = vdwg.mxu0
      %vm244 = vcmask 36864
      %v245 = vsel %vm244, %v239, -inf
      %246 = vmax.xlane.f32.xlu0 %v245
      %v247 = vpop.xlane.xlu0 %246
      %v248 = vsub.f32 %v239, %v247
      %v249 = vmul.f32 %v248, 1.442695
      %v250 = vpow.pop %v249
      %v251 = vsel %vm244, %v250, 0.0
      %252 = vadd.xlane.f32.xlu0 %v251
      %v253 = vpop.xlane.xlu0 %252
      %v254 = vrcp.pop %v253
      %v255 = vmul.f32 %v250, %v254
      %v256 = vpack.c.bf16 %v255, %v255
      %257 = vrot.lane.b32.xlu0 %v194, 64
      %v258 = vpop.permute.xlu0 %257
      %vm259 = vcmask 39936
      %v261 = vsel %vm259, %v256, 0
      %vm263 = vcmask 1041408
      %vm264 = vcmask 1042432
      %v265 = vsel %vm263, 4294967295, 65535
      %v266 = vsel %vm264, %v265, 0
      %v268 = vand.u32 %v258, %v266
      %270 = vmatprep.subr.bf16.mxu0 0
      %271 = vmatpush1.bf16.msra.mxu0 %v268
      %272 = vmatprep.subr.bf16.mxu0 0
      %273 = vmatpush1.bf16.msra.mxu0 0
      %274 = vmatprep.subr.bf16.mxu0 0
      %275 = vmatpush1.bf16.msra.mxu0 0
      %276 = vmatprep.subr.bf16.mxu0 0
      %277 = vmatpush1.bf16.msra.mxu0 0
      %278 = vmatprep.subr.bf16.mxu0 0
      %279 = vmatpush1.bf16.msra.mxu0 0
      %280 = vmatprep.subr.bf16.mxu0 0
      %281 = vmatpush1.bf16.msra.mxu0 0
      %282 = vmatprep.subr.bf16.mxu0 0
      %283 = vmatpush1.bf16.msra.mxu0 0
      %284 = vmatprep.subr.bf16.mxu0 0
      %285 = vmatpush1.bf16.msra.mxu0 0
      %286 = vmatprep.subr.bf16.mxu0 0
      %287 = vmatpush1.bf16.msra.mxu0 0
      %288 = vmatprep.subr.bf16.mxu0 0
      %289 = vmatpush1.bf16.msra.mxu0 0
      %290 = vmatprep.subr.bf16.mxu0 0
      %291 = vmatpush1.bf16.msra.mxu0 0
      %292 = vmatprep.subr.bf16.mxu0 0
      %293 = vmatpush1.bf16.msra.mxu0 0
      %294 = vmatprep.subr.bf16.mxu0 0
      %295 = vmatpush1.bf16.msra.mxu0 0
      %296 = vmatprep.subr.bf16.mxu0 0
      %297 = vmatpush1.bf16.msra.mxu0 0
      %298 = vmatprep.subr.bf16.mxu0 0
      %299 = vmatpush1.bf16.msra.mxu0 0
      %300 = vmatprep.subr.bf16.mxu0 0
      %301 = vmatpush1.bf16.msra.mxu0 0
      %302 = vmatprep.mubr.bf16.mxu0 0
      %303 = vmatmul.mubr.bf16.gmra.mrb[0].mxu0 %v261
      %v304 = vpop.f32.mrb[0].mxu0
      %v305 = vadd.f32 0.0, %v304
      %v306 = vpop.f32.mrb[0].mxu0
      %v307 = vpop.f32.mrb[0].mxu0
      %v308 = vpop.f32.mrb[0].mxu0
      %309 = vdwg.mxu0
      %v311 = vunpack.c.l.b16 %v190
      %v312 = vpack.c.b16 %v311, %v311
      %313 = vrot.lane.b32.xlu0 %v312, 120
      %v314 = vpop.permute.xlu0 %313
      %315 = vrot.lane.b32.xlu0 %v194, 88
      %v316 = vpop.permute.xlu0 %315
      %v318 = vsel %vm197, %v314, 0
      %v321 = vsel %vm197, %v316, 0
      %323 = vmatprep.subr.bf16.mxu0 0
      %324 = vmatpush1.bf16.xpose.msra.mxu0 %v321
      %325 = vmatprep.subr.bf16.mxu0 0
      %326 = vmatpush1.bf16.xpose.msra.mxu0 0
      %327 = vmatprep.subr.bf16.mxu0 0
      %328 = vmatpush1.bf16.xpose.msra.mxu0 0
      %329 = vmatprep.subr.bf16.mxu0 0
      %330 = vmatpush1.bf16.xpose.msra.mxu0 0
      %331 = vmatprep.subr.bf16.mxu0 0
      %332 = vmatpush1.bf16.xpose.msra.mxu0 0
      %333 = vmatprep.subr.bf16.mxu0 0
      %334 = vmatpush1.bf16.xpose.msra.mxu0 0
      %335 = vmatprep.subr.bf16.mxu0 0
      %336 = vmatpush1.bf16.xpose.msra.mxu0 0
      %337 = vmatprep.subr.bf16.mxu0 0
      %338 = vmatpush1.bf16.xpose.msra.mxu0 0
      %339 = vmatprep.subr.bf16.mxu0 0
      %340 = vmatpush1.bf16.xpose.msra.mxu0 0
      %341 = vmatprep.subr.bf16.mxu0 0
      %342 = vmatpush1.bf16.xpose.msra.mxu0 0
      %343 = vmatprep.subr.bf16.mxu0 0
      %344 = vmatpush1.bf16.xpose.msra.mxu0 0
      %345 = vmatprep.subr.bf16.mxu0 0
      %346 = vmatpush1.bf16.xpose.msra.mxu0 0
      %347 = vmatprep.subr.bf16.mxu0 0
      %348 = vmatpush1.bf16.xpose.msra.mxu0 0
      %349 = vmatprep.subr.bf16.mxu0 0
      %350 = vmatpush1.bf16.xpose.msra.mxu0 0
      %351 = vmatprep.subr.bf16.mxu0 0
      %352 = vmatpush1.bf16.xpose.msra.mxu0 0
      %353 = vmatprep.subr.bf16.mxu0 0
      %354 = vmatpush1.bf16.xpose.msra.mxu0 0
      %355 = vmatprep.mubr.bf16.mxu0 0
      %356 = vmatmul.mubr.bf16.gmra.mrb[0].mxu0 %v318
      %v357 = vpop.f32.mrb[0].mxu0
      %v358 = vadd.f32 0.0, %v357
      %v359 = vpop.f32.mrb[0].mxu0
      %v360 = vpop.f32.mrb[0].mxu0
      %v361 = vpop.f32.mrb[0].mxu0
      %362 = vdwg.mxu0
      %v363 = vsel %vm244, %v358, -inf
      %364 = vmax.xlane.f32.xlu0 %v363
      %v365 = vpop.xlane.xlu0 %364
      %v366 = vsub.f32 %v358, %v365
      %v367 = vmul.f32 %v366, 1.442695
      %v368 = vpow.pop %v367
      %v369 = vsel %vm244, %v368, 0.0
      %370 = vadd.xlane.f32.xlu0 %v369
      %v371 = vpop.xlane.xlu0 %370
      %v372 = vrcp.pop %v371
      %v373 = vmul.f32 %v368, %v372
      %v374 = vpack.c.bf16 %v373, %v373
      %375 = vrot.lane.b32.xlu0 %v194, 56
      %v376 = vpop.permute.xlu0 %375
      %v378 = vsel %vm259, %v374, 0
      %v381 = vand.u32 %v376, %v266
      %383 = vmatprep.subr.bf16.mxu0 0
      %384 = vmatpush1.bf16.msra.mxu0 %v381
      %385 = vmatprep.subr.bf16.mxu0 0
      %386 = vmatpush1.bf16.msra.mxu0 0
      %387 = vmatprep.subr.bf16.mxu0 0
      %388 = vmatpush1.bf16.msra.mxu0 0
      %389 = vmatprep.subr.bf16.mxu0 0
      %390 = vmatpush1.bf16.msra.mxu0 0
      %391 = vmatprep.subr.bf16.mxu0 0
      %392 = vmatpush1.bf16.msra.mxu0 0
      %393 = vmatprep.subr.bf16.mxu0 0
      %394 = vmatpush1.bf16.msra.mxu0 0
      %395 = vmatprep.subr.bf16.mxu0 0
      %396 = vmatpush1.bf16.msra.mxu0 0
      %397 = vmatprep.subr.bf16.mxu0 0
      %398 = vmatpush1.bf16.msra.mxu0 0
      %399 = vmatprep.subr.bf16.mxu0 0
      %400 = vmatpush1.bf16.msra.mxu0 0
      %401 = vmatprep.subr.bf16.mxu0 0
      %402 = vmatpush1.bf16.msra.mxu0 0
      %403 = vmatprep.subr.bf16.mxu0 0
      %404 = vmatpush1.bf16.msra.mxu0 0
      %405 = vmatprep.subr.bf16.mxu0 0
      %406 = vmatpush1.bf16.msra.mxu0 0
      %407 = vmatprep.subr.bf16.mxu0 0
      %408 = vmatpush1.bf16.msra.mxu0 0
      %409 = vmatprep.subr.bf16.mxu0 0
      %410 = vmatpush1.bf16.msra.mxu0 0
      %411 = vmatprep.subr.bf16.mxu0 0
      %412 = vmatpush1.bf16.msra.mxu0 0
      %413 = vmatprep.subr.bf16.mxu0 0
      %414 = vmatpush1.bf16.msra.mxu0 0
      %415 = vmatprep.mubr.bf16.mxu0 0
      %416 = vmatmul.mubr.bf16.gmra.mrb[0].mxu0 %v378
      %v417 = vpop.f32.mrb[0].mxu0
      %v418 = vadd.f32 0.0, %v417
      %v419 = vpop.f32.mrb[0].mxu0
      %v420 = vpop.f32.mrb[0].mxu0
      %v421 = vpop.f32.mrb[0].mxu0
      %422 = vdwg.mxu0
      %423 = vrot.lane.b32.xlu0 %v312, 112
      %v424 = vpop.permute.xlu0 %423
      %425 = vrot.lane.b32.xlu0 %v194, 80
      %v426 = vpop.permute.xlu0 %425
      %v428 = vsel %vm197, %v424, 0
      %v431 = vsel %vm197, %v426, 0
      %433 = vmatprep.subr.bf16.mxu0 0
      %434 = vmatpush1.bf16.xpose.msra.mxu0 %v431
      %435 = vmatprep.subr.bf16.mxu0 0
      %436 = vmatpush1.bf16.xpose.msra.mxu0 0
      %437 = vmatprep.subr.bf16.mxu0 0
      %438 = vmatpush1.bf16.xpose.msra.mxu0 0
      %439 = vmatprep.subr.bf16.mxu0 0
      %440 = vmatpush1.bf16.xpose.msra.mxu0 0
      %441 = vmatprep.subr.bf16.mxu0 0
      %442 = vmatpush1.bf16.xpose.msra.mxu0 0
      %443 = vmatprep.subr.bf16.mxu0 0
      %444 = vmatpush1.bf16.xpose.msra.mxu0 0
      %445 = vmatprep.subr.bf16.mxu0 0
      %446 = vmatpush1.bf16.xpose.msra.mxu0 0
      %447 = vmatprep.subr.bf16.mxu0 0
      %448 = vmatpush1.bf16.xpose.msra.mxu0 0
      %449 = vmatprep.subr.bf16.mxu0 0
      %450 = vmatpush1.bf16.xpose.msra.mxu0 0
      %451 = vmatprep.subr.bf16.mxu0 0
      %452 = vmatpush1.bf16.xpose.msra.mxu0 0
      %453 = vmatprep.subr.bf16.mxu0 0
      %454 = vmatpush1.bf16.xpose.msra.mxu0 0
      %455 = vmatprep.subr.bf16.mxu0 0
      %456 = vmatpush1.bf16.xpose.msra.mxu0 0
      %457 = vmatprep.subr.bf16.mxu0 0
      %458 = vmatpush1.bf16.xpose.msra.mxu0 0
      %459 = vmatprep.subr.bf16.mxu0 0
      %460 = vmatpush1.bf16.xpose.msra.mxu0 0
      %461 = vmatprep.subr.bf16.mxu0 0
      %462 = vmatpush1.bf16.xpose.msra.mxu0 0
      %463 = vmatprep.subr.bf16.mxu0 0
      %464 = vmatpush1.bf16.xpose.msra.mxu0 0
      %465 = vmatprep.mubr.bf16.mxu0 0
      %466 = vmatmul.mubr.bf16.gmra.mrb[0].mxu0 %v428
      %v467 = vpop.f32.mrb[0].mxu0
      %v468 = vadd.f32 0.0, %v467
      %v469 = vpop.f32.mrb[0].mxu0
      %v470 = vpop.f32.mrb[0].mxu0
      %v471 = vpop.f32.mrb[0].mxu0
      %472 = vdwg.mxu0
      %v473 = vsel %vm244, %v468, -inf
      %474 = vmax.xlane.f32.xlu0 %v473
      %v475 = vpop.xlane.xlu0 %474
      %v476 = vsub.f32 %v468, %v475
      %v477 = vmul.f32 %v476, 1.442695
      %v478 = vpow.pop %v477
      %v479 = vsel %vm244, %v478, 0.0
      %480 = vadd.xlane.f32.xlu0 %v479
      %v481 = vpop.xlane.xlu0 %480
      %v482 = vrcp.pop %v481
      %v483 = vmul.f32 %v478, %v482
      %v484 = vpack.c.bf16 %v483, %v483
      %485 = vrot.lane.b32.xlu0 %v194, 48
      %v486 = vpop.permute.xlu0 %485
      %v488 = vsel %vm259, %v484, 0
      %v491 = vand.u32 %v486, %v266
      %493 = vmatprep.subr.bf16.mxu0 0
      %494 = vmatpush1.bf16.msra.mxu0 %v491
      %495 = vmatprep.subr.bf16.mxu0 0
      %496 = vmatpush1.bf16.msra.mxu0 0
      %497 = vmatprep.subr.bf16.mxu0 0
      %498 = vmatpush1.bf16.msra.mxu0 0
      %499 = vmatprep.subr.bf16.mxu0 0
      %500 = vmatpush1.bf16.msra.mxu0 0
      %501 = vmatprep.subr.bf16.mxu0 0
      %502 = vmatpush1.bf16.msra.mxu0 0
      %503 = vmatprep.subr.bf16.mxu0 0
      %504 = vmatpush1.bf16.msra.mxu0 0
      %505 = vmatprep.subr.bf16.mxu0 0
      %506 = vmatpush1.bf16.msra.mxu0 0
      %507 = vmatprep.subr.bf16.mxu0 0
      %508 = vmatpush1.bf16.msra.mxu0 0
      %509 = vmatprep.subr.bf16.mxu0 0
      %510 = vmatpush1.bf16.msra.mxu0 0
      %511 = vmatprep.subr.bf16.mxu0 0
      %512 = vmatpush1.bf16.msra.mxu0 0
      %513 = vmatprep.subr.bf16.mxu0 0
      %514 = vmatpush1.bf16.msra.mxu0 0
      %515 = vmatprep.subr.bf16.mxu0 0
      %516 = vmatpush1.bf16.msra.mxu0 0
      %517 = vmatprep.subr.bf16.mxu0 0
      %518 = vmatpush1.bf16.msra.mxu0 0
      %519 = vmatprep.subr.bf16.mxu0 0
      %520 = vmatpush1.bf16.msra.mxu0 0
      %521 = vmatprep.subr.bf16.mxu0 0
      %522 = vmatpush1.bf16.msra.mxu0 0
      %523 = vmatprep.subr.bf16.mxu0 0
      %524 = vmatpush1.bf16.msra.mxu0 0
      %525 = vmatprep.mubr.bf16.mxu0 0
      %526 = vmatmul.mubr.bf16.gmra.mrb[0].mxu0 %v488
      %v527 = vpop.f32.mrb[0].mxu0
      %v528 = vadd.f32 0.0, %v527
      %v529 = vpop.f32.mrb[0].mxu0
      %v530 = vpop.f32.mrb[0].mxu0
      %v531 = vpop.f32.mrb[0].mxu0
      %532 = vdwg.mxu0
      %533 = vrot.lane.b32.xlu0 %v312, 104
      %v534 = vpop.permute.xlu0 %533
      %535 = vrot.lane.b32.xlu0 %v194, 72
      %v536 = vpop.permute.xlu0 %535
      %v538 = vsel %vm197, %v534, 0
      %v541 = vsel %vm197, %v536, 0
      %543 = vmatprep.subr.bf16.mxu0 0
      %544 = vmatpush1.bf16.xpose.msra.mxu0 %v541
      %545 = vmatprep.subr.bf16.mxu0 0
      %546 = vmatpush1.bf16.xpose.msra.mxu0 0
      %547 = vmatprep.subr.bf16.mxu0 0
      %548 = vmatpush1.bf16.xpose.msra.mxu0 0
      %549 = vmatprep.subr.bf16.mxu0 0
      %550 = vmatpush1.bf16.xpose.msra.mxu0 0
      %551 = vmatprep.subr.bf16.mxu0 0
      %552 = vmatpush1.bf16.xpose.msra.mxu0 0
      %553 = vmatprep.subr.bf16.mxu0 0
      %554 = vmatpush1.bf16.xpose.msra.mxu0 0
      %555 = vmatprep.subr.bf16.mxu0 0
      %556 = vmatpush1.bf16.xpose.msra.mxu0 0
      %557 = vmatprep.subr.bf16.mxu0 0
      %558 = vmatpush1.bf16.xpose.msra.mxu0 0
      %559 = vmatprep.subr.bf16.mxu0 0
      %560 = vmatpush1.bf16.xpose.msra.mxu0 0
      %561 = vmatprep.subr.bf16.mxu0 0
      %562 = vmatpush1.bf16.xpose.msra.mxu0 0
      %563 = vmatprep.subr.bf16.mxu0 0
      %564 = vmatpush1.bf16.xpose.msra.mxu0 0
      %565 = vmatprep.subr.bf16.mxu0 0
      %566 = vmatpush1.bf16.xpose.msra.mxu0 0
      %567 = vmatprep.subr.bf16.mxu0 0
      %568 = vmatpush1.bf16.xpose.msra.mxu0 0
      %569 = vmatprep.subr.bf16.mxu0 0
      %570 = vmatpush1.bf16.xpose.msra.mxu0 0
      %571 = vmatprep.subr.bf16.mxu0 0
      %572 = vmatpush1.bf16.xpose.msra.mxu0 0
      %573 = vmatprep.subr.bf16.mxu0 0
      %574 = vmatpush1.bf16.xpose.msra.mxu0 0
      %575 = vmatprep.mubr.bf16.mxu0 0
      %576 = vmatmul.mubr.bf16.gmra.mrb[0].mxu0 %v538
      %v577 = vpop.f32.mrb[0].mxu0
      %v578 = vadd.f32 0.0, %v577
      %v579 = vpop.f32.mrb[0].mxu0
      %v580 = vpop.f32.mrb[0].mxu0
      %v581 = vpop.f32.mrb[0].mxu0
      %582 = vdwg.mxu0
      %v583 = vsel %vm244, %v578, -inf
      %584 = vmax.xlane.f32.xlu0 %v583
      %v585 = vpop.xlane.xlu0 %584
      %v586 = vsub.f32 %v578, %v585
      %v587 = vmul.f32 %v586, 1.442695
      %v588 = vpow.pop %v587
      %v589 = vsel %vm244, %v588, 0.0
      %590 = vadd.xlane.f32.xlu0 %v589
      %v591 = vpop.xlane.xlu0 %590
      %v592 = vrcp.pop %v591
      %v593 = vmul.f32 %v588, %v592
      %v594 = vpack.c.bf16 %v593, %v593
      %595 = vrot.lane.b32.xlu0 %v194, 40
      %v596 = vpop.permute.xlu0 %595
      %v598 = vsel %vm259, %v594, 0
      %v601 = vand.u32 %v596, %v266
      %603 = vmatprep.subr.bf16.mxu0 0
      %604 = vmatpush1.bf16.msra.mxu0 %v601
      %605 = vmatprep.subr.bf16.mxu0 0
      %606 = vmatpush1.bf16.msra.mxu0 0
      %607 = vmatprep.subr.bf16.mxu0 0
      %608 = vmatpush1.bf16.msra.mxu0 0
      %609 = vmatprep.subr.bf16.mxu0 0
      %610 = vmatpush1.bf16.msra.mxu0 0
      %611 = vmatprep.subr.bf16.mxu0 0
      %612 = vmatpush1.bf16.msra.mxu0 0
      %613 = vmatprep.subr.bf16.mxu0 0
      %614 = vmatpush1.bf16.msra.mxu0 0
      %615 = vmatprep.subr.bf16.mxu0 0
      %616 = vmatpush1.bf16.msra.mxu0 0
      %617 = vmatprep.subr.bf16.mxu0 0
      %618 = vmatpush1.bf16.msra.mxu0 0
      %619 = vmatprep.subr.bf16.mxu0 0
      %620 = vmatpush1.bf16.msra.mxu0 0
      %621 = vmatprep.subr.bf16.mxu0 0
      %622 = vmatpush1.bf16.msra.mxu0 0
      %623 = vmatprep.subr.bf16.mxu0 0
      %624 = vmatpush1.bf16.msra.mxu0 0
      %625 = vmatprep.subr.bf16.mxu0 0
      %626 = vmatpush1.bf16.msra.mxu0 0
      %627 = vmatprep.subr.bf16.mxu0 0
      %628 = vmatpush1.bf16.msra.mxu0 0
      %629 = vmatprep.subr.bf16.mxu0 0
      %630 = vmatpush1.bf16.msra.mxu0 0
      %631 = vmatprep.subr.bf16.mxu0 0
      %632 = vmatpush1.bf16.msra.mxu0 0
      %633 = vmatprep.subr.bf16.mxu0 0
      %634 = vmatpush1.bf16.msra.mxu0 0
      %635 = vmatprep.mubr.bf16.mxu0 0
      %636 = vmatmul.mubr.bf16.gmra.mrb[0].mxu0 %v598
      %v637 = vpop.f32.mrb[0].mxu0
      %v638 = vadd.f32 0.0, %v637
      %v639 = vpop.f32.mrb[0].mxu0
      %v640 = vpop.f32.mrb[0].mxu0
      %v641 = vpop.f32.mrb[0].mxu0
      %642 = vdwg.mxu0
      %644 = vrot.lane.b32.xlu0 %v418, 8
      %v645 = vpop.permute.xlu0 %644
      %648 = vrot.lane.b32.xlu0 %v528, 16
      %v649 = vpop.permute.xlu0 %648
      %652 = vrot.lane.b32.xlu0 %v638, 24
      %v653 = vpop.permute.xlu0 %652
      %v655 = vsel %vm197, %v305, %v645
      %vm656 = vcmask 130048
      %v657 = vsel %vm656, %v655, %v649
      %vm658 = vcmask 195584
      %v659 = vsel %vm658, %v657, %v653
      %v660 = vpack.c.bf16 %v659, %v659
      %vm661 = vcmask 256000
      %vm662 = vsmask.f32 2304
      %vm663 = vmand %vm661, %vm662
      %v664 = vld [vmem:[%s186] sm:$0x7]
      %v665 = vsel %vm663, %v660, %v664
      %666 = vst [vmem:[%s186] sm:$0x7] %v665
      %p667 = scmp.lt.s32.totalorder %s17, 1
      %s668 = scalar_select %p667, %s17, 1
      %p669 = scmp.lt.s32.totalorder %s18, 0
      %s670 = scalar_select %p669, %s18, 0
      %s671 = sadd.s32 %s670, %s668
      %s672 = smul.addr %s671, 4
      %s673 = scalar_lea.vmem %s2, %s672
      // Predicated region
      $region29: #{blip_decoder_forward.35} parent=27 // pred_check
        %p674 = pneg %p99
      $region30: #{blip_decoder_forward.35} parent=27 // pred_check_branch
        %676 = sbr.rel (%p674) target = $region32
      $region31: #{blip_decoder_forward.35} parent=27 // pred_region
        _
      $region32: #{blip_decoder_forward.35} parent=27 // pred_fallthru
        _
    $region28: #{blip_decoder_forward.35} parent=5 // pred_fallthru
      _
    %p677 = scmp.le.s32.totalorder 2, %s8
    // Predicated region
    $region33: #{blip_decoder_forward.35} parent=5 // pred_check
      %p678 = pneg %p677
    $region34: #{blip_decoder_forward.35} parent=5 // pred_check_branch
      %680 = sbr.rel (%p678) target = $region36
    $region35: #{blip_decoder_forward.35} parent=5 // pred_region
      %s681 = ssub.s32 %s8, 2
      // Predicated region
      $region37: #{blip_decoder_forward.35} parent=35 // pred_check
        %p682 = pneg %p105
      $region38: #{blip_decoder_forward.35} parent=35 // pred_check_branch
        %684 = sbr.rel (%p682) target = $region40
      $region39: #{blip_decoder_forward.35} parent=35 // pred_region
        %p685 = scmp.lt.s32.totalorder %s19, 1
        %s686 = scalar_select %p685, %s19, 1
        %p687 = scmp.lt.s32.totalorder %s20, 0
        %s688 = scalar_select %p687, %s20, 0
        %s689 = sadd.s32 %s688, %s686
        %s690 = smul.addr %s689, 4
        %s691 = scalar_lea.vmem %s2, %s690
      $region40: #{blip_decoder_forward.35} parent=35 // pred_fallthru
        _
    $region36: #{blip_decoder_forward.35} parent=5 // pred_fallthru
      _
  $region6: #{blip_decoder_forward.35} parent=0 // loop_footer
    %s12 = sadd.s32 1, %s8
  $region7: #{blip_decoder_forward.35} parent=0 // loop_footer_branch
    %7 = sbr.rel target = $region3
  $region8: #{blip_decoder_forward.35} parent=0 // loop_exit
    _

// kernel: blip_decoder_forward.44
$region0: #{blip_decoder_forward.44}
  #allocation0 [shape = 'u32[]', space=smem, size = 0x4, offset = 0x4, fixed_abs, tag = 'smem constant byte address 0x4 - core index']
  #allocation1 [shape = 'u32[144,128]{1,0:T(1,128)}', space=vmem, size = 0x12000, scoped, tag = 'internal scratch']
  %s0 = inlined_call_operand.vmem [shape: f32[16,32], index: 0, kind: input, shape index: {}]
  %s1 = inlined_call_operand.vmem [shape: f32[1,32], index: 1, kind: input, shape index: {}]
  %s2 = inlined_call_operand.vmem [shape: f32[1,32], index: 2, kind: input, shape index: {}]
  %s3 = inlined_call_operand.vmem [shape: f32[16,32], index: 3, kind: output, shape index: {}]
  %s4 = sld [smem:[#allocation0]]
  $region22: #{blip_decoder_forward.44} parent=0
    _
  %s6 = ssub.s32 1, %s4
  %s7 = scalar_select 0, %s6, %s4
  // Predicated region
  $region2: #{blip_decoder_forward.44} parent=0 // pred_check
    _
  $region3: #{blip_decoder_forward.44} parent=0 // pred_check_branch
    %9 = sbr.rel (0) target = $region5
  $region4: #{blip_decoder_forward.44} parent=0 // pred_region
    _
  $region5: #{blip_decoder_forward.44} parent=0 // pred_fallthru
    _
  // Predicated region
  $region6: #{blip_decoder_forward.44} parent=0 // pred_check
    _
  $region7: #{blip_decoder_forward.44} parent=0 // pred_check_branch
    %11 = sbr.rel (0) target = $region9
  $region8: #{blip_decoder_forward.44} parent=0 // pred_region
    _
  $region9: #{blip_decoder_forward.44} parent=0 // pred_fallthru
    _
  // Predicated region
  $region10: #{blip_decoder_forward.44} parent=0 // pred_check
    _
  $region11: #{blip_decoder_forward.44} parent=0 // pred_check_branch
    %13 = sbr.rel (0) target = $region13
  $region12: #{blip_decoder_forward.44} parent=0 // pred_region
    _
  $region13: #{blip_decoder_forward.44} parent=0 // pred_fallthru
    _
  %v14 = vld [vmem:[%s0] sm:$0xff]
  %v15 = vld [vmem:[%s0 + $0x8] sm:$0xff]
  %vm16 = vcmask 261120
  %v17 = vsel %vm16, %v14, 0.0
  %18 = vadd.xlane.f32.xlu0 %v17
  %v19 = vpop.xlane.xlu0 %18
  %v20 = vsel %vm16, %v15, 0.0
  %21 = vadd.xlane.f32.xlu0 %v20
  %v22 = vpop.xlane.xlu0 %21
  %v23 = vrcp.pop 32.0
  %v24 = vmul.f32 %v19, %v23
  %v25 = vmul.f32 %v22, %v23
  %v26 = vsub.f32 %v14, %v24
  %v27 = vsub.f32 %v15, %v25
  %v28 = vmul.f32 %v26, %v26
  %v29 = vmul.f32 %v27, %v27
  %v30 = vsel %vm16, %v28, 0.0
  %31 = vadd.xlane.f32.xlu0 %v30
  %v32 = vpop.xlane.xlu0 %31
  %v33 = vsel %vm16, %v29, 0.0
  %34 = vadd.xlane.f32.xlu0 %v33
  %v35 = vpop.xlane.xlu0 %34
  %v36 = vmul.f32 %v32, %v23
  %v37 = vmul.f32 %v35, %v23
  %v38 = vadd.f32 %v36, 1e-06
  %v39 = vadd.f32 %v37, 1e-06
  %v40 = vrsqrt.pop %v38
  %v41 = vrsqrt.pop %v39
  %v42 = vmul.f32 %v26, %v40
  %v43 = vmul.f32 %v27, %v41
  %v44 = vld [vmem:[%s1] sm:$0x1]
  %v46 = vlaneseq
  %v47 = vshrl.u32 %v46, 7
  %v48 = vsub.s32 0, %v47
  %v49 = vrot.slane %v44, %v48
  %v51 = vmul.f32 %v42, %v49
  %v52 = vmul.f32 %v43, %v49
  %v53 = vld [vmem:[%s2] sm:$0x1]
  %v55 = vlaneseq
  %v56 = vshrl.u32 %v55, 7
  %v57 = vsub.s32 0, %v56
  %v58 = vrot.slane %v53, %v57
  %v60 = vadd.f32 %v51, %v58
  %v61 = vadd.f32 %v52, %v58
  %62 = vst.msk [vmem:[%s3] sm:$0xff] %vm16, %v60
  %63 = vst.msk [vmem:[%s3 + $0x8] sm:$0xff] %vm16, %v61
  // Predicated region
  $region14: #{blip_decoder_forward.44} parent=0 // pred_check
    _
  $region15: #{blip_decoder_forward.44} parent=0 // pred_check_branch
    %65 = sbr.rel (0) target = $region17
  $region16: #{blip_decoder_forward.44} parent=0 // pred_region
    _
  $region17: #{blip_decoder_forward.44} parent=0 // pred_fallthru
    _
  // Predicated region
  $region18: #{blip_decoder_forward.44} parent=0 // pred_check
    _
  $region19: #{blip_decoder_forward.44} parent=0 // pred_check_branch
    %67 = sbr.rel (0) target = $region21
  $region20: #{blip_decoder_forward.44} parent=0 // pred_region
    _
  $region21: #{blip_decoder_forward.44} parent=0 // pred_fallthru
    _

// kernel: blip_decoder_forward.38
$region0: #{blip_decoder_forward.38}
  #allocation0 [shape = 'u32[]', space=smem, size = 0x4, offset = 0x4, fixed_abs, tag = 'smem constant byte address 0x4 - core index']
  #allocation1 [shape = 'u32[144,128]{1,0:T(1,128)}', space=vmem, size = 0x12000, scoped, tag = 'internal scratch']
  #allocation2 [shape = 'f32[16,32]{1,0:T(8,128)}', space=vmem, size = 0x2000, scoped, tag = 'scratch operand']
  %s0 = inlined_call_operand.vmem [shape: bf16[16,128], index: 0, kind: input, shape index: {}]
  %s1 = inlined_call_operand.vmem [shape: bf16[128,32], index: 1, kind: input, shape index: {}]
  %s2 = inlined_call_operand.vmem [shape: f32[1,32], index: 2, kind: input, shape index: {}]
  %s3 = inlined_call_operand.vmem [shape: f32[16,32], index: 3, kind: input, shape index: {}]
  %s4 = inlined_call_operand.vmem [shape: f32[16,32], index: 4, kind: output, shape index: {}]
  %s5 = sld [smem:[#allocation0]]
  $region34: #{blip_decoder_forward.38} parent=0
    _
  %s7 = ssub.s32 1, %s5
  %s8 = scalar_select 0, %s7, %s5
  // Predicated region
  $region2: #{blip_decoder_forward.38} parent=0 // pred_check
    _
  $region3: #{blip_decoder_forward.38} parent=0 // pred_check_branch
    %10 = sbr.rel (0) target = $region5
  $region4: #{blip_decoder_forward.38} parent=0 // pred_region
    _
  $region5: #{blip_decoder_forward.38} parent=0 // pred_fallthru
    _
  // Predicated region
  $region6: #{blip_decoder_forward.38} parent=0 // pred_check
    _
  $region7: #{blip_decoder_forward.38} parent=0 // pred_check_branch
    %12 = sbr.rel (0) target = $region9
  $region8: #{blip_decoder_forward.38} parent=0 // pred_region
    _
  $region9: #{blip_decoder_forward.38} parent=0 // pred_fallthru
    _
  // Predicated region
  $region10: #{blip_decoder_forward.38} parent=0 // pred_check
    _
  $region11: #{blip_decoder_forward.38} parent=0 // pred_check_branch
    %14 = sbr.rel (0) target = $region13
  $region12: #{blip_decoder_forward.38} parent=0 // pred_region
    _
  $region13: #{blip_decoder_forward.38} parent=0 // pred_fallthru
    _
  // Predicated region
  $region14: #{blip_decoder_forward.38} parent=0 // pred_check
    _
  $region15: #{blip_decoder_forward.38} parent=0 // pred_check_branch
    %16 = sbr.rel (0) target = $region17
  $region16: #{blip_decoder_forward.38} parent=0 // pred_region
    _
  $region17: #{blip_decoder_forward.38} parent=0 // pred_fallthru
    _
  %p18 = scmp.eq.s32.totalorder 0, 0
  // Predicated region
  $region18: #{blip_decoder_forward.38} parent=0 // pred_check
    %p19 = pneg %p18
  $region19: #{blip_decoder_forward.38} parent=0 // pred_check_branch
    %21 = sbr.rel (%p19) target = $region21
  $region20: #{blip_decoder_forward.38} parent=0 // pred_region
    %vm22 = vcmask 261120
    %23 = vst.msk [vmem:[#allocation2] sm:$0xff] %vm22, 0.0
    %24 = vst.msk [vmem:[#allocation2 + $0x8] sm:$0xff] %vm22, 0.0
  $region21: #{blip_decoder_forward.38} parent=0 // pred_fallthru
    _
  %v25 = vld [vmem:[#allocation2] sm:$0xff]
  %v26 = vld [vmem:[#allocation2 + $0x8] sm:$0xff]
  %v27 = vld [vmem:[%s0] sm:$0xf]
  %v28 = vld [vmem:[%s0 + $0x4] sm:$0xf]
  %v29 = vld [vmem:[%s1] sm:$0xf]
  %v30 = vld [vmem:[%s1 + $0x4] sm:$0xf]
  %v31 = vld [vmem:[%s1 + $0x8] sm:$0xf]
  %v32 = vld [vmem:[%s1 + $0xc] sm:$0xf]
  %v33 = vld [vmem:[%s1 + $0x10] sm:$0xf]
  %v34 = vld [vmem:[%s1 + $0x14] sm:$0xf]
  %v35 = vld [vmem:[%s1 + $0x18] sm:$0xf]
  %v36 = vld [vmem:[%s1 + $0x1c] sm:$0xf]
  %v37 = vld [vmem:[%s1 + $0x20] sm:$0xf]
  %v38 = vld [vmem:[%s1 + $0x24] sm:$0xf]
  %v39 = vld [vmem:[%s1 + $0x28] sm:$0xf]
  %v40 = vld [vmem:[%s1 + $0x2c] sm:$0xf]
  %v41 = vld [vmem:[%s1 + $0x30] sm:$0xf]
  %v42 = vld [vmem:[%s1 + $0x34] sm:$0xf]
  %v43 = vld [vmem:[%s1 + $0x38] sm:$0xf]
  %v44 = vld [vmem:[%s1 + $0x3c] sm:$0xf]
  %v47 = vunpack.c.l.b16 %v27
  %v48 = vunpack.c.l.b16 %v28
  %v49 = vpack.c.b16 %v48, %v47
  %v67 = vunpack.c.l.b16 %v29
  %v68 = vunpack.c.l.b16 %v30
  %v69 = vunpack.c.l.b16 %v31
  %v70 = vunpack.c.l.b16 %v32
  %v71 = vunpack.c.l.b16 %v33
  %v72 = vunpack.c.l.b16 %v34
  %v73 = vunpack.c.l.b16 %v35
  %v74 = vunpack.c.l.b16 %v36
  %v75 = vunpack.c.l.b16 %v37
  %v76 = vunpack.c.l.b16 %v38
  %v77 = vunpack.c.l.b16 %v39
  %v78 = vunpack.c.l.b16 %v40
  %v79 = vunpack.c.l.b16 %v41
  %v80 = vunpack.c.l.b16 %v42
  %v81 = vunpack.c.l.b16 %v43
  %v82 = vunpack.c.l.b16 %v44
  %v83 = vpack.c.b16 %v68, %v67
  %v84 = vpack.c.b16 %v70, %v69
  %v85 = vpack.c.b16 %v72, %v71
  %v86 = vpack.c.b16 %v74, %v73
  %v87 = vpack.c.b16 %v76, %v75
  %v88 = vpack.c.b16 %v78, %v77
  %v89 = vpack.c.b16 %v80, %v79
  %v90 = vpack.c.b16 %v82, %v81
  %99 = vmatprep.subr.bf16.mxu0 0
  %100 = vmatpush1.bf16.msra.mxu0 %v83
  %101 = vmatprep.subr.bf16.mxu0 0
  %102 = vmatpush1.bf16.msra.mxu0 %v84
  %103 = vmatprep.subr.bf16.mxu0 0
  %104 = vmatpush1.bf16.msra.mxu0 %v85
  %105 = vmatprep.subr.bf16.mxu0 0
  %106 = vmatpush1.bf16.msra.mxu0 %v86
  %107 = vmatprep.subr.bf16.mxu0 0
  %108 = vmatpush1.bf16.msra.mxu0 %v87
  %109 = vmatprep.subr.bf16.mxu0 0
  %110 = vmatpush1.bf16.msra.mxu0 %v88
  %111 = vmatprep.subr.bf16.mxu0 0
  %112 = vmatpush1.bf16.msra.mxu0 %v89
  %113 = vmatprep.subr.bf16.mxu0 0
  %114 = vmatpush1.bf16.msra.mxu0 %v90
  %115 = vmatprep.subr.bf16.mxu0 0
  %116 = vmatpush1.bf16.msra.mxu0 0
  %117 = vmatprep.subr.bf16.mxu0 0
  %118 = vmatpush1.bf16.msra.mxu0 0
  %119 = vmatprep.subr.bf16.mxu0 0
  %120 = vmatpush1.bf16.msra.mxu0 0
  %121 = vmatprep.subr.bf16.mxu0 0
  %122 = vmatpush1.bf16.msra.mxu0 0
  %123 = vmatprep.subr.bf16.mxu0 0
  %124 = vmatpush1.bf16.msra.mxu0 0
  %125 = vmatprep.subr.bf16.mxu0 0
  %126 = vmatpush1.bf16.msra.mxu0 0
  %127 = vmatprep.subr.bf16.mxu0 0
  %128 = vmatpush1.bf16.msra.mxu0 0
  %129 = vmatprep.subr.bf16.mxu0 0
  %130 = vmatpush1.bf16.msra.mxu0 0
  %131 = vmatprep.mubr.bf16.mxu0 0
  %132 = vmatmul.mubr.bf16.gmra.mrb[0].mxu0 %v49
  %v133 = vpop.f32.mrb[0].mxu0
  %v134 = vadd.f32 0.0, %v133
  %v135 = vpop.f32.mrb[0].mxu0
  %v136 = vpop.f32.mrb[0].mxu0
  %v137 = vadd.f32 0.0, %v136
  %v138 = vpop.f32.mrb[0].mxu0
  %139 = vdwg.mxu0
  %v140 = vadd.f32 %v25, %v134
  %v141 = vadd.f32 %v26, %v137
  %vm142 = vcmask 261120
  %143 = vst.msk [vmem:[#allocation2] sm:$0xff] %vm142, %v140
  %144 = vst.msk [vmem:[#allocation2 + $0x8] sm:$0xff] %vm142, %v141
  // Predicated region
  $region22: #{blip_decoder_forward.38} parent=0 // pred_check
    %p145 = pneg %p18
  $region23: #{blip_decoder_forward.38} parent=0 // pred_check_branch
    %147 = sbr.rel (%p145) target = $region25
  $region24: #{blip_decoder_forward.38} parent=0 // pred_region
    %v148 = vld [vmem:[#allocation2] sm:$0xff]
    %v149 = vld [vmem:[#allocation2 + $0x8] sm:$0xff]
    %v150 = vld [vmem:[%s2] sm:$0x1]
    %v152 = vlaneseq
    %v153 = vshrl.u32 %v152, 7
    %v154 = vsub.s32 0, %v153
    %v155 = vrot.slane %v150, %v154
    %v157 = vadd.f32 %v148, %v155
    %v158 = vadd.f32 %v149, %v155
    %v159 = vld [vmem:[%s3] sm:$0xff]
    %v160 = vld [vmem:[%s3 + $0x8] sm:$0xff]
    %v161 = vadd.f32 %v157, %v159
    %v162 = vadd.f32 %v158, %v160
    %163 = vst.msk [vmem:[%s4] sm:$0xff] %vm142, %v161
    %164 = vst.msk [vmem:[%s4 + $0x8] sm:$0xff] %vm142, %v162
  $region25: #{blip_decoder_forward.38} parent=0 // pred_fallthru
    _
  // Predicated region
  $region26: #{blip_decoder_forward.38} parent=0 // pred_check
    _
  $region27: #{blip_decoder_forward.38} parent=0 // pred_check_branch
    %166 = sbr.rel (0) target = $region29
  $region28: #{blip_decoder_forward.38} parent=0 // pred_region
    _
  $region29: #{blip_decoder_forward.38} parent=0 // pred_fallthru
    _
  // Predicated region
  $region30: #{blip_decoder_forward.38} parent=0 // pred_check
    _
  $region31: #{blip_decoder_forward.38} parent=0 // pred_check_branch
    %168 = sbr.rel (0) target = $region33
  $region32: #{blip_decoder_forward.38} parent=0 // pred_region
    _
  $region33: #{blip_decoder_forward.38} parent=0 // pred_fallthru
    _

// kernel: blip_decoder_forward.50
$region0: #{blip_decoder_forward.50}
  #allocation0 [shape = 'u32[]', space=smem, size = 0x4, offset = 0x4, fixed_abs, tag = 'smem constant byte address 0x4 - core index']
  #allocation1 [shape = 'u32[144,128]{1,0:T(1,128)}', space=vmem, size = 0x12000, scoped, tag = 'internal scratch']
  #allocation2 [shape = 'f32[16,64]{1,0:T(8,128)}', space=vmem, size = 0x2000, scoped, tag = 'scratch operand']
  %s0 = inlined_call_operand.vmem [shape: f32[16,32], index: 0, kind: input, shape index: {}]
  %s1 = inlined_call_operand.vmem [shape: bf16[32,64], index: 1, kind: input, shape index: {}]
  %s2 = inlined_call_operand.vmem [shape: f32[1,64], index: 2, kind: input, shape index: {}]
  %s3 = inlined_call_operand.vmem [shape: bf16[16,64], index: 3, kind: output, shape index: {}]
  %s4 = sld [smem:[#allocation0]]
  $region30: #{blip_decoder_forward.50} parent=0
    _
  %s6 = ssub.s32 1, %s4
  %s7 = scalar_select 0, %s6, %s4
  // Predicated region
  $region2: #{blip_decoder_forward.50} parent=0 // pred_check
    _
  $region3: #{blip_decoder_forward.50} parent=0 // pred_check_branch
    %9 = sbr.rel (0) target = $region5
  $region4: #{blip_decoder_forward.50} parent=0 // pred_region
    _
  $region5: #{blip_decoder_forward.50} parent=0 // pred_fallthru
    _
  // Predicated region
  $region6: #{blip_decoder_forward.50} parent=0 // pred_check
    _
  $region7: #{blip_decoder_forward.50} parent=0 // pred_check_branch
    %11 = sbr.rel (0) target = $region9
  $region8: #{blip_decoder_forward.50} parent=0 // pred_region
    _
  $region9: #{blip_decoder_forward.50} parent=0 // pred_fallthru
    _
  // Predicated region
  $region10: #{blip_decoder_forward.50} parent=0 // pred_check
    _
  $region11: #{blip_decoder_forward.50} parent=0 // pred_check_branch
    %13 = sbr.rel (0) target = $region13
  $region12: #{blip_decoder_forward.50} parent=0 // pred_region
    _
  $region13: #{blip_decoder_forward.50} parent=0 // pred_fallthru
    _
  %p15 = scmp.eq.s32.totalorder 0, 0
  // Predicated region
  $region14: #{blip_decoder_forward.50} parent=0 // pred_check
    %p16 = pneg %p15
  $region15: #{blip_decoder_forward.50} parent=0 // pred_check_branch
    %18 = sbr.rel (%p16) target = $region17
  $region16: #{blip_decoder_forward.50} parent=0 // pred_region
    %vm19 = vcmask 523264
    %20 = vst.msk [vmem:[#allocation2] sm:$0xff] %vm19, 0.0
    %21 = vst.msk [vmem:[#allocation2 + $0x8] sm:$0xff] %vm19, 0.0
  $region17: #{blip_decoder_forward.50} parent=0 // pred_fallthru
    _
  %v22 = vld [vmem:[#allocation2] sm:$0xff]
  %v23 = vld [vmem:[#allocation2 + $0x8] sm:$0xff]
  %v24 = vld [vmem:[%s0] sm:$0xff]
  %v25 = vld [vmem:[%s0 + $0x8] sm:$0xff]
  %v26 = vpack.c.bf16 %v25, %v24
  %v27 = vld [vmem:[%s1] sm:$0xf]
  %v28 = vld [vmem:[%s1 + $0x4] sm:$0xf]
  %v29 = vld [vmem:[%s1 + $0x8] sm:$0xf]
  %v30 = vld [vmem:[%s1 + $0xc] sm:$0xf]
  %v35 = vunpack.c.l.b16 %v27
  %v36 = vunpack.c.l.b16 %v28
  %v37 = vunpack.c.l.b16 %v29
  %v38 = vunpack.c.l.b16 %v30
  %v39 = vpack.c.b16 %v36, %v35
  %v40 = vpack.c.b16 %v38, %v37
  %vm43 = vcmask 261120
  %v45 = vsel %vm43, %v26, 0
  %47 = vmatprep.subr.bf16.mxu0 0
  %48 = vmatpush1.bf16.msra.mxu0 %v39
  %49 = vmatprep.subr.bf16.mxu0 0
  %50 = vmatpush1.bf16.msra.mxu0 %v40
  %51 = vmatprep.subr.bf16.mxu0 0
  %52 = vmatpush1.bf16.msra.mxu0 0
  %53 = vmatprep.subr.bf16.mxu0 0
  %54 = vmatpush1.bf16.msra.mxu0 0
  %55 = vmatprep.subr.bf16.mxu0 0
  %56 = vmatpush1.bf16.msra.mxu0 0
  %57 = vmatprep.subr.bf16.mxu0 0
  %58 = vmatpush1.bf16.msra.mxu0 0
  %59 = vmatprep.subr.bf16.mxu0 0
  %60 = vmatpush1.bf16.msra.mxu0 0
  %61 = vmatprep.subr.bf16.mxu0 0
  %62 = vmatpush1.bf16.msra.mxu0 0
  %63 = vmatprep.subr.bf16.mxu0 0
  %64 = vmatpush1.bf16.msra.mxu0 0
  %65 = vmatprep.subr.bf16.mxu0 0
  %66 = vmatpush1.bf16.msra.mxu0 0
  %67 = vmatprep.subr.bf16.mxu0 0
  %68 = vmatpush1.bf16.msra.mxu0 0
  %69 = vmatprep.subr.bf16.mxu0 0
  %70 = vmatpush1.bf16.msra.mxu0 0
  %71 = vmatprep.subr.bf16.mxu0 0
  %72 = vmatpush1.bf16.msra.mxu0 0
  %73 = vmatprep.subr.bf16.mxu0 0
  %74 = vmatpush1.bf16.msra.mxu0 0
  %75 = vmatprep.subr.bf16.mxu0 0
  %76 = vmatpush1.bf16.msra.mxu0 0
  %77 = vmatprep.subr.bf16.mxu0 0
  %78 = vmatpush1.bf16.msra.mxu0 0
  %79 = vmatprep.mubr.bf16.mxu0 0
  %80 = vmatmul.mubr.bf16.gmra.mrb[0].mxu0 %v45
  %v81 = vpop.f32.mrb[0].mxu0
  %v82 = vadd.f32 0.0, %v81
  %v83 = vpop.f32.mrb[0].mxu0
  %v84 = vpop.f32.mrb[0].mxu0
  %v85 = vadd.f32 0.0, %v84
  %v86 = vpop.f32.mrb[0].mxu0
  %87 = vdwg.mxu0
  %v88 = vadd.f32 %v22, %v82
  %v89 = vadd.f32 %v23, %v85
  %vm90 = vcmask 523264
  %91 = vst.msk [vmem:[#allocation2] sm:$0xff] %vm90, %v88
  %92 = vst.msk [vmem:[#allocation2 + $0x8] sm:$0xff] %vm90, %v89
  // Predicated region
  $region18: #{blip_decoder_forward.50} parent=0 // pred_check
    %p93 = pneg %p15
  $region19: #{blip_decoder_forward.50} parent=0 // pred_check_branch
    %95 = sbr.rel (%p93) target = $region21
  $region20: #{blip_decoder_forward.50} parent=0 // pred_region
    %v96 = vld [vmem:[#allocation2] sm:$0xff]
    %v97 = vld [vmem:[#allocation2 + $0x8] sm:$0xff]
    %v98 = vld [vmem:[%s2] sm:$0x1]
    %v100 = vlaneseq
    %v101 = vshrl.u32 %v100, 7
    %v102 = vsub.s32 0, %v101
    %v103 = vrot.slane %v98, %v102
    %v105 = vadd.f32 %v96, %v103
    %v106 = vadd.f32 %v97, %v103
    %v107 = vpack.c.bf16 %v106, %v105
    %v109 = vunpack.c.l.b16 %v107
    %v110 = vunpack.c.h.b16 %v107
    %v111 = vpack.c.b16 %v109, %v109
    %v112 = vpack.c.b16 %v110, %v110
    %vm115 = vcmask 519168
    %116 = vst.msk [vmem:[%s3] sm:$0xf] %vm115, %v111
    %117 = vst.msk [vmem:[%s3 + $0x4] sm:$0xf] %vm115, %v112
  $region21: #{blip_decoder_forward.50} parent=0 // pred_fallthru
    _
  // Predicated region
  $region22: #{blip_decoder_forward.50} parent=0 // pred_check
    _
  $region23: #{blip_decoder_forward.50} parent=0 // pred_check_branch
    %119 = sbr.rel (0) target = $region25
  $region24: #{blip_decoder_forward.50} parent=0 // pred_region
    _
  $region25: #{blip_decoder_forward.50} parent=0 // pred_fallthru
    _
  // Predicated region
  $region26: #{blip_decoder_forward.50} parent=0 // pred_check
    _
  $region27: #{blip_decoder_forward.50} parent=0 // pred_check_branch
    %121 = sbr.rel (0) target = $region29
  $region28: #{blip_decoder_forward.50} parent=0 // pred_region
    _
  $region29: #{blip_decoder_forward.50} parent=0 // pred_fallthru
    _

// kernel: blip_decoder_forward.37
$region0: #{blip_decoder_forward.37}
  #allocation0 [shape = 'u32[]', space=smem, size = 0x4, offset = 0x4, fixed_abs, tag = 'smem constant byte address 0x4 - core index']
  #allocation1 [shape = 'u32[144,128]{1,0:T(1,128)}', space=vmem, size = 0x12000, scoped, tag = 'internal scratch']
  #allocation2 [shape = 'bf16[16,32]{1,0:T(16,128)(2,1)}', space=vmem, size = 0x1000, scoped, tag = 'scratch operand']
  %s0 = inlined_call_operand.vmem [shape: f32[16,32], index: 0, kind: input, shape index: {}]
  %s1 = inlined_call_operand.vmem [shape: f32[1,32], index: 1, kind: input, shape index: {}]
  %s2 = inlined_call_operand.vmem [shape: f32[1,32], index: 2, kind: input, shape index: {}]
  %s3 = inlined_call_operand.vmem [shape: bf16[32,128], index: 3, kind: input, shape index: {}]
  %s4 = inlined_call_operand.vmem [shape: f32[1,128], index: 4, kind: input, shape index: {}]
  %s5 = inlined_call_operand.vmem [shape: bf16[16,128], index: 5, kind: output, shape index: {}]
  %s6 = sld [smem:[#allocation0]]
  $region34: #{blip_decoder_forward.37} parent=0
    _
  %s8 = ssub.s32 1, %s6
  %s9 = scalar_select 0, %s8, %s6
  // Predicated region
  $region2: #{blip_decoder_forward.37} parent=0 // pred_check
    _
  $region3: #{blip_decoder_forward.37} parent=0 // pred_check_branch
    %11 = sbr.rel (0) target = $region5
  $region4: #{blip_decoder_forward.37} parent=0 // pred_region
    _
  $region5: #{blip_decoder_forward.37} parent=0 // pred_fallthru
    _
  // Predicated region
  $region6: #{blip_decoder_forward.37} parent=0 // pred_check
    _
  $region7: #{blip_decoder_forward.37} parent=0 // pred_check_branch
    %13 = sbr.rel (0) target = $region9
  $region8: #{blip_decoder_forward.37} parent=0 // pred_region
    _
  $region9: #{blip_decoder_forward.37} parent=0 // pred_fallthru
    _
  // Predicated region
  $region10: #{blip_decoder_forward.37} parent=0 // pred_check
    _
  $region11: #{blip_decoder_forward.37} parent=0 // pred_check_branch
    %15 = sbr.rel (0) target = $region13
  $region12: #{blip_decoder_forward.37} parent=0 // pred_region
    _
  $region13: #{blip_decoder_forward.37} parent=0 // pred_fallthru
    _
  // Predicated region
  $region14: #{blip_decoder_forward.37} parent=0 // pred_check
    _
  $region15: #{blip_decoder_forward.37} parent=0 // pred_check_branch
    %17 = sbr.rel (0) target = $region17
  $region16: #{blip_decoder_forward.37} parent=0 // pred_region
    _
  $region17: #{blip_decoder_forward.37} parent=0 // pred_fallthru
    _
  // Predicated region
  $region18: #{blip_decoder_forward.37} parent=0 // pred_check
    _
  $region19: #{blip_decoder_forward.37} parent=0 // pred_check_branch
    %19 = sbr.rel (0) target = $region21
  $region20: #{blip_decoder_forward.37} parent=0 // pred_region
    _
  $region21: #{blip_decoder_forward.37} parent=0 // pred_fallthru
    _
  %p21 = scmp.eq.s32.totalorder 0, 0
  // Predicated region
  $region22: #{blip_decoder_forward.37} parent=0 // pred_check
    %p22 = pneg %p21
  $region23: #{blip_decoder_forward.37} parent=0 // pred_check_branch
    %24 = sbr.rel (%p22) target = $region25
  $region24: #{blip_decoder_forward.37} parent=0 // pred_region
    %v25 = vld [vmem:[%s0] sm:$0xff]
    %v26 = vld [vmem:[%s0 + $0x8] sm:$0xff]
    %vm27 = vcmask 261120
    %v28 = vsel %vm27, %v25, 0.0
    %29 = vadd.xlane.f32.xlu0 %v28
    %v30 = vpop.xlane.xlu0 %29
    %v31 = vsel %vm27, %v26, 0.0
    %32 = vadd.xlane.f32.xlu0 %v31
    %v33 = vpop.xlane.xlu0 %32
    %v34 = vrcp.pop 32.0
    %v35 = vmul.f32 %v30, %v34
    %v36 = vmul.f32 %v33, %v34
    %v37 = vsub.f32 %v25, %v35
    %v38 = vsub.f32 %v26, %v36
    %v39 = vmul.f32 %v37, %v37
    %v40 = vmul.f32 %v38, %v38
    %v41 = vsel %vm27, %v39, 0.0
    %42 = vadd.xlane.f32.xlu0 %v41
    %v43 = vpop.xlane.xlu0 %42
    %v44 = vsel %vm27, %v40, 0.0
    %45 = vadd.xlane.f32.xlu0 %v44
    %v46 = vpop.xlane.xlu0 %45
    %v47 = vmul.f32 %v43, %v34
    %v48 = vmul.f32 %v46, %v34
    %v49 = vadd.f32 %v47, 1e-06
    %v50 = vadd.f32 %v48, 1e-06
    %v51 = vrsqrt.pop %v49
    %v52 = vrsqrt.pop %v50
    %v53 = vmul.f32 %v37, %v51
    %v54 = vmul.f32 %v38, %v52
    %v55 = vld [vmem:[%s1] sm:$0x1]
    %v57 = vlaneseq
    %v58 = vshrl.u32 %v57, 7
    %v59 = vsub.s32 0, %v58
    %v60 = vrot.slane %v55, %v59
    %v62 = vmul.f32 %v53, %v60
    %v63 = vmul.f32 %v54, %v60
    %v64 = vld [vmem:[%s2] sm:$0x1]
    %v66 = vlaneseq
    %v67 = vshrl.u32 %v66, 7
    %v68 = vsub.s32 0, %v67
    %v69 = vrot.slane %v64, %v68
    %v71 = vadd.f32 %v62, %v69
    %v72 = vadd.f32 %v63, %v69
    %v73 = vpack.c.bf16 %v72, %v71
    %74 = vst.msk [vmem:[#allocation2] sm:$0xff] %vm27, %v73
  $region25: #{blip_decoder_forward.37} parent=0 // pred_fallthru
    _
  %v75 = vld [vmem:[#allocation2] sm:$0xff]
  %v76 = vld [vmem:[%s3] sm:$0xf]
  %v77 = vld [vmem:[%s3 + $0x4] sm:$0xf]
  %v78 = vld [vmem:[%s3 + $0x8] sm:$0xf]
  %v79 = vld [vmem:[%s3 + $0xc] sm:$0xf]
  %v80 = vld [vmem:[%s4] sm:$0x1]
  %v82 = vlaneseq
  %v83 = vshrl.u32 %v82, 7
  %v84 = vsub.s32 0, %v83
  %v85 = vrot.slane %v80, %v84
  %v91 = vunpack.c.l.b16 %v76
  %v92 = vunpack.c.l.b16 %v77
  %v93 = vunpack.c.l.b16 %v78
  %v94 = vunpack.c.l.b16 %v79
  %v95 = vpack.c.b16 %v92, %v91
  %v96 = vpack.c.b16 %v94, %v93
  %vm99 = vcmask 261120
  %v101 = vsel %vm99, %v75, 0
  %103 = vmatprep.subr.bf16.mxu0 0
  %104 = vmatpush1.bf16.msra.mxu0 %v95
  %105 = vmatprep.subr.bf16.mxu0 0
  %106 = vmatpush1.bf16.msra.mxu0 %v96
  %107 = vmatprep.subr.bf16.mxu0 0
  %108 = vmatpush1.bf16.msra.mxu0 0
  %109 = vmatprep.subr.bf16.mxu0 0
  %110 = vmatpush1.bf16.msra.mxu0 0
  %111 = vmatprep.subr.bf16.mxu0 0
  %112 = vmatpush1.bf16.msra.mxu0 0
  %113 = vmatprep.subr.bf16.mxu0 0
  %114 = vmatpush1.bf16.msra.mxu0 0
  %115 = vmatprep.subr.bf16.mxu0 0
  %116 = vmatpush1.bf16.msra.mxu0 0
  %117 = vmatprep.subr.bf16.mxu0 0
  %118 = vmatpush1.bf16.msra.mxu0 0
  %119 = vmatprep.subr.bf16.mxu0 0
  %120 = vmatpush1.bf16.msra.mxu0 0
  %121 = vmatprep.subr.bf16.mxu0 0
  %122 = vmatpush1.bf16.msra.mxu0 0
  %123 = vmatprep.subr.bf16.mxu0 0
  %124 = vmatpush1.bf16.msra.mxu0 0
  %125 = vmatprep.subr.bf16.mxu0 0
  %126 = vmatpush1.bf16.msra.mxu0 0
  %127 = vmatprep.subr.bf16.mxu0 0
  %128 = vmatpush1.bf16.msra.mxu0 0
  %129 = vmatprep.subr.bf16.mxu0 0
  %130 = vmatpush1.bf16.msra.mxu0 0
  %131 = vmatprep.subr.bf16.mxu0 0
  %132 = vmatpush1.bf16.msra.mxu0 0
  %133 = vmatprep.subr.bf16.mxu0 0
  %134 = vmatpush1.bf16.msra.mxu0 0
  %135 = vmatprep.mubr.bf16.mxu0 0
  %136 = vmatmul.mubr.bf16.gmra.mrb[0].mxu0 %v101
  %v137 = vpop.f32.mrb[0].mxu0
  %v138 = vadd.f32 %v85, %v137
  %v139 = vpop.f32.mrb[0].mxu0
  %v140 = vpop.f32.mrb[0].mxu0
  %v141 = vadd.f32 %v85, %v140
  %v142 = vpop.f32.mrb[0].mxu0
  %143 = vdwg.mxu0
  %v144 = vmul.f32 %v138, 0.5
  %v145 = vmul.f32 %v141, 0.5
  %v146 = vmul.f32 %v138, 0.044715
  %v147 = vmul.f32 %v141, 0.044715
  %v148 = vmul.f32 %v146, %v138
  %v149 = vmul.f32 %v147, %v141
  %v150 = vmul.f32 %v148, %v138
  %v151 = vmul.f32 %v149, %v141
  %v152 = vadd.f32 %v138, %v150
  %v153 = vadd.f32 %v141, %v151
  %v154 = vmul.f32 %v152, 0.7978846
  %v155 = vmul.f32 %v153, 0.7978846
  %v156 = vtanh.pop %v154
  %v157 = vtanh.pop %v155
  %v158 = vadd.f32 %v156, 1.0
  %v159 = vadd.f32 %v157, 1.0
  %v160 = vmul.f32 %v144, %v158
  %v161 = vmul.f32 %v145, %v159
  %v162 = vpack.c.bf16 %v161, %v160
  %v164 = vunpack.c.l.b16 %v162
  %v165 = vunpack.c.h.b16 %v162
  %v166 = vpack.c.b16 %v164, %v164
  %v167 = vpack.c.b16 %v165, %v165
  %170 = vst [vmem:[%s5] sm:$0xf] %v166
  %171 = vst [vmem:[%s5 + $0x4] sm:$0xf] %v167
  // Predicated region
  $region26: #{blip_decoder_forward.37} parent=0 // pred_check
    _
  $region27: #{blip_decoder_forward.37} parent=0 // pred_check_branch
    %173 = sbr.rel (0) target = $region29
  $region28: #{blip_decoder_forward.37} parent=0 // pred_region
    _
  $region29: #{blip_decoder_forward.37} parent=0 // pred_fallthru
    _
  // Predicated region
  $region30: #{blip_decoder_forward.37} parent=0 // pred_check
    _
  $region31: #{blip_decoder_forward.37} parent=0 // pred_check_branch
    %175 = sbr.rel (0) target = $region33
  $region32: #{blip_decoder_forward.37} parent=0 // pred_region
    _
  $region33: #{blip_decoder_forward.37} parent=0 // pred_fallthru
    _

// kernel: blip_decoder_forward.46
$region0: #{blip_decoder_forward.46}
  #allocation0 [shape = 'u32[]', space=smem, size = 0x4, offset = 0x4, fixed_abs, tag = 'smem constant byte address 0x4 - core index']
  #allocation1 [shape = 'u32[144,128]{1,0:T(1,128)}', space=vmem, size = 0x12000, scoped, tag = 'internal scratch']
  #allocation2 [shape = 'f32[16,96]{1,0:T(8,128)}', space=vmem, size = 0x2000, scoped, tag = 'scratch operand']
  %s0 = inlined_call_operand.vmem [shape: f32[16,32], index: 0, kind: input, shape index: {}]
  %s1 = inlined_call_operand.vmem [shape: bf16[32,96], index: 1, kind: input, shape index: {}]
  %s2 = inlined_call_operand.vmem [shape: f32[1,96], index: 2, kind: input, shape index: {}]
  %s3 = inlined_call_operand.vmem [shape: bf16[16,96], index: 3, kind: output, shape index: {}]
  %s4 = sld [smem:[#allocation0]]
  $region30: #{blip_decoder_forward.46} parent=0
    _
  %s6 = ssub.s32 1, %s4
  %s7 = scalar_select 0, %s6, %s4
  // Predicated region
  $region2: #{blip_decoder_forward.46} parent=0 // pred_check
    _
  $region3: #{blip_decoder_forward.46} parent=0 // pred_check_branch
    %9 = sbr.rel (0) target = $region5
  $region4: #{blip_decoder_forward.46} parent=0 // pred_region
    _
  $region5: #{blip_decoder_forward.46} parent=0 // pred_fallthru
    _
  // Predicated region
  $region6: #{blip_decoder_forward.46} parent=0 // pred_check
    _
  $region7: #{blip_decoder_forward.46} parent=0 // pred_check_branch
    %11 = sbr.rel (0) target = $region9
  $region8: #{blip_decoder_forward.46} parent=0 // pred_region
    _
  $region9: #{blip_decoder_forward.46} parent=0 // pred_fallthru
    _
  // Predicated region
  $region10: #{blip_decoder_forward.46} parent=0 // pred_check
    _
  $region11: #{blip_decoder_forward.46} parent=0 // pred_check_branch
    %13 = sbr.rel (0) target = $region13
  $region12: #{blip_decoder_forward.46} parent=0 // pred_region
    _
  $region13: #{blip_decoder_forward.46} parent=0 // pred_fallthru
    _
  %p15 = scmp.eq.s32.totalorder 0, 0
  // Predicated region
  $region14: #{blip_decoder_forward.46} parent=0 // pred_check
    %p16 = pneg %p15
  $region15: #{blip_decoder_forward.46} parent=0 // pred_check_branch
    %18 = sbr.rel (%p16) target = $region17
  $region16: #{blip_decoder_forward.46} parent=0 // pred_region
    %vm19 = vcmask 785408
    %20 = vst.msk [vmem:[#allocation2] sm:$0xff] %vm19, 0.0
    %21 = vst.msk [vmem:[#allocation2 + $0x8] sm:$0xff] %vm19, 0.0
  $region17: #{blip_decoder_forward.46} parent=0 // pred_fallthru
    _
  %v22 = vld [vmem:[#allocation2] sm:$0xff]
  %v23 = vld [vmem:[#allocation2 + $0x8] sm:$0xff]
  %v24 = vld [vmem:[%s0] sm:$0xff]
  %v25 = vld [vmem:[%s0 + $0x8] sm:$0xff]
  %v26 = vpack.c.bf16 %v25, %v24
  %v27 = vld [vmem:[%s1] sm:$0xf]
  %v28 = vld [vmem:[%s1 + $0x4] sm:$0xf]
  %v29 = vld [vmem:[%s1 + $0x8] sm:$0xf]
  %v30 = vld [vmem:[%s1 + $0xc] sm:$0xf]
  %v35 = vunpack.c.l.b16 %v27
  %v36 = vunpack.c.l.b16 %v28
  %v37 = vunpack.c.l.b16 %v29
  %v38 = vunpack.c.l.b16 %v30
  %v39 = vpack.c.b16 %v36, %v35
  %v40 = vpack.c.b16 %v38, %v37
  %vm43 = vcmask 261120
  %v45 = vsel %vm43, %v26, 0
  %47 = vmatprep.subr.bf16.mxu0 0
  %48 = vmatpush1.bf16.msra.mxu0 %v39
  %49 = vmatprep.subr.bf16.mxu0 0
  %50 = vmatpush1.bf16.msra.mxu0 %v40
  %51 = vmatprep.subr.bf16.mxu0 0
  %52 = vmatpush1.bf16.msra.mxu0 0
  %53 = vmatprep.subr.bf16.mxu0 0
  %54 = vmatpush1.bf16.msra.mxu0 0
  %55 = vmatprep.subr.bf16.mxu0 0
  %56 = vmatpush1.bf16.msra.mxu0 0
  %57 = vmatprep.subr.bf16.mxu0 0
  %58 = vmatpush1.bf16.msra.mxu0 0
  %59 = vmatprep.subr.bf16.mxu0 0
  %60 = vmatpush1.bf16.msra.mxu0 0
  %61 = vmatprep.subr.bf16.mxu0 0
  %62 = vmatpush1.bf16.msra.mxu0 0
  %63 = vmatprep.subr.bf16.mxu0 0
  %64 = vmatpush1.bf16.msra.mxu0 0
  %65 = vmatprep.subr.bf16.mxu0 0
  %66 = vmatpush1.bf16.msra.mxu0 0
  %67 = vmatprep.subr.bf16.mxu0 0
  %68 = vmatpush1.bf16.msra.mxu0 0
  %69 = vmatprep.subr.bf16.mxu0 0
  %70 = vmatpush1.bf16.msra.mxu0 0
  %71 = vmatprep.subr.bf16.mxu0 0
  %72 = vmatpush1.bf16.msra.mxu0 0
  %73 = vmatprep.subr.bf16.mxu0 0
  %74 = vmatpush1.bf16.msra.mxu0 0
  %75 = vmatprep.subr.bf16.mxu0 0
  %76 = vmatpush1.bf16.msra.mxu0 0
  %77 = vmatprep.subr.bf16.mxu0 0
  %78 = vmatpush1.bf16.msra.mxu0 0
  %79 = vmatprep.mubr.bf16.mxu0 0
  %80 = vmatmul.mubr.bf16.gmra.mrb[0].mxu0 %v45
  %v81 = vpop.f32.mrb[0].mxu0
  %v82 = vadd.f32 0.0, %v81
  %v83 = vpop.f32.mrb[0].mxu0
  %v84 = vpop.f32.mrb[0].mxu0
  %v85 = vadd.f32 0.0, %v84
  %v86 = vpop.f32.mrb[0].mxu0
  %87 = vdwg.mxu0
  %v88 = vadd.f32 %v22, %v82
  %v89 = vadd.f32 %v23, %v85
  %vm90 = vcmask 785408
  %91 = vst.msk [vmem:[#allocation2] sm:$0xff] %vm90, %v88
  %92 = vst.msk [vmem:[#allocation2 + $0x8] sm:$0xff] %vm90, %v89
  // Predicated region
  $region18: #{blip_decoder_forward.46} parent=0 // pred_check
    %p93 = pneg %p15
  $region19: #{blip_decoder_forward.46} parent=0 // pred_check_branch
    %95 = sbr.rel (%p93) target = $region21
  $region20: #{blip_decoder_forward.46} parent=0 // pred_region
    %v96 = vld [vmem:[#allocation2] sm:$0xff]
    %v97 = vld [vmem:[#allocation2 + $0x8] sm:$0xff]
    %v98 = vld [vmem:[%s2] sm:$0x1]
    %v100 = vlaneseq
    %v101 = vshrl.u32 %v100, 7
    %v102 = vsub.s32 0, %v101
    %v103 = vrot.slane %v98, %v102
    %v105 = vadd.f32 %v96, %v103
    %v106 = vadd.f32 %v97, %v103
    %v107 = vpack.c.bf16 %v106, %v105
    %v109 = vunpack.c.l.b16 %v107
    %v110 = vunpack.c.h.b16 %v107
    %v111 = vpack.c.b16 %v109, %v109
    %v112 = vpack.c.b16 %v110, %v110
    %vm115 = vcmask 781312
    %116 = vst.msk [vmem:[%s3] sm:$0xf] %vm115, %v111
    %117 = vst.msk [vmem:[%s3 + $0x4] sm:$0xf] %vm115, %v112
  $region21: #{blip_decoder_forward.46} parent=0 // pred_fallthru
    _
  // Predicated region
  $region22: #{blip_decoder_forward.46} parent=0 // pred_check
    _
  $region23: #{blip_decoder_forward.46} parent=0 // pred_check_branch
    %119 = sbr.rel (0) target = $region25
  $region24: #{blip_decoder_forward.46} parent=0 // pred_region
    _
  $region25: #{blip_decoder_forward.46} parent=0 // pred_fallthru
    _
  // Predicated region
  $region26: #{blip_decoder_forward.46} parent=0 // pred_check
    _
  $region27: #{blip_decoder_forward.46} parent=0 // pred_check_branch
    %121 = sbr.rel (0) target = $region29
  $region28: #{blip_decoder_forward.46} parent=0 // pred_region
    _
  $region29: #{blip_decoder_forward.46} parent=0 // pred_fallthru
    _

// kernel: blip_decoder_forward.45
$region0: #{blip_decoder_forward.45}
  #allocation0 [shape = 'u32[]', space=smem, size = 0x4, offset = 0x4, fixed_abs, tag = 'smem constant byte address 0x4 - core index']
  #allocation1 [shape = 'u32[144,128]{1,0:T(1,128)}', space=vmem, size = 0x12000, scoped, tag = 'internal scratch']
  %s0 = inlined_call_operand.vmem [shape: f32[16,32], index: 0, kind: input, shape index: {}]
  %s1 = inlined_call_operand.vmem [shape: f32[1,32], index: 1, kind: input, shape index: {}]
  %s2 = inlined_call_operand.vmem [shape: f32[1,32], index: 2, kind: input, shape index: {}]
  %s3 = inlined_call_operand.vmem [shape: f32[16,32], index: 3, kind: output, shape index: {}]
  %s4 = sld [smem:[#allocation0]]
  $region22: #{blip_decoder_forward.45} parent=0
    _
  %s6 = ssub.s32 1, %s4
  %s7 = scalar_select 0, %s6, %s4
  // Predicated region
  $region2: #{blip_decoder_forward.45} parent=0 // pred_check
    _
  $region3: #{blip_decoder_forward.45} parent=0 // pred_check_branch
    %9 = sbr.rel (0) target = $region5
  $region4: #{blip_decoder_forward.45} parent=0 // pred_region
    _
  $region5: #{blip_decoder_forward.45} parent=0 // pred_fallthru
    _
  // Predicated region
  $region6: #{blip_decoder_forward.45} parent=0 // pred_check
    _
  $region7: #{blip_decoder_forward.45} parent=0 // pred_check_branch
    %11 = sbr.rel (0) target = $region9
  $region8: #{blip_decoder_forward.45} parent=0 // pred_region
    _
  $region9: #{blip_decoder_forward.45} parent=0 // pred_fallthru
    _
  // Predicated region
  $region10: #{blip_decoder_forward.45} parent=0 // pred_check
    _
  $region11: #{blip_decoder_forward.45} parent=0 // pred_check_branch
    %13 = sbr.rel (0) target = $region13
  $region12: #{blip_decoder_forward.45} parent=0 // pred_region
    _
  $region13: #{blip_decoder_forward.45} parent=0 // pred_fallthru
    _
  %v14 = vld [vmem:[%s0] sm:$0xff]
  %v15 = vld [vmem:[%s0 + $0x8] sm:$0xff]
  %vm16 = vcmask 261120
  %v17 = vsel %vm16, %v14, 0.0
  %18 = vadd.xlane.f32.xlu0 %v17
  %v19 = vpop.xlane.xlu0 %18
  %v20 = vsel %vm16, %v15, 0.0
  %21 = vadd.xlane.f32.xlu0 %v20
  %v22 = vpop.xlane.xlu0 %21
  %v23 = vrcp.pop 32.0
  %v24 = vmul.f32 %v19, %v23
  %v25 = vmul.f32 %v22, %v23
  %v26 = vsub.f32 %v14, %v24
  %v27 = vsub.f32 %v15, %v25
  %v28 = vmul.f32 %v26, %v26
  %v29 = vmul.f32 %v27, %v27
  %v30 = vsel %vm16, %v28, 0.0
  %31 = vadd.xlane.f32.xlu0 %v30
  %v32 = vpop.xlane.xlu0 %31
  %v33 = vsel %vm16, %v29, 0.0
  %34 = vadd.xlane.f32.xlu0 %v33
  %v35 = vpop.xlane.xlu0 %34
  %v36 = vmul.f32 %v32, %v23
  %v37 = vmul.f32 %v35, %v23
  %v38 = vadd.f32 %v36, 1e-12
  %v39 = vadd.f32 %v37, 1e-12
  %v40 = vrsqrt.pop %v38
  %v41 = vrsqrt.pop %v39
  %v42 = vmul.f32 %v26, %v40
  %v43 = vmul.f32 %v27, %v41
  %v44 = vld [vmem:[%s1] sm:$0x1]
  %v46 = vlaneseq
  %v47 = vshrl.u32 %v46, 7
  %v48 = vsub.s32 0, %v47
  %v49 = vrot.slane %v44, %v48
  %v51 = vmul.f32 %v42, %v49
  %v52 = vmul.f32 %v43, %v49
  %v53 = vld [vmem:[%s2] sm:$0x1]
  %v55 = vlaneseq
  %v56 = vshrl.u32 %v55, 7
  %v57 = vsub.s32 0, %v56
  %v58 = vrot.slane %v53, %v57
  %v60 = vadd.f32 %v51, %v58
  %v61 = vadd.f32 %v52, %v58
  %62 = vst.msk [vmem:[%s3] sm:$0xff] %vm16, %v60
  %63 = vst.msk [vmem:[%s3 + $0x8] sm:$0xff] %vm16, %v61
  // Predicated region
  $region14: #{blip_decoder_forward.45} parent=0 // pred_check
    _
  $region15: #{blip_decoder_forward.45} parent=0 // pred_check_branch
    %65 = sbr.rel (0) target = $region17
  $region16: #{blip_decoder_forward.45} parent=0 // pred_region
    _
  $region17: #{blip_decoder_forward.45} parent=0 // pred_fallthru
    _
  // Predicated region
  $region18: #{blip_decoder_forward.45} parent=0 // pred_check
    _
  $region19: #{blip_decoder_forward.45} parent=0 // pred_check_branch
    %67 = sbr.rel (0) target = $region21
  $region20: #{blip_decoder_forward.45} parent=0 // pred_region
    _
  $region21: #{blip_decoder_forward.45} parent=0 // pred_fallthru
    _

// kernel: blip_decoder_forward.48
$region0: #{blip_decoder_forward.48}
  #allocation0 [shape = 'u32[]', space=smem, size = 0x4, offset = 0x4, fixed_abs, tag = 'smem constant byte address 0x4 - core index']
  #allocation1 [shape = 'u32[144,128]{1,0:T(1,128)}', space=vmem, size = 0x12000, scoped, tag = 'internal scratch']
  %s0 = inlined_call_operand.vmem [shape: bf16[16,32], index: 0, kind: input, shape index: {}]
  %s1 = inlined_call_operand.vmem [shape: bf16[32,32], index: 1, kind: input, shape index: {}]
  %s2 = inlined_call_operand.vmem [shape: f32[1,32], index: 2, kind: input, shape index: {}]
  %s3 = inlined_call_operand.vmem [shape: f32[16,32], index: 3, kind: input, shape index: {}]
  %s4 = inlined_call_operand.vmem [shape: f32[1,32], index: 4, kind: input, shape index: {}]
  %s5 = inlined_call_operand.vmem [shape: f32[1,32], index: 5, kind: input, shape index: {}]
  %s6 = inlined_call_operand.vmem [shape: f32[16,32], index: 6, kind: output, shape index: {}]
  %s7 = sld [smem:[#allocation0]]
  $region34: #{blip_decoder_forward.48} parent=0
    _
  %s9 = ssub.s32 1, %s7
  %s10 = scalar_select 0, %s9, %s7
  // Predicated region
  $region2: #{blip_decoder_forward.48} parent=0 // pred_check
    _
  $region3: #{blip_decoder_forward.48} parent=0 // pred_check_branch
    %12 = sbr.rel (0) target = $region5
  $region4: #{blip_decoder_forward.48} parent=0 // pred_region
    _
  $region5: #{blip_decoder_forward.48} parent=0 // pred_fallthru
    _
  // Predicated region
  $region6: #{blip_decoder_forward.48} parent=0 // pred_check
    _
  $region7: #{blip_decoder_forward.48} parent=0 // pred_check_branch
    %14 = sbr.rel (0) target = $region9
  $region8: #{blip_decoder_forward.48} parent=0 // pred_region
    _
  $region9: #{blip_decoder_forward.48} parent=0 // pred_fallthru
    _
  // Predicated region
  $region10: #{blip_decoder_forward.48} parent=0 // pred_check
    _
  $region11: #{blip_decoder_forward.48} parent=0 // pred_check_branch
    %16 = sbr.rel (0) target = $region13
  $region12: #{blip_decoder_forward.48} parent=0 // pred_region
    _
  $region13: #{blip_decoder_forward.48} parent=0 // pred_fallthru
    _
  // Predicated region
  $region14: #{blip_decoder_forward.48} parent=0 // pred_check
    _
  $region15: #{blip_decoder_forward.48} parent=0 // pred_check_branch
    %18 = sbr.rel (0) target = $region17
  $region16: #{blip_decoder_forward.48} parent=0 // pred_region
    _
  $region17: #{blip_decoder_forward.48} parent=0 // pred_fallthru
    _
  // Predicated region
  $region18: #{blip_decoder_forward.48} parent=0 // pred_check
    _
  $region19: #{blip_decoder_forward.48} parent=0 // pred_check_branch
    %20 = sbr.rel (0) target = $region21
  $region20: #{blip_decoder_forward.48} parent=0 // pred_region
    _
  $region21: #{blip_decoder_forward.48} parent=0 // pred_fallthru
    _
  // Predicated region
  $region22: #{blip_decoder_forward.48} parent=0 // pred_check
    _
  $region23: #{blip_decoder_forward.48} parent=0 // pred_check_branch
    %22 = sbr.rel (0) target = $region25
  $region24: #{blip_decoder_forward.48} parent=0 // pred_region
    _
  $region25: #{blip_decoder_forward.48} parent=0 // pred_fallthru
    _
  %v24 = vld [vmem:[%s0] sm:$0xf]
  %v25 = vld [vmem:[%s0 + $0x4] sm:$0xf]
  %v26 = vld [vmem:[%s1] sm:$0xf]
  %v27 = vld [vmem:[%s1 + $0x4] sm:$0xf]
  %v28 = vld [vmem:[%s1 + $0x8] sm:$0xf]
  %v29 = vld [vmem:[%s1 + $0xc] sm:$0xf]
  %v30 = vld [vmem:[%s2] sm:$0x1]
  %v32 = vlaneseq
  %v33 = vshrl.u32 %v32, 7
  %v34 = vsub.s32 0, %v33
  %v35 = vrot.slane %v30, %v34
  %v39 = vunpack.c.l.b16 %v24
  %v40 = vunpack.c.l.b16 %v25
  %v41 = vpack.c.b16 %v40, %v39
  %v46 = vunpack.c.l.b16 %v26
  %v47 = vunpack.c.l.b16 %v27
  %v48 = vunpack.c.l.b16 %v28
  %v49 = vunpack.c.l.b16 %v29
  %v50 = vpack.c.b16 %v47, %v46
  %v51 = vpack.c.b16 %v49, %v48
  %vm54 = vcmask 261120
  %v56 = vsel %vm54, %v41, 0
  %58 = vmatprep.subr.bf16.mxu0 0
  %59 = vmatpush1.bf16.msra.mxu0 %v50
  %60 = vmatprep.subr.bf16.mxu0 0
  %61 = vmatpush1.bf16.msra.mxu0 %v51
  %62 = vmatprep.subr.bf16.mxu0 0
  %63 = vmatpush1.bf16.msra.mxu0 0
  %64 = vmatprep.subr.bf16.mxu0 0
  %65 = vmatpush1.bf16.msra.mxu0 0
  %66 = vmatprep.subr.bf16.mxu0 0
  %67 = vmatpush1.bf16.msra.mxu0 0
  %68 = vmatprep.subr.bf16.mxu0 0
  %69 = vmatpush1.bf16.msra.mxu0 0
  %70 = vmatprep.subr.bf16.mxu0 0
  %71 = vmatpush1.bf16.msra.mxu0 0
  %72 = vmatprep.subr.bf16.mxu0 0
  %73 = vmatpush1.bf16.msra.mxu0 0
  %74 = vmatprep.subr.bf16.mxu0 0
  %75 = vmatpush1.bf16.msra.mxu0 0
  %76 = vmatprep.subr.bf16.mxu0 0
  %77 = vmatpush1.bf16.msra.mxu0 0
  %78 = vmatprep.subr.bf16.mxu0 0
  %79 = vmatpush1.bf16.msra.mxu0 0
  %80 = vmatprep.subr.bf16.mxu0 0
  %81 = vmatpush1.bf16.msra.mxu0 0
  %82 = vmatprep.subr.bf16.mxu0 0
  %83 = vmatpush1.bf16.msra.mxu0 0
  %84 = vmatprep.subr.bf16.mxu0 0
  %85 = vmatpush1.bf16.msra.mxu0 0
  %86 = vmatprep.subr.bf16.mxu0 0
  %87 = vmatpush1.bf16.msra.mxu0 0
  %88 = vmatprep.subr.bf16.mxu0 0
  %89 = vmatpush1.bf16.msra.mxu0 0
  %90 = vmatprep.mubr.bf16.mxu0 0
  %91 = vmatmul.mubr.bf16.gmra.mrb[0].mxu0 %v56
  %v92 = vpop.f32.mrb[0].mxu0
  %v93 = vadd.f32 %v35, %v92
  %v94 = vpop.f32.mrb[0].mxu0
  %v95 = vpop.f32.mrb[0].mxu0
  %v96 = vadd.f32 %v35, %v95
  %v97 = vpop.f32.mrb[0].mxu0
  %98 = vdwg.mxu0
  %v99 = vld [vmem:[%s3] sm:$0xff]
  %v100 = vld [vmem:[%s3 + $0x8] sm:$0xff]
  %v101 = vadd.f32 %v93, %v99
  %v102 = vadd.f32 %v96, %v100
  %v103 = vsel %vm54, %v101, 0.0
  %104 = vadd.xlane.f32.xlu0 %v103
  %v105 = vpop.xlane.xlu0 %104
  %v106 = vsel %vm54, %v102, 0.0
  %107 = vadd.xlane.f32.xlu0 %v106
  %v108 = vpop.xlane.xlu0 %107
  %v109 = vrcp.pop 32.0
  %v110 = vmul.f32 %v105, %v109
  %v111 = vmul.f32 %v108, %v109
  %v112 = vsub.f32 %v101, %v110
  %v113 = vsub.f32 %v102, %v111
  %v114 = vmul.f32 %v112, %v112
  %v115 = vmul.f32 %v113, %v113
  %v116 = vsel %vm54, %v114, 0.0
  %117 = vadd.xlane.f32.xlu0 %v116
  %v118 = vpop.xlane.xlu0 %117
  %v119 = vsel %vm54, %v115, 0.0
  %120 = vadd.xlane.f32.xlu0 %v119
  %v121 = vpop.xlane.xlu0 %120
  %v122 = vmul.f32 %v118, %v109
  %v123 = vmul.f32 %v121, %v109
  %v124 = vadd.f32 %v122, 1e-12
  %v125 = vadd.f32 %v123, 1e-12
  %v126 = vrsqrt.pop %v124
  %v127 = vrsqrt.pop %v125
  %v128 = vmul.f32 %v112, %v126
  %v129 = vmul.f32 %v113, %v127
  %v130 = vld [vmem:[%s4] sm:$0x1]
  %v132 = vlaneseq
  %v133 = vshrl.u32 %v132, 7
  %v134 = vsub.s32 0, %v133
  %v135 = vrot.slane %v130, %v134
  %v137 = vmul.f32 %v128, %v135
  %v138 = vmul.f32 %v129, %v135
  %v139 = vld [vmem:[%s5] sm:$0x1]
  %v141 = vlaneseq
  %v142 = vshrl.u32 %v141, 7
  %v143 = vsub.s32 0, %v142
  %v144 = vrot.slane %v139, %v143
  %v146 = vadd.f32 %v137, %v144
  %v147 = vadd.f32 %v138, %v144
  %148 = vst.msk [vmem:[%s6] sm:$0xff] %vm54, %v146
  %149 = vst.msk [vmem:[%s6 + $0x8] sm:$0xff] %vm54, %v147
  // Predicated region
  $region26: #{blip_decoder_forward.48} parent=0 // pred_check
    _
  $region27: #{blip_decoder_forward.48} parent=0 // pred_check_branch
    %151 = sbr.rel (0) target = $region29
  $region28: #{blip_decoder_forward.48} parent=0 // pred_region
    _
  $region29: #{blip_decoder_forward.48} parent=0 // pred_fallthru
    _
  // Predicated region
  $region30: #{blip_decoder_forward.48} parent=0 // pred_check
    _
  $region31: #{blip_decoder_forward.48} parent=0 // pred_check_branch
    %153 = sbr.rel (0) target = $region33
  $region32: #{blip_decoder_forward.48} parent=0 // pred_region
    _
  $region33: #{blip_decoder_forward.48} parent=0 // pred_fallthru
    _

// kernel: blip_decoder_forward.47
$region0: #{blip_decoder_forward.47}
  #allocation0 [shape = 'u32[]', space=smem, size = 0x4, offset = 0x4, fixed_abs, tag = 'smem constant byte address 0x4 - core index']
  #allocation1 [shape = 'u32[144,128]{1,0:T(1,128)}', space=vmem, size = 0x12000, scoped, tag = 'internal scratch']
  %s0 = inlined_call_operand.vmem [shape: bf16[2,8,96], index: 0, kind: input, shape index: {}, may-alias: {0,1}]
  %s1 = inlined_call_operand.vmem [shape: bf16[2,8,96], index: 1, kind: input, shape index: {}, may-alias: {0,1}]
  %s2 = inlined_call_operand.vmem [shape: f32[2,1,8], index: 2, kind: input, shape index: {}]
  %s3 = inlined_call_operand.vmem [shape: bf16[2,8,32], index: 3, kind: output, shape index: {}]
  %s4 = sld [smem:[#allocation0]]
  $region45: #{blip_decoder_forward.47} parent=0
    _
  %s6 = ssub.s32 1, %s4
  %s7 = scalar_select 0, %s6, %s4
  loop: start=0, step=1, limit=4
  $region2: #{blip_decoder_forward.47} parent=0 // loop_pre_header
    _
  $region3: #{blip_decoder_forward.47} parent=0 // loop_header
    %s9 = sphi 0, %s13
    %p10 = scmp.ge.s32.totalorder %s9, 4
    %s16 = sphi 0, %s28
    %s17 = sphi 0, %s24
    %s18 = sphi 0, %s16
    %s19 = sphi 0, %s17
    %s20 = sphi 0, %s18
    %s21 = sphi 0, %s19
    %s33 = sphi 0, %s35
    %s36 = sphi 0, %s33
    %s37 = sphi 0, %s36
    %s53 = sphi 0, %s37
    %s59 = sphi 0, %s61
    %s62 = sphi 0, %s59
    %s63 = sphi 0, %s62
    %s79 = sphi 0, %s63
    %s85 = sphi 0, %s87
    %s88 = sphi 0, %s85
    %s89 = sphi 0, %s88
    %s105 = sphi 0, %s89
    %s113 = sphi 0, %s115
    %s116 = sphi 0, %s113
    %s117 = sphi 0, %s116
    %s133 = sphi 0, %s117
  $region4: #{blip_decoder_forward.47} parent=0 // loop_header_branch
    %12 = sbr.rel (%p10) target = $region8
  $region5: #{blip_decoder_forward.47} parent=0 // loop_body
    %s14 = ssub.s32 %s9, 1
    %s15 = ssub.s32 %s9, 2
    %s22 = sadd.s32 1, %s17
    %p23 = scmp.ge.s32.totalorder %s22, 1
    %s24 = scalar_select %p23, 0, %s22
    %s25 = sadd.s32 1, %s16
    %s26 = scalar_select %p23, %s25, %s16
    %p27 = scmp.ge.s32.totalorder %s26, 2
    %s28 = scalar_select %p27, 0, %s26
    %s29 = ssub.s32 %s16, %s28
    %s30 = ssub.s32 %s17, %s24
    %s31 = sor.u32 %s29, %s30
    %p32 = scmp.eq.s32.totalorder %s31, 0
    %s34 = sadd.s32 %s33, 1
    %s35 = scalar_select %p32, %s33, %s34
    %p38 = pneg %p32
    %p39 = scmp.eq.s32.totalorder %s9, 1
    %p40 = por %p38, %p39
    %p41 = scmp.ne.s32.totalorder %s33, %s36
    %p42 = scmp.eq.s32.totalorder %s9, 0
    %p43 = por %p41, %p42
    %p44 = scmp.ne.s32.totalorder %s33, %s36
    %p45 = scmp.eq.s32.totalorder %s14, 1
    %p46 = por %p44, %p45
    %p47 = scmp.ne.s32.totalorder %s36, %s37
    %p48 = scmp.eq.s32.totalorder %s14, 0
    %p49 = por %p47, %p48
    %p50 = scmp.ne.s32.totalorder %s36, %s37
    %p51 = scmp.eq.s32.totalorder %s15, 1
    %p52 = por %p50, %p51
    %p54 = scmp.ne.s32.totalorder %s37, %s53
    %p55 = scmp.eq.s32.totalorder %s15, 0
    %p56 = por %p54, %p55
    %s57 = ssub.s32 %s16, %s28
    %p58 = scmp.eq.s32.totalorder %s57, 0
    %s60 = sadd.s32 %s59, 1
    %s61 = scalar_select %p58, %s59, %s60
    %p64 = pneg %p58
    %p65 = scmp.eq.s32.totalorder %s9, 1
    %p66 = por %p64, %p65
    %p67 = scmp.ne.s32.totalorder %s59, %s62
    %p68 = scmp.eq.s32.totalorder %s9, 0
    %p69 = por %p67, %p68
    %p70 = scmp.ne.s32.totalorder %s59, %s62
    %p71 = scmp.eq.s32.totalorder %s14, 1
    %p72 = por %p70, %p71
    %p73 = scmp.ne.s32.totalorder %s62, %s63
    %p74 = scmp.eq.s32.totalorder %s14, 0
    %p75 = por %p73, %p74
    %p76 = scmp.ne.s32.totalorder %s62, %s63
    %p77 = scmp.eq.s32.totalorder %s15, 1
    %p78 = por %p76, %p77
    %p80 = scmp.ne.s32.totalorder %s63, %s79
    %p81 = scmp.eq.s32.totalorder %s15, 0
    %p82 = por %p80, %p81
    %s83 = ssub.s32 %s16, %s28
    %p84 = scmp.eq.s32.totalorder %s83, 0
    %s86 = sadd.s32 %s85, 1
    %s87 = scalar_select %p84, %s85, %s86
    %p90 = pneg %p84
    %p91 = scmp.eq.s32.totalorder %s9, 1
    %p92 = por %p90, %p91
    %p93 = scmp.ne.s32.totalorder %s85, %s88
    %p94 = scmp.eq.s32.totalorder %s9, 0
    %p95 = por %p93, %p94
    %p96 = scmp.ne.s32.totalorder %s85, %s88
    %p97 = scmp.eq.s32.totalorder %s14, 1
    %p98 = por %p96, %p97
    %p99 = scmp.ne.s32.totalorder %s88, %s89
    %p100 = scmp.eq.s32.totalorder %s14, 0
    %p101 = por %p99, %p100
    %p102 = scmp.ne.s32.totalorder %s88, %s89
    %p103 = scmp.eq.s32.totalorder %s15, 1
    %p104 = por %p102, %p103
    %p106 = scmp.ne.s32.totalorder %s89, %s105
    %p107 = scmp.eq.s32.totalorder %s15, 0
    %p108 = por %p106, %p107
    %s109 = ssub.s32 %s16, %s28
    %s110 = ssub.s32 %s17, %s24
    %s111 = sor.u32 %s109, %s110
    %p112 = scmp.eq.s32.totalorder %s111, 0
    %s114 = sadd.s32 %s113, 1
    %s115 = scalar_select %p112, %s113, %s114
    %p118 = pneg %p112
    %p119 = scmp.eq.s32.totalorder %s9, 1
    %p120 = por %p118, %p119
    %p121 = scmp.ne.s32.totalorder %s113, %s116
    %p122 = scmp.eq.s32.totalorder %s9, 0
    %p123 = por %p121, %p122
    %p124 = scmp.ne.s32.totalorder %s113, %s116
    %p125 = scmp.eq.s32.totalorder %s14, 1
    %p126 = por %p124, %p125
    %p127 = scmp.ne.s32.totalorder %s116, %s117
    %p128 = scmp.eq.s32.totalorder %s14, 0
    %p129 = por %p127, %p128
    %p130 = scmp.ne.s32.totalorder %s116, %s117
    %p131 = scmp.eq.s32.totalorder %s15, 1
    %p132 = por %p130, %p131
    %p134 = scmp.ne.s32.totalorder %s117, %s133
    %p135 = scmp.eq.s32.totalorder %s15, 0
    %p136 = por %p134, %p135
    %p137 = scmp.le.s32.totalorder 1, %s9
    %p138 = scmp.lt.s32.totalorder %s9, 3
    %p139 = pnand %p137, %p138
    %p140 = pneg %p139
    // Predicated region
    $region9: #{blip_decoder_forward.47} parent=5 // pred_check
      _
    $region10: #{blip_decoder_forward.47} parent=5 // pred_check_branch
      %142 = sbr.rel (%p139) target = $region12
    $region11: #{blip_decoder_forward.47} parent=5 // pred_region
      %s143 = ssub.s32 %s9, 1
    $region12: #{blip_decoder_forward.47} parent=5 // pred_fallthru
      _
    %p144 = scmp.lt.s32.totalorder %s9, 2
    // Predicated region
    $region13: #{blip_decoder_forward.47} parent=5 // pred_check
      %p145 = pneg %p144
    $region14: #{blip_decoder_forward.47} parent=5 // pred_check_branch
      %147 = sbr.rel (%p145) target = $region16
    $region15: #{blip_decoder_forward.47} parent=5 // pred_region
      // Predicated region
      $region17: #{blip_decoder_forward.47} parent=15 // pred_check
        %p148 = pneg %p43
      $region18: #{blip_decoder_forward.47} parent=15 // pred_check_branch
        %150 = sbr.rel (%p148) target = $region20
      $region19: #{blip_decoder_forward.47} parent=15 // pred_region
        %p151 = scmp.lt.s32.totalorder %s16, 1
        %s152 = scalar_select %p151, %s16, 1
        %p153 = scmp.lt.s32.totalorder %s17, 0
        %s154 = scalar_select %p153, %s17, 0
        %s155 = sadd.s32 %s154, %s152
        %s156 = smul.addr %s155, 4
        %s157 = scalar_lea.vmem %s0, %s156
      $region20: #{blip_decoder_forward.47} parent=15 // pred_fallthru
        _
      // Predicated region
      $region21: #{blip_decoder_forward.47} parent=15 // pred_check
        %p158 = pneg %p69
      $region22: #{blip_decoder_forward.47} parent=15 // pred_check_branch
        %160 = sbr.rel (%p158) target = $region24
      $region23: #{blip_decoder_forward.47} parent=15 // pred_region
        %p161 = scmp.lt.s32.totalorder %s16, 1
        %s162 = scalar_select %p161, %s16, 1
        %s163 = smul.addr %s162, 4
        %s164 = scalar_lea.vmem %s1, %s163
      $region24: #{blip_decoder_forward.47} parent=15 // pred_fallthru
        _
      // Predicated region
      $region25: #{blip_decoder_forward.47} parent=15 // pred_check
        %p165 = pneg %p95
      $region26: #{blip_decoder_forward.47} parent=15 // pred_check_branch
        %167 = sbr.rel (%p165) target = $region28
      $region27: #{blip_decoder_forward.47} parent=15 // pred_region
        %p168 = scmp.lt.s32.totalorder %s16, 1
        %s169 = scalar_select %p168, %s16, 1
        %s170 = scalar_lea.vmem %s2, %s169
      $region28: #{blip_decoder_forward.47} parent=15 // pred_fallthru
        _
    $region16: #{blip_decoder_forward.47} parent=5 // pred_fallthru
      _
    %p171 = scmp.le.s32.totalorder 1, %s9
    %p172 = scmp.lt.s32.totalorder %s9, 3
    %p173 = pnand %p171, %p172
    %p174 = pneg %p173
    // Predicated region
    $region29: #{blip_decoder_forward.47} parent=5 // pred_check
      _
    $region30: #{blip_decoder_forward.47} parent=5 // pred_check_branch
      %176 = sbr.rel (%p173) target = $region32
    $region31: #{blip_decoder_forward.47} parent=5 // pred_region
      %s177 = ssub.s32 %s9, 1
      %p178 = scmp.lt.s32.totalorder %s18, 1
      %s179 = scalar_select %p178, %s18, 1
      %p180 = scmp.lt.s32.totalorder %s19, 0
      %s181 = scalar_select %p180, %s19, 0
      %s182 = sadd.s32 %s181, %s179
      %s183 = smul.addr %s182, 4
      %s184 = scalar_lea.vmem %s0, %s183
      %p185 = pneg %p49
      %p186 = pneg %p46
      %p187 = scmp.lt.s32.totalorder %s18, 1
      %s188 = scalar_select %p187, %s18, 1
      %s189 = smul.addr %s188, 4
      %s190 = scalar_lea.vmem %s1, %s189
      %p191 = pneg %p75
      %p192 = pneg %p72
      %p193 = scmp.lt.s32.totalorder %s18, 1
      %s194 = scalar_select %p193, %s18, 1
      %s195 = scalar_lea.vmem %s2, %s194
      %p196 = pneg %p101
      %p197 = pneg %p98
      %p198 = pneg %p129
      %p199 = pneg %p126
      %p200 = scmp.lt.s32.totalorder %s18, 1
      %s201 = scalar_select %p200, %s18, 1
      %p202 = scmp.lt.s32.totalorder %s19, 0
      %s203 = scalar_select %p202, %s19, 0
      %s204 = sadd.s32 %s203, %s201
      %s205 = smul.addr %s204, 4
      %s206 = scalar_lea.vmem %s3, %s205
      %p207 = scmp.lt.s32.totalorder %s18, 1
      %s208 = scalar_select %p207, %s18, 1
      %p209 = scmp.lt.s32.totalorder %s19, 0
      %s210 = scalar_select %p209, %s19, 0
      %s211 = sadd.s32 %s210, %s208
      %s212 = smul.addr %s211, 4
      %s213 = scalar_lea.vmem %s0, %s212
      %p214 = scmp.lt.s32.totalorder %s18, 1
      %s215 = scalar_select %p214, %s18, 1
      %s216 = smul.addr %s215, 4
      %s217 = scalar_lea.vmem %s1, %s216
      %p218 = scmp.lt.s32.totalorder %s18, 1
      %s219 = scalar_select %p218, %s18, 1
      %s220 = scalar_lea.vmem %s2, %s219
      %p221 = scmp.lt.s32.totalorder %s18, 1
      %s222 = scalar_select %p221, %s18, 1
      %p223 = scmp.lt.s32.totalorder %s19, 0
      %s224 = scalar_select %p223, %s19, 0
      %s225 = sadd.s32 %s224, %s222
      %s226 = smul.addr %s225, 4
      %s227 = scalar_lea.vmem %s3, %s226
      %v230 = vld [vmem:[%s213] sm:$0xf]
      %v231 = vmul.bf16 %v230, 1052065461
      %v232 = vld [vmem:[%s217] sm:$0xf]
      %v233 = vlaneseq
      %v234 = vand.u32 %v233, 127
      %v235 = vlaneseq
      %v236 = vshrl.u32 %v235, 7
      %s237 = smul.u32 %s19, 8
      %v238 = vstv %s237
      %v239 = vadd.s32 %v236, %v238
      %vm240 = vcmp.le.s32.totalorder %v234, %v239
      %v241 = vsel %vm240, 0.0, -10000.0
      %v242 = vld [vmem:[%s220] sm:$0x1]
      %v243 = vsub.f32 1.0, %v242
      %v244 = vmul.f32 %v243, -10000.0
      %v246 = vlaneseq
      %v247 = vshrl.u32 %v246, 7
      %v248 = vsub.s32 0, %v247
      %v249 = vrot.slane %v244, %v248
      %v251 = vadd.f32 %v241, %v249
      %v253 = vunpack.c.l.b16 %v232
      %v254 = vpack.c.b16 %v253, %v253
      %255 = vrot.lane.b32.xlu0 %v254, 96
      %v256 = vpop.permute.xlu0 %255
      %vm257 = vcmask 64512
      %v259 = vsel %vm257, %v231, 0
      %v262 = vsel %vm257, %v256, 0
      %264 = vmatprep.subr.bf16.mxu0 0
      %265 = vmatpush1.bf16.xpose.msra.mxu0 %v262
      %266 = vmatprep.subr.bf16.mxu0 0
      %267 = vmatpush1.bf16.xpose.msra.mxu0 0
      %268 = vmatprep.subr.bf16.mxu0 0
      %269 = vmatpush1.bf16.xpose.msra.mxu0 0
      %270 = vmatprep.subr.bf16.mxu0 0
      %271 = vmatpush1.bf16.xpose.msra.mxu0 0
      %272 = vmatprep.subr.bf16.mxu0 0
      %273 = vmatpush1.bf16.xpose.msra.mxu0 0
      %274 = vmatprep.subr.bf16.mxu0 0
      %275 = vmatpush1.bf16.xpose.msra.mxu0 0
      %276 = vmatprep.subr.bf16.mxu0 0
      %277 = vmatpush1.bf16.xpose.msra.mxu0 0
      %278 = vmatprep.subr.bf16.mxu0 0
      %279 = vmatpush1.bf16.xpose.msra.mxu0 0
      %280 = vmatprep.subr.bf16.mxu0 0
      %281 = vmatpush1.bf16.xpose.msra.mxu0 0
      %282 = vmatprep.subr.bf16.mxu0 0
      %283 = vmatpush1.bf16.xpose.msra.mxu0 0
      %284 = vmatprep.subr.bf16.mxu0 0
      %285 = vmatpush1.bf16.xpose.msra.mxu0 0
      %286 = vmatprep.subr.bf16.mxu0 0
      %287 = vmatpush1.bf16.xpose.msra.mxu0 0
      %288 = vmatprep.subr.bf16.mxu0 0
      %289 = vmatpush1.bf16.xpose.msra.mxu0 0
      %290 = vmatprep.subr.bf16.mxu0 0
      %291 = vmatpush1.bf16.xpose.msra.mxu0 0
      %292 = vmatprep.subr.bf16.mxu0 0
      %293 = vmatpush1.bf16.xpose.msra.mxu0 0
      %294 = vmatprep.subr.bf16.mxu0 0
      %295 = vmatpush1.bf16.xpose.msra.mxu0 0
      %296 = vmatprep.mubr.bf16.mxu0 0
      %297 = vmatmul.mubr.bf16.gmra.mrb[0].mxu0 %v259
      %v298 = vpop.f32.mrb[0].mxu0
      %v299 = vadd.f32 %v251, %v298
      %v300 = vpop.f32.mrb[0].mxu0
      %v301 = vpop.f32.mrb[0].mxu0
      %v302 = vpop.f32.mrb[0].mxu0
      %303 = vdwg.mxu0
      %v304 = vsel %vm257, %v299, -inf
      %305 = vmax.xlane.f32.xlu0 %v304
      %v306 = vpop.xlane.xlu0 %305
      %v307 = vsub.f32 %v299, %v306
      %v308 = vmul.f32 %v307, 1.442695
      %v309 = vpow.pop %v308
      %v310 = vsel %vm257, %v309, 0.0
      %311 = vadd.xlane.f32.xlu0 %v310
      %v312 = vpop.xlane.xlu0 %311
      %v313 = vrcp.pop %v312
      %v314 = vmul.f32 %v309, %v313
      %v315 = vpack.c.bf16 %v314, %v314
      %316 = vrot.lane.b32.xlu0 %v254, 64
      %v317 = vpop.permute.xlu0 %316
      %v319 = vsel %vm257, %v315, 0
      %vm321 = vcmask 1043456
      %v323 = vsel %vm321, %v317, 0
      %325 = vmatprep.subr.bf16.mxu0 0
      %326 = vmatpush1.bf16.msra.mxu0 %v323
      %327 = vmatprep.subr.bf16.mxu0 0
      %328 = vmatpush1.bf16.msra.mxu0 0
      %329 = vmatprep.subr.bf16.mxu0 0
      %330 = vmatpush1.bf16.msra.mxu0 0
      %331 = vmatprep.subr.bf16.mxu0 0
      %332 = vmatpush1.bf16.msra.mxu0 0
      %333 = vmatprep.subr.bf16.mxu0 0
      %334 = vmatpush1.bf16.msra.mxu0 0
      %335 = vmatprep.subr.bf16.mxu0 0
      %336 = vmatpush1.bf16.msra.mxu0 0
      %337 = vmatprep.subr.bf16.mxu0 0
      %338 = vmatpush1.bf16.msra.mxu0 0
      %339 = vmatprep.subr.bf16.mxu0 0
      %340 = vmatpush1.bf16.msra.mxu0 0
      %341 = vmatprep.subr.bf16.mxu0 0
      %342 = vmatpush1.bf16.msra.mxu0 0
      %343 = vmatprep.subr.bf16.mxu0 0
      %344 = vmatpush1.bf16.msra.mxu0 0
      %345 = vmatprep.subr.bf16.mxu0 0
      %346 = vmatpush1.bf16.msra.mxu0 0
      %347 = vmatprep.subr.bf16.mxu0 0
      %348 = vmatpush1.bf16.msra.mxu0 0
      %349 = vmatprep.subr.bf16.mxu0 0
      %350 = vmatpush1.bf16.msra.mxu0 0
      %351 = vmatprep.subr.bf16.mxu0 0
      %352 = vmatpush1.bf16.msra.mxu0 0
      %353 = vmatprep.subr.bf16.mxu0 0
      %354 = vmatpush1.bf16.msra.mxu0 0
      %355 = vmatprep.subr.bf16.mxu0 0
      %356 = vmatpush1.bf16.msra.mxu0 0
      %357 = vmatprep.mubr.bf16.mxu0 0
      %358 = vmatmul.mubr.bf16.gmra.mrb[0].mxu0 %v319
      %v359 = vpop.f32.mrb[0].mxu0
      %v360 = vadd.f32 0.0, %v359
      %v361 = vpop.f32.mrb[0].mxu0
      %v362 = vpop.f32.mrb[0].mxu0
      %v363 = vpop.f32.mrb[0].mxu0
      %364 = vdwg.mxu0
      %v366 = vunpack.c.l.b16 %v231
      %v367 = vpack.c.b16 %v366, %v366
      %368 = vrot.lane.b32.xlu0 %v367, 120
      %v369 = vpop.permute.xlu0 %368
      %370 = vrot.lane.b32.xlu0 %v254, 88
      %v371 = vpop.permute.xlu0 %370
      %v373 = vsel %vm257, %v369, 0
      %v376 = vsel %vm257, %v371, 0
      %378 = vmatprep.subr.bf16.mxu0 0
      %379 = vmatpush1.bf16.xpose.msra.mxu0 %v376
      %380 = vmatprep.subr.bf16.mxu0 0
      %381 = vmatpush1.bf16.xpose.msra.mxu0 0
      %382 = vmatprep.subr.bf16.mxu0 0
      %383 = vmatpush1.bf16.xpose.msra.mxu0 0
      %384 = vmatprep.subr.bf16.mxu0 0
      %385 = vmatpush1.bf16.xpose.msra.mxu0 0
      %386 = vmatprep.subr.bf16.mxu0 0
      %387 = vmatpush1.bf16.xpose.msra.mxu0 0
      %388 = vmatprep.subr.bf16.mxu0 0
      %389 = vmatpush1.bf16.xpose.msra.mxu0 0
      %390 = vmatprep.subr.bf16.mxu0 0
      %391 = vmatpush1.bf16.xpose.msra.mxu0 0
      %392 = vmatprep.subr.bf16.mxu0 0
      %393 = vmatpush1.bf16.xpose.msra.mxu0 0
      %394 = vmatprep.subr.bf16.mxu0 0
      %395 = vmatpush1.bf16.xpose.msra.mxu0 0
      %396 = vmatprep.subr.bf16.mxu0 0
      %397 = vmatpush1.bf16.xpose.msra.mxu0 0
      %398 = vmatprep.subr.bf16.mxu0 0
      %399 = vmatpush1.bf16.xpose.msra.mxu0 0
      %400 = vmatprep.subr.bf16.mxu0 0
      %401 = vmatpush1.bf16.xpose.msra.mxu0 0
      %402 = vmatprep.subr.bf16.mxu0 0
      %403 = vmatpush1.bf16.xpose.msra.mxu0 0
      %404 = vmatprep.subr.bf16.mxu0 0
      %405 = vmatpush1.bf16.xpose.msra.mxu0 0
      %406 = vmatprep.subr.bf16.mxu0 0
      %407 = vmatpush1.bf16.xpose.msra.mxu0 0
      %408 = vmatprep.subr.bf16.mxu0 0
      %409 = vmatpush1.bf16.xpose.msra.mxu0 0
      %410 = vmatprep.mubr.bf16.mxu0 0
      %411 = vmatmul.mubr.bf16.gmra.mrb[0].mxu0 %v373
      %v412 = vpop.f32.mrb[0].mxu0
      %v413 = vadd.f32 %v251, %v412
      %v414 = vpop.f32.mrb[0].mxu0
      %v415 = vpop.f32.mrb[0].mxu0
      %v416 = vpop.f32.mrb[0].mxu0
      %417 = vdwg.mxu0
      %v418 = vsel %vm257, %v413, -inf
      %419 = vmax.xlane.f32.xlu0 %v418
      %v420 = vpop.xlane.xlu0 %419
      %v421 = vsub.f32 %v413, %v420
      %v422 = vmul.f32 %v421, 1.442695
      %v423 = vpow.pop %v422
      %v424 = vsel %vm257, %v423, 0.0
      %425 = vadd.xlane.f32.xlu0 %v424
      %v426 = vpop.xlane.xlu0 %425
      %v427 = vrcp.pop %v426
      %v428 = vmul.f32 %v423, %v427
      %v429 = vpack.c.bf16 %v428, %v428
      %430 = vrot.lane.b32.xlu0 %v254, 56
      %v431 = vpop.permute.xlu0 %430
      %v433 = vsel %vm257, %v429, 0
      %v436 = vsel %vm321, %v431, 0
      %438 = vmatprep.subr.bf16.mxu0 0
      %439 = vmatpush1.bf16.msra.mxu0 %v436
      %440 = vmatprep.subr.bf16.mxu0 0
      %441 = vmatpush1.bf16.msra.mxu0 0
      %442 = vmatprep.subr.bf16.mxu0 0
      %443 = vmatpush1.bf16.msra.mxu0 0
      %444 = vmatprep.subr.bf16.mxu0 0
      %445 = vmatpush1.bf16.msra.mxu0 0
      %446 = vmatprep.subr.bf16.mxu0 0
      %447 = vmatpush1.bf16.msra.mxu0 0
      %448 = vmatprep.subr.bf16.mxu0 0
      %449 = vmatpush1.bf16.msra.mxu0 0
      %450 = vmatprep.subr.bf16.mxu0 0
      %451 = vmatpush1.bf16.msra.mxu0 0
      %452 = vmatprep.subr.bf16.mxu0 0
      %453 = vmatpush1.bf16.msra.mxu0 0
      %454 = vmatprep.subr.bf16.mxu0 0
      %455 = vmatpush1.bf16.msra.mxu0 0
      %456 = vmatprep.subr.bf16.mxu0 0
      %457 = vmatpush1.bf16.msra.mxu0 0
      %458 = vmatprep.subr.bf16.mxu0 0
      %459 = vmatpush1.bf16.msra.mxu0 0
      %460 = vmatprep.subr.bf16.mxu0 0
      %461 = vmatpush1.bf16.msra.mxu0 0
      %462 = vmatprep.subr.bf16.mxu0 0
      %463 = vmatpush1.bf16.msra.mxu0 0
      %464 = vmatprep.subr.bf16.mxu0 0
      %465 = vmatpush1.bf16.msra.mxu0 0
      %466 = vmatprep.subr.bf16.mxu0 0
      %467 = vmatpush1.bf16.msra.mxu0 0
      %468 = vmatprep.subr.bf16.mxu0 0
      %469 = vmatpush1.bf16.msra.mxu0 0
      %470 = vmatprep.mubr.bf16.mxu0 0
      %471 = vmatmul.mubr.bf16.gmra.mrb[0].mxu0 %v433
      %v472 = vpop.f32.mrb[0].mxu0
      %v473 = vadd.f32 0.0, %v472
      %v474 = vpop.f32.mrb[0].mxu0
      %v475 = vpop.f32.mrb[0].mxu0
      %v476 = vpop.f32.mrb[0].mxu0
      %477 = vdwg.mxu0
      %478 = vrot.lane.b32.xlu0 %v367, 112
      %v479 = vpop.permute.xlu0 %478
      %480 = vrot.lane.b32.xlu0 %v254, 80
      %v481 = vpop.permute.xlu0 %480
      %v483 = vsel %vm257, %v479, 0
      %v486 = vsel %vm257, %v481, 0
      %488 = vmatprep.subr.bf16.mxu0 0
      %489 = vmatpush1.bf16.xpose.msra.mxu0 %v486
      %490 = vmatprep.subr.bf16.mxu0 0
      %491 = vmatpush1.bf16.xpose.msra.mxu0 0
      %492 = vmatprep.subr.bf16.mxu0 0
      %493 = vmatpush1.bf16.xpose.msra.mxu0 0
      %494 = vmatprep.subr.bf16.mxu0 0
      %495 = vmatpush1.bf16.xpose.msra.mxu0 0
      %496 = vmatprep.subr.bf16.mxu0 0
      %497 = vmatpush1.bf16.xpose.msra.mxu0 0
      %498 = vmatprep.subr.bf16.mxu0 0
      %499 = vmatpush1.bf16.xpose.msra.mxu0 0
      %500 = vmatprep.subr.bf16.mxu0 0
      %501 = vmatpush1.bf16.xpose.msra.mxu0 0
      %502 = vmatprep.subr.bf16.mxu0 0
      %503 = vmatpush1.bf16.xpose.msra.mxu0 0
      %504 = vmatprep.subr.bf16.mxu0 0
      %505 = vmatpush1.bf16.xpose.msra.mxu0 0
      %506 = vmatprep.subr.bf16.mxu0 0
      %507 = vmatpush1.bf16.xpose.msra.mxu0 0
      %508 = vmatprep.subr.bf16.mxu0 0
      %509 = vmatpush1.bf16.xpose.msra.mxu0 0
      %510 = vmatprep.subr.bf16.mxu0 0
      %511 = vmatpush1.bf16.xpose.msra.mxu0 0
      %512 = vmatprep.subr.bf16.mxu0 0
      %513 = vmatpush1.bf16.xpose.msra.mxu0 0
      %514 = vmatprep.subr.bf16.mxu0 0
      %515 = vmatpush1.bf16.xpose.msra.mxu0 0
      %516 = vmatprep.subr.bf16.mxu0 0
      %517 = vmatpush1.bf16.xpose.msra.mxu0 0
      %518 = vmatprep.subr.bf16.mxu0 0
      %519 = vmatpush1.bf16.xpose.msra.mxu0 0
      %520 = vmatprep.mubr.bf16.mxu0 0
      %521 = vmatmul.mubr.bf16.gmra.mrb[0].mxu0 %v483
      %v522 = vpop.f32.mrb[0].mxu0
      %v523 = vadd.f32 %v251, %v522
      %v524 = vpop.f32.mrb[0].mxu0
      %v525 = vpop.f32.mrb[0].mxu0
      %v526 = vpop.f32.mrb[0].mxu0
      %527 = vdwg.mxu0
      %v528 = vsel %vm257, %v523, -inf
      %529 = vmax.xlane.f32.xlu0 %v528
      %v530 = vpop.xlane.xlu0 %529
      %v531 = vsub.f32 %v523, %v530
      %v532 = vmul.f32 %v531, 1.442695
      %v533 = vpow.pop %v532
      %v534 = vsel %vm257, %v533, 0.0
      %535 = vadd.xlane.f32.xlu0 %v534
      %v536 = vpop.xlane.xlu0 %535
      %v537 = vrcp.pop %v536
      %v538 = vmul.f32 %v533, %v537
      %v539 = vpack.c.bf16 %v538, %v538
      %540 = vrot.lane.b32.xlu0 %v254, 48
      %v541 = vpop.permute.xlu0 %540
      %v543 = vsel %vm257, %v539, 0
      %v546 = vsel %vm321, %v541, 0
      %548 = vmatprep.subr.bf16.mxu0 0
      %549 = vmatpush1.bf16.msra.mxu0 %v546
      %550 = vmatprep.subr.bf16.mxu0 0
      %551 = vmatpush1.bf16.msra.mxu0 0
      %552 = vmatprep.subr.bf16.mxu0 0
      %553 = vmatpush1.bf16.msra.mxu0 0
      %554 = vmatprep.subr.bf16.mxu0 0
      %555 = vmatpush1.bf16.msra.mxu0 0
      %556 = vmatprep.subr.bf16.mxu0 0
      %557 = vmatpush1.bf16.msra.mxu0 0
      %558 = vmatprep.subr.bf16.mxu0 0
      %559 = vmatpush1.bf16.msra.mxu0 0
      %560 = vmatprep.subr.bf16.mxu0 0
      %561 = vmatpush1.bf16.msra.mxu0 0
      %562 = vmatprep.subr.bf16.mxu0 0
      %563 = vmatpush1.bf16.msra.mxu0 0
      %564 = vmatprep.subr.bf16.mxu0 0
      %565 = vmatpush1.bf16.msra.mxu0 0
      %566 = vmatprep.subr.bf16.mxu0 0
      %567 = vmatpush1.bf16.msra.mxu0 0
      %568 = vmatprep.subr.bf16.mxu0 0
      %569 = vmatpush1.bf16.msra.mxu0 0
      %570 = vmatprep.subr.bf16.mxu0 0
      %571 = vmatpush1.bf16.msra.mxu0 0
      %572 = vmatprep.subr.bf16.mxu0 0
      %573 = vmatpush1.bf16.msra.mxu0 0
      %574 = vmatprep.subr.bf16.mxu0 0
      %575 = vmatpush1.bf16.msra.mxu0 0
      %576 = vmatprep.subr.bf16.mxu0 0
      %577 = vmatpush1.bf16.msra.mxu0 0
      %578 = vmatprep.subr.bf16.mxu0 0
      %579 = vmatpush1.bf16.msra.mxu0 0
      %580 = vmatprep.mubr.bf16.mxu0 0
      %581 = vmatmul.mubr.bf16.gmra.mrb[0].mxu0 %v543
      %v582 = vpop.f32.mrb[0].mxu0
      %v583 = vadd.f32 0.0, %v582
      %v584 = vpop.f32.mrb[0].mxu0
      %v585 = vpop.f32.mrb[0].mxu0
      %v586 = vpop.f32.mrb[0].mxu0
      %587 = vdwg.mxu0
      %588 = vrot.lane.b32.xlu0 %v367, 104
      %v589 = vpop.permute.xlu0 %588
      %590 = vrot.lane.b32.xlu0 %v254, 72
      %v591 = vpop.permute.xlu0 %590
      %v593 = vsel %vm257, %v589, 0
      %v596 = vsel %vm257, %v591, 0
      %598 = vmatprep.subr.bf16.mxu0 0
      %599 = vmatpush1.bf16.xpose.msra.mxu0 %v596
      %600 = vmatprep.subr.bf16.mxu0 0
      %601 = vmatpush1.bf16.xpose.msra.mxu0 0
      %602 = vmatprep.subr.bf16.mxu0 0
      %603 = vmatpush1.bf16.xpose.msra.mxu0 0
      %604 = vmatprep.subr.bf16.mxu0 0
      %605 = vmatpush1.bf16.xpose.msra.mxu0 0
      %606 = vmatprep.subr.bf16.mxu0 0
      %607 = vmatpush1.bf16.xpose.msra.mxu0 0
      %608 = vmatprep.subr.bf16.mxu0 0
      %609 = vmatpush1.bf16.xpose.msra.mxu0 0
      %610 = vmatprep.subr.bf16.mxu0 0
      %611 = vmatpush1.bf16.xpose.msra.mxu0 0
      %612 = vmatprep.subr.bf16.mxu0 0
      %613 = vmatpush1.bf16.xpose.msra.mxu0 0
      %614 = vmatprep.subr.bf16.mxu0 0
      %615 = vmatpush1.bf16.xpose.msra.mxu0 0
      %616 = vmatprep.subr.bf16.mxu0 0
      %617 = vmatpush1.bf16.xpose.msra.mxu0 0
      %618 = vmatprep.subr.bf16.mxu0 0
      %619 = vmatpush1.bf16.xpose.msra.mxu0 0
      %620 = vmatprep.subr.bf16.mxu0 0
      %621 = vmatpush1.bf16.xpose.msra.mxu0 0
      %622 = vmatprep.subr.bf16.mxu0 0
      %623 = vmatpush1.bf16.xpose.msra.mxu0 0
      %624 = vmatprep.subr.bf16.mxu0 0
      %625 = vmatpush1.bf16.xpose.msra.mxu0 0
      %626 = vmatprep.subr.bf16.mxu0 0
      %627 = vmatpush1.bf16.xpose.msra.mxu0 0
      %628 = vmatprep.subr.bf16.mxu0 0
      %629 = vmatpush1.bf16.xpose.msra.mxu0 0
      %630 = vmatprep.mubr.bf16.mxu0 0
      %631 = vmatmul.mubr.bf16.gmra.mrb[0].mxu0 %v593
      %v632 = vpop.f32.mrb[0].mxu0
      %v633 = vadd.f32 %v251, %v632
      %v634 = vpop.f32.mrb[0].mxu0
      %v635 = vpop.f32.mrb[0].mxu0
      %v636 = vpop.f32.mrb[0].mxu0
      %637 = vdwg.mxu0
      %v638 = vsel %vm257, %v633, -inf
      %639 = vmax.xlane.f32.xlu0 %v638
      %v640 = vpop.xlane.xlu0 %639
      %v641 = vsub.f32 %v633, %v640
      %v642 = vmul.f32 %v641, 1.442695
      %v643 = vpow.pop %v642
      %v644 = vsel %vm257, %v643, 0.0
      %645 = vadd.xlane.f32.xlu0 %v644
      %v646 = vpop.xlane.xlu0 %645
      %v647 = vrcp.pop %v646
      %v648 = vmul.f32 %v643, %v647
      %v649 = vpack.c.bf16 %v648, %v648
      %650 = vrot.lane.b32.xlu0 %v254, 40
      %v651 = vpop.permute.xlu0 %650
      %v653 = vsel %vm257, %v649, 0
      %v656 = vsel %vm321, %v651, 0
      %658 = vmatprep.subr.bf16.mxu0 0
      %659 = vmatpush1.bf16.msra.mxu0 %v656
      %660 = vmatprep.subr.bf16.mxu0 0
      %661 = vmatpush1.bf16.msra.mxu0 0
      %662 = vmatprep.subr.bf16.mxu0 0
      %663 = vmatpush1.bf16.msra.mxu0 0
      %664 = vmatprep.subr.bf16.mxu0 0
      %665 = vmatpush1.bf16.msra.mxu0 0
      %666 = vmatprep.subr.bf16.mxu0 0
      %667 = vmatpush1.bf16.msra.mxu0 0
      %668 = vmatprep.subr.bf16.mxu0 0
      %669 = vmatpush1.bf16.msra.mxu0 0
      %670 = vmatprep.subr.bf16.mxu0 0
      %671 = vmatpush1.bf16.msra.mxu0 0
      %672 = vmatprep.subr.bf16.mxu0 0
      %673 = vmatpush1.bf16.msra.mxu0 0
      %674 = vmatprep.subr.bf16.mxu0 0
      %675 = vmatpush1.bf16.msra.mxu0 0
      %676 = vmatprep.subr.bf16.mxu0 0
      %677 = vmatpush1.bf16.msra.mxu0 0
      %678 = vmatprep.subr.bf16.mxu0 0
      %679 = vmatpush1.bf16.msra.mxu0 0
      %680 = vmatprep.subr.bf16.mxu0 0
      %681 = vmatpush1.bf16.msra.mxu0 0
      %682 = vmatprep.subr.bf16.mxu0 0
      %683 = vmatpush1.bf16.msra.mxu0 0
      %684 = vmatprep.subr.bf16.mxu0 0
      %685 = vmatpush1.bf16.msra.mxu0 0
      %686 = vmatprep.subr.bf16.mxu0 0
      %687 = vmatpush1.bf16.msra.mxu0 0
      %688 = vmatprep.subr.bf16.mxu0 0
      %689 = vmatpush1.bf16.msra.mxu0 0
      %690 = vmatprep.mubr.bf16.mxu0 0
      %691 = vmatmul.mubr.bf16.gmra.mrb[0].mxu0 %v653
      %v692 = vpop.f32.mrb[0].mxu0
      %v693 = vadd.f32 0.0, %v692
      %v694 = vpop.f32.mrb[0].mxu0
      %v695 = vpop.f32.mrb[0].mxu0
      %v696 = vpop.f32.mrb[0].mxu0
      %697 = vdwg.mxu0
      %699 = vrot.lane.b32.xlu0 %v473, 8
      %v700 = vpop.permute.xlu0 %699
      %703 = vrot.lane.b32.xlu0 %v583, 16
      %v704 = vpop.permute.xlu0 %703
      %707 = vrot.lane.b32.xlu0 %v693, 24
      %v708 = vpop.permute.xlu0 %707
      %v710 = vsel %vm257, %v360, %v700
      %vm711 = vcmask 130048
      %v712 = vsel %vm711, %v710, %v704
      %vm713 = vcmask 195584
      %v714 = vsel %vm713, %v712, %v708
      %v715 = vpack.c.bf16 %v714, %v714
      %vm716 = vcmask 257024
      %717 = vst.msk [vmem:[%s227] sm:$0xf] %vm716, %v715
      %p718 = scmp.lt.s32.totalorder %s18, 1
      %s719 = scalar_select %p718, %s18, 1
      %p720 = scmp.lt.s32.totalorder %s19, 0
      %s721 = scalar_select %p720, %s19, 0
      %s722 = sadd.s32 %s721, %s719
      %s723 = smul.addr %s722, 4
      %s724 = scalar_lea.vmem %s3, %s723
      // Predicated region
      $region33: #{blip_decoder_forward.47} parent=31 // pred_check
        %p725 = pneg %p126
      $region34: #{blip_decoder_forward.47} parent=31 // pred_check_branch
        %727 = sbr.rel (%p725) target = $region36
      $region35: #{blip_decoder_forward.47} parent=31 // pred_region
        _
      $region36: #{blip_decoder_forward.47} parent=31 // pred_fallthru
        _
    $region32: #{blip_decoder_forward.47} parent=5 // pred_fallthru
      _
    %p728 = scmp.le.s32.totalorder 2, %s9
    // Predicated region
    $region37: #{blip_decoder_forward.47} parent=5 // pred_check
      %p729 = pneg %p728
    $region38: #{blip_decoder_forward.47} parent=5 // pred_check_branch
      %731 = sbr.rel (%p729) target = $region40
    $region39: #{blip_decoder_forward.47} parent=5 // pred_region
      %s732 = ssub.s32 %s9, 2
      // Predicated region
      $region41: #{blip_decoder_forward.47} parent=39 // pred_check
        %p733 = pneg %p132
      $region42: #{blip_decoder_forward.47} parent=39 // pred_check_branch
        %735 = sbr.rel (%p733) target = $region44
      $region43: #{blip_decoder_forward.47} parent=39 // pred_region
        %p736 = scmp.lt.s32.totalorder %s20, 1
        %s737 = scalar_select %p736, %s20, 1
        %p738 = scmp.lt.s32.totalorder %s21, 0
        %s739 = scalar_select %p738, %s21, 0
        %s740 = sadd.s32 %s739, %s737
        %s741 = smul.addr %s740, 4
        %s742 = scalar_lea.vmem %s3, %s741
      $region44: #{blip_decoder_forward.47} parent=39 // pred_fallthru
        _
    $region40: #{blip_decoder_forward.47} parent=5 // pred_fallthru
      _
  $region6: #{blip_decoder_forward.47} parent=0 // loop_footer
    %s13 = sadd.s32 1, %s9
  $region7: #{blip_decoder_forward.47} parent=0 // loop_footer_branch
    %8 = sbr.rel target = $region3
  $region8: #{blip_decoder_forward.47} parent=0 // loop_exit
    _

// kernel: blip_decoder_forward.51
$region0: #{blip_decoder_forward.51}
  #allocation0 [shape = 'u32[]', space=smem, size = 0x4, offset = 0x4, fixed_abs, tag = 'smem constant byte address 0x4 - core index']
  #allocation1 [shape = 'u32[144,128]{1,0:T(1,128)}', space=vmem, size = 0x12000, scoped, tag = 'internal scratch']
  %s0 = inlined_call_operand.vmem [shape: bf16[2,8,32], index: 0, kind: input, shape index: {}]
  %s1 = inlined_call_operand.vmem [shape: bf16[2,5,64], index: 1, kind: input, shape index: {}]
  %s2 = inlined_call_operand.vmem [shape: bf16[2,8,32], index: 2, kind: output, shape index: {}]
  %s3 = sld [smem:[#allocation0]]
  $region41: #{blip_decoder_forward.51} parent=0
    _
  %s5 = ssub.s32 1, %s3
  %s6 = scalar_select 0, %s5, %s3
  loop: start=0, step=1, limit=4
  $region2: #{blip_decoder_forward.51} parent=0 // loop_pre_header
    _
  $region3: #{blip_decoder_forward.51} parent=0 // loop_header
    %s8 = sphi 0, %s12
    %p9 = scmp.ge.s32.totalorder %s8, 4
    %s15 = sphi 0, %s27
    %s16 = sphi 0, %s23
    %s17 = sphi 0, %s15
    %s18 = sphi 0, %s16
    %s19 = sphi 0, %s17
    %s20 = sphi 0, %s18
    %s32 = sphi 0, %s34
    %s35 = sphi 0, %s32
    %s36 = sphi 0, %s35
    %s52 = sphi 0, %s36
    %s58 = sphi 0, %s60
    %s61 = sphi 0, %s58
    %s62 = sphi 0, %s61
    %s78 = sphi 0, %s62
    %s86 = sphi 0, %s88
    %s89 = sphi 0, %s86
    %s90 = sphi 0, %s89
    %s106 = sphi 0, %s90
  $region4: #{blip_decoder_forward.51} parent=0 // loop_header_branch
    %11 = sbr.rel (%p9) target = $region8
  $region5: #{blip_decoder_forward.51} parent=0 // loop_body
    %s13 = ssub.s32 %s8, 1
    %s14 = ssub.s32 %s8, 2
    %s21 = sadd.s32 1, %s16
    %p22 = scmp.ge.s32.totalorder %s21, 1
    %s23 = scalar_select %p22, 0, %s21
    %s24 = sadd.s32 1, %s15
    %s25 = scalar_select %p22, %s24, %s15
    %p26 = scmp.ge.s32.totalorder %s25, 2
    %s27 = scalar_select %p26, 0, %s25
    %s28 = ssub.s32 %s15, %s27
    %s29 = ssub.s32 %s16, %s23
    %s30 = sor.u32 %s28, %s29
    %p31 = scmp.eq.s32.totalorder %s30, 0
    %s33 = sadd.s32 %s32, 1
    %s34 = scalar_select %p31, %s32, %s33
    %p37 = pneg %p31
    %p38 = scmp.eq.s32.totalorder %s8, 1
    %p39 = por %p37, %p38
    %p40 = scmp.ne.s32.totalorder %s32, %s35
    %p41 = scmp.eq.s32.totalorder %s8, 0
    %p42 = por %p40, %p41
    %p43 = scmp.ne.s32.totalorder %s32, %s35
    %p44 = scmp.eq.s32.totalorder %s13, 1
    %p45 = por %p43, %p44
    %p46 = scmp.ne.s32.totalorder %s35, %s36
    %p47 = scmp.eq.s32.totalorder %s13, 0
    %p48 = por %p46, %p47
    %p49 = scmp.ne.s32.totalorder %s35, %s36
    %p50 = scmp.eq.s32.totalorder %s14, 1
    %p51 = por %p49, %p50
    %p53 = scmp.ne.s32.totalorder %s36, %s52
    %p54 = scmp.eq.s32.totalorder %s14, 0
    %p55 = por %p53, %p54
    %s56 = ssub.s32 %s15, %s27
    %p57 = scmp.eq.s32.totalorder %s56, 0
    %s59 = sadd.s32 %s58, 1
    %s60 = scalar_select %p57, %s58, %s59
    %p63 = pneg %p57
    %p64 = scmp.eq.s32.totalorder %s8, 1
    %p65 = por %p63, %p64
    %p66 = scmp.ne.s32.totalorder %s58, %s61
    %p67 = scmp.eq.s32.totalorder %s8, 0
    %p68 = por %p66, %p67
    %p69 = scmp.ne.s32.totalorder %s58, %s61
    %p70 = scmp.eq.s32.totalorder %s13, 1
    %p71 = por %p69, %p70
    %p72 = scmp.ne.s32.totalorder %s61, %s62
    %p73 = scmp.eq.s32.totalorder %s13, 0
    %p74 = por %p72, %p73
    %p75 = scmp.ne.s32.totalorder %s61, %s62
    %p76 = scmp.eq.s32.totalorder %s14, 1
    %p77 = por %p75, %p76
    %p79 = scmp.ne.s32.totalorder %s62, %s78
    %p80 = scmp.eq.s32.totalorder %s14, 0
    %p81 = por %p79, %p80
    %s82 = ssub.s32 %s15, %s27
    %s83 = ssub.s32 %s16, %s23
    %s84 = sor.u32 %s82, %s83
    %p85 = scmp.eq.s32.totalorder %s84, 0
    %s87 = sadd.s32 %s86, 1
    %s88 = scalar_select %p85, %s86, %s87
    %p91 = pneg %p85
    %p92 = scmp.eq.s32.totalorder %s8, 1
    %p93 = por %p91, %p92
    %p94 = scmp.ne.s32.totalorder %s86, %s89
    %p95 = scmp.eq.s32.totalorder %s8, 0
    %p96 = por %p94, %p95
    %p97 = scmp.ne.s32.totalorder %s86, %s89
    %p98 = scmp.eq.s32.totalorder %s13, 1
    %p99 = por %p97, %p98
    %p100 = scmp.ne.s32.totalorder %s89, %s90
    %p101 = scmp.eq.s32.totalorder %s13, 0
    %p102 = por %p100, %p101
    %p103 = scmp.ne.s32.totalorder %s89, %s90
    %p104 = scmp.eq.s32.totalorder %s14, 1
    %p105 = por %p103, %p104
    %p107 = scmp.ne.s32.totalorder %s90, %s106
    %p108 = scmp.eq.s32.totalorder %s14, 0
    %p109 = por %p107, %p108
    %p110 = scmp.le.s32.totalorder 1, %s8
    %p111 = scmp.lt.s32.totalorder %s8, 3
    %p112 = pnand %p110, %p111
    %p113 = pneg %p112
    // Predicated region
    $region9: #{blip_decoder_forward.51} parent=5 // pred_check
      _
    $region10: #{blip_decoder_forward.51} parent=5 // pred_check_branch
      %115 = sbr.rel (%p112) target = $region12
    $region11: #{blip_decoder_forward.51} parent=5 // pred_region
      %s116 = ssub.s32 %s8, 1
    $region12: #{blip_decoder_forward.51} parent=5 // pred_fallthru
      _
    %p117 = scmp.lt.s32.totalorder %s8, 2
    // Predicated region
    $region13: #{blip_decoder_forward.51} parent=5 // pred_check
      %p118 = pneg %p117
    $region14: #{blip_decoder_forward.51} parent=5 // pred_check_branch
      %120 = sbr.rel (%p118) target = $region16
    $region15: #{blip_decoder_forward.51} parent=5 // pred_region
      // Predicated region
      $region17: #{blip_decoder_forward.51} parent=15 // pred_check
        %p121 = pneg %p42
      $region18: #{blip_decoder_forward.51} parent=15 // pred_check_branch
        %123 = sbr.rel (%p121) target = $region20
      $region19: #{blip_decoder_forward.51} parent=15 // pred_region
        %p124 = scmp.lt.s32.totalorder %s15, 1
        %s125 = scalar_select %p124, %s15, 1
        %p126 = scmp.lt.s32.totalorder %s16, 0
        %s127 = scalar_select %p126, %s16, 0
        %s128 = sadd.s32 %s127, %s125
        %s129 = smul.addr %s128, 4
        %s130 = scalar_lea.vmem %s0, %s129
      $region20: #{blip_decoder_forward.51} parent=15 // pred_fallthru
        _
      // Predicated region
      $region21: #{blip_decoder_forward.51} parent=15 // pred_check
        %p131 = pneg %p68
      $region22: #{blip_decoder_forward.51} parent=15 // pred_check_branch
        %133 = sbr.rel (%p131) target = $region24
      $region23: #{blip_decoder_forward.51} parent=15 // pred_region
        %p134 = scmp.lt.s32.totalorder %s15, 1
        %s135 = scalar_select %p134, %s15, 1
        %s136 = smul.addr %s135, 4
        %s137 = scalar_lea.vmem %s1, %s136
      $region24: #{blip_decoder_forward.51} parent=15 // pred_fallthru
        _
    $region16: #{blip_decoder_forward.51} parent=5 // pred_fallthru
      _
    %p138 = scmp.le.s32.totalorder 1, %s8
    %p139 = scmp.lt.s32.totalorder %s8, 3
    %p140 = pnand %p138, %p139
    %p141 = pneg %p140
    // Predicated region
    $region25: #{blip_decoder_forward.51} parent=5 // pred_check
      _
    $region26: #{blip_decoder_forward.51} parent=5 // pred_check_branch
      %143 = sbr.rel (%p140) target = $region28
    $region27: #{blip_decoder_forward.51} parent=5 // pred_region
      %s144 = ssub.s32 %s8, 1
      %p145 = scmp.lt.s32.totalorder %s17, 1
      %s146 = scalar_select %p145, %s17, 1
      %p147 = scmp.lt.s32.totalorder %s18, 0
      %s148 = scalar_select %p147, %s18, 0
      %s149 = sadd.s32 %s148, %s146
      %s150 = smul.addr %s149, 4
      %s151 = scalar_lea.vmem %s0, %s150
      %p152 = pneg %p48
      %p153 = pneg %p45
      %p154 = scmp.lt.s32.totalorder %s17, 1
      %s155 = scalar_select %p154, %s17, 1
      %s156 = smul.addr %s155, 4
      %s157 = scalar_lea.vmem %s1, %s156
      %p158 = pneg %p74
      %p159 = pneg %p71
      %p160 = pneg %p102
      %p161 = pneg %p99
      %p162 = scmp.lt.s32.totalorder %s17, 1
      %s163 = scalar_select %p162, %s17, 1
      %p164 = scmp.lt.s32.totalorder %s18, 0
      %s165 = scalar_select %p164, %s18, 0
      %s166 = sadd.s32 %s165, %s163
      %s167 = smul.addr %s166, 4
      %s168 = scalar_lea.vmem %s2, %s167
      %p169 = scmp.lt.s32.totalorder %s17, 1
      %s170 = scalar_select %p169, %s17, 1
      %p171 = scmp.lt.s32.totalorder %s18, 0
      %s172 = scalar_select %p171, %s18, 0
      %s173 = sadd.s32 %s172, %s170
      %s174 = smul.addr %s173, 4
      %s175 = scalar_lea.vmem %s0, %s174
      %p176 = scmp.lt.s32.totalorder %s17, 1
      %s177 = scalar_select %p176, %s17, 1
      %s178 = smul.addr %s177, 4
      %s179 = scalar_lea.vmem %s1, %s178
      %p180 = scmp.lt.s32.totalorder %s17, 1
      %s181 = scalar_select %p180, %s17, 1
      %p182 = scmp.lt.s32.totalorder %s18, 0
      %s183 = scalar_select %p182, %s18, 0
      %s184 = sadd.s32 %s183, %s181
      %s185 = smul.addr %s184, 4
      %s186 = scalar_lea.vmem %s2, %s185
      %v189 = vld [vmem:[%s175] sm:$0xf]
      %v190 = vmul.bf16 %v189, 1052065461
      %v191 = vld [vmem:[%s179] sm:$0x7]
      %vm192 = vcmask 64512
      %v194 = vsel %vm192, %v190, 0
      %v197 = vsel %vm192, %v191, 0
      %199 = vmatprep.subr.bf16.mxu0 0
      %200 = vmatpush1.bf16.xpose.msra.mxu0 %v197
      %201 = vmatprep.subr.bf16.mxu0 0
      %202 = vmatpush1.bf16.xpose.msra.mxu0 0
      %203 = vmatprep.subr.bf16.mxu0 0
      %204 = vmatpush1.bf16.xpose.msra.mxu0 0
      %205 = vmatprep.subr.bf16.mxu0 0
      %206 = vmatpush1.bf16.xpose.msra.mxu0 0
      %207 = vmatprep.subr.bf16.mxu0 0
      %208 = vmatpush1.bf16.xpose.msra.mxu0 0
      %209 = vmatprep.subr.bf16.mxu0 0
      %210 = vmatpush1.bf16.xpose.msra.mxu0 0
      %211 = vmatprep.subr.bf16.mxu0 0
      %212 = vmatpush1.bf16.xpose.msra.mxu0 0
      %213 = vmatprep.subr.bf16.mxu0 0
      %214 = vmatpush1.bf16.xpose.msra.mxu0 0
      %215 = vmatprep.subr.bf16.mxu0 0
      %216 = vmatpush1.bf16.xpose.msra.mxu0 0
      %217 = vmatprep.subr.bf16.mxu0 0
      %218 = vmatpush1.bf16.xpose.msra.mxu0 0
      %219 = vmatprep.subr.bf16.mxu0 0
      %220 = vmatpush1.bf16.xpose.msra.mxu0 0
      %221 = vmatprep.subr.bf16.mxu0 0
      %222 = vmatpush1.bf16.xpose.msra.mxu0 0
      %223 = vmatprep.subr.bf16.mxu0 0
      %224 = vmatpush1.bf16.xpose.msra.mxu0 0
      %225 = vmatprep.subr.bf16.mxu0 0
      %226 = vmatpush1.bf16.xpose.msra.mxu0 0
      %227 = vmatprep.subr.bf16.mxu0 0
      %228 = vmatpush1.bf16.xpose.msra.mxu0 0
      %229 = vmatprep.subr.bf16.mxu0 0
      %230 = vmatpush1.bf16.xpose.msra.mxu0 0
      %231 = vmatprep.mubr.bf16.mxu0 0
      %232 = vmatmul.mubr.bf16.gmra.mrb[0].mxu0 %v194
      %v233 = vpop.f32.mrb[0].mxu0
      %v234 = vadd.f32 0.0, %v233
      %v235 = vpop.f32.mrb[0].mxu0
      %v236 = vpop.f32.mrb[0].mxu0
      %v237 = vpop.f32.mrb[0].mxu0
      %238 = vdwg.mxu0
      %vm239 = vcmask 39936
      %v240 = vsel %vm239, %v234, -inf
      %241 = vmax.xlane.f32.xlu0 %v240
      %v242 = vpop.xlane.xlu0 %241
      %v243 = vsub.f32 %v234, %v242
      %v244 = vmul.f32 %v243, 1.442695
      %v245 = vpow.pop %v244
      %v246 = vsel %vm239, %v245, 0.0
      %247 = vadd.xlane.f32.xlu0 %v246
      %v248 = vpop.xlane.xlu0 %247
      %v249 = vrcp.pop %v248
      %v250 = vmul.f32 %v245, %v249
      %v251 = vpack.c.bf16 %v250, %v250
      %v253 = vunpack.c.l.b16 %v191
      %v254 = vpack.c.b16 %v253, %v253
      %255 = vrot.lane.b32.xlu0 %v254, 96
      %v256 = vpop.permute.xlu0 %255
      %v258 = vsel %vm239, %v251, 0
      %vm260 = vcmask 1041408
      %vm261 = vcmask 1042432
      %v262 = vsel %vm260, 4294967295, 65535
      %v263 = vsel %vm261, %v262, 0
      %v265 = vand.u32 %v256, %v263
      %267 = vmatprep.subr.bf16.mxu0 0
      %268 = vmatpush1.bf16.msra.mxu0 %v265
      %269 = vmatprep.subr.bf16.mxu0 0
      %270 = vmatpush1.bf16.msra.mxu0 0
      %271 = vmatprep.subr.bf16.mxu0 0
      %272 = vmatpush1.bf16.msra.mxu0 0
      %273 = vmatprep.subr.bf16.mxu0 0
      %274 = vmatpush1.bf16.msra.mxu0 0
      %275 = vmatprep.subr.bf16.mxu0 0
      %276 = vmatpush1.bf16.msra.mxu0 0
      %277 = vmatprep.subr.bf16.mxu0 0
      %278 = vmatpush1.bf16.msra.mxu0 0
      %279 = vmatprep.subr.bf16.mxu0 0
      %280 = vmatpush1.bf16.msra.mxu0 0
      %281 = vmatprep.subr.bf16.mxu0 0
      %282 = vmatpush1.bf16.msra.mxu0 0
      %283 = vmatprep.subr.bf16.mxu0 0
      %284 = vmatpush1.bf16.msra.mxu0 0
      %285 = vmatprep.subr.bf16.mxu0 0
      %286 = vmatpush1.bf16.msra.mxu0 0
      %287 = vmatprep.subr.bf16.mxu0 0
      %288 = vmatpush1.bf16.msra.mxu0 0
      %289 = vmatprep.subr.bf16.mxu0 0
      %290 = vmatpush1.bf16.msra.mxu0 0
      %291 = vmatprep.subr.bf16.mxu0 0
      %292 = vmatpush1.bf16.msra.mxu0 0
      %293 = vmatprep.subr.bf16.mxu0 0
      %294 = vmatpush1.bf16.msra.mxu0 0
      %295 = vmatprep.subr.bf16.mxu0 0
      %296 = vmatpush1.bf16.msra.mxu0 0
      %297 = vmatprep.subr.bf16.mxu0 0
      %298 = vmatpush1.bf16.msra.mxu0 0
      %299 = vmatprep.mubr.bf16.mxu0 0
      %300 = vmatmul.mubr.bf16.gmra.mrb[0].mxu0 %v258
      %v301 = vpop.f32.mrb[0].mxu0
      %v302 = vadd.f32 0.0, %v301
      %v303 = vpop.f32.mrb[0].mxu0
      %v304 = vpop.f32.mrb[0].mxu0
      %v305 = vpop.f32.mrb[0].mxu0
      %306 = vdwg.mxu0
      %v308 = vunpack.c.l.b16 %v190
      %v309 = vpack.c.b16 %v308, %v308
      %310 = vrot.lane.b32.xlu0 %v309, 120
      %v311 = vpop.permute.xlu0 %310
      %312 = vrot.lane.b32.xlu0 %v254, 120
      %v313 = vpop.permute.xlu0 %312
      %v315 = vsel %vm192, %v311, 0
      %v318 = vsel %vm192, %v313, 0
      %320 = vmatprep.subr.bf16.mxu0 0
      %321 = vmatpush1.bf16.xpose.msra.mxu0 %v318
      %322 = vmatprep.subr.bf16.mxu0 0
      %323 = vmatpush1.bf16.xpose.msra.mxu0 0
      %324 = vmatprep.subr.bf16.mxu0 0
      %325 = vmatpush1.bf16.xpose.msra.mxu0 0
      %326 = vmatprep.subr.bf16.mxu0 0
      %327 = vmatpush1.bf16.xpose.msra.mxu0 0
      %328 = vmatprep.subr.bf16.mxu0 0
      %329 = vmatpush1.bf16.xpose.msra.mxu0 0
      %330 = vmatprep.subr.bf16.mxu0 0
      %331 = vmatpush1.bf16.xpose.msra.mxu0 0
      %332 = vmatprep.subr.bf16.mxu0 0
      %333 = vmatpush1.bf16.xpose.msra.mxu0 0
      %334 = vmatprep.subr.bf16.mxu0 0
      %335 = vmatpush1.bf16.xpose.msra.mxu0 0
      %336 = vmatprep.subr.bf16.mxu0 0
      %337 = vmatpush1.bf16.xpose.msra.mxu0 0
      %338 = vmatprep.subr.bf16.mxu0 0
      %339 = vmatpush1.bf16.xpose.msra.mxu0 0
      %340 = vmatprep.subr.bf16.mxu0 0
      %341 = vmatpush1.bf16.xpose.msra.mxu0 0
      %342 = vmatprep.subr.bf16.mxu0 0
      %343 = vmatpush1.bf16.xpose.msra.mxu0 0
      %344 = vmatprep.subr.bf16.mxu0 0
      %345 = vmatpush1.bf16.xpose.msra.mxu0 0
      %346 = vmatprep.subr.bf16.mxu0 0
      %347 = vmatpush1.bf16.xpose.msra.mxu0 0
      %348 = vmatprep.subr.bf16.mxu0 0
      %349 = vmatpush1.bf16.xpose.msra.mxu0 0
      %350 = vmatprep.subr.bf16.mxu0 0
      %351 = vmatpush1.bf16.xpose.msra.mxu0 0
      %352 = vmatprep.mubr.bf16.mxu0 0
      %353 = vmatmul.mubr.bf16.gmra.mrb[0].mxu0 %v315
      %v354 = vpop.f32.mrb[0].mxu0
      %v355 = vadd.f32 0.0, %v354
      %v356 = vpop.f32.mrb[0].mxu0
      %v357 = vpop.f32.mrb[0].mxu0
      %v358 = vpop.f32.mrb[0].mxu0
      %359 = vdwg.mxu0
      %v360 = vsel %vm239, %v355, -inf
      %361 = vmax.xlane.f32.xlu0 %v360
      %v362 = vpop.xlane.xlu0 %361
      %v363 = vsub.f32 %v355, %v362
      %v364 = vmul.f32 %v363, 1.442695
      %v365 = vpow.pop %v364
      %v366 = vsel %vm239, %v365, 0.0
      %367 = vadd.xlane.f32.xlu0 %v366
      %v368 = vpop.xlane.xlu0 %367
      %v369 = vrcp.pop %v368
      %v370 = vmul.f32 %v365, %v369
      %v371 = vpack.c.bf16 %v370, %v370
      %372 = vrot.lane.b32.xlu0 %v254, 88
      %v373 = vpop.permute.xlu0 %372
      %v375 = vsel %vm239, %v371, 0
      %v378 = vand.u32 %v373, %v263
      %380 = vmatprep.subr.bf16.mxu0 0
      %381 = vmatpush1.bf16.msra.mxu0 %v378
      %382 = vmatprep.subr.bf16.mxu0 0
      %383 = vmatpush1.bf16.msra.mxu0 0
      %384 = vmatprep.subr.bf16.mxu0 0
      %385 = vmatpush1.bf16.msra.mxu0 0
      %386 = vmatprep.subr.bf16.mxu0 0
      %387 = vmatpush1.bf16.msra.mxu0 0
      %388 = vmatprep.subr.bf16.mxu0 0
      %389 = vmatpush1.bf16.msra.mxu0 0
      %390 = vmatprep.subr.bf16.mxu0 0
      %391 = vmatpush1.bf16.msra.mxu0 0
      %392 = vmatprep.subr.bf16.mxu0 0
      %393 = vmatpush1.bf16.msra.mxu0 0
      %394 = vmatprep.subr.bf16.mxu0 0
      %395 = vmatpush1.bf16.msra.mxu0 0
      %396 = vmatprep.subr.bf16.mxu0 0
      %397 = vmatpush1.bf16.msra.mxu0 0
      %398 = vmatprep.subr.bf16.mxu0 0
      %399 = vmatpush1.bf16.msra.mxu0 0
      %400 = vmatprep.subr.bf16.mxu0 0
      %401 = vmatpush1.bf16.msra.mxu0 0
      %402 = vmatprep.subr.bf16.mxu0 0
      %403 = vmatpush1.bf16.msra.mxu0 0
      %404 = vmatprep.subr.bf16.mxu0 0
      %405 = vmatpush1.bf16.msra.mxu0 0
      %406 = vmatprep.subr.bf16.mxu0 0
      %407 = vmatpush1.bf16.msra.mxu0 0
      %408 = vmatprep.subr.bf16.mxu0 0
      %409 = vmatpush1.bf16.msra.mxu0 0
      %410 = vmatprep.subr.bf16.mxu0 0
      %411 = vmatpush1.bf16.msra.mxu0 0
      %412 = vmatprep.mubr.bf16.mxu0 0
      %413 = vmatmul.mubr.bf16.gmra.mrb[0].mxu0 %v375
      %v414 = vpop.f32.mrb[0].mxu0
      %v415 = vadd.f32 0.0, %v414
      %v416 = vpop.f32.mrb[0].mxu0
      %v417 = vpop.f32.mrb[0].mxu0
      %v418 = vpop.f32.mrb[0].mxu0
      %419 = vdwg.mxu0
      %420 = vrot.lane.b32.xlu0 %v309, 112
      %v421 = vpop.permute.xlu0 %420
      %422 = vrot.lane.b32.xlu0 %v254, 112
      %v423 = vpop.permute.xlu0 %422
      %v425 = vsel %vm192, %v421, 0
      %v428 = vsel %vm192, %v423, 0
      %430 = vmatprep.subr.bf16.mxu0 0
      %431 = vmatpush1.bf16.xpose.msra.mxu0 %v428
      %432 = vmatprep.subr.bf16.mxu0 0
      %433 = vmatpush1.bf16.xpose.msra.mxu0 0
      %434 = vmatprep.subr.bf16.mxu0 0
      %435 = vmatpush1.bf16.xpose.msra.mxu0 0
      %436 = vmatprep.subr.bf16.mxu0 0
      %437 = vmatpush1.bf16.xpose.msra.mxu0 0
      %438 = vmatprep.subr.bf16.mxu0 0
      %439 = vmatpush1.bf16.xpose.msra.mxu0 0
      %440 = vmatprep.subr.bf16.mxu0 0
      %441 = vmatpush1.bf16.xpose.msra.mxu0 0
      %442 = vmatprep.subr.bf16.mxu0 0
      %443 = vmatpush1.bf16.xpose.msra.mxu0 0
      %444 = vmatprep.subr.bf16.mxu0 0
      %445 = vmatpush1.bf16.xpose.msra.mxu0 0
      %446 = vmatprep.subr.bf16.mxu0 0
      %447 = vmatpush1.bf16.xpose.msra.mxu0 0
      %448 = vmatprep.subr.bf16.mxu0 0
      %449 = vmatpush1.bf16.xpose.msra.mxu0 0
      %450 = vmatprep.subr.bf16.mxu0 0
      %451 = vmatpush1.bf16.xpose.msra.mxu0 0
      %452 = vmatprep.subr.bf16.mxu0 0
      %453 = vmatpush1.bf16.xpose.msra.mxu0 0
      %454 = vmatprep.subr.bf16.mxu0 0
      %455 = vmatpush1.bf16.xpose.msra.mxu0 0
      %456 = vmatprep.subr.bf16.mxu0 0
      %457 = vmatpush1.bf16.xpose.msra.mxu0 0
      %458 = vmatprep.subr.bf16.mxu0 0
      %459 = vmatpush1.bf16.xpose.msra.mxu0 0
      %460 = vmatprep.subr.bf16.mxu0 0
      %461 = vmatpush1.bf16.xpose.msra.mxu0 0
      %462 = vmatprep.mubr.bf16.mxu0 0
      %463 = vmatmul.mubr.bf16.gmra.mrb[0].mxu0 %v425
      %v464 = vpop.f32.mrb[0].mxu0
      %v465 = vadd.f32 0.0, %v464
      %v466 = vpop.f32.mrb[0].mxu0
      %v467 = vpop.f32.mrb[0].mxu0
      %v468 = vpop.f32.mrb[0].mxu0
      %469 = vdwg.mxu0
      %v470 = vsel %vm239, %v465, -inf
      %471 = vmax.xlane.f32.xlu0 %v470
      %v472 = vpop.xlane.xlu0 %471
      %v473 = vsub.f32 %v465, %v472
      %v474 = vmul.f32 %v473, 1.442695
      %v475 = vpow.pop %v474
      %v476 = vsel %vm239, %v475, 0.0
      %477 = vadd.xlane.f32.xlu0 %v476
      %v478 = vpop.xlane.xlu0 %477
      %v479 = vrcp.pop %v478
      %v480 = vmul.f32 %v475, %v479
      %v481 = vpack.c.bf16 %v480, %v480
      %482 = vrot.lane.b32.xlu0 %v254, 80
      %v483 = vpop.permute.xlu0 %482
      %v485 = vsel %vm239, %v481, 0
      %v488 = vand.u32 %v483, %v263
      %490 = vmatprep.subr.bf16.mxu0 0
      %491 = vmatpush1.bf16.msra.mxu0 %v488
      %492 = vmatprep.subr.bf16.mxu0 0
      %493 = vmatpush1.bf16.msra.mxu0 0
      %494 = vmatprep.subr.bf16.mxu0 0
      %495 = vmatpush1.bf16.msra.mxu0 0
      %496 = vmatprep.subr.bf16.mxu0 0
      %497 = vmatpush1.bf16.msra.mxu0 0
      %498 = vmatprep.subr.bf16.mxu0 0
      %499 = vmatpush1.bf16.msra.mxu0 0
      %500 = vmatprep.subr.bf16.mxu0 0
      %501 = vmatpush1.bf16.msra.mxu0 0
      %502 = vmatprep.subr.bf16.mxu0 0
      %503 = vmatpush1.bf16.msra.mxu0 0
      %504 = vmatprep.subr.bf16.mxu0 0
      %505 = vmatpush1.bf16.msra.mxu0 0
      %506 = vmatprep.subr.bf16.mxu0 0
      %507 = vmatpush1.bf16.msra.mxu0 0
      %508 = vmatprep.subr.bf16.mxu0 0
      %509 = vmatpush1.bf16.msra.mxu0 0
      %510 = vmatprep.subr.bf16.mxu0 0
      %511 = vmatpush1.bf16.msra.mxu0 0
      %512 = vmatprep.subr.bf16.mxu0 0
      %513 = vmatpush1.bf16.msra.mxu0 0
      %514 = vmatprep.subr.bf16.mxu0 0
      %515 = vmatpush1.bf16.msra.mxu0 0
      %516 = vmatprep.subr.bf16.mxu0 0
      %517 = vmatpush1.bf16.msra.mxu0 0
      %518 = vmatprep.subr.bf16.mxu0 0
      %519 = vmatpush1.bf16.msra.mxu0 0
      %520 = vmatprep.subr.bf16.mxu0 0
      %521 = vmatpush1.bf16.msra.mxu0 0
      %522 = vmatprep.mubr.bf16.mxu0 0
      %523 = vmatmul.mubr.bf16.gmra.mrb[0].mxu0 %v485
      %v524 = vpop.f32.mrb[0].mxu0
      %v525 = vadd.f32 0.0, %v524
      %v526 = vpop.f32.mrb[0].mxu0
      %v527 = vpop.f32.mrb[0].mxu0
      %v528 = vpop.f32.mrb[0].mxu0
      %529 = vdwg.mxu0
      %530 = vrot.lane.b32.xlu0 %v309, 104
      %v531 = vpop.permute.xlu0 %530
      %532 = vrot.lane.b32.xlu0 %v254, 104
      %v533 = vpop.permute.xlu0 %532
      %v535 = vsel %vm192, %v531, 0
      %v538 = vsel %vm192, %v533, 0
      %540 = vmatprep.subr.bf16.mxu0 0
      %541 = vmatpush1.bf16.xpose.msra.mxu0 %v538
      %542 = vmatprep.subr.bf16.mxu0 0
      %543 = vmatpush1.bf16.xpose.msra.mxu0 0
      %544 = vmatprep.subr.bf16.mxu0 0
      %545 = vmatpush1.bf16.xpose.msra.mxu0 0
      %546 = vmatprep.subr.bf16.mxu0 0
      %547 = vmatpush1.bf16.xpose.msra.mxu0 0
      %548 = vmatprep.subr.bf16.mxu0 0
      %549 = vmatpush1.bf16.xpose.msra.mxu0 0
      %550 = vmatprep.subr.bf16.mxu0 0
      %551 = vmatpush1.bf16.xpose.msra.mxu0 0
      %552 = vmatprep.subr.bf16.mxu0 0
      %553 = vmatpush1.bf16.xpose.msra.mxu0 0
      %554 = vmatprep.subr.bf16.mxu0 0
      %555 = vmatpush1.bf16.xpose.msra.mxu0 0
      %556 = vmatprep.subr.bf16.mxu0 0
      %557 = vmatpush1.bf16.xpose.msra.mxu0 0
      %558 = vmatprep.subr.bf16.mxu0 0
      %559 = vmatpush1.bf16.xpose.msra.mxu0 0
      %560 = vmatprep.subr.bf16.mxu0 0
      %561 = vmatpush1.bf16.xpose.msra.mxu0 0
      %562 = vmatprep.subr.bf16.mxu0 0
      %563 = vmatpush1.bf16.xpose.msra.mxu0 0
      %564 = vmatprep.subr.bf16.mxu0 0
      %565 = vmatpush1.bf16.xpose.msra.mxu0 0
      %566 = vmatprep.subr.bf16.mxu0 0
      %567 = vmatpush1.bf16.xpose.msra.mxu0 0
      %568 = vmatprep.subr.bf16.mxu0 0
      %569 = vmatpush1.bf16.xpose.msra.mxu0 0
      %570 = vmatprep.subr.bf16.mxu0 0
      %571 = vmatpush1.bf16.xpose.msra.mxu0 0
      %572 = vmatprep.mubr.bf16.mxu0 0
      %573 = vmatmul.mubr.bf16.gmra.mrb[0].mxu0 %v535
      %v574 = vpop.f32.mrb[0].mxu0
      %v575 = vadd.f32 0.0, %v574
      %v576 = vpop.f32.mrb[0].mxu0
      %v577 = vpop.f32.mrb[0].mxu0
      %v578 = vpop.f32.mrb[0].mxu0
      %579 = vdwg.mxu0
      %v580 = vsel %vm239, %v575, -inf
      %581 = vmax.xlane.f32.xlu0 %v580
      %v582 = vpop.xlane.xlu0 %581
      %v583 = vsub.f32 %v575, %v582
      %v584 = vmul.f32 %v583, 1.442695
      %v585 = vpow.pop %v584
      %v586 = vsel %vm239, %v585, 0.0
      %587 = vadd.xlane.f32.xlu0 %v586
      %v588 = vpop.xlane.xlu0 %587
      %v589 = vrcp.pop %v588
      %v590 = vmul.f32 %v585, %v589
      %v591 = vpack.c.bf16 %v590, %v590
      %592 = vrot.lane.b32.xlu0 %v254, 72
      %v593 = vpop.permute.xlu0 %592
      %v595 = vsel %vm239, %v591, 0
      %v598 = vand.u32 %v593, %v263
      %600 = vmatprep.subr.bf16.mxu0 0
      %601 = vmatpush1.bf16.msra.mxu0 %v598
      %602 = vmatprep.subr.bf16.mxu0 0
      %603 = vmatpush1.bf16.msra.mxu0 0
      %604 = vmatprep.subr.bf16.mxu0 0
      %605 = vmatpush1.bf16.msra.mxu0 0
      %606 = vmatprep.subr.bf16.mxu0 0
      %607 = vmatpush1.bf16.msra.mxu0 0
      %608 = vmatprep.subr.bf16.mxu0 0
      %609 = vmatpush1.bf16.msra.mxu0 0
      %610 = vmatprep.subr.bf16.mxu0 0
      %611 = vmatpush1.bf16.msra.mxu0 0
      %612 = vmatprep.subr.bf16.mxu0 0
      %613 = vmatpush1.bf16.msra.mxu0 0
      %614 = vmatprep.subr.bf16.mxu0 0
      %615 = vmatpush1.bf16.msra.mxu0 0
      %616 = vmatprep.subr.bf16.mxu0 0
      %617 = vmatpush1.bf16.msra.mxu0 0
      %618 = vmatprep.subr.bf16.mxu0 0
      %619 = vmatpush1.bf16.msra.mxu0 0
      %620 = vmatprep.subr.bf16.mxu0 0
      %621 = vmatpush1.bf16.msra.mxu0 0
      %622 = vmatprep.subr.bf16.mxu0 0
      %623 = vmatpush1.bf16.msra.mxu0 0
      %624 = vmatprep.subr.bf16.mxu0 0
      %625 = vmatpush1.bf16.msra.mxu0 0
      %626 = vmatprep.subr.bf16.mxu0 0
      %627 = vmatpush1.bf16.msra.mxu0 0
      %628 = vmatprep.subr.bf16.mxu0 0
      %629 = vmatpush1.bf16.msra.mxu0 0
      %630 = vmatprep.subr.bf16.mxu0 0
      %631 = vmatpush1.bf16.msra.mxu0 0
      %632 = vmatprep.mubr.bf16.mxu0 0
      %633 = vmatmul.mubr.bf16.gmra.mrb[0].mxu0 %v595
      %v634 = vpop.f32.mrb[0].mxu0
      %v635 = vadd.f32 0.0, %v634
      %v636 = vpop.f32.mrb[0].mxu0
      %v637 = vpop.f32.mrb[0].mxu0
      %v638 = vpop.f32.mrb[0].mxu0
      %639 = vdwg.mxu0
      %641 = vrot.lane.b32.xlu0 %v415, 8
      %v642 = vpop.permute.xlu0 %641
      %645 = vrot.lane.b32.xlu0 %v525, 16
      %v646 = vpop.permute.xlu0 %645
      %649 = vrot.lane.b32.xlu0 %v635, 24
      %v650 = vpop.permute.xlu0 %649
      %v652 = vsel %vm192, %v302, %v642
      %vm653 = vcmask 130048
      %v654 = vsel %vm653, %v652, %v646
      %vm655 = vcmask 195584
      %v656 = vsel %vm655, %v654, %v650
      %v657 = vpack.c.bf16 %v656, %v656
      %vm658 = vcmask 257024
      %659 = vst.msk [vmem:[%s186] sm:$0xf] %vm658, %v657
      %p660 = scmp.lt.s32.totalorder %s17, 1
      %s661 = scalar_select %p660, %s17, 1
      %p662 = scmp.lt.s32.totalorder %s18, 0
      %s663 = scalar_select %p662, %s18, 0
      %s664 = sadd.s32 %s663, %s661
      %s665 = smul.addr %s664, 4
      %s666 = scalar_lea.vmem %s2, %s665
      // Predicated region
      $region29: #{blip_decoder_forward.51} parent=27 // pred_check
        %p667 = pneg %p99
      $region30: #{blip_decoder_forward.51} parent=27 // pred_check_branch
        %669 = sbr.rel (%p667) target = $region32
      $region31: #{blip_decoder_forward.51} parent=27 // pred_region
        _
      $region32: #{blip_decoder_forward.51} parent=27 // pred_fallthru
        _
    $region28: #{blip_decoder_forward.51} parent=5 // pred_fallthru
      _
    %p670 = scmp.le.s32.totalorder 2, %s8
    // Predicated region
    $region33: #{blip_decoder_forward.51} parent=5 // pred_check
      %p671 = pneg %p670
    $region34: #{blip_decoder_forward.51} parent=5 // pred_check_branch
      %673 = sbr.rel (%p671) target = $region36
    $region35: #{blip_decoder_forward.51} parent=5 // pred_region
      %s674 = ssub.s32 %s8, 2
      // Predicated region
      $region37: #{blip_decoder_forward.51} parent=35 // pred_check
        %p675 = pneg %p105
      $region38: #{blip_decoder_forward.51} parent=35 // pred_check_branch
        %677 = sbr.rel (%p675) target = $region40
      $region39: #{blip_decoder_forward.51} parent=35 // pred_region
        %p678 = scmp.lt.s32.totalorder %s19, 1
        %s679 = scalar_select %p678, %s19, 1
        %p680 = scmp.lt.s32.totalorder %s20, 0
        %s681 = scalar_select %p680, %s20, 0
        %s682 = sadd.s32 %s681, %s679
        %s683 = smul.addr %s682, 4
        %s684 = scalar_lea.vmem %s2, %s683
      $region40: #{blip_decoder_forward.51} parent=35 // pred_fallthru
        _
    $region36: #{blip_decoder_forward.51} parent=5 // pred_fallthru
      _
  $region6: #{blip_decoder_forward.51} parent=0 // loop_footer
    %s12 = sadd.s32 1, %s8
  $region7: #{blip_decoder_forward.51} parent=0 // loop_footer_branch
    %7 = sbr.rel target = $region3
  $region8: #{blip_decoder_forward.51} parent=0 // loop_exit
    _

// kernel: blip_decoder_forward.49
$region0: #{blip_decoder_forward.49}
  #allocation0 [shape = 'u32[]', space=smem, size = 0x4, offset = 0x4, fixed_abs, tag = 'smem constant byte address 0x4 - core index']
  #allocation1 [shape = 'u32[144,128]{1,0:T(1,128)}', space=vmem, size = 0x12000, scoped, tag = 'internal scratch']
  #allocation2 [shape = 'f32[16,32]{1,0:T(8,128)}', space=vmem, size = 0x2000, scoped, tag = 'scratch operand']
  %s0 = inlined_call_operand.vmem [shape: f32[16,32], index: 0, kind: input, shape index: {}]
  %s1 = inlined_call_operand.vmem [shape: bf16[32,32], index: 1, kind: input, shape index: {}]
  %s2 = inlined_call_operand.vmem [shape: f32[1,32], index: 2, kind: input, shape index: {}]
  %s3 = inlined_call_operand.vmem [shape: bf16[16,32], index: 3, kind: output, shape index: {}]
  %s4 = sld [smem:[#allocation0]]
  $region30: #{blip_decoder_forward.49} parent=0
    _
  %s6 = ssub.s32 1, %s4
  %s7 = scalar_select 0, %s6, %s4
  // Predicated region
  $region2: #{blip_decoder_forward.49} parent=0 // pred_check
    _
  $region3: #{blip_decoder_forward.49} parent=0 // pred_check_branch
    %9 = sbr.rel (0) target = $region5
  $region4: #{blip_decoder_forward.49} parent=0 // pred_region
    _
  $region5: #{blip_decoder_forward.49} parent=0 // pred_fallthru
    _
  // Predicated region
  $region6: #{blip_decoder_forward.49} parent=0 // pred_check
    _
  $region7: #{blip_decoder_forward.49} parent=0 // pred_check_branch
    %11 = sbr.rel (0) target = $region9
  $region8: #{blip_decoder_forward.49} parent=0 // pred_region
    _
  $region9: #{blip_decoder_forward.49} parent=0 // pred_fallthru
    _
  // Predicated region
  $region10: #{blip_decoder_forward.49} parent=0 // pred_check
    _
  $region11: #{blip_decoder_forward.49} parent=0 // pred_check_branch
    %13 = sbr.rel (0) target = $region13
  $region12: #{blip_decoder_forward.49} parent=0 // pred_region
    _
  $region13: #{blip_decoder_forward.49} parent=0 // pred_fallthru
    _
  %p15 = scmp.eq.s32.totalorder 0, 0
  // Predicated region
  $region14: #{blip_decoder_forward.49} parent=0 // pred_check
    %p16 = pneg %p15
  $region15: #{blip_decoder_forward.49} parent=0 // pred_check_branch
    %18 = sbr.rel (%p16) target = $region17
  $region16: #{blip_decoder_forward.49} parent=0 // pred_region
    %vm19 = vcmask 261120
    %20 = vst.msk [vmem:[#allocation2] sm:$0xff] %vm19, 0.0
    %21 = vst.msk [vmem:[#allocation2 + $0x8] sm:$0xff] %vm19, 0.0
  $region17: #{blip_decoder_forward.49} parent=0 // pred_fallthru
    _
  %v22 = vld [vmem:[#allocation2] sm:$0xff]
  %v23 = vld [vmem:[#allocation2 + $0x8] sm:$0xff]
  %v24 = vld [vmem:[%s0] sm:$0xff]
  %v25 = vld [vmem:[%s0 + $0x8] sm:$0xff]
  %v26 = vpack.c.bf16 %v25, %v24
  %v27 = vld [vmem:[%s1] sm:$0xf]
  %v28 = vld [vmem:[%s1 + $0x4] sm:$0xf]
  %v29 = vld [vmem:[%s1 + $0x8] sm:$0xf]
  %v30 = vld [vmem:[%s1 + $0xc] sm:$0xf]
  %v35 = vunpack.c.l.b16 %v27
  %v36 = vunpack.c.l.b16 %v28
  %v37 = vunpack.c.l.b16 %v29
  %v38 = vunpack.c.l.b16 %v30
  %v39 = vpack.c.b16 %v36, %v35
  %v40 = vpack.c.b16 %v38, %v37
  %vm43 = vcmask 261120
  %v45 = vsel %vm43, %v26, 0
  %47 = vmatprep.subr.bf16.mxu0 0
  %48 = vmatpush1.bf16.msra.mxu0 %v39
  %49 = vmatprep.subr.bf16.mxu0 0
  %50 = vmatpush1.bf16.msra.mxu0 %v40
  %51 = vmatprep.subr.bf16.mxu0 0
  %52 = vmatpush1.bf16.msra.mxu0 0
  %53 = vmatprep.subr.bf16.mxu0 0
  %54 = vmatpush1.bf16.msra.mxu0 0
  %55 = vmatprep.subr.bf16.mxu0 0
  %56 = vmatpush1.bf16.msra.mxu0 0
  %57 = vmatprep.subr.bf16.mxu0 0
  %58 = vmatpush1.bf16.msra.mxu0 0
  %59 = vmatprep.subr.bf16.mxu0 0
  %60 = vmatpush1.bf16.msra.mxu0 0
  %61 = vmatprep.subr.bf16.mxu0 0
  %62 = vmatpush1.bf16.msra.mxu0 0
  %63 = vmatprep.subr.bf16.mxu0 0
  %64 = vmatpush1.bf16.msra.mxu0 0
  %65 = vmatprep.subr.bf16.mxu0 0
  %66 = vmatpush1.bf16.msra.mxu0 0
  %67 = vmatprep.subr.bf16.mxu0 0
  %68 = vmatpush1.bf16.msra.mxu0 0
  %69 = vmatprep.subr.bf16.mxu0 0
  %70 = vmatpush1.bf16.msra.mxu0 0
  %71 = vmatprep.subr.bf16.mxu0 0
  %72 = vmatpush1.bf16.msra.mxu0 0
  %73 = vmatprep.subr.bf16.mxu0 0
  %74 = vmatpush1.bf16.msra.mxu0 0
  %75 = vmatprep.subr.bf16.mxu0 0
  %76 = vmatpush1.bf16.msra.mxu0 0
  %77 = vmatprep.subr.bf16.mxu0 0
  %78 = vmatpush1.bf16.msra.mxu0 0
  %79 = vmatprep.mubr.bf16.mxu0 0
  %80 = vmatmul.mubr.bf16.gmra.mrb[0].mxu0 %v45
  %v81 = vpop.f32.mrb[0].mxu0
  %v82 = vadd.f32 0.0, %v81
  %v83 = vpop.f32.mrb[0].mxu0
  %v84 = vpop.f32.mrb[0].mxu0
  %v85 = vadd.f32 0.0, %v84
  %v86 = vpop.f32.mrb[0].mxu0
  %87 = vdwg.mxu0
  %v88 = vadd.f32 %v22, %v82
  %v89 = vadd.f32 %v23, %v85
  %90 = vst.msk [vmem:[#allocation2] sm:$0xff] %vm43, %v88
  %91 = vst.msk [vmem:[#allocation2 + $0x8] sm:$0xff] %vm43, %v89
  // Predicated region
  $region18: #{blip_decoder_forward.49} parent=0 // pred_check
    %p92 = pneg %p15
  $region19: #{blip_decoder_forward.49} parent=0 // pred_check_branch
    %94 = sbr.rel (%p92) target = $region21
  $region20: #{blip_decoder_forward.49} parent=0 // pred_region
    %v95 = vld [vmem:[#allocation2] sm:$0xff]
    %v96 = vld [vmem:[#allocation2 + $0x8] sm:$0xff]
    %v97 = vld [vmem:[%s2] sm:$0x1]
    %v99 = vlaneseq
    %v100 = vshrl.u32 %v99, 7
    %v101 = vsub.s32 0, %v100
    %v102 = vrot.slane %v97, %v101
    %v104 = vadd.f32 %v95, %v102
    %v105 = vadd.f32 %v96, %v102
    %v106 = vpack.c.bf16 %v105, %v104
    %v108 = vunpack.c.l.b16 %v106
    %v109 = vunpack.c.h.b16 %v106
    %v110 = vpack.c.b16 %v108, %v108
    %v111 = vpack.c.b16 %v109, %v109
    %vm114 = vcmask 257024
    %115 = vst.msk [vmem:[%s3] sm:$0xf] %vm114, %v110
    %116 = vst.msk [vmem:[%s3 + $0x4] sm:$0xf] %vm114, %v111
  $region21: #{blip_decoder_forward.49} parent=0 // pred_fallthru
    _
  // Predicated region
  $region22: #{blip_decoder_forward.49} parent=0 // pred_check
    _
  $region23: #{blip_decoder_forward.49} parent=0 // pred_check_branch
    %118 = sbr.rel (0) target = $region25
  $region24: #{blip_decoder_forward.49} parent=0 // pred_region
    _
  $region25: #{blip_decoder_forward.49} parent=0 // pred_fallthru
    _
  // Predicated region
  $region26: #{blip_decoder_forward.49} parent=0 // pred_check
    _
  $region27: #{blip_decoder_forward.49} parent=0 // pred_check_branch
    %120 = sbr.rel (0) target = $region29
  $region28: #{blip_decoder_forward.49} parent=0 // pred_region
    _
  $region29: #{blip_decoder_forward.49} parent=0 // pred_fallthru
    _

// kernel: blip_decoder_forward.53
$region0: #{blip_decoder_forward.53}
  #allocation0 [shape = 'u32[]', space=smem, size = 0x4, offset = 0x4, fixed_abs, tag = 'smem constant byte address 0x4 - core index']
  #allocation1 [shape = 'u32[144,128]{1,0:T(1,128)}', space=vmem, size = 0x12000, scoped, tag = 'internal scratch']
  #allocation2 [shape = 'f32[16,64]{1,0:T(8,128)}', space=vmem, size = 0x2000, scoped, tag = 'scratch operand']
  %s0 = inlined_call_operand.vmem [shape: f32[16,32], index: 0, kind: input, shape index: {}]
  %s1 = inlined_call_operand.vmem [shape: bf16[32,64], index: 1, kind: input, shape index: {}]
  %s2 = inlined_call_operand.vmem [shape: f32[1,64], index: 2, kind: input, shape index: {}]
  %s3 = inlined_call_operand.vmem [shape: bf16[16,64], index: 3, kind: output, shape index: {}]
  %s4 = sld [smem:[#allocation0]]
  $region30: #{blip_decoder_forward.53} parent=0
    _
  %s6 = ssub.s32 1, %s4
  %s7 = scalar_select 0, %s6, %s4
  // Predicated region
  $region2: #{blip_decoder_forward.53} parent=0 // pred_check
    _
  $region3: #{blip_decoder_forward.53} parent=0 // pred_check_branch
    %9 = sbr.rel (0) target = $region5
  $region4: #{blip_decoder_forward.53} parent=0 // pred_region
    _
  $region5: #{blip_decoder_forward.53} parent=0 // pred_fallthru
    _
  // Predicated region
  $region6: #{blip_decoder_forward.53} parent=0 // pred_check
    _
  $region7: #{blip_decoder_forward.53} parent=0 // pred_check_branch
    %11 = sbr.rel (0) target = $region9
  $region8: #{blip_decoder_forward.53} parent=0 // pred_region
    _
  $region9: #{blip_decoder_forward.53} parent=0 // pred_fallthru
    _
  // Predicated region
  $region10: #{blip_decoder_forward.53} parent=0 // pred_check
    _
  $region11: #{blip_decoder_forward.53} parent=0 // pred_check_branch
    %13 = sbr.rel (0) target = $region13
  $region12: #{blip_decoder_forward.53} parent=0 // pred_region
    _
  $region13: #{blip_decoder_forward.53} parent=0 // pred_fallthru
    _
  %p15 = scmp.eq.s32.totalorder 0, 0
  // Predicated region
  $region14: #{blip_decoder_forward.53} parent=0 // pred_check
    %p16 = pneg %p15
  $region15: #{blip_decoder_forward.53} parent=0 // pred_check_branch
    %18 = sbr.rel (%p16) target = $region17
  $region16: #{blip_decoder_forward.53} parent=0 // pred_region
    %vm19 = vcmask 523264
    %20 = vst.msk [vmem:[#allocation2] sm:$0xff] %vm19, 0.0
    %21 = vst.msk [vmem:[#allocation2 + $0x8] sm:$0xff] %vm19, 0.0
  $region17: #{blip_decoder_forward.53} parent=0 // pred_fallthru
    _
  %v22 = vld [vmem:[#allocation2] sm:$0xff]
  %v23 = vld [vmem:[#allocation2 + $0x8] sm:$0xff]
  %v24 = vld [vmem:[%s0] sm:$0xff]
  %v25 = vld [vmem:[%s0 + $0x8] sm:$0xff]
  %v26 = vpack.c.bf16 %v25, %v24
  %v27 = vld [vmem:[%s1] sm:$0xf]
  %v28 = vld [vmem:[%s1 + $0x4] sm:$0xf]
  %v29 = vld [vmem:[%s1 + $0x8] sm:$0xf]
  %v30 = vld [vmem:[%s1 + $0xc] sm:$0xf]
  %v35 = vunpack.c.l.b16 %v27
  %v36 = vunpack.c.l.b16 %v28
  %v37 = vunpack.c.l.b16 %v29
  %v38 = vunpack.c.l.b16 %v30
  %v39 = vpack.c.b16 %v36, %v35
  %v40 = vpack.c.b16 %v38, %v37
  %vm43 = vcmask 261120
  %v45 = vsel %vm43, %v26, 0
  %47 = vmatprep.subr.bf16.mxu0 0
  %48 = vmatpush1.bf16.msra.mxu0 %v39
  %49 = vmatprep.subr.bf16.mxu0 0
  %50 = vmatpush1.bf16.msra.mxu0 %v40
  %51 = vmatprep.subr.bf16.mxu0 0
  %52 = vmatpush1.bf16.msra.mxu0 0
  %53 = vmatprep.subr.bf16.mxu0 0
  %54 = vmatpush1.bf16.msra.mxu0 0
  %55 = vmatprep.subr.bf16.mxu0 0
  %56 = vmatpush1.bf16.msra.mxu0 0
  %57 = vmatprep.subr.bf16.mxu0 0
  %58 = vmatpush1.bf16.msra.mxu0 0
  %59 = vmatprep.subr.bf16.mxu0 0
  %60 = vmatpush1.bf16.msra.mxu0 0
  %61 = vmatprep.subr.bf16.mxu0 0
  %62 = vmatpush1.bf16.msra.mxu0 0
  %63 = vmatprep.subr.bf16.mxu0 0
  %64 = vmatpush1.bf16.msra.mxu0 0
  %65 = vmatprep.subr.bf16.mxu0 0
  %66 = vmatpush1.bf16.msra.mxu0 0
  %67 = vmatprep.subr.bf16.mxu0 0
  %68 = vmatpush1.bf16.msra.mxu0 0
  %69 = vmatprep.subr.bf16.mxu0 0
  %70 = vmatpush1.bf16.msra.mxu0 0
  %71 = vmatprep.subr.bf16.mxu0 0
  %72 = vmatpush1.bf16.msra.mxu0 0
  %73 = vmatprep.subr.bf16.mxu0 0
  %74 = vmatpush1.bf16.msra.mxu0 0
  %75 = vmatprep.subr.bf16.mxu0 0
  %76 = vmatpush1.bf16.msra.mxu0 0
  %77 = vmatprep.subr.bf16.mxu0 0
  %78 = vmatpush1.bf16.msra.mxu0 0
  %79 = vmatprep.mubr.bf16.mxu0 0
  %80 = vmatmul.mubr.bf16.gmra.mrb[0].mxu0 %v45
  %v81 = vpop.f32.mrb[0].mxu0
  %v82 = vadd.f32 0.0, %v81
  %v83 = vpop.f32.mrb[0].mxu0
  %v84 = vpop.f32.mrb[0].mxu0
  %v85 = vadd.f32 0.0, %v84
  %v86 = vpop.f32.mrb[0].mxu0
  %87 = vdwg.mxu0
  %v88 = vadd.f32 %v22, %v82
  %v89 = vadd.f32 %v23, %v85
  %vm90 = vcmask 523264
  %91 = vst.msk [vmem:[#allocation2] sm:$0xff] %vm90, %v88
  %92 = vst.msk [vmem:[#allocation2 + $0x8] sm:$0xff] %vm90, %v89
  // Predicated region
  $region18: #{blip_decoder_forward.53} parent=0 // pred_check
    %p93 = pneg %p15
  $region19: #{blip_decoder_forward.53} parent=0 // pred_check_branch
    %95 = sbr.rel (%p93) target = $region21
  $region20: #{blip_decoder_forward.53} parent=0 // pred_region
    %v96 = vld [vmem:[#allocation2] sm:$0xff]
    %v97 = vld [vmem:[#allocation2 + $0x8] sm:$0xff]
    %v98 = vld [vmem:[%s2] sm:$0x1]
    %v100 = vlaneseq
    %v101 = vshrl.u32 %v100, 7
    %v102 = vsub.s32 0, %v101
    %v103 = vrot.slane %v98, %v102
    %v105 = vadd.f32 %v96, %v103
    %v106 = vadd.f32 %v97, %v103
    %v107 = vmul.f32 %v105, 0.5
    %v108 = vmul.f32 %v106, 0.5
    %v109 = vmul.f32 %v105, 0.044715
    %v110 = vmul.f32 %v106, 0.044715
    %v111 = vmul.f32 %v109, %v105
    %v112 = vmul.f32 %v110, %v106
    %v113 = vmul.f32 %v111, %v105
    %v114 = vmul.f32 %v112, %v106
    %v115 = vadd.f32 %v105, %v113
    %v116 = vadd.f32 %v106, %v114
    %v117 = vmul.f32 %v115, 0.7978846
    %v118 = vmul.f32 %v116, 0.7978846
    %v119 = vtanh.pop %v117
    %v120 = vtanh.pop %v118
    %v121 = vadd.f32 %v119, 1.0
    %v122 = vadd.f32 %v120, 1.0
    %v123 = vmul.f32 %v107, %v121
    %v124 = vmul.f32 %v108, %v122
    %v125 = vpack.c.bf16 %v124, %v123
    %v127 = vunpack.c.l.b16 %v125
    %v128 = vunpack.c.h.b16 %v125
    %v129 = vpack.c.b16 %v127, %v127
    %v130 = vpack.c.b16 %v128, %v128
    %vm133 = vcmask 519168
    %134 = vst.msk [vmem:[%s3] sm:$0xf] %vm133, %v129
    %135 = vst.msk [vmem:[%s3 + $0x4] sm:$0xf] %vm133, %v130
  $region21: #{blip_decoder_forward.53} parent=0 // pred_fallthru
    _
  // Predicated region
  $region22: #{blip_decoder_forward.53} parent=0 // pred_check
    _
  $region23: #{blip_decoder_forward.53} parent=0 // pred_check_branch
    %137 = sbr.rel (0) target = $region25
  $region24: #{blip_decoder_forward.53} parent=0 // pred_region
    _
  $region25: #{blip_decoder_forward.53} parent=0 // pred_fallthru
    _
  // Predicated region
  $region26: #{blip_decoder_forward.53} parent=0 // pred_check
    _
  $region27: #{blip_decoder_forward.53} parent=0 // pred_check_branch
    %139 = sbr.rel (0) target = $region29
  $region28: #{blip_decoder_forward.53} parent=0 // pred_region
    _
  $region29: #{blip_decoder_forward.53} parent=0 // pred_fallthru
    _

// kernel: blip_decoder_forward.54
$region0: #{blip_decoder_forward.54}
  #allocation0 [shape = 'u32[]', space=smem, size = 0x4, offset = 0x4, fixed_abs, tag = 'smem constant byte address 0x4 - core index']
  #allocation1 [shape = 'u32[144,128]{1,0:T(1,128)}', space=vmem, size = 0x12000, scoped, tag = 'internal scratch']
  %s0 = inlined_call_operand.vmem [shape: bf16[16,64], index: 0, kind: input, shape index: {}]
  %s1 = inlined_call_operand.vmem [shape: bf16[64,32], index: 1, kind: input, shape index: {}]
  %s2 = inlined_call_operand.vmem [shape: f32[1,32], index: 2, kind: input, shape index: {}]
  %s3 = inlined_call_operand.vmem [shape: f32[16,32], index: 3, kind: input, shape index: {}]
  %s4 = inlined_call_operand.vmem [shape: f32[1,32], index: 4, kind: input, shape index: {}]
  %s5 = inlined_call_operand.vmem [shape: f32[1,32], index: 5, kind: input, shape index: {}]
  %s6 = inlined_call_operand.vmem [shape: f32[16,32], index: 6, kind: output, shape index: {}]
  %s7 = sld [smem:[#allocation0]]
  $region34: #{blip_decoder_forward.54} parent=0
    _
  %s9 = ssub.s32 1, %s7
  %s10 = scalar_select 0, %s9, %s7
  // Predicated region
  $region2: #{blip_decoder_forward.54} parent=0 // pred_check
    _
  $region3: #{blip_decoder_forward.54} parent=0 // pred_check_branch
    %12 = sbr.rel (0) target = $region5
  $region4: #{blip_decoder_forward.54} parent=0 // pred_region
    _
  $region5: #{blip_decoder_forward.54} parent=0 // pred_fallthru
    _
  // Predicated region
  $region6: #{blip_decoder_forward.54} parent=0 // pred_check
    _
  $region7: #{blip_decoder_forward.54} parent=0 // pred_check_branch
    %14 = sbr.rel (0) target = $region9
  $region8: #{blip_decoder_forward.54} parent=0 // pred_region
    _
  $region9: #{blip_decoder_forward.54} parent=0 // pred_fallthru
    _
  // Predicated region
  $region10: #{blip_decoder_forward.54} parent=0 // pred_check
    _
  $region11: #{blip_decoder_forward.54} parent=0 // pred_check_branch
    %16 = sbr.rel (0) target = $region13
  $region12: #{blip_decoder_forward.54} parent=0 // pred_region
    _
  $region13: #{blip_decoder_forward.54} parent=0 // pred_fallthru
    _
  // Predicated region
  $region14: #{blip_decoder_forward.54} parent=0 // pred_check
    _
  $region15: #{blip_decoder_forward.54} parent=0 // pred_check_branch
    %18 = sbr.rel (0) target = $region17
  $region16: #{blip_decoder_forward.54} parent=0 // pred_region
    _
  $region17: #{blip_decoder_forward.54} parent=0 // pred_fallthru
    _
  // Predicated region
  $region18: #{blip_decoder_forward.54} parent=0 // pred_check
    _
  $region19: #{blip_decoder_forward.54} parent=0 // pred_check_branch
    %20 = sbr.rel (0) target = $region21
  $region20: #{blip_decoder_forward.54} parent=0 // pred_region
    _
  $region21: #{blip_decoder_forward.54} parent=0 // pred_fallthru
    _
  // Predicated region
  $region22: #{blip_decoder_forward.54} parent=0 // pred_check
    _
  $region23: #{blip_decoder_forward.54} parent=0 // pred_check_branch
    %22 = sbr.rel (0) target = $region25
  $region24: #{blip_decoder_forward.54} parent=0 // pred_region
    _
  $region25: #{blip_decoder_forward.54} parent=0 // pred_fallthru
    _
  %v24 = vld [vmem:[%s0] sm:$0xf]
  %v25 = vld [vmem:[%s0 + $0x4] sm:$0xf]
  %v26 = vld [vmem:[%s1] sm:$0xf]
  %v27 = vld [vmem:[%s1 + $0x4] sm:$0xf]
  %v28 = vld [vmem:[%s1 + $0x8] sm:$0xf]
  %v29 = vld [vmem:[%s1 + $0xc] sm:$0xf]
  %v30 = vld [vmem:[%s1 + $0x10] sm:$0xf]
  %v31 = vld [vmem:[%s1 + $0x14] sm:$0xf]
  %v32 = vld [vmem:[%s1 + $0x18] sm:$0xf]
  %v33 = vld [vmem:[%s1 + $0x1c] sm:$0xf]
  %v34 = vld [vmem:[%s2] sm:$0x1]
  %v36 = vlaneseq
  %v37 = vshrl.u32 %v36, 7
  %v38 = vsub.s32 0, %v37
  %v39 = vrot.slane %v34, %v38
  %v43 = vunpack.c.l.b16 %v24
  %v44 = vunpack.c.l.b16 %v25
  %v45 = vpack.c.b16 %v44, %v43
  %v54 = vunpack.c.l.b16 %v26
  %v55 = vunpack.c.l.b16 %v27
  %v56 = vunpack.c.l.b16 %v28
  %v57 = vunpack.c.l.b16 %v29
  %v58 = vunpack.c.l.b16 %v30
  %v59 = vunpack.c.l.b16 %v31
  %v60 = vunpack.c.l.b16 %v32
  %v61 = vunpack.c.l.b16 %v33
  %v62 = vpack.c.b16 %v55, %v54
  %v63 = vpack.c.b16 %v57, %v56
  %v64 = vpack.c.b16 %v59, %v58
  %v65 = vpack.c.b16 %v61, %v60
  %vm70 = vcmask 523264
  %v72 = vsel %vm70, %v45, 0
  %74 = vmatprep.subr.bf16.mxu0 0
  %75 = vmatpush1.bf16.msra.mxu0 %v62
  %76 = vmatprep.subr.bf16.mxu0 0
  %77 = vmatpush1.bf16.msra.mxu0 %v63
  %78 = vmatprep.subr.bf16.mxu0 0
  %79 = vmatpush1.bf16.msra.mxu0 %v64
  %80 = vmatprep.subr.bf16.mxu0 0
  %81 = vmatpush1.bf16.msra.mxu0 %v65
  %82 = vmatprep.subr.bf16.mxu0 0
  %83 = vmatpush1.bf16.msra.mxu0 0
  %84 = vmatprep.subr.bf16.mxu0 0
  %85 = vmatpush1.bf16.msra.mxu0 0
  %86 = vmatprep.subr.bf16.mxu0 0
  %87 = vmatpush1.bf16.msra.mxu0 0
  %88 = vmatprep.subr.bf16.mxu0 0
  %89 = vmatpush1.bf16.msra.mxu0 0
  %90 = vmatprep.subr.bf16.mxu0 0
  %91 = vmatpush1.bf16.msra.mxu0 0
  %92 = vmatprep.subr.bf16.mxu0 0
  %93 = vmatpush1.bf16.msra.mxu0 0
  %94 = vmatprep.subr.bf16.mxu0 0
  %95 = vmatpush1.bf16.msra.mxu0 0
  %96 = vmatprep.subr.bf16.mxu0 0
  %97 = vmatpush1.bf16.msra.mxu0 0
  %98 = vmatprep.subr.bf16.mxu0 0
  %99 = vmatpush1.bf16.msra.mxu0 0
  %100 = vmatprep.subr.bf16.mxu0 0
  %101 = vmatpush1.bf16.msra.mxu0 0
  %102 = vmatprep.subr.bf16.mxu0 0
  %103 = vmatpush1.bf16.msra.mxu0 0
  %104 = vmatprep.subr.bf16.mxu0 0
  %105 = vmatpush1.bf16.msra.mxu0 0
  %106 = vmatprep.mubr.bf16.mxu0 0
  %107 = vmatmul.mubr.bf16.gmra.mrb[0].mxu0 %v72
  %v108 = vpop.f32.mrb[0].mxu0
  %v109 = vadd.f32 %v39, %v108
  %v110 = vpop.f32.mrb[0].mxu0
  %v111 = vpop.f32.mrb[0].mxu0
  %v112 = vadd.f32 %v39, %v111
  %v113 = vpop.f32.mrb[0].mxu0
  %114 = vdwg.mxu0
  %v115 = vld [vmem:[%s3] sm:$0xff]
  %v116 = vld [vmem:[%s3 + $0x8] sm:$0xff]
  %v117 = vadd.f32 %v109, %v115
  %v118 = vadd.f32 %v112, %v116
  %vm119 = vcmask 261120
  %v120 = vsel %vm119, %v117, 0.0
  %121 = vadd.xlane.f32.xlu0 %v120
  %v122 = vpop.xlane.xlu0 %121
  %v123 = vsel %vm119, %v118, 0.0
  %124 = vadd.xlane.f32.xlu0 %v123
  %v125 = vpop.xlane.xlu0 %124
  %v126 = vrcp.pop 32.0
  %v127 = vmul.f32 %v122, %v126
  %v128 = vmul.f32 %v125, %v126
  %v129 = vsub.f32 %v117, %v127
  %v130 = vsub.f32 %v118, %v128
  %v131 = vmul.f32 %v129, %v129
  %v132 = vmul.f32 %v130, %v130
  %v133 = vsel %vm119, %v131, 0.0
  %134 = vadd.xlane.f32.xlu0 %v133
  %v135 = vpop.xlane.xlu0 %134
  %v136 = vsel %vm119, %v132, 0.0
  %137 = vadd.xlane.f32.xlu0 %v136
  %v138 = vpop.xlane.xlu0 %137
  %v139 = vmul.f32 %v135, %v126
  %v140 = vmul.f32 %v138, %v126
  %v141 = vadd.f32 %v139, 1e-12
  %v142 = vadd.f32 %v140, 1e-12
  %v143 = vrsqrt.pop %v141
  %v144 = vrsqrt.pop %v142
  %v145 = vmul.f32 %v129, %v143
  %v146 = vmul.f32 %v130, %v144
  %v147 = vld [vmem:[%s4] sm:$0x1]
  %v149 = vlaneseq
  %v150 = vshrl.u32 %v149, 7
  %v151 = vsub.s32 0, %v150
  %v152 = vrot.slane %v147, %v151
  %v154 = vmul.f32 %v145, %v152
  %v155 = vmul.f32 %v146, %v152
  %v156 = vld [vmem:[%s5] sm:$0x1]
  %v158 = vlaneseq
  %v159 = vshrl.u32 %v158, 7
  %v160 = vsub.s32 0, %v159
  %v161 = vrot.slane %v156, %v160
  %v163 = vadd.f32 %v154, %v161
  %v164 = vadd.f32 %v155, %v161
  %165 = vst.msk [vmem:[%s6] sm:$0xff] %vm119, %v163
  %166 = vst.msk [vmem:[%s6 + $0x8] sm:$0xff] %vm119, %v164
  // Predicated region
  $region26: #{blip_decoder_forward.54} parent=0 // pred_check
    _
  $region27: #{blip_decoder_forward.54} parent=0 // pred_check_branch
    %168 = sbr.rel (0) target = $region29
  $region28: #{blip_decoder_forward.54} parent=0 // pred_region
    _
  $region29: #{blip_decoder_forward.54} parent=0 // pred_fallthru
    _
  // Predicated region
  $region30: #{blip_decoder_forward.54} parent=0 // pred_check
    _
  $region31: #{blip_decoder_forward.54} parent=0 // pred_check_branch
    %170 = sbr.rel (0) target = $region33
  $region32: #{blip_decoder_forward.54} parent=0 // pred_region
    _
  $region33: #{blip_decoder_forward.54} parent=0 // pred_fallthru
    _

// kernel: blip_decoder_forward.64
$region0: #{blip_decoder_forward.64}
  #allocation0 [shape = 'u32[]', space=smem, size = 0x4, offset = 0x4, fixed_abs, tag = 'smem constant byte address 0x4 - core index']
  #allocation1 [shape = 'u32[144,128]{1,0:T(1,128)}', space=vmem, size = 0x12000, scoped, tag = 'internal scratch']
  %s0 = inlined_call_operand.vmem [shape: f32[16,32], index: 0, kind: input, shape index: {}]
  %s1 = inlined_call_operand.vmem [shape: bf16[32,32], index: 1, kind: input, shape index: {}]
  %s2 = inlined_call_operand.vmem [shape: f32[1,32], index: 2, kind: input, shape index: {}]
  %s3 = inlined_call_operand.vmem [shape: f32[1,32], index: 3, kind: input, shape index: {}]
  %s4 = inlined_call_operand.vmem [shape: f32[1,32], index: 4, kind: input, shape index: {}]
  %s5 = inlined_call_operand.vmem [shape: bf16[16,32], index: 5, kind: output, shape index: {}]
  %s6 = sld [smem:[#allocation0]]
  $region30: #{blip_decoder_forward.64} parent=0
    _
  %s8 = ssub.s32 1, %s6
  %s9 = scalar_select 0, %s8, %s6
  // Predicated region
  $region2: #{blip_decoder_forward.64} parent=0 // pred_check
    _
  $region3: #{blip_decoder_forward.64} parent=0 // pred_check_branch
    %11 = sbr.rel (0) target = $region5
  $region4: #{blip_decoder_forward.64} parent=0 // pred_region
    _
  $region5: #{blip_decoder_forward.64} parent=0 // pred_fallthru
    _
  // Predicated region
  $region6: #{blip_decoder_forward.64} parent=0 // pred_check
    _
  $region7: #{blip_decoder_forward.64} parent=0 // pred_check_branch
    %13 = sbr.rel (0) target = $region9
  $region8: #{blip_decoder_forward.64} parent=0 // pred_region
    _
  $region9: #{blip_decoder_forward.64} parent=0 // pred_fallthru
    _
  // Predicated region
  $region10: #{blip_decoder_forward.64} parent=0 // pred_check
    _
  $region11: #{blip_decoder_forward.64} parent=0 // pred_check_branch
    %15 = sbr.rel (0) target = $region13
  $region12: #{blip_decoder_forward.64} parent=0 // pred_region
    _
  $region13: #{blip_decoder_forward.64} parent=0 // pred_fallthru
    _
  // Predicated region
  $region14: #{blip_decoder_forward.64} parent=0 // pred_check
    _
  $region15: #{blip_decoder_forward.64} parent=0 // pred_check_branch
    %17 = sbr.rel (0) target = $region17
  $region16: #{blip_decoder_forward.64} parent=0 // pred_region
    _
  $region17: #{blip_decoder_forward.64} parent=0 // pred_fallthru
    _
  // Predicated region
  $region18: #{blip_decoder_forward.64} parent=0 // pred_check
    _
  $region19: #{blip_decoder_forward.64} parent=0 // pred_check_branch
    %19 = sbr.rel (0) target = $region21
  $region20: #{blip_decoder_forward.64} parent=0 // pred_region
    _
  $region21: #{blip_decoder_forward.64} parent=0 // pred_fallthru
    _
  %v21 = vld [vmem:[%s0] sm:$0xff]
  %v22 = vld [vmem:[%s0 + $0x8] sm:$0xff]
  %v23 = vpack.c.bf16 %v22, %v21
  %v24 = vld [vmem:[%s1] sm:$0xf]
  %v25 = vld [vmem:[%s1 + $0x4] sm:$0xf]
  %v26 = vld [vmem:[%s1 + $0x8] sm:$0xf]
  %v27 = vld [vmem:[%s1 + $0xc] sm:$0xf]
  %v28 = vld [vmem:[%s2] sm:$0x1]
  %v30 = vlaneseq
  %v31 = vshrl.u32 %v30, 7
  %v32 = vsub.s32 0, %v31
  %v33 = vrot.slane %v28, %v32
  %v39 = vunpack.c.l.b16 %v24
  %v40 = vunpack.c.l.b16 %v25
  %v41 = vunpack.c.l.b16 %v26
  %v42 = vunpack.c.l.b16 %v27
  %v43 = vpack.c.b16 %v40, %v39
  %v44 = vpack.c.b16 %v42, %v41
  %vm47 = vcmask 261120
  %v49 = vsel %vm47, %v23, 0
  %51 = vmatprep.subr.bf16.mxu0 0
  %52 = vmatpush1.bf16.msra.mxu0 %v43
  %53 = vmatprep.subr.bf16.mxu0 0
  %54 = vmatpush1.bf16.msra.mxu0 %v44
  %55 = vmatprep.subr.bf16.mxu0 0
  %56 = vmatpush1.bf16.msra.mxu0 0
  %57 = vmatprep.subr.bf16.mxu0 0
  %58 = vmatpush1.bf16.msra.mxu0 0
  %59 = vmatprep.subr.bf16.mxu0 0
  %60 = vmatpush1.bf16.msra.mxu0 0
  %61 = vmatprep.subr.bf16.mxu0 0
  %62 = vmatpush1.bf16.msra.mxu0 0
  %63 = vmatprep.subr.bf16.mxu0 0
  %64 = vmatpush1.bf16.msra.mxu0 0
  %65 = vmatprep.subr.bf16.mxu0 0
  %66 = vmatpush1.bf16.msra.mxu0 0
  %67 = vmatprep.subr.bf16.mxu0 0
  %68 = vmatpush1.bf16.msra.mxu0 0
  %69 = vmatprep.subr.bf16.mxu0 0
  %70 = vmatpush1.bf16.msra.mxu0 0
  %71 = vmatprep.subr.bf16.mxu0 0
  %72 = vmatpush1.bf16.msra.mxu0 0
  %73 = vmatprep.subr.bf16.mxu0 0
  %74 = vmatpush1.bf16.msra.mxu0 0
  %75 = vmatprep.subr.bf16.mxu0 0
  %76 = vmatpush1.bf16.msra.mxu0 0
  %77 = vmatprep.subr.bf16.mxu0 0
  %78 = vmatpush1.bf16.msra.mxu0 0
  %79 = vmatprep.subr.bf16.mxu0 0
  %80 = vmatpush1.bf16.msra.mxu0 0
  %81 = vmatprep.subr.bf16.mxu0 0
  %82 = vmatpush1.bf16.msra.mxu0 0
  %83 = vmatprep.mubr.bf16.mxu0 0
  %84 = vmatmul.mubr.bf16.gmra.mrb[0].mxu0 %v49
  %v85 = vpop.f32.mrb[0].mxu0
  %v86 = vadd.f32 %v33, %v85
  %v87 = vpop.f32.mrb[0].mxu0
  %v88 = vpop.f32.mrb[0].mxu0
  %v89 = vadd.f32 %v33, %v88
  %v90 = vpop.f32.mrb[0].mxu0
  %91 = vdwg.mxu0
  %v92 = vmul.f32 %v86, 0.5
  %v93 = vmul.f32 %v89, 0.5
  %v94 = vmul.f32 %v86, 0.044715
  %v95 = vmul.f32 %v89, 0.044715
  %v96 = vmul.f32 %v94, %v86
  %v97 = vmul.f32 %v95, %v89
  %v98 = vmul.f32 %v96, %v86
  %v99 = vmul.f32 %v97, %v89
  %v100 = vadd.f32 %v86, %v98
  %v101 = vadd.f32 %v89, %v99
  %v102 = vmul.f32 %v100, 0.7978846
  %v103 = vmul.f32 %v101, 0.7978846
  %v104 = vtanh.pop %v102
  %v105 = vtanh.pop %v103
  %v106 = vadd.f32 %v104, 1.0
  %v107 = vadd.f32 %v105, 1.0
  %v108 = vmul.f32 %v92, %v106
  %v109 = vmul.f32 %v93, %v107
  %v110 = vsel %vm47, %v108, 0.0
  %111 = vadd.xlane.f32.xlu0 %v110
  %v112 = vpop.xlane.xlu0 %111
  %v113 = vsel %vm47, %v109, 0.0
  %114 = vadd.xlane.f32.xlu0 %v113
  %v115 = vpop.xlane.xlu0 %114
  %v116 = vrcp.pop 32.0
  %v117 = vmul.f32 %v112, %v116
  %v118 = vmul.f32 %v115, %v116
  %v119 = vsub.f32 %v108, %v117
  %v120 = vsub.f32 %v109, %v118
  %v121 = vmul.f32 %v119, %v119
  %v122 = vmul.f32 %v120, %v120
  %v123 = vsel %vm47, %v121, 0.0
  %124 = vadd.xlane.f32.xlu0 %v123
  %v125 = vpop.xlane.xlu0 %124
  %v126 = vsel %vm47, %v122, 0.0
  %127 = vadd.xlane.f32.xlu0 %v126
  %v128 = vpop.xlane.xlu0 %127
  %v129 = vmul.f32 %v125, %v116
  %v130 = vmul.f32 %v128, %v116
  %v131 = vadd.f32 %v129, 1e-12
  %v132 = vadd.f32 %v130, 1e-12
  %v133 = vrsqrt.pop %v131
  %v134 = vrsqrt.pop %v132
  %v135 = vmul.f32 %v119, %v133
  %v136 = vmul.f32 %v120, %v134
  %v137 = vld [vmem:[%s3] sm:$0x1]
  %v139 = vlaneseq
  %v140 = vshrl.u32 %v139, 7
  %v141 = vsub.s32 0, %v140
  %v142 = vrot.slane %v137, %v141
  %v144 = vmul.f32 %v135, %v142
  %v145 = vmul.f32 %v136, %v142
  %v146 = vld [vmem:[%s4] sm:$0x1]
  %v148 = vlaneseq
  %v149 = vshrl.u32 %v148, 7
  %v150 = vsub.s32 0, %v149
  %v151 = vrot.slane %v146, %v150
  %v153 = vadd.f32 %v144, %v151
  %v154 = vadd.f32 %v145, %v151
  %v155 = vpack.c.bf16 %v154, %v153
  %v157 = vunpack.c.l.b16 %v155
  %v158 = vunpack.c.h.b16 %v155
  %v159 = vpack.c.b16 %v157, %v157
  %v160 = vpack.c.b16 %v158, %v158
  %vm163 = vcmask 257024
  %164 = vst.msk [vmem:[%s5] sm:$0xf] %vm163, %v159
  %165 = vst.msk [vmem:[%s5 + $0x4] sm:$0xf] %vm163, %v160
  // Predicated region
  $region22: #{blip_decoder_forward.64} parent=0 // pred_check
    _
  $region23: #{blip_decoder_forward.64} parent=0 // pred_check_branch
    %167 = sbr.rel (0) target = $region25
  $region24: #{blip_decoder_forward.64} parent=0 // pred_region
    _
  $region25: #{blip_decoder_forward.64} parent=0 // pred_fallthru
    _
  // Predicated region
  $region26: #{blip_decoder_forward.64} parent=0 // pred_check
    _
  $region27: #{blip_decoder_forward.64} parent=0 // pred_check_branch
    %169 = sbr.rel (0) target = $region29
  $region28: #{blip_decoder_forward.64} parent=0 // pred_region
    _
  $region29: #{blip_decoder_forward.64} parent=0 // pred_fallthru
    _

// kernel: blip_decoder_forward.65
$region0: #{blip_decoder_forward.65}
  #allocation0 [shape = 'u32[]', space=smem, size = 0x4, offset = 0x4, fixed_abs, tag = 'smem constant byte address 0x4 - core index']
  #allocation1 [shape = 'u32[144,128]{1,0:T(1,128)}', space=vmem, size = 0x12000, scoped, tag = 'internal scratch']
  #allocation2 [shape = 'f32[16,1]{1,0:T(8,128)}', space=vmem, size = 0x2000, scoped, tag = 'scratch operand']
  #allocation3 [shape = 'f32[16,1]{1,0:T(8,128)}', space=vmem, size = 0x2000, scoped, tag = 'scratch operand']
  #allocation4 [shape = 'f32[16,1]{1,0:T(8,128)}', space=vmem, size = 0x2000, scoped, tag = 'scratch operand']
  #allocation5 [shape = 'f32[16,1]{1,0:T(8,128)}', space=vmem, size = 0x2000, scoped, tag = 'scratch operand']
  %s0 = inlined_call_operand.vmem [shape: bf16[16,32], index: 0, kind: input, shape index: {}]
  %s1 = inlined_call_operand.vmem [shape: bf16[32,128], index: 1, kind: input, shape index: {}]
  %s2 = inlined_call_operand.vmem [shape: f32[1,128], index: 2, kind: input, shape index: {}]
  %s3 = inlined_call_operand.vmem [shape: s32[16,1], index: 3, kind: input, shape index: {}]
  %s4 = inlined_call_operand.vmem [shape: f32[16,1], index: 4, kind: output, shape index: {0}]
  %s5 = inlined_call_operand.vmem [shape: f32[16,1], index: 5, kind: output, shape index: {1}]
  %6 = xla_tuple %s4, %s5
  %s7 = sld [smem:[#allocation0]]
  $region42: #{blip_decoder_forward.65} parent=0
    _
  %s9 = ssub.s32 1, %s7
  %s10 = scalar_select 0, %s9, %s7
  // Predicated region
  $region2: #{blip_decoder_forward.65} parent=0 // pred_check
    _
  $region3: #{blip_decoder_forward.65} parent=0 // pred_check_branch
    %12 = sbr.rel (0) target = $region5
  $region4: #{blip_decoder_forward.65} parent=0 // pred_region
    _
  $region5: #{blip_decoder_forward.65} parent=0 // pred_fallthru
    _
  // Predicated region
  $region6: #{blip_decoder_forward.65} parent=0 // pred_check
    _
  $region7: #{blip_decoder_forward.65} parent=0 // pred_check_branch
    %14 = sbr.rel (0) target = $region9
  $region8: #{blip_decoder_forward.65} parent=0 // pred_region
    _
  $region9: #{blip_decoder_forward.65} parent=0 // pred_fallthru
    _
  // Predicated region
  $region10: #{blip_decoder_forward.65} parent=0 // pred_check
    _
  $region11: #{blip_decoder_forward.65} parent=0 // pred_check_branch
    %16 = sbr.rel (0) target = $region13
  $region12: #{blip_decoder_forward.65} parent=0 // pred_region
    _
  $region13: #{blip_decoder_forward.65} parent=0 // pred_fallthru
    _
  // Predicated region
  $region14: #{blip_decoder_forward.65} parent=0 // pred_check
    _
  $region15: #{blip_decoder_forward.65} parent=0 // pred_check_branch
    %18 = sbr.rel (0) target = $region17
  $region16: #{blip_decoder_forward.65} parent=0 // pred_region
    _
  $region17: #{blip_decoder_forward.65} parent=0 // pred_fallthru
    _
  %p20 = scmp.eq.s32.totalorder 0, 0
  // Predicated region
  $region18: #{blip_decoder_forward.65} parent=0 // pred_check
    %p21 = pneg %p20
  $region19: #{blip_decoder_forward.65} parent=0 // pred_check_branch
    %23 = sbr.rel (%p21) target = $region21
  $region20: #{blip_decoder_forward.65} parent=0 // pred_region
    %vm24 = vcmask 7168
    %25 = vst.msk [vmem:[#allocation2] sm:$0xff] %vm24, -1e+30
    %26 = vst.msk [vmem:[#allocation2 + $0x8] sm:$0xff] %vm24, -1e+30
    %27 = vst.msk [vmem:[#allocation3] sm:$0xff] %vm24, 0.0
    %28 = vst.msk [vmem:[#allocation3 + $0x8] sm:$0xff] %vm24, 0.0
    %29 = vst.msk [vmem:[#allocation4] sm:$0xff] %vm24, 0.0
    %30 = vst.msk [vmem:[#allocation4 + $0x8] sm:$0xff] %vm24, 0.0
    %31 = vst.msk [vmem:[#allocation5] sm:$0xff] %vm24, 0.0
    %32 = vst.msk [vmem:[#allocation5 + $0x8] sm:$0xff] %vm24, 0.0
  $region21: #{blip_decoder_forward.65} parent=0 // pred_fallthru
    _
  %v33 = vld [vmem:[%s0] sm:$0xf]
  %v34 = vld [vmem:[%s0 + $0x4] sm:$0xf]
  %v35 = vld [vmem:[%s1] sm:$0xf]
  %v36 = vld [vmem:[%s1 + $0x4] sm:$0xf]
  %v37 = vld [vmem:[%s1 + $0x8] sm:$0xf]
  %v38 = vld [vmem:[%s1 + $0xc] sm:$0xf]
  %v39 = vld [vmem:[%s2] sm:$0x1]
  %v41 = vlaneseq
  %v42 = vshrl.u32 %v41, 7
  %v43 = vsub.s32 0, %v42
  %v44 = vrot.slane %v39, %v43
  %v48 = vunpack.c.l.b16 %v33
  %v49 = vunpack.c.l.b16 %v34
  %v50 = vpack.c.b16 %v49, %v48
  %v55 = vunpack.c.l.b16 %v35
  %v56 = vunpack.c.l.b16 %v36
  %v57 = vunpack.c.l.b16 %v37
  %v58 = vunpack.c.l.b16 %v38
  %v59 = vpack.c.b16 %v56, %v55
  %v60 = vpack.c.b16 %v58, %v57
  %vm63 = vcmask 261120
  %v65 = vsel %vm63, %v50, 0
  %67 = vmatprep.subr.bf16.mxu0 0
  %68 = vmatpush1.bf16.msra.mxu0 %v59
  %69 = vmatprep.subr.bf16.mxu0 0
  %70 = vmatpush1.bf16.msra.mxu0 %v60
  %71 = vmatprep.subr.bf16.mxu0 0
  %72 = vmatpush1.bf16.msra.mxu0 0
  %73 = vmatprep.subr.bf16.mxu0 0
  %74 = vmatpush1.bf16.msra.mxu0 0
  %75 = vmatprep.subr.bf16.mxu0 0
  %76 = vmatpush1.bf16.msra.mxu0 0
  %77 = vmatprep.subr.bf16.mxu0 0
  %78 = vmatpush1.bf16.msra.mxu0 0
  %79 = vmatprep.subr.bf16.mxu0 0
  %80 = vmatpush1.bf16.msra.mxu0 0
  %81 = vmatprep.subr.bf16.mxu0 0
  %82 = vmatpush1.bf16.msra.mxu0 0
  %83 = vmatprep.subr.bf16.mxu0 0
  %84 = vmatpush1.bf16.msra.mxu0 0
  %85 = vmatprep.subr.bf16.mxu0 0
  %86 = vmatpush1.bf16.msra.mxu0 0
  %87 = vmatprep.subr.bf16.mxu0 0
  %88 = vmatpush1.bf16.msra.mxu0 0
  %89 = vmatprep.subr.bf16.mxu0 0
  %90 = vmatpush1.bf16.msra.mxu0 0
  %91 = vmatprep.subr.bf16.mxu0 0
  %92 = vmatpush1.bf16.msra.mxu0 0
  %93 = vmatprep.subr.bf16.mxu0 0
  %94 = vmatpush1.bf16.msra.mxu0 0
  %95 = vmatprep.subr.bf16.mxu0 0
  %96 = vmatpush1.bf16.msra.mxu0 0
  %97 = vmatprep.subr.bf16.mxu0 0
  %98 = vmatpush1.bf16.msra.mxu0 0
  %99 = vmatprep.mubr.bf16.mxu0 0
  %100 = vmatmul.mubr.bf16.gmra.mrb[0].mxu0 %v65
  %v101 = vpop.f32.mrb[0].mxu0
  %v102 = vadd.f32 %v44, %v101
  %v103 = vpop.f32.mrb[0].mxu0
  %v104 = vpop.f32.mrb[0].mxu0
  %v105 = vadd.f32 %v44, %v104
  %v106 = vpop.f32.mrb[0].mxu0
  %107 = vdwg.mxu0
  %v108 = vld [vmem:[%s3] sm:$0xff]
  %v109 = vld [vmem:[%s3 + $0x8] sm:$0xff]
  %v110 = vlaneseq
  %v111 = vand.u32 %v110, 127
  %s112 = smul.u32 0, 128
  %v113 = vstv %s112
  %v114 = vadd.s32 %v111, %v113
  %vm115 = vcmp.lt.s32.totalorder %v114, 64
  %v116 = vsel %vm115, %v102, -1e+30
  %v117 = vsel %vm115, %v105, -1e+30
  %v118 = vld [vmem:[#allocation5] sm:$0xff]
  %v119 = vld [vmem:[#allocation5 + $0x8] sm:$0xff]
  %120 = vset.pattern.permute.xlu0 0
  %121 = vperm.xlu0 %120, %v108
  %v122 = vpop.permute.xlu0 %121
  %123 = vset.pattern.permute.xlu0 0
  %124 = vperm.xlu0 %123, %v109
  %v125 = vpop.permute.xlu0 %124
  %vm126 = vcmp.eq.s32.totalorder %v114, %v122
  %vm127 = vcmp.eq.s32.totalorder %v114, %v125
  %v128 = vsel %vm126, %v102, 0.0
  %v129 = vsel %vm127, %v105, 0.0
  %130 = vadd.xlane.f32.xlu0 %v128
  %v131 = vpop.xlane.xlu0 %130
  %132 = vadd.xlane.f32.xlu0 %v129
  %v133 = vpop.xlane.xlu0 %132
  %v134 = vadd.f32 %v118, %v131
  %v135 = vadd.f32 %v119, %v133
  %vm136 = vcmask 7168
  %137 = vst.msk [vmem:[#allocation5] sm:$0xff] %vm136, %v134
  %138 = vst.msk [vmem:[#allocation5 + $0x8] sm:$0xff] %vm136, %v135
  %v139 = vld [vmem:[#allocation4] sm:$0xff]
  %v140 = vld [vmem:[#allocation4 + $0x8] sm:$0xff]
  %v141 = vsel %vm115, %v102, 0.0
  %v142 = vsel %vm115, %v105, 0.0
  %143 = vadd.xlane.f32.xlu0 %v141
  %v144 = vpop.xlane.xlu0 %143
  %145 = vadd.xlane.f32.xlu0 %v142
  %v146 = vpop.xlane.xlu0 %145
  %v147 = vadd.f32 %v139, %v144
  %v148 = vadd.f32 %v140, %v146
  %149 = vst.msk [vmem:[#allocation4] sm:$0xff] %vm136, %v147
  %150 = vst.msk [vmem:[#allocation4 + $0x8] sm:$0xff] %vm136, %v148
  %v151 = vld [vmem:[#allocation2] sm:$0xff]
  %v152 = vld [vmem:[#allocation2 + $0x8] sm:$0xff]
  %153 = vmax.xlane.f32.xlu0 %v116
  %v154 = vpop.xlane.xlu0 %153
  %155 = vmax.xlane.f32.xlu0 %v117
  %v156 = vpop.xlane.xlu0 %155
  %v157 = vmax.f32 %v151, %v154
  %v158 = vmax.f32 %v152, %v156
  %v159 = vld [vmem:[#allocation3] sm:$0xff]
  %v160 = vld [vmem:[#allocation3 + $0x8] sm:$0xff]
  %v161 = vsub.f32 %v151, %v157
  %v162 = vsub.f32 %v152, %v158
  %v163 = vmul.f32 %v161, 1.442695
  %v164 = vpow.pop %v163
  %v165 = vmul.f32 %v162, 1.442695
  %v166 = vpow.pop %v165
  %v167 = vmul.f32 %v159, %v164
  %v168 = vmul.f32 %v160, %v166
  %170 = vset.pattern.permute.xlu0 0
  %171 = vperm.xlu0 %170, %v157
  %v172 = vpop.permute.xlu0 %171
  %175 = vset.pattern.permute.xlu0 0
  %176 = vperm.xlu0 %175, %v158
  %v177 = vpop.permute.xlu0 %176
  %v179 = vsub.f32 %v116, %v172
  %v180 = vsub.f32 %v117, %v177
  %v181 = vmul.f32 %v179, 1.442695
  %v182 = vpow.pop %v181
  %v183 = vmul.f32 %v180, 1.442695
  %v184 = vpow.pop %v183
  %185 = vadd.xlane.f32.xlu0 %v182
  %v186 = vpop.xlane.xlu0 %185
  %187 = vadd.xlane.f32.xlu0 %v184
  %v188 = vpop.xlane.xlu0 %187
  %v189 = vadd.f32 %v167, %v186
  %v190 = vadd.f32 %v168, %v188
  %191 = vst.msk [vmem:[#allocation3] sm:$0xff] %vm136, %v189
  %192 = vst.msk [vmem:[#allocation3 + $0x8] sm:$0xff] %vm136, %v190
  %193 = vst.msk [vmem:[#allocation2] sm:$0xff] %vm136, %v157
  %194 = vst.msk [vmem:[#allocation2 + $0x8] sm:$0xff] %vm136, %v158
  // Predicated region
  $region22: #{blip_decoder_forward.65} parent=0 // pred_check
    %p195 = pneg %p20
  $region23: #{blip_decoder_forward.65} parent=0 // pred_check_branch
    %197 = sbr.rel (%p195) target = $region25
  $region24: #{blip_decoder_forward.65} parent=0 // pred_region
    %v198 = vld [vmem:[#allocation2] sm:$0xff]
    %v199 = vld [vmem:[#allocation2 + $0x8] sm:$0xff]
    %v200 = vld [vmem:[#allocation3] sm:$0xff]
    %v201 = vld [vmem:[#allocation3 + $0x8] sm:$0xff]
    %v202 = vlog2.pop %v200
    %v203 = vmul.f32 %v202, 0.6931472
    %v204 = vlog2.pop %v201
    %v205 = vmul.f32 %v204, 0.6931472
    %v206 = vadd.f32 %v198, %v203
    %v207 = vadd.f32 %v199, %v205
    %v208 = vld [vmem:[#allocation5] sm:$0xff]
    %v209 = vld [vmem:[#allocation5 + $0x8] sm:$0xff]
    %v210 = vsub.f32 %v206, %v208
    %v211 = vsub.f32 %v207, %v209
    %v212 = vld [vmem:[#allocation4] sm:$0xff]
    %v213 = vld [vmem:[#allocation4 + $0x8] sm:$0xff]
    %v214 = vmul.f32 %v212, 0.015625
    %v215 = vmul.f32 %v213, 0.015625
    %v216 = vsub.f32 %v206, %v214
    %v217 = vsub.f32 %v207, %v215
    %v218 = vmul.f32 %v210, 0.9
    %v219 = vmul.f32 %v211, 0.9
    %v220 = vmul.f32 %v216, 0.1
    %v221 = vmul.f32 %v217, 0.1
    %v222 = vadd.f32 %v218, %v220
    %v223 = vadd.f32 %v219, %v221
    %vm224 = vcmp.ne.s32.totalorder %v108, 4294967196
    %vm225 = vcmp.ne.s32.totalorder %v109, 4294967196
    %v226 = vsel %vm224, 1, 0
    %v227 = vsel %vm225, 1, 0
    %v228 = vcvt.s32.f32 %v226
    %v229 = vcvt.s32.f32 %v227
    %v230 = vmul.f32 %v222, %v228
    %v231 = vmul.f32 %v223, %v229
    %232 = vst.msk [vmem:[%s4] sm:$0xff] %vm136, %v230
    %233 = vst.msk [vmem:[%s4 + $0x8] sm:$0xff] %vm136, %v231
    %234 = vst.msk [vmem:[%s5] sm:$0xff] %vm136, %v228
    %235 = vst.msk [vmem:[%s5 + $0x8] sm:$0xff] %vm136, %v229
  $region25: #{blip_decoder_forward.65} parent=0 // pred_fallthru
    _
  // Predicated region
  $region26: #{blip_decoder_forward.65} parent=0 // pred_check
    _
  $region27: #{blip_decoder_forward.65} parent=0 // pred_check_branch
    %237 = sbr.rel (0) target = $region29
  $region28: #{blip_decoder_forward.65} parent=0 // pred_region
    _
  $region29: #{blip_decoder_forward.65} parent=0 // pred_fallthru
    _
  // Predicated region
  $region30: #{blip_decoder_forward.65} parent=0 // pred_check
    _
  $region31: #{blip_decoder_forward.65} parent=0 // pred_check_branch
    %239 = sbr.rel (0) target = $region33
  $region32: #{blip_decoder_forward.65} parent=0 // pred_region
    _
  $region33: #{blip_decoder_forward.65} parent=0 // pred_fallthru
    _
  // Predicated region
  $region34: #{blip_decoder_forward.65} parent=0 // pred_check
    _
  $region35: #{blip_decoder_forward.65} parent=0 // pred_check_branch
    %241 = sbr.rel (0) target = $region37
  $region36: #{blip_decoder_forward.65} parent=0 // pred_region
    _
  $region37: #{blip_decoder_forward.65} parent=0 // pred_fallthru
    _
  // Predicated region
  $region38: #{blip_decoder_forward.65} parent=0 // pred_check
    _
  $region39: #{blip_decoder_forward.65} parent=0 // pred_check_branch
    %243 = sbr.rel (0) target = $region41
  $region40: #{blip_decoder_forward.65} parent=0 // pred_region
    _
  $region41: #{blip_decoder_forward.65} parent=0 // pred_fallthru
    _

</llo_original>
